<compile_context>
chip_gen: v6e
topology: v6e:2x2x1
jax: 0.10.0
libtpu: 0.0.40
codegen_flags: <defaults>
</compile_context>

<pallas_src>
import functools

import numpy as np
import jax
import jax.numpy as jnp
from jax.experimental import pallas as pl
from jax.experimental.pallas import tpu as pltpu


# ---------------------------------------------------------------------------
# Pallas kernel: stride-1 kxk conv (input pre-padded) + folded BN (+ReLU)
# Single im2col matmul: patches (Ho*Wo, k*k*Cin) @ W (k*k*Cin, Cout) on the MXU.
# ---------------------------------------------------------------------------
def _conv_bn_kernel(x_ref, w_ref, s_ref, b_ref, o_ref, *, k, Ho, Wo, relu):
    xv = x_ref[0]                           # (Hp, Wp, Cin), bf16
    cin = xv.shape[-1]
    if k == 1:
        patches = xv[:Ho, :Wo, :].reshape(Ho * Wo, cin)
    else:
        cols = [xv[kh:kh + Ho, kw:kw + Wo, :]
                for kh in range(k) for kw in range(k)]
        patches = jnp.concatenate(cols, axis=-1).reshape(Ho * Wo, k * k * cin)
    # bf16 x bf16 -> fp32 accumulate on the MXU.
    y = jnp.dot(patches, w_ref[...], preferred_element_type=jnp.float32)
    y = y * s_ref[...] + b_ref[...]         # fp32 epilogue
    if relu:
        y = jnp.maximum(y, 0.0)
    o_ref[0] = y                            # contiguous (Ho*Wo, Cout) slab store


def _conv_pallas(xp, w_flat, scale, bias, *, k, Ho, Wo, relu):
    """xp: (N, Hp, Wp, Cin) bf16 (pre-padded); w_flat: (k*k*Cin, Cout) bf16."""
    N, Hp, Wp, Cin = xp.shape
    Kdim, Cout = w_flat.shape
    kernel = functools.partial(_conv_bn_kernel, k=k, Ho=Ho, Wo=Wo, relu=relu)
    out = pl.pallas_call(
        kernel,
        out_shape=jax.ShapeDtypeStruct((N, Ho * Wo, Cout), jnp.float32),
        grid=(N,),
        in_specs=[
            pl.BlockSpec((1, Hp, Wp, Cin), lambda n: (n, 0, 0, 0)),
            pl.BlockSpec((Kdim, Cout), lambda n: (0, 0)),
            pl.BlockSpec((1, Cout), lambda n: (0, 0)),
            pl.BlockSpec((1, Cout), lambda n: (0, 0)),
        ],
        out_specs=pl.BlockSpec((1, Ho * Wo, Cout), lambda n: (n, 0, 0)),
        compiler_params=pltpu.CompilerParams(dimension_semantics=("parallel",)),
    )(xp, w_flat, scale.reshape(1, -1), bias.reshape(1, -1))
    return out.reshape(N, Ho, Wo, Cout)


# ---------------------------------------------------------------------------
# Pallas kernel: fused router p1 (3x3) + p0 (1x1) on the SAME input (one DMA).
# ---------------------------------------------------------------------------
def _router_dual_kernel(x_ref, w1_ref, s1_ref, b1_ref, w0_ref, s0_ref, b0_ref,
                        o1_ref, o0_ref, *, Ho, Wo):
    xv = x_ref[0]                           # (Ho+2, Wo+2, Cin), bf16
    cin = xv.shape[-1]
    cols = [xv[kh:kh + Ho, kw:kw + Wo, :] for kh in range(3) for kw in range(3)]
    patches = jnp.concatenate(cols, axis=-1).reshape(Ho * Wo, 9 * cin)
    y1 = jnp.dot(patches, w1_ref[...], preferred_element_type=jnp.float32)
    o1_ref[0] = y1 * s1_ref[...] + b1_ref[...]
    center = cols[4].reshape(Ho * Wo, cin)  # center tap == 1x1 conv input
    y0 = jnp.dot(center, w0_ref[...], preferred_element_type=jnp.float32)
    o0_ref[0] = y0 * s0_ref[...] + b0_ref[...]


def router_dual_conv(p1, p0, x, *, beta1, beta0):
    """3x3 conv (p1) and 1x1 conv (p0) on x, betas folded into BN scale/bias."""
    N, H, W, Cin = x.shape
    C1 = p1["w"].shape[-1]
    C0 = p0["w"].shape[-1]
    xp = jnp.pad(x, ((0, 0), (1, 1), (1, 1), (0, 0))).astype(jnp.bfloat16)
    w1 = p1["w"].reshape(9 * Cin, C1).astype(jnp.bfloat16)
    w0 = p0["w"].reshape(Cin, C0).astype(jnp.bfloat16)
    s1 = (p1["scale"] * beta1).reshape(1, -1)
    b1 = (p1["bias"] * beta1).reshape(1, -1)
    s0 = (p0["scale"] * beta0).reshape(1, -1)
    b0 = (p0["bias"] * beta0).reshape(1, -1)
    kernel = functools.partial(_router_dual_kernel, Ho=H, Wo=W)
    o1, o0 = pl.pallas_call(
        kernel,
        out_shape=(jax.ShapeDtypeStruct((N, H * W, C1), jnp.float32),
                   jax.ShapeDtypeStruct((N, H * W, C0), jnp.float32)),
        grid=(N,),
        in_specs=[
            pl.BlockSpec((1, H + 2, W + 2, Cin), lambda n: (n, 0, 0, 0)),
            pl.BlockSpec((9 * Cin, C1), lambda n: (0, 0)),
            pl.BlockSpec((1, C1), lambda n: (0, 0)),
            pl.BlockSpec((1, C1), lambda n: (0, 0)),
            pl.BlockSpec((Cin, C0), lambda n: (0, 0)),
            pl.BlockSpec((1, C0), lambda n: (0, 0)),
            pl.BlockSpec((1, C0), lambda n: (0, 0)),
        ],
        out_specs=(pl.BlockSpec((1, H * W, C1), lambda n: (n, 0, 0)),
                   pl.BlockSpec((1, H * W, C0), lambda n: (n, 0, 0))),
        compiler_params=pltpu.CompilerParams(dimension_semantics=("parallel",)),
    )(xp, w1, s1, b1, w0, s0, b0)
    return o1.reshape(N, H, W, C1), o0.reshape(N, H, W, C0)


# ---------------------------------------------------------------------------
# Conv + BN wrapper (stride 1 or 2).  Stride-2 3x3 == 2x2 stride-1 conv on a
# space-to-depth input (exactly equivalent; missing taps get zero weights).
# ---------------------------------------------------------------------------
def _space_to_depth_weights(w):
    """(3,3,Cin,Cout) stride-2 weights -> (2,2,4*Cin,Cout) stride-1 weights."""
    Cin, Cout = w.shape[2], w.shape[3]
    w2 = jnp.zeros((2, 2, 2, 2, Cin, Cout), w.dtype)     # (a, b, dy, dx, ci, co)
    w2 = w2.at[0, 0].set(w[0:2, 0:2])
    w2 = w2.at[0, 1, :, 0].set(w[0:2, 2])
    w2 = w2.at[1, 0, 0, :].set(w[2, 0:2])
    w2 = w2.at[1, 1, 0, 0].set(w[2, 2])
    return w2.reshape(2, 2, 4 * Cin, Cout)


def conv_bn(p, x, *, stride=1, relu=False, out_scale=None):
    """Conv(kxk, pad=(k-1)//2, bias=False) + BN (+ReLU) on NHWC input.

    `out_scale` (routing beta) is folded into the BN scale/bias.
    """
    w, scale, bias = p["w"], p["scale"], p["bias"]
    if out_scale is not None:
        scale = scale * out_scale
        bias = bias * out_scale
    k = w.shape[0]
    N, H, W, Cin = x.shape
    Cout = w.shape[-1]

    if stride == 2:
        assert k == 3 and H % 2 == 0 and W % 2 == 0
        xp = jnp.pad(x, ((0, 0), (1, 1), (1, 1), (0, 0))).astype(jnp.bfloat16)
        Hp, Wp = H + 2, W + 2
        z = xp.reshape(N, Hp // 2, 2, Wp // 2, 2, Cin)
        z = z.transpose(0, 1, 3, 2, 4, 5).reshape(N, Hp // 2, Wp // 2, 4 * Cin)
        w2 = _space_to_depth_weights(w)
        wf = w2.reshape(4 * 4 * Cin, Cout).astype(jnp.bfloat16)
        return _conv_pallas(z, wf, scale, bias, k=2, Ho=H // 2, Wo=W // 2, relu=relu)

    pad = (k - 1) // 2
    xp = x
    if pad:
        xp = jnp.pad(x, ((0, 0), (pad, pad), (pad, pad), (0, 0)))
    xp = xp.astype(jnp.bfloat16)
    wf = w.reshape(k * k * Cin, Cout).astype(jnp.bfloat16)
    return _conv_pallas(xp, wf, scale, bias, k=k, Ho=H, Wo=W, relu=relu)


# ---------------------------------------------------------------------------
# Bilinear 2x upsample, align_corners=False  (matches F.interpolate semantics)
# ---------------------------------------------------------------------------
def upsample2x_bilinear(x):  # NHWC
    def up_axis(a, axis):
        n = a.shape[axis]
        o = jnp.arange(2 * n, dtype=jnp.float32)
        src = jnp.maximum((o + 0.5) * 0.5 - 0.5, 0.0)
        lo = jnp.floor(src).astype(jnp.int32)
        hi = jnp.minimum(lo + 1, n - 1)
        lam = src - lo.astype(jnp.float32)
        al = jnp.take(a, lo, axis=axis)
        ah = jnp.take(a, hi, axis=axis)
        shp = [1] * a.ndim
        shp[axis] = 2 * n
        lam = lam.reshape(shp)
        return al * (1.0 - lam) + ah * lam

    x = up_axis(x, 1)
    x = up_axis(x, 2)
    return x


# ---------------------------------------------------------------------------
# Router forward (betas folded into conv scale/bias; p0 commuted after the 1x1)
# ---------------------------------------------------------------------------
def router_forward(rp, x, betas_row, *, ind, num_strides):
    h0 = h2 = None
    if ind > 0:
        # p1 (3x3) and p0 (1x1) share one pallas_call / one input DMA.
        h1, h0_low = router_dual_conv(rp["p1"], rp["p0"], x,
                                      beta1=betas_row[1], beta0=betas_row[0])
        # upsample(conv1x1(x)) == conv1x1(upsample(x))  (both linear)
        h0 = upsample2x_bilinear(h0_low)
    else:
        h1 = conv_bn(rp["p1"], x, stride=1, relu=False, out_scale=betas_row[1])
    if ind < num_strides - 1:
        h2 = conv_bn(rp["p2"], x, stride=2, relu=False, out_scale=betas_row[2])
    return h0, h1, h2


# ---------------------------------------------------------------------------
# Parameter construction (deterministic, synthetic)
# ---------------------------------------------------------------------------
def init_conv_bn(key, k, cin, cout):
    kw_, kg, kb = jax.random.split(key, 3)
    w = 0.05 * jax.random.normal(kw_, (k, k, cin, cout), jnp.float32)
    gamma = 1.0 + 0.01 * jax.random.normal(kg, (cout,), jnp.float32)
    beta = 0.01 * jax.random.normal(kb, (cout,), jnp.float32)
    eps = 1e-5
    scale = gamma / jnp.sqrt(1.0 + eps)   # running_var = 1
    bias = beta                            # running_mean = 0
    return {"w": w, "scale": scale, "bias": bias}


def init_params(key, cfg):
    f, nb, nl, ns = cfg["f"], cfg["num_blocks"], cfg["num_layers"], cfg["num_strides"]
    keys = iter(jax.random.split(key, 128))
    nk = lambda: next(keys)

    p = {}
    p["stem0"] = init_conv_bn(nk(), 3, 3, 64)
    p["stem1"] = init_conv_bn(nk(), 3, 64, 64)
    p["stem2"] = init_conv_bn(nk(), 3, 64, f * 4 * nb)
    p["reduce1"] = init_conv_bn(nk(), 3, f * 4 * nb, f * 4)

    routers = []
    for l in range(1, nl + 1):
        for h in range(min(ns, l + 1)):
            C = f * (2 ** (h + 2))
            if h < l:
                rp = {}
                if h > 0:
                    rp["p0"] = init_conv_bn(nk(), 1, C * nb, C // 2)
                rp["p1"] = init_conv_bn(nk(), 3, C * nb, C)
                if h < ns - 1:
                    rp["p2"] = init_conv_bn(nk(), 3, C * nb, C * 2)
                routers.append(rp)
    p["routers"] = routers

    # arch alphas (tie_cell=True).  TODO(synk): PRIMITIVES list not provided; use 8 ops.
    k_alpha = sum(2 + i for i in range(nb))
    p["arch_alphas"] = jnp.ones((k_alpha, 8), jnp.float32)

    # arch betas (same construction as init_alphas)
    m = sum(min(l + 1, ns) for l in range(nl))
    bw = np.ones((m, 3), np.float32)
    top_inds, btm_inds, start = [], [], 0
    for l in range(nl):
        top_inds.append(start)
        if l + 1 < ns:
            start += l + 1
        else:
            start += ns
            btm_inds.append(start - 1)
    bw[top_inds, 0] = -50.0
    if btm_inds:
        bw[btm_inds, 2] = -50.0
    p["arch_betas"] = jnp.asarray(bw)
    return p


# ---------------------------------------------------------------------------
# AutoDeepLab forward
# ---------------------------------------------------------------------------
def autodeeplab_forward(params, images_nchw, cfg):
    f, nb, nl, ns = cfg["f"], cfg["num_blocks"], cfg["num_layers"], cfg["num_strides"]

    x = jnp.transpose(images_nchw, (0, 2, 3, 1))  # NCHW -> NHWC

    # scores()
    alphas = jax.nn.softmax(params["arch_alphas"], axis=-1)  # unused (see Cell TODO)
    betas = jax.nn.softmax(params["arch_betas"], axis=-1)

    # stem
    x = conv_bn(params["stem0"], x, stride=2, relu=True)
    x = conv_bn(params["stem1"], x, stride=1, relu=True)
    features = conv_bn(params["stem2"], x, stride=2, relu=False)

    hidden_states = [features]
    inputs_1 = [conv_bn(params["reduce1"], features, stride=1, relu=False)]

    router_ind = 0
    for l in range(nl):
        num_scales = min(l + 2, ns)
        inputs_0 = [0.0] * num_scales
        for i, hs in enumerate(hidden_states):
            rp = params["routers"][router_ind]
            # hidden_states[i] lives at scale i, so the router index `ind` == i.
            h0, h1, h2 = router_forward(rp, hs, betas[router_ind],
                                        ind=i, num_strides=ns)
            if i > 0:
                inputs_0[i - 1] = inputs_0[i - 1] + h0   # beta already folded
            inputs_0[i] = inputs_0[i] + h1
            if i < ns - 1:
                inputs_0[i + 1] = inputs_0[i + 1] + h2
            router_ind += 1

        new_hidden = []
        for i, s0 in enumerate(inputs_0):
            s1 = inputs_1[i] if i < len(inputs_1) else 0.0
            # TODO(synk): `Cell` (DARTS mixed-op cell weighted by `alphas`) is not defined
            # in the reference source; placeholder keeps channel counts consistent
            # (C * num_blocks) so downstream routers see the correct shapes.
            h = s0 + s1
            new_hidden.append(jnp.concatenate([h] * nb, axis=-1))
        hidden_states = new_hidden
        inputs_1 = inputs_0

    # TODO(synk): build_decoder(cfg) / decoder loss not provided; return multi-scale hidden states.
    return hidden_states


# ---------------------------------------------------------------------------
if __name__ == "__main__":
    cfg = {"f": 4, "num_blocks": 2, "num_layers": 2, "num_strides": 4}

    key = jax.random.PRNGKey(0)
    params = init_params(key, cfg)

    img_key = jax.random.fold_in(key, 1234)
    images = jax.random.normal(img_key, (2, 3, 32, 32), jnp.float32)  # NCHW

    fwd = jax.jit(lambda p, im: autodeeplab_forward(p, im, cfg))
    outs = fwd(params, images)
    outs = jax.block_until_ready(outs)

    # sanity: expected multi-scale hidden states (channels = f*2^(h+2)*num_blocks)
    expected = [(2, 8, 8, 32), (2, 4, 4, 64), (2, 2, 2, 128)]
    assert [tuple(o.shape) for o in outs] == expected, [o.shape for o in outs]
    assert all(bool(jnp.all(jnp.isfinite(o))) for o in outs)

    print("KERNEL_OK")
</pallas_src>

<mosaic_0001>
module attributes {stable_mosaic.version = 11 : i64} {
  func.func @_conv_bn_kernel(%arg0: i32, %arg1: memref<1x17x17x12xbf16, #tpu.memory_space<vmem>>, %arg2: memref<48x64xbf16, #tpu.memory_space<vmem>>, %arg3: memref<1x64xf32, #tpu.memory_space<vmem>>, %arg4: memref<1x64xf32, #tpu.memory_space<vmem>>, %arg5: memref<1x256x64xf32, #tpu.memory_space<vmem>>) attributes {dimension_semantics = [#tpu.dimension_semantics<parallel>], iteration_bounds = array<i64: 2>, scalar_prefetch = 0 : i64, scratch_operands = 0 : i64, tpu.core_type = #tpu.core_type<tc>, window_params = [{transform_indices = @transform_0, window_bounds = array<i64: 1, 17, 17, 12>}, {pipeline_mode = #tpu.pipeline_mode<synchronous>, transform_indices = @transform_1, window_bounds = array<i64: 48, 64>}, {pipeline_mode = #tpu.pipeline_mode<synchronous>, transform_indices = @transform_2, window_bounds = array<i64: 1, 64>}, {pipeline_mode = #tpu.pipeline_mode<synchronous>, transform_indices = @transform_3, window_bounds = array<i64: 1, 64>}, {transform_indices = @transform_4, window_bounds = array<i64: 1, 256, 64>}]} {
    %c0 = arith.constant 0 : index
    %c0_0 = arith.constant 0 : index
    %c0_1 = arith.constant 0 : index
    %c0_2 = arith.constant 0 : index
    %0 = vector.load %arg1[%c0, %c0_0, %c0_1, %c0_2] : memref<1x17x17x12xbf16, #tpu.memory_space<vmem>>, vector<1x17x17x12xbf16>
    %1 = vector.shape_cast %0 : vector<1x17x17x12xbf16> to vector<17x17x12xbf16>
    %2 = vector.extract_strided_slice %1 {offsets = [0, 0, 0], sizes = [16, 16, 12], strides = [1, 1, 1]} : vector<17x17x12xbf16> to vector<16x16x12xbf16>
    %3 = vector.extract_strided_slice %1 {offsets = [0, 1, 0], sizes = [16, 16, 12], strides = [1, 1, 1]} : vector<17x17x12xbf16> to vector<16x16x12xbf16>
    %4 = vector.extract_strided_slice %1 {offsets = [1, 0, 0], sizes = [16, 16, 12], strides = [1, 1, 1]} : vector<17x17x12xbf16> to vector<16x16x12xbf16>
    %5 = vector.extract_strided_slice %1 {offsets = [1, 1, 0], sizes = [16, 16, 12], strides = [1, 1, 1]} : vector<17x17x12xbf16> to vector<16x16x12xbf16>
    %6 = tpu.concatenate %2, %3, %4, %5 in 2 : vector<16x16x12xbf16>, vector<16x16x12xbf16>, vector<16x16x12xbf16>, vector<16x16x12xbf16> -> vector<16x16x48xbf16>
    %7 = vector.shape_cast %6 : vector<16x16x48xbf16> to vector<256x48xbf16>
    %c0_3 = arith.constant 0 : index
    %c0_4 = arith.constant 0 : index
    %8 = vector.load %arg2[%c0_3, %c0_4] : memref<48x64xbf16, #tpu.memory_space<vmem>>, vector<48x64xbf16>
    %cst = arith.constant dense<0.000000e+00> : vector<256x64xf32>
    %9 = tpu.matmul %7, %8, %cst {dimension_numbers = #tpu.dot_dimension_numbers<[1], [0], [0], [1], [0, 0, 1, 1], [], []>} : vector<256x48xbf16>, vector<48x64xbf16>, vector<256x64xf32> -> vector<256x64xf32>
    %c0_5 = arith.constant 0 : index
    %c0_6 = arith.constant 0 : index
    %10 = vector.load %arg3[%c0_5, %c0_6] : memref<1x64xf32, #tpu.memory_space<vmem>>, vector<1x64xf32>
    %11 = vector.broadcast %10 : vector<1x64xf32> to vector<256x64xf32>
    %12 = arith.mulf %9, %11 : vector<256x64xf32>
    %c0_7 = arith.constant 0 : index
    %c0_8 = arith.constant 0 : index
    %13 = vector.load %arg4[%c0_7, %c0_8] : memref<1x64xf32, #tpu.memory_space<vmem>>, vector<1x64xf32>
    %14 = vector.broadcast %13 : vector<1x64xf32> to vector<256x64xf32>
    %15 = arith.addf %12, %14 : vector<256x64xf32>
    %cst_9 = arith.constant 0.000000e+00 : f32
    %16 = vector.broadcast %cst_9 : f32 to vector<256x64xf32>
    %17 = arith.maximumf %15, %16 : vector<256x64xf32>
    %c0_10 = arith.constant 0 : index
    %c0_11 = arith.constant 0 : index
    %c0_12 = arith.constant 0 : index
    %18 = vector.load %arg5[%c0_10, %c0_11, %c0_12] : memref<1x256x64xf32, #tpu.memory_space<vmem>>, vector<1x256x64xf32>
    %19 = vector.shape_cast %18 : vector<1x256x64xf32> to vector<256x64xf32>
    %20 = vector.shape_cast %17 : vector<256x64xf32> to vector<1x256x64xf32>
    tpu.vector_store %arg5[%c0_10, %c0_11, %c0_12], %20 {strides = array<i32>} : memref<1x256x64xf32, #tpu.memory_space<vmem>>, vector<1x256x64xf32>,
    return
  }
  func.func @transform_0(%arg0: i32) -> (i32, i32, i32, i32) {
    %c0_i32 = arith.constant 0 : i32
    %c0_i32_0 = arith.constant 0 : i32
    %c0_i32_1 = arith.constant 0 : i32
    %c0_i32_2 = arith.constant 0 : i32
    return %arg0, %c0_i32, %c0_i32_0, %c0_i32_1 : i32, i32, i32, i32
  }
  func.func @transform_1(%arg0: i32) -> (i32, i32) {
    %c0_i32 = arith.constant 0 : i32
    %c0_i32_0 = arith.constant 0 : i32
    %c0_i32_1 = arith.constant 0 : i32
    return %c0_i32, %c0_i32_0 : i32, i32
  }
  func.func @transform_2(%arg0: i32) -> (i32, i32) {
    %c0_i32 = arith.constant 0 : i32
    %c0_i32_0 = arith.constant 0 : i32
    %c0_i32_1 = arith.constant 0 : i32
    return %c0_i32, %c0_i32_0 : i32, i32
  }
  func.func @transform_3(%arg0: i32) -> (i32, i32) {
    %c0_i32 = arith.constant 0 : i32
    %c0_i32_0 = arith.constant 0 : i32
    %c0_i32_1 = arith.constant 0 : i32
    return %c0_i32, %c0_i32_0 : i32, i32
  }
  func.func @transform_4(%arg0: i32) -> (i32, i32, i32) {
    %c0_i32 = arith.constant 0 : i32
    %c0_i32_0 = arith.constant 0 : i32
    %c0_i32_1 = arith.constant 0 : i32
    return %arg0, %c0_i32, %c0_i32_0 : i32, i32, i32
  }
}

module attributes {stable_mosaic.version = 11 : i64} {
  func.func @_conv_bn_kernel(%arg0: i32, %arg1: memref<1x18x18x64xbf16, #tpu.memory_space<vmem>>, %arg2: memref<576x64xbf16, #tpu.memory_space<vmem>>, %arg3: memref<1x64xf32, #tpu.memory_space<vmem>>, %arg4: memref<1x64xf32, #tpu.memory_space<vmem>>, %arg5: memref<1x256x64xf32, #tpu.memory_space<vmem>>) attributes {dimension_semantics = [#tpu.dimension_semantics<parallel>], iteration_bounds = array<i64: 2>, scalar_prefetch = 0 : i64, scratch_operands = 0 : i64, tpu.core_type = #tpu.core_type<tc>, window_params = [{transform_indices = @transform_0, window_bounds = array<i64: 1, 18, 18, 64>}, {pipeline_mode = #tpu.pipeline_mode<synchronous>, transform_indices = @transform_1, window_bounds = array<i64: 576, 64>}, {pipeline_mode = #tpu.pipeline_mode<synchronous>, transform_indices = @transform_2, window_bounds = array<i64: 1, 64>}, {pipeline_mode = #tpu.pipeline_mode<synchronous>, transform_indices = @transform_3, window_bounds = array<i64: 1, 64>}, {transform_indices = @transform_4, window_bounds = array<i64: 1, 256, 64>}]} {
    %c0 = arith.constant 0 : index
    %c0_0 = arith.constant 0 : index
    %c0_1 = arith.constant 0 : index
    %c0_2 = arith.constant 0 : index
    %0 = vector.load %arg1[%c0, %c0_0, %c0_1, %c0_2] : memref<1x18x18x64xbf16, #tpu.memory_space<vmem>>, vector<1x18x18x64xbf16>
    %1 = vector.shape_cast %0 : vector<1x18x18x64xbf16> to vector<18x18x64xbf16>
    %2 = vector.extract_strided_slice %1 {offsets = [0, 0, 0], sizes = [16, 16, 64], strides = [1, 1, 1]} : vector<18x18x64xbf16> to vector<16x16x64xbf16>
    %3 = vector.extract_strided_slice %1 {offsets = [0, 1, 0], sizes = [16, 16, 64], strides = [1, 1, 1]} : vector<18x18x64xbf16> to vector<16x16x64xbf16>
    %4 = vector.extract_strided_slice %1 {offsets = [0, 2, 0], sizes = [16, 16, 64], strides = [1, 1, 1]} : vector<18x18x64xbf16> to vector<16x16x64xbf16>
    %5 = vector.extract_strided_slice %1 {offsets = [1, 0, 0], sizes = [16, 16, 64], strides = [1, 1, 1]} : vector<18x18x64xbf16> to vector<16x16x64xbf16>
    %6 = vector.extract_strided_slice %1 {offsets = [1, 1, 0], sizes = [16, 16, 64], strides = [1, 1, 1]} : vector<18x18x64xbf16> to vector<16x16x64xbf16>
    %7 = vector.extract_strided_slice %1 {offsets = [1, 2, 0], sizes = [16, 16, 64], strides = [1, 1, 1]} : vector<18x18x64xbf16> to vector<16x16x64xbf16>
    %8 = vector.extract_strided_slice %1 {offsets = [2, 0, 0], sizes = [16, 16, 64], strides = [1, 1, 1]} : vector<18x18x64xbf16> to vector<16x16x64xbf16>
    %9 = vector.extract_strided_slice %1 {offsets = [2, 1, 0], sizes = [16, 16, 64], strides = [1, 1, 1]} : vector<18x18x64xbf16> to vector<16x16x64xbf16>
    %10 = vector.extract_strided_slice %1 {offsets = [2, 2, 0], sizes = [16, 16, 64], strides = [1, 1, 1]} : vector<18x18x64xbf16> to vector<16x16x64xbf16>
    %11 = tpu.concatenate %2, %3, %4, %5, %6, %7, %8, %9, %10 in 2 : vector<16x16x64xbf16>, vector<16x16x64xbf16>, vector<16x16x64xbf16>, vector<16x16x64xbf16>, vector<16x16x64xbf16>, vector<16x16x64xbf16>, vector<16x16x64xbf16>, vector<16x16x64xbf16>, vector<16x16x64xbf16> -> vector<16x16x576xbf16>
    %12 = vector.shape_cast %11 : vector<16x16x576xbf16> to vector<256x576xbf16>
    %c0_3 = arith.constant 0 : index
    %c0_4 = arith.constant 0 : index
    %13 = vector.load %arg2[%c0_3, %c0_4] : memref<576x64xbf16, #tpu.memory_space<vmem>>, vector<576x64xbf16>
    %cst = arith.constant dense<0.000000e+00> : vector<256x64xf32>
    %14 = tpu.matmul %12, %13, %cst {dimension_numbers = #tpu.dot_dimension_numbers<[1], [0], [0], [1], [0, 0, 1, 1], [], []>} : vector<256x576xbf16>, vector<576x64xbf16>, vector<256x64xf32> -> vector<256x64xf32>
    %c0_5 = arith.constant 0 : index
    %c0_6 = arith.constant 0 : index
    %15 = vector.load %arg3[%c0_5, %c0_6] : memref<1x64xf32, #tpu.memory_space<vmem>>, vector<1x64xf32>
    %16 = vector.broadcast %15 : vector<1x64xf32> to vector<256x64xf32>
    %17 = arith.mulf %14, %16 : vector<256x64xf32>
    %c0_7 = arith.constant 0 : index
    %c0_8 = arith.constant 0 : index
    %18 = vector.load %arg4[%c0_7, %c0_8] : memref<1x64xf32, #tpu.memory_space<vmem>>, vector<1x64xf32>
    %19 = vector.broadcast %18 : vector<1x64xf32> to vector<256x64xf32>
    %20 = arith.addf %17, %19 : vector<256x64xf32>
    %cst_9 = arith.constant 0.000000e+00 : f32
    %21 = vector.broadcast %cst_9 : f32 to vector<256x64xf32>
    %22 = arith.maximumf %20, %21 : vector<256x64xf32>
    %c0_10 = arith.constant 0 : index
    %c0_11 = arith.constant 0 : index
    %c0_12 = arith.constant 0 : index
    %23 = vector.load %arg5[%c0_10, %c0_11, %c0_12] : memref<1x256x64xf32, #tpu.memory_space<vmem>>, vector<1x256x64xf32>
    %24 = vector.shape_cast %23 : vector<1x256x64xf32> to vector<256x64xf32>
    %25 = vector.shape_cast %22 : vector<256x64xf32> to vector<1x256x64xf32>
    tpu.vector_store %arg5[%c0_10, %c0_11, %c0_12], %25 {strides = array<i32>} : memref<1x256x64xf32, #tpu.memory_space<vmem>>, vector<1x256x64xf32>,
    return
  }
  func.func @transform_0(%arg0: i32) -> (i32, i32, i32, i32) {
    %c0_i32 = arith.constant 0 : i32
    %c0_i32_0 = arith.constant 0 : i32
    %c0_i32_1 = arith.constant 0 : i32
    %c0_i32_2 = arith.constant 0 : i32
    return %arg0, %c0_i32, %c0_i32_0, %c0_i32_1 : i32, i32, i32, i32
  }
  func.func @transform_1(%arg0: i32) -> (i32, i32) {
    %c0_i32 = arith.constant 0 : i32
    %c0_i32_0 = arith.constant 0 : i32
    %c0_i32_1 = arith.constant 0 : i32
    return %c0_i32, %c0_i32_0 : i32, i32
  }
  func.func @transform_2(%arg0: i32) -> (i32, i32) {
    %c0_i32 = arith.constant 0 : i32
    %c0_i32_0 = arith.constant 0 : i32
    %c0_i32_1 = arith.constant 0 : i32
    return %c0_i32, %c0_i32_0 : i32, i32
  }
  func.func @transform_3(%arg0: i32) -> (i32, i32) {
    %c0_i32 = arith.constant 0 : i32
    %c0_i32_0 = arith.constant 0 : i32
    %c0_i32_1 = arith.constant 0 : i32
    return %c0_i32, %c0_i32_0 : i32, i32
  }
  func.func @transform_4(%arg0: i32) -> (i32, i32, i32) {
    %c0_i32 = arith.constant 0 : i32
    %c0_i32_0 = arith.constant 0 : i32
    %c0_i32_1 = arith.constant 0 : i32
    return %arg0, %c0_i32, %c0_i32_0 : i32, i32, i32
  }
}

module attributes {stable_mosaic.version = 11 : i64} {
  func.func @_conv_bn_kernel(%arg0: i32, %arg1: memref<1x9x9x256xbf16, #tpu.memory_space<vmem>>, %arg2: memref<1024x32xbf16, #tpu.memory_space<vmem>>, %arg3: memref<1x32xf32, #tpu.memory_space<vmem>>, %arg4: memref<1x32xf32, #tpu.memory_space<vmem>>, %arg5: memref<1x64x32xf32, #tpu.memory_space<vmem>>) attributes {dimension_semantics = [#tpu.dimension_semantics<parallel>], iteration_bounds = array<i64: 2>, scalar_prefetch = 0 : i64, scratch_operands = 0 : i64, tpu.core_type = #tpu.core_type<tc>, window_params = [{transform_indices = @transform_0, window_bounds = array<i64: 1, 9, 9, 256>}, {pipeline_mode = #tpu.pipeline_mode<synchronous>, transform_indices = @transform_1, window_bounds = array<i64: 1024, 32>}, {pipeline_mode = #tpu.pipeline_mode<synchronous>, transform_indices = @transform_2, window_bounds = array<i64: 1, 32>}, {pipeline_mode = #tpu.pipeline_mode<synchronous>, transform_indices = @transform_3, window_bounds = array<i64: 1, 32>}, {transform_indices = @transform_4, window_bounds = array<i64: 1, 64, 32>}]} {
    %c0 = arith.constant 0 : index
    %c0_0 = arith.constant 0 : index
    %c0_1 = arith.constant 0 : index
    %c0_2 = arith.constant 0 : index
    %0 = vector.load %arg1[%c0, %c0_0, %c0_1, %c0_2] : memref<1x9x9x256xbf16, #tpu.memory_space<vmem>>, vector<1x9x9x256xbf16>
    %1 = vector.shape_cast %0 : vector<1x9x9x256xbf16> to vector<9x9x256xbf16>
    %2 = vector.extract_strided_slice %1 {offsets = [0, 0, 0], sizes = [8, 8, 256], strides = [1, 1, 1]} : vector<9x9x256xbf16> to vector<8x8x256xbf16>
    %3 = vector.extract_strided_slice %1 {offsets = [0, 1, 0], sizes = [8, 8, 256], strides = [1, 1, 1]} : vector<9x9x256xbf16> to vector<8x8x256xbf16>
    %4 = vector.extract_strided_slice %1 {offsets = [1, 0, 0], sizes = [8, 8, 256], strides = [1, 1, 1]} : vector<9x9x256xbf16> to vector<8x8x256xbf16>
    %5 = vector.extract_strided_slice %1 {offsets = [1, 1, 0], sizes = [8, 8, 256], strides = [1, 1, 1]} : vector<9x9x256xbf16> to vector<8x8x256xbf16>
    %6 = tpu.concatenate %2, %3, %4, %5 in 2 : vector<8x8x256xbf16>, vector<8x8x256xbf16>, vector<8x8x256xbf16>, vector<8x8x256xbf16> -> vector<8x8x1024xbf16>
    %7 = vector.shape_cast %6 : vector<8x8x1024xbf16> to vector<64x1024xbf16>
    %c0_3 = arith.constant 0 : index
    %c0_4 = arith.constant 0 : index
    %8 = vector.load %arg2[%c0_3, %c0_4] : memref<1024x32xbf16, #tpu.memory_space<vmem>>, vector<1024x32xbf16>
    %cst = arith.constant dense<0.000000e+00> : vector<64x32xf32>
    %9 = tpu.matmul %7, %8, %cst {dimension_numbers = #tpu.dot_dimension_numbers<[1], [0], [0], [1], [0, 0, 1, 1], [], []>} : vector<64x1024xbf16>, vector<1024x32xbf16>, vector<64x32xf32> -> vector<64x32xf32>
    %c0_5 = arith.constant 0 : index
    %c0_6 = arith.constant 0 : index
    %10 = vector.load %arg3[%c0_5, %c0_6] : memref<1x32xf32, #tpu.memory_space<vmem>>, vector<1x32xf32>
    %11 = vector.broadcast %10 : vector<1x32xf32> to vector<64x32xf32>
    %12 = arith.mulf %9, %11 : vector<64x32xf32>
    %c0_7 = arith.constant 0 : index
    %c0_8 = arith.constant 0 : index
    %13 = vector.load %arg4[%c0_7, %c0_8] : memref<1x32xf32, #tpu.memory_space<vmem>>, vector<1x32xf32>
    %14 = vector.broadcast %13 : vector<1x32xf32> to vector<64x32xf32>
    %15 = arith.addf %12, %14 : vector<64x32xf32>
    %c0_9 = arith.constant 0 : index
    %c0_10 = arith.constant 0 : index
    %c0_11 = arith.constant 0 : index
    %16 = vector.load %arg5[%c0_9, %c0_10, %c0_11] : memref<1x64x32xf32, #tpu.memory_space<vmem>>, vector<1x64x32xf32>
    %17 = vector.shape_cast %16 : vector<1x64x32xf32> to vector<64x32xf32>
    %18 = vector.shape_cast %15 : vector<64x32xf32> to vector<1x64x32xf32>
    tpu.vector_store %arg5[%c0_9, %c0_10, %c0_11], %18 {strides = array<i32>} : memref<1x64x32xf32, #tpu.memory_space<vmem>>, vector<1x64x32xf32>,
    return
  }
  func.func @transform_0(%arg0: i32) -> (i32, i32, i32, i32) {
    %c0_i32 = arith.constant 0 : i32
    %c0_i32_0 = arith.constant 0 : i32
    %c0_i32_1 = arith.constant 0 : i32
    %c0_i32_2 = arith.constant 0 : i32
    return %arg0, %c0_i32, %c0_i32_0, %c0_i32_1 : i32, i32, i32, i32
  }
  func.func @transform_1(%arg0: i32) -> (i32, i32) {
    %c0_i32 = arith.constant 0 : i32
    %c0_i32_0 = arith.constant 0 : i32
    %c0_i32_1 = arith.constant 0 : i32
    return %c0_i32, %c0_i32_0 : i32, i32
  }
  func.func @transform_2(%arg0: i32) -> (i32, i32) {
    %c0_i32 = arith.constant 0 : i32
    %c0_i32_0 = arith.constant 0 : i32
    %c0_i32_1 = arith.constant 0 : i32
    return %c0_i32, %c0_i32_0 : i32, i32
  }
  func.func @transform_3(%arg0: i32) -> (i32, i32) {
    %c0_i32 = arith.constant 0 : i32
    %c0_i32_0 = arith.constant 0 : i32
    %c0_i32_1 = arith.constant 0 : i32
    return %c0_i32, %c0_i32_0 : i32, i32
  }
  func.func @transform_4(%arg0: i32) -> (i32, i32, i32) {
    %c0_i32 = arith.constant 0 : i32
    %c0_i32_0 = arith.constant 0 : i32
    %c0_i32_1 = arith.constant 0 : i32
    return %arg0, %c0_i32, %c0_i32_0 : i32, i32, i32
  }
}

module attributes {stable_mosaic.version = 11 : i64} {
  func.func @_conv_bn_kernel(%arg0: i32, %arg1: memref<1x10x10x32xbf16, #tpu.memory_space<vmem>>, %arg2: memref<288x16xbf16, #tpu.memory_space<vmem>>, %arg3: memref<1x16xf32, #tpu.memory_space<vmem>>, %arg4: memref<1x16xf32, #tpu.memory_space<vmem>>, %arg5: memref<1x64x16xf32, #tpu.memory_space<vmem>>) attributes {dimension_semantics = [#tpu.dimension_semantics<parallel>], iteration_bounds = array<i64: 2>, scalar_prefetch = 0 : i64, scratch_operands = 0 : i64, tpu.core_type = #tpu.core_type<tc>, window_params = [{transform_indices = @transform_0, window_bounds = array<i64: 1, 10, 10, 32>}, {pipeline_mode = #tpu.pipeline_mode<synchronous>, transform_indices = @transform_1, window_bounds = array<i64: 288, 16>}, {pipeline_mode = #tpu.pipeline_mode<synchronous>, transform_indices = @transform_2, window_bounds = array<i64: 1, 16>}, {pipeline_mode = #tpu.pipeline_mode<synchronous>, transform_indices = @transform_3, window_bounds = array<i64: 1, 16>}, {transform_indices = @transform_4, window_bounds = array<i64: 1, 64, 16>}]} {
    %c0 = arith.constant 0 : index
    %c0_0 = arith.constant 0 : index
    %c0_1 = arith.constant 0 : index
    %c0_2 = arith.constant 0 : index
    %0 = vector.load %arg1[%c0, %c0_0, %c0_1, %c0_2] : memref<1x10x10x32xbf16, #tpu.memory_space<vmem>>, vector<1x10x10x32xbf16>
    %1 = vector.shape_cast %0 : vector<1x10x10x32xbf16> to vector<10x10x32xbf16>
    %2 = vector.extract_strided_slice %1 {offsets = [0, 0, 0], sizes = [8, 8, 32], strides = [1, 1, 1]} : vector<10x10x32xbf16> to vector<8x8x32xbf16>
    %3 = vector.extract_strided_slice %1 {offsets = [0, 1, 0], sizes = [8, 8, 32], strides = [1, 1, 1]} : vector<10x10x32xbf16> to vector<8x8x32xbf16>
    %4 = vector.extract_strided_slice %1 {offsets = [0, 2, 0], sizes = [8, 8, 32], strides = [1, 1, 1]} : vector<10x10x32xbf16> to vector<8x8x32xbf16>
    %5 = vector.extract_strided_slice %1 {offsets = [1, 0, 0], sizes = [8, 8, 32], strides = [1, 1, 1]} : vector<10x10x32xbf16> to vector<8x8x32xbf16>
    %6 = vector.extract_strided_slice %1 {offsets = [1, 1, 0], sizes = [8, 8, 32], strides = [1, 1, 1]} : vector<10x10x32xbf16> to vector<8x8x32xbf16>
    %7 = vector.extract_strided_slice %1 {offsets = [1, 2, 0], sizes = [8, 8, 32], strides = [1, 1, 1]} : vector<10x10x32xbf16> to vector<8x8x32xbf16>
    %8 = vector.extract_strided_slice %1 {offsets = [2, 0, 0], sizes = [8, 8, 32], strides = [1, 1, 1]} : vector<10x10x32xbf16> to vector<8x8x32xbf16>
    %9 = vector.extract_strided_slice %1 {offsets = [2, 1, 0], sizes = [8, 8, 32], strides = [1, 1, 1]} : vector<10x10x32xbf16> to vector<8x8x32xbf16>
    %10 = vector.extract_strided_slice %1 {offsets = [2, 2, 0], sizes = [8, 8, 32], strides = [1, 1, 1]} : vector<10x10x32xbf16> to vector<8x8x32xbf16>
    %11 = tpu.concatenate %2, %3, %4, %5, %6, %7, %8, %9, %10 in 2 : vector<8x8x32xbf16>, vector<8x8x32xbf16>, vector<8x8x32xbf16>, vector<8x8x32xbf16>, vector<8x8x32xbf16>, vector<8x8x32xbf16>, vector<8x8x32xbf16>, vector<8x8x32xbf16>, vector<8x8x32xbf16> -> vector<8x8x288xbf16>
    %12 = vector.shape_cast %11 : vector<8x8x288xbf16> to vector<64x288xbf16>
    %c0_3 = arith.constant 0 : index
    %c0_4 = arith.constant 0 : index
    %13 = vector.load %arg2[%c0_3, %c0_4] : memref<288x16xbf16, #tpu.memory_space<vmem>>, vector<288x16xbf16>
    %cst = arith.constant dense<0.000000e+00> : vector<64x16xf32>
    %14 = tpu.matmul %12, %13, %cst {dimension_numbers = #tpu.dot_dimension_numbers<[1], [0], [0], [1], [0, 0, 1, 1], [], []>} : vector<64x288xbf16>, vector<288x16xbf16>, vector<64x16xf32> -> vector<64x16xf32>
    %c0_5 = arith.constant 0 : index
    %c0_6 = arith.constant 0 : index
    %15 = vector.load %arg3[%c0_5, %c0_6] : memref<1x16xf32, #tpu.memory_space<vmem>>, vector<1x16xf32>
    %16 = vector.broadcast %15 : vector<1x16xf32> to vector<64x16xf32>
    %17 = arith.mulf %14, %16 : vector<64x16xf32>
    %c0_7 = arith.constant 0 : index
    %c0_8 = arith.constant 0 : index
    %18 = vector.load %arg4[%c0_7, %c0_8] : memref<1x16xf32, #tpu.memory_space<vmem>>, vector<1x16xf32>
    %19 = vector.broadcast %18 : vector<1x16xf32> to vector<64x16xf32>
    %20 = arith.addf %17, %19 : vector<64x16xf32>
    %c0_9 = arith.constant 0 : index
    %c0_10 = arith.constant 0 : index
    %c0_11 = arith.constant 0 : index
    %21 = vector.load %arg5[%c0_9, %c0_10, %c0_11] : memref<1x64x16xf32, #tpu.memory_space<vmem>>, vector<1x64x16xf32>
    %22 = vector.shape_cast %21 : vector<1x64x16xf32> to vector<64x16xf32>
    %23 = vector.shape_cast %20 : vector<64x16xf32> to vector<1x64x16xf32>
    tpu.vector_store %arg5[%c0_9, %c0_10, %c0_11], %23 {strides = array<i32>} : memref<1x64x16xf32, #tpu.memory_space<vmem>>, vector<1x64x16xf32>,
    return
  }
  func.func @transform_0(%arg0: i32) -> (i32, i32, i32, i32) {
    %c0_i32 = arith.constant 0 : i32
    %c0_i32_0 = arith.constant 0 : i32
    %c0_i32_1 = arith.constant 0 : i32
    %c0_i32_2 = arith.constant 0 : i32
    return %arg0, %c0_i32, %c0_i32_0, %c0_i32_1 : i32, i32, i32, i32
  }
  func.func @transform_1(%arg0: i32) -> (i32, i32) {
    %c0_i32 = arith.constant 0 : i32
    %c0_i32_0 = arith.constant 0 : i32
    %c0_i32_1 = arith.constant 0 : i32
    return %c0_i32, %c0_i32_0 : i32, i32
  }
  func.func @transform_2(%arg0: i32) -> (i32, i32) {
    %c0_i32 = arith.constant 0 : i32
    %c0_i32_0 = arith.constant 0 : i32
    %c0_i32_1 = arith.constant 0 : i32
    return %c0_i32, %c0_i32_0 : i32, i32
  }
  func.func @transform_3(%arg0: i32) -> (i32, i32) {
    %c0_i32 = arith.constant 0 : i32
    %c0_i32_0 = arith.constant 0 : i32
    %c0_i32_1 = arith.constant 0 : i32
    return %c0_i32, %c0_i32_0 : i32, i32
  }
  func.func @transform_4(%arg0: i32) -> (i32, i32, i32) {
    %c0_i32 = arith.constant 0 : i32
    %c0_i32_0 = arith.constant 0 : i32
    %c0_i32_1 = arith.constant 0 : i32
    return %arg0, %c0_i32, %c0_i32_0 : i32, i32, i32
  }
}

module attributes {stable_mosaic.version = 11 : i64} {
  func.func @_conv_bn_kernel(%arg0: i32, %arg1: memref<1x5x5x128xbf16, #tpu.memory_space<vmem>>, %arg2: memref<512x32xbf16, #tpu.memory_space<vmem>>, %arg3: memref<1x32xf32, #tpu.memory_space<vmem>>, %arg4: memref<1x32xf32, #tpu.memory_space<vmem>>, %arg5: memref<1x16x32xf32, #tpu.memory_space<vmem>>) attributes {dimension_semantics = [#tpu.dimension_semantics<parallel>], iteration_bounds = array<i64: 2>, scalar_prefetch = 0 : i64, scratch_operands = 0 : i64, tpu.core_type = #tpu.core_type<tc>, window_params = [{transform_indices = @transform_0, window_bounds = array<i64: 1, 5, 5, 128>}, {pipeline_mode = #tpu.pipeline_mode<synchronous>, transform_indices = @transform_1, window_bounds = array<i64: 512, 32>}, {pipeline_mode = #tpu.pipeline_mode<synchronous>, transform_indices = @transform_2, window_bounds = array<i64: 1, 32>}, {pipeline_mode = #tpu.pipeline_mode<synchronous>, transform_indices = @transform_3, window_bounds = array<i64: 1, 32>}, {transform_indices = @transform_4, window_bounds = array<i64: 1, 16, 32>}]} {
    %c0 = arith.constant 0 : index
    %c0_0 = arith.constant 0 : index
    %c0_1 = arith.constant 0 : index
    %c0_2 = arith.constant 0 : index
    %0 = vector.load %arg1[%c0, %c0_0, %c0_1, %c0_2] : memref<1x5x5x128xbf16, #tpu.memory_space<vmem>>, vector<1x5x5x128xbf16>
    %1 = vector.shape_cast %0 : vector<1x5x5x128xbf16> to vector<5x5x128xbf16>
    %2 = vector.extract_strided_slice %1 {offsets = [0, 0, 0], sizes = [4, 4, 128], strides = [1, 1, 1]} : vector<5x5x128xbf16> to vector<4x4x128xbf16>
    %3 = vector.extract_strided_slice %1 {offsets = [0, 1, 0], sizes = [4, 4, 128], strides = [1, 1, 1]} : vector<5x5x128xbf16> to vector<4x4x128xbf16>
    %4 = vector.extract_strided_slice %1 {offsets = [1, 0, 0], sizes = [4, 4, 128], strides = [1, 1, 1]} : vector<5x5x128xbf16> to vector<4x4x128xbf16>
    %5 = vector.extract_strided_slice %1 {offsets = [1, 1, 0], sizes = [4, 4, 128], strides = [1, 1, 1]} : vector<5x5x128xbf16> to vector<4x4x128xbf16>
    %6 = tpu.concatenate %2, %3, %4, %5 in 2 : vector<4x4x128xbf16>, vector<4x4x128xbf16>, vector<4x4x128xbf16>, vector<4x4x128xbf16> -> vector<4x4x512xbf16>
    %7 = vector.shape_cast %6 : vector<4x4x512xbf16> to vector<16x512xbf16>
    %c0_3 = arith.constant 0 : index
    %c0_4 = arith.constant 0 : index
    %8 = vector.load %arg2[%c0_3, %c0_4] : memref<512x32xbf16, #tpu.memory_space<vmem>>, vector<512x32xbf16>
    %cst = arith.constant dense<0.000000e+00> : vector<16x32xf32>
    %9 = tpu.matmul %7, %8, %cst {dimension_numbers = #tpu.dot_dimension_numbers<[1], [0], [0], [1], [0, 0, 1, 1], [], []>} : vector<16x512xbf16>, vector<512x32xbf16>, vector<16x32xf32> -> vector<16x32xf32>
    %c0_5 = arith.constant 0 : index
    %c0_6 = arith.constant 0 : index
    %10 = vector.load %arg3[%c0_5, %c0_6] : memref<1x32xf32, #tpu.memory_space<vmem>>, vector<1x32xf32>
    %11 = vector.broadcast %10 : vector<1x32xf32> to vector<16x32xf32>
    %12 = arith.mulf %9, %11 : vector<16x32xf32>
    %c0_7 = arith.constant 0 : index
    %c0_8 = arith.constant 0 : index
    %13 = vector.load %arg4[%c0_7, %c0_8] : memref<1x32xf32, #tpu.memory_space<vmem>>, vector<1x32xf32>
    %14 = vector.broadcast %13 : vector<1x32xf32> to vector<16x32xf32>
    %15 = arith.addf %12, %14 : vector<16x32xf32>
    %c0_9 = arith.constant 0 : index
    %c0_10 = arith.constant 0 : index
    %c0_11 = arith.constant 0 : index
    %16 = vector.load %arg5[%c0_9, %c0_10, %c0_11] : memref<1x16x32xf32, #tpu.memory_space<vmem>>, vector<1x16x32xf32>
    %17 = vector.shape_cast %16 : vector<1x16x32xf32> to vector<16x32xf32>
    %18 = vector.shape_cast %15 : vector<16x32xf32> to vector<1x16x32xf32>
    tpu.vector_store %arg5[%c0_9, %c0_10, %c0_11], %18 {strides = array<i32>} : memref<1x16x32xf32, #tpu.memory_space<vmem>>, vector<1x16x32xf32>,
    return
  }
  func.func @transform_0(%arg0: i32) -> (i32, i32, i32, i32) {
    %c0_i32 = arith.constant 0 : i32
    %c0_i32_0 = arith.constant 0 : i32
    %c0_i32_1 = arith.constant 0 : i32
    %c0_i32_2 = arith.constant 0 : i32
    return %arg0, %c0_i32, %c0_i32_0, %c0_i32_1 : i32, i32, i32, i32
  }
  func.func @transform_1(%arg0: i32) -> (i32, i32) {
    %c0_i32 = arith.constant 0 : i32
    %c0_i32_0 = arith.constant 0 : i32
    %c0_i32_1 = arith.constant 0 : i32
    return %c0_i32, %c0_i32_0 : i32, i32
  }
  func.func @transform_2(%arg0: i32) -> (i32, i32) {
    %c0_i32 = arith.constant 0 : i32
    %c0_i32_0 = arith.constant 0 : i32
    %c0_i32_1 = arith.constant 0 : i32
    return %c0_i32, %c0_i32_0 : i32, i32
  }
  func.func @transform_3(%arg0: i32) -> (i32, i32) {
    %c0_i32 = arith.constant 0 : i32
    %c0_i32_0 = arith.constant 0 : i32
    %c0_i32_1 = arith.constant 0 : i32
    return %c0_i32, %c0_i32_0 : i32, i32
  }
  func.func @transform_4(%arg0: i32) -> (i32, i32, i32) {
    %c0_i32 = arith.constant 0 : i32
    %c0_i32_0 = arith.constant 0 : i32
    %c0_i32_1 = arith.constant 0 : i32
    return %arg0, %c0_i32, %c0_i32_0 : i32, i32, i32
  }
}

module attributes {stable_mosaic.version = 11 : i64} {
  func.func @_router_dual_kernel(%arg0: i32, %arg1: memref<1x6x6x64xbf16, #tpu.memory_space<vmem>>, %arg2: memref<576x32xbf16, #tpu.memory_space<vmem>>, %arg3: memref<1x32xf32, #tpu.memory_space<vmem>>, %arg4: memref<1x32xf32, #tpu.memory_space<vmem>>, %arg5: memref<64x16xbf16, #tpu.memory_space<vmem>>, %arg6: memref<1x16xf32, #tpu.memory_space<vmem>>, %arg7: memref<1x16xf32, #tpu.memory_space<vmem>>, %arg8: memref<1x16x32xf32, #tpu.memory_space<vmem>>, %arg9: memref<1x16x16xf32, #tpu.memory_space<vmem>>) attributes {dimension_semantics = [#tpu.dimension_semantics<parallel>], iteration_bounds = array<i64: 2>, scalar_prefetch = 0 : i64, scratch_operands = 0 : i64, tpu.core_type = #tpu.core_type<tc>, window_params = [{transform_indices = @transform_0, window_bounds = array<i64: 1, 6, 6, 64>}, {pipeline_mode = #tpu.pipeline_mode<synchronous>, transform_indices = @transform_1, window_bounds = array<i64: 576, 32>}, {pipeline_mode = #tpu.pipeline_mode<synchronous>, transform_indices = @transform_2, window_bounds = array<i64: 1, 32>}, {pipeline_mode = #tpu.pipeline_mode<synchronous>, transform_indices = @transform_3, window_bounds = array<i64: 1, 32>}, {pipeline_mode = #tpu.pipeline_mode<synchronous>, transform_indices = @transform_4, window_bounds = array<i64: 64, 16>}, {pipeline_mode = #tpu.pipeline_mode<synchronous>, transform_indices = @transform_5, window_bounds = array<i64: 1, 16>}, {pipeline_mode = #tpu.pipeline_mode<synchronous>, transform_indices = @transform_6, window_bounds = array<i64: 1, 16>}, {transform_indices = @transform_7, window_bounds = array<i64: 1, 16, 32>}, {transform_indices = @transform_8, window_bounds = array<i64: 1, 16, 16>}]} {
    %c0 = arith.constant 0 : index
    %c0_0 = arith.constant 0 : index
    %c0_1 = arith.constant 0 : index
    %c0_2 = arith.constant 0 : index
    %0 = vector.load %arg1[%c0, %c0_0, %c0_1, %c0_2] : memref<1x6x6x64xbf16, #tpu.memory_space<vmem>>, vector<1x6x6x64xbf16>
    %1 = vector.shape_cast %0 : vector<1x6x6x64xbf16> to vector<6x6x64xbf16>
    %2 = vector.extract_strided_slice %1 {offsets = [0, 0, 0], sizes = [4, 4, 64], strides = [1, 1, 1]} : vector<6x6x64xbf16> to vector<4x4x64xbf16>
    %3 = vector.extract_strided_slice %1 {offsets = [0, 1, 0], sizes = [4, 4, 64], strides = [1, 1, 1]} : vector<6x6x64xbf16> to vector<4x4x64xbf16>
    %4 = vector.extract_strided_slice %1 {offsets = [0, 2, 0], sizes = [4, 4, 64], strides = [1, 1, 1]} : vector<6x6x64xbf16> to vector<4x4x64xbf16>
    %5 = vector.extract_strided_slice %1 {offsets = [1, 0, 0], sizes = [4, 4, 64], strides = [1, 1, 1]} : vector<6x6x64xbf16> to vector<4x4x64xbf16>
    %6 = vector.extract_strided_slice %1 {offsets = [1, 1, 0], sizes = [4, 4, 64], strides = [1, 1, 1]} : vector<6x6x64xbf16> to vector<4x4x64xbf16>
    %7 = vector.extract_strided_slice %1 {offsets = [1, 2, 0], sizes = [4, 4, 64], strides = [1, 1, 1]} : vector<6x6x64xbf16> to vector<4x4x64xbf16>
    %8 = vector.extract_strided_slice %1 {offsets = [2, 0, 0], sizes = [4, 4, 64], strides = [1, 1, 1]} : vector<6x6x64xbf16> to vector<4x4x64xbf16>
    %9 = vector.extract_strided_slice %1 {offsets = [2, 1, 0], sizes = [4, 4, 64], strides = [1, 1, 1]} : vector<6x6x64xbf16> to vector<4x4x64xbf16>
    %10 = vector.extract_strided_slice %1 {offsets = [2, 2, 0], sizes = [4, 4, 64], strides = [1, 1, 1]} : vector<6x6x64xbf16> to vector<4x4x64xbf16>
    %11 = tpu.concatenate %2, %3, %4, %5, %6, %7, %8, %9, %10 in 2 : vector<4x4x64xbf16>, vector<4x4x64xbf16>, vector<4x4x64xbf16>, vector<4x4x64xbf16>, vector<4x4x64xbf16>, vector<4x4x64xbf16>, vector<4x4x64xbf16>, vector<4x4x64xbf16>, vector<4x4x64xbf16> -> vector<4x4x576xbf16>
    %12 = vector.shape_cast %11 : vector<4x4x576xbf16> to vector<16x576xbf16>
    %c0_3 = arith.constant 0 : index
    %c0_4 = arith.constant 0 : index
    %13 = vector.load %arg2[%c0_3, %c0_4] : memref<576x32xbf16, #tpu.memory_space<vmem>>, vector<576x32xbf16>
    %cst = arith.constant dense<0.000000e+00> : vector<16x32xf32>
    %14 = tpu.matmul %12, %13, %cst {dimension_numbers = #tpu.dot_dimension_numbers<[1], [0], [0], [1], [0, 0, 1, 1], [], []>} : vector<16x576xbf16>, vector<576x32xbf16>, vector<16x32xf32> -> vector<16x32xf32>
    %c0_5 = arith.constant 0 : index
    %c0_6 = arith.constant 0 : index
    %15 = vector.load %arg3[%c0_5, %c0_6] : memref<1x32xf32, #tpu.memory_space<vmem>>, vector<1x32xf32>
    %16 = vector.broadcast %15 : vector<1x32xf32> to vector<16x32xf32>
    %17 = arith.mulf %14, %16 : vector<16x32xf32>
    %c0_7 = arith.constant 0 : index
    %c0_8 = arith.constant 0 : index
    %18 = vector.load %arg4[%c0_7, %c0_8] : memref<1x32xf32, #tpu.memory_space<vmem>>, vector<1x32xf32>
    %19 = vector.broadcast %18 : vector<1x32xf32> to vector<16x32xf32>
    %20 = arith.addf %17, %19 : vector<16x32xf32>
    %c0_9 = arith.constant 0 : index
    %c0_10 = arith.constant 0 : index
    %c0_11 = arith.constant 0 : index
    %21 = vector.load %arg8[%c0_9, %c0_10, %c0_11] : memref<1x16x32xf32, #tpu.memory_space<vmem>>, vector<1x16x32xf32>
    %22 = vector.shape_cast %21 : vector<1x16x32xf32> to vector<16x32xf32>
    %23 = vector.shape_cast %20 : vector<16x32xf32> to vector<1x16x32xf32>
    tpu.vector_store %arg8[%c0_9, %c0_10, %c0_11], %23 {strides = array<i32>} : memref<1x16x32xf32, #tpu.memory_space<vmem>>, vector<1x16x32xf32>,
    %24 = vector.shape_cast %6 : vector<4x4x64xbf16> to vector<16x64xbf16>
    %c0_12 = arith.constant 0 : index
    %c0_13 = arith.constant 0 : index
    %25 = vector.load %arg5[%c0_12, %c0_13] : memref<64x16xbf16, #tpu.memory_space<vmem>>, vector<64x16xbf16>
    %cst_14 = arith.constant dense<0.000000e+00> : vector<16x16xf32>
    %26 = tpu.matmul %24, %25, %cst_14 {dimension_numbers = #tpu.dot_dimension_numbers<[1], [0], [0], [1], [0, 0, 1, 1], [], []>} : vector<16x64xbf16>, vector<64x16xbf16>, vector<16x16xf32> -> vector<16x16xf32>
    %c0_15 = arith.constant 0 : index
    %c0_16 = arith.constant 0 : index
    %27 = vector.load %arg6[%c0_15, %c0_16] : memref<1x16xf32, #tpu.memory_space<vmem>>, vector<1x16xf32>
    %28 = vector.broadcast %27 : vector<1x16xf32> to vector<16x16xf32>
    %29 = arith.mulf %26, %28 : vector<16x16xf32>
    %c0_17 = arith.constant 0 : index
    %c0_18 = arith.constant 0 : index
    %30 = vector.load %arg7[%c0_17, %c0_18] : memref<1x16xf32, #tpu.memory_space<vmem>>, vector<1x16xf32>
    %31 = vector.broadcast %30 : vector<1x16xf32> to vector<16x16xf32>
    %32 = arith.addf %29, %31 : vector<16x16xf32>
    %c0_19 = arith.constant 0 : index
    %c0_20 = arith.constant 0 : index
    %c0_21 = arith.constant 0 : index
    %33 = vector.load %arg9[%c0_19, %c0_20, %c0_21] : memref<1x16x16xf32, #tpu.memory_space<vmem>>, vector<1x16x16xf32>
    %34 = vector.shape_cast %33 : vector<1x16x16xf32> to vector<16x16xf32>
    %35 = vector.shape_cast %32 : vector<16x16xf32> to vector<1x16x16xf32>
    tpu.vector_store %arg9[%c0_19, %c0_20, %c0_21], %35 {strides = array<i32>} : memref<1x16x16xf32, #tpu.memory_space<vmem>>, vector<1x16x16xf32>,
    return
  }
  func.func @transform_0(%arg0: i32) -> (i32, i32, i32, i32) {
    %c0_i32 = arith.constant 0 : i32
    %c0_i32_0 = arith.constant 0 : i32
    %c0_i32_1 = arith.constant 0 : i32
    %c0_i32_2 = arith.constant 0 : i32
    return %arg0, %c0_i32, %c0_i32_0, %c0_i32_1 : i32, i32, i32, i32
  }
  func.func @transform_1(%arg0: i32) -> (i32, i32) {
    %c0_i32 = arith.constant 0 : i32
    %c0_i32_0 = arith.constant 0 : i32
    %c0_i32_1 = arith.constant 0 : i32
    return %c0_i32, %c0_i32_0 : i32, i32
  }
  func.func @transform_2(%arg0: i32) -> (i32, i32) {
    %c0_i32 = arith.constant 0 : i32
    %c0_i32_0 = arith.constant 0 : i32
    %c0_i32_1 = arith.constant 0 : i32
    return %c0_i32, %c0_i32_0 : i32, i32
  }
  func.func @transform_3(%arg0: i32) -> (i32, i32) {
    %c0_i32 = arith.constant 0 : i32
    %c0_i32_0 = arith.constant 0 : i32
    %c0_i32_1 = arith.constant 0 : i32
    return %c0_i32, %c0_i32_0 : i32, i32
  }
  func.func @transform_4(%arg0: i32) -> (i32, i32) {
    %c0_i32 = arith.constant 0 : i32
    %c0_i32_0 = arith.constant 0 : i32
    %c0_i32_1 = arith.constant 0 : i32
    return %c0_i32, %c0_i32_0 : i32, i32
  }
  func.func @transform_5(%arg0: i32) -> (i32, i32) {
    %c0_i32 = arith.constant 0 : i32
    %c0_i32_0 = arith.constant 0 : i32
    %c0_i32_1 = arith.constant 0 : i32
    return %c0_i32, %c0_i32_0 : i32, i32
  }
  func.func @transform_6(%arg0: i32) -> (i32, i32) {
    %c0_i32 = arith.constant 0 : i32
    %c0_i32_0 = arith.constant 0 : i32
    %c0_i32_1 = arith.constant 0 : i32
    return %c0_i32, %c0_i32_0 : i32, i32
  }
  func.func @transform_7(%arg0: i32) -> (i32, i32, i32) {
    %c0_i32 = arith.constant 0 : i32
    %c0_i32_0 = arith.constant 0 : i32
    %c0_i32_1 = arith.constant 0 : i32
    return %arg0, %c0_i32, %c0_i32_0 : i32, i32, i32
  }
  func.func @transform_8(%arg0: i32) -> (i32, i32, i32) {
    %c0_i32 = arith.constant 0 : i32
    %c0_i32_0 = arith.constant 0 : i32
    %c0_i32_1 = arith.constant 0 : i32
    return %arg0, %c0_i32, %c0_i32_0 : i32, i32, i32
  }
}

module attributes {stable_mosaic.version = 11 : i64} {
  func.func @_conv_bn_kernel(%arg0: i32, %arg1: memref<1x3x3x256xbf16, #tpu.memory_space<vmem>>, %arg2: memref<1024x64xbf16, #tpu.memory_space<vmem>>, %arg3: memref<1x64xf32, #tpu.memory_space<vmem>>, %arg4: memref<1x64xf32, #tpu.memory_space<vmem>>, %arg5: memref<1x4x64xf32, #tpu.memory_space<vmem>>) attributes {dimension_semantics = [#tpu.dimension_semantics<parallel>], iteration_bounds = array<i64: 2>, scalar_prefetch = 0 : i64, scratch_operands = 0 : i64, tpu.core_type = #tpu.core_type<tc>, window_params = [{transform_indices = @transform_0, window_bounds = array<i64: 1, 3, 3, 256>}, {pipeline_mode = #tpu.pipeline_mode<synchronous>, transform_indices = @transform_1, window_bounds = array<i64: 1024, 64>}, {pipeline_mode = #tpu.pipeline_mode<synchronous>, transform_indices = @transform_2, window_bounds = array<i64: 1, 64>}, {pipeline_mode = #tpu.pipeline_mode<synchronous>, transform_indices = @transform_3, window_bounds = array<i64: 1, 64>}, {transform_indices = @transform_4, window_bounds = array<i64: 1, 4, 64>}]} {
    %c0 = arith.constant 0 : index
    %c0_0 = arith.constant 0 : index
    %c0_1 = arith.constant 0 : index
    %c0_2 = arith.constant 0 : index
    %0 = vector.load %arg1[%c0, %c0_0, %c0_1, %c0_2] : memref<1x3x3x256xbf16, #tpu.memory_space<vmem>>, vector<1x3x3x256xbf16>
    %1 = vector.shape_cast %0 : vector<1x3x3x256xbf16> to vector<3x3x256xbf16>
    %2 = vector.extract_strided_slice %1 {offsets = [0, 0, 0], sizes = [2, 2, 256], strides = [1, 1, 1]} : vector<3x3x256xbf16> to vector<2x2x256xbf16>
    %3 = vector.extract_strided_slice %1 {offsets = [0, 1, 0], sizes = [2, 2, 256], strides = [1, 1, 1]} : vector<3x3x256xbf16> to vector<2x2x256xbf16>
    %4 = vector.extract_strided_slice %1 {offsets = [1, 0, 0], sizes = [2, 2, 256], strides = [1, 1, 1]} : vector<3x3x256xbf16> to vector<2x2x256xbf16>
    %5 = vector.extract_strided_slice %1 {offsets = [1, 1, 0], sizes = [2, 2, 256], strides = [1, 1, 1]} : vector<3x3x256xbf16> to vector<2x2x256xbf16>
    %6 = tpu.concatenate %2, %3, %4, %5 in 2 : vector<2x2x256xbf16>, vector<2x2x256xbf16>, vector<2x2x256xbf16>, vector<2x2x256xbf16> -> vector<2x2x1024xbf16>
    %7 = vector.shape_cast %6 : vector<2x2x1024xbf16> to vector<4x1024xbf16>
    %c0_3 = arith.constant 0 : index
    %c0_4 = arith.constant 0 : index
    %8 = vector.load %arg2[%c0_3, %c0_4] : memref<1024x64xbf16, #tpu.memory_space<vmem>>, vector<1024x64xbf16>
    %cst = arith.constant dense<0.000000e+00> : vector<4x64xf32>
    %9 = tpu.matmul %7, %8, %cst {dimension_numbers = #tpu.dot_dimension_numbers<[1], [0], [0], [1], [0, 0, 1, 1], [], []>} : vector<4x1024xbf16>, vector<1024x64xbf16>, vector<4x64xf32> -> vector<4x64xf32>
    %c0_5 = arith.constant 0 : index
    %c0_6 = arith.constant 0 : index
    %10 = vector.load %arg3[%c0_5, %c0_6] : memref<1x64xf32, #tpu.memory_space<vmem>>, vector<1x64xf32>
    %11 = vector.broadcast %10 : vector<1x64xf32> to vector<4x64xf32>
    %12 = arith.mulf %9, %11 : vector<4x64xf32>
    %c0_7 = arith.constant 0 : index
    %c0_8 = arith.constant 0 : index
    %13 = vector.load %arg4[%c0_7, %c0_8] : memref<1x64xf32, #tpu.memory_space<vmem>>, vector<1x64xf32>
    %14 = vector.broadcast %13 : vector<1x64xf32> to vector<4x64xf32>
    %15 = arith.addf %12, %14 : vector<4x64xf32>
    %c0_9 = arith.constant 0 : index
    %c0_10 = arith.constant 0 : index
    %c0_11 = arith.constant 0 : index
    %16 = vector.load %arg5[%c0_9, %c0_10, %c0_11] : memref<1x4x64xf32, #tpu.memory_space<vmem>>, vector<1x4x64xf32>
    %17 = vector.shape_cast %16 : vector<1x4x64xf32> to vector<4x64xf32>
    %18 = vector.shape_cast %15 : vector<4x64xf32> to vector<1x4x64xf32>
    tpu.vector_store %arg5[%c0_9, %c0_10, %c0_11], %18 {strides = array<i32>} : memref<1x4x64xf32, #tpu.memory_space<vmem>>, vector<1x4x64xf32>,
    return
  }
  func.func @transform_0(%arg0: i32) -> (i32, i32, i32, i32) {
    %c0_i32 = arith.constant 0 : i32
    %c0_i32_0 = arith.constant 0 : i32
    %c0_i32_1 = arith.constant 0 : i32
    %c0_i32_2 = arith.constant 0 : i32
    return %arg0, %c0_i32, %c0_i32_0, %c0_i32_1 : i32, i32, i32, i32
  }
  func.func @transform_1(%arg0: i32) -> (i32, i32) {
    %c0_i32 = arith.constant 0 : i32
    %c0_i32_0 = arith.constant 0 : i32
    %c0_i32_1 = arith.constant 0 : i32
    return %c0_i32, %c0_i32_0 : i32, i32
  }
  func.func @transform_2(%arg0: i32) -> (i32, i32) {
    %c0_i32 = arith.constant 0 : i32
    %c0_i32_0 = arith.constant 0 : i32
    %c0_i32_1 = arith.constant 0 : i32
    return %c0_i32, %c0_i32_0 : i32, i32
  }
  func.func @transform_3(%arg0: i32) -> (i32, i32) {
    %c0_i32 = arith.constant 0 : i32
    %c0_i32_0 = arith.constant 0 : i32
    %c0_i32_1 = arith.constant 0 : i32
    return %c0_i32, %c0_i32_0 : i32, i32
  }
  func.func @transform_4(%arg0: i32) -> (i32, i32, i32) {
    %c0_i32 = arith.constant 0 : i32
    %c0_i32_0 = arith.constant 0 : i32
    %c0_i32_1 = arith.constant 0 : i32
    return %arg0, %c0_i32, %c0_i32_0 : i32, i32, i32
  }
}

</mosaic_0001>

<llo_original>
// kernel: _lambda_.10
$region0: #{_lambda_.10}
  #allocation0 [shape = 'u32[]', space=smem, size = 0x4, offset = 0x4, fixed_abs, tag = 'smem constant byte address 0x4 - core index']
  #allocation1 [shape = 'u32[144,128]{1,0:T(1,128)}', space=vmem, size = 0x12000, scoped, tag = 'internal scratch']
  %s0 = inlined_call_operand.vmem [shape: bf16[2,17,17,12], index: 0, kind: input, shape index: {}]
  %s1 = inlined_call_operand.vmem [shape: bf16[48,64], index: 1, kind: input, shape index: {}]
  %s2 = inlined_call_operand.vmem [shape: f32[1,64], index: 2, kind: input, shape index: {}]
  %s3 = inlined_call_operand.vmem [shape: f32[1,64], index: 3, kind: input, shape index: {}]
  %s4 = inlined_call_operand.vmem [shape: f32[2,256,64], index: 4, kind: output, shape index: {}]
  %s5 = sld [smem:[#allocation0]]
  $region49: #{_lambda_.10} parent=0
    _
  %s7 = ssub.s32 1, %s5
  %s8 = scalar_select 0, %s7, %s5
  loop: start=0, step=1, limit=4
  $region2: #{_lambda_.10} parent=0 // loop_pre_header
    _
  $region3: #{_lambda_.10} parent=0 // loop_header
    %s10 = sphi 0, %s14
    %p11 = scmp.ge.s32.totalorder %s10, 4
    %s20 = sphi 0, %s22
    %s23 = sphi 0, %s20
    %s24 = sphi 0, %s23
    %s40 = sphi 0, %s24
    %s44 = sphi 0, %s44
    %s46 = sphi 0, %s44
    %s47 = sphi 0, %s46
    %s61 = sphi 0, %s47
    %s65 = sphi 0, %s65
    %s67 = sphi 0, %s65
    %s68 = sphi 0, %s67
    %s82 = sphi 0, %s68
    %s86 = sphi 0, %s86
    %s88 = sphi 0, %s86
    %s89 = sphi 0, %s88
    %s103 = sphi 0, %s89
    %s109 = sphi 0, %s111
    %s112 = sphi 0, %s109
    %s113 = sphi 0, %s112
    %s129 = sphi 0, %s113
  $region4: #{_lambda_.10} parent=0 // loop_header_branch
    %13 = sbr.rel (%p11) target = $region8
  $region5: #{_lambda_.10} parent=0 // loop_body
    %s15 = ssub.s32 %s10, 1
    %s16 = ssub.s32 %s10, 2
    %s17 = sadd.s32 %s10, 1
    %s18 = ssub.s32 %s10, %s17
    %p19 = scmp.eq.s32.totalorder %s18, 0
    %s21 = sadd.s32 %s20, 1
    %s22 = scalar_select %p19, %s20, %s21
    %p25 = pneg %p19
    %p26 = scmp.eq.s32.totalorder %s10, 1
    %p27 = por %p25, %p26
    %p28 = scmp.ne.s32.totalorder %s20, %s23
    %p29 = scmp.eq.s32.totalorder %s10, 0
    %p30 = por %p28, %p29
    %p31 = scmp.ne.s32.totalorder %s20, %s23
    %p32 = scmp.eq.s32.totalorder %s15, 1
    %p33 = por %p31, %p32
    %p34 = scmp.ne.s32.totalorder %s23, %s24
    %p35 = scmp.eq.s32.totalorder %s15, 0
    %p36 = por %p34, %p35
    %p37 = scmp.ne.s32.totalorder %s23, %s24
    %p38 = scmp.eq.s32.totalorder %s16, 1
    %p39 = por %p37, %p38
    %p41 = scmp.ne.s32.totalorder %s24, %s40
    %p42 = scmp.eq.s32.totalorder %s16, 0
    %p43 = por %p41, %p42
    %s45 = sadd.s32 %s44, 1
    %p48 = scmp.eq.s32.totalorder %s10, 1
    %p49 = scmp.ne.s32.totalorder %s44, %s46
    %p50 = scmp.eq.s32.totalorder %s10, 0
    %p51 = por %p49, %p50
    %p52 = scmp.ne.s32.totalorder %s44, %s46
    %p53 = scmp.eq.s32.totalorder %s15, 1
    %p54 = por %p52, %p53
    %p55 = scmp.ne.s32.totalorder %s46, %s47
    %p56 = scmp.eq.s32.totalorder %s15, 0
    %p57 = por %p55, %p56
    %p58 = scmp.ne.s32.totalorder %s46, %s47
    %p59 = scmp.eq.s32.totalorder %s16, 1
    %p60 = por %p58, %p59
    %p62 = scmp.ne.s32.totalorder %s47, %s61
    %p63 = scmp.eq.s32.totalorder %s16, 0
    %p64 = por %p62, %p63
    %s66 = sadd.s32 %s65, 1
    %p69 = scmp.eq.s32.totalorder %s10, 1
    %p70 = scmp.ne.s32.totalorder %s65, %s67
    %p71 = scmp.eq.s32.totalorder %s10, 0
    %p72 = por %p70, %p71
    %p73 = scmp.ne.s32.totalorder %s65, %s67
    %p74 = scmp.eq.s32.totalorder %s15, 1
    %p75 = por %p73, %p74
    %p76 = scmp.ne.s32.totalorder %s67, %s68
    %p77 = scmp.eq.s32.totalorder %s15, 0
    %p78 = por %p76, %p77
    %p79 = scmp.ne.s32.totalorder %s67, %s68
    %p80 = scmp.eq.s32.totalorder %s16, 1
    %p81 = por %p79, %p80
    %p83 = scmp.ne.s32.totalorder %s68, %s82
    %p84 = scmp.eq.s32.totalorder %s16, 0
    %p85 = por %p83, %p84
    %s87 = sadd.s32 %s86, 1
    %p90 = scmp.eq.s32.totalorder %s10, 1
    %p91 = scmp.ne.s32.totalorder %s86, %s88
    %p92 = scmp.eq.s32.totalorder %s10, 0
    %p93 = por %p91, %p92
    %p94 = scmp.ne.s32.totalorder %s86, %s88
    %p95 = scmp.eq.s32.totalorder %s15, 1
    %p96 = por %p94, %p95
    %p97 = scmp.ne.s32.totalorder %s88, %s89
    %p98 = scmp.eq.s32.totalorder %s15, 0
    %p99 = por %p97, %p98
    %p100 = scmp.ne.s32.totalorder %s88, %s89
    %p101 = scmp.eq.s32.totalorder %s16, 1
    %p102 = por %p100, %p101
    %p104 = scmp.ne.s32.totalorder %s89, %s103
    %p105 = scmp.eq.s32.totalorder %s16, 0
    %p106 = por %p104, %p105
    %s107 = ssub.s32 %s10, %s17
    %p108 = scmp.eq.s32.totalorder %s107, 0
    %s110 = sadd.s32 %s109, 1
    %s111 = scalar_select %p108, %s109, %s110
    %p114 = pneg %p108
    %p115 = scmp.eq.s32.totalorder %s10, 1
    %p116 = por %p114, %p115
    %p117 = scmp.ne.s32.totalorder %s109, %s112
    %p118 = scmp.eq.s32.totalorder %s10, 0
    %p119 = por %p117, %p118
    %p120 = scmp.ne.s32.totalorder %s109, %s112
    %p121 = scmp.eq.s32.totalorder %s15, 1
    %p122 = por %p120, %p121
    %p123 = scmp.ne.s32.totalorder %s112, %s113
    %p124 = scmp.eq.s32.totalorder %s15, 0
    %p125 = por %p123, %p124
    %p126 = scmp.ne.s32.totalorder %s112, %s113
    %p127 = scmp.eq.s32.totalorder %s16, 1
    %p128 = por %p126, %p127
    %p130 = scmp.ne.s32.totalorder %s113, %s129
    %p131 = scmp.eq.s32.totalorder %s16, 0
    %p132 = por %p130, %p131
    %p133 = scmp.le.s32.totalorder 1, %s10
    %p134 = scmp.lt.s32.totalorder %s10, 3
    %p135 = pnand %p133, %p134
    %p136 = pneg %p135
    // Predicated region
    $region9: #{_lambda_.10} parent=5 // pred_check
      _
    $region10: #{_lambda_.10} parent=5 // pred_check_branch
      %138 = sbr.rel (%p135) target = $region12
    $region11: #{_lambda_.10} parent=5 // pred_region
      %s139 = ssub.s32 %s10, 1
      // Predicated region
      $region13: #{_lambda_.10} parent=11 // pred_check
        %p140 = pneg %p57
      $region14: #{_lambda_.10} parent=11 // pred_check_branch
        %142 = sbr.rel (%p140) target = $region16
      $region15: #{_lambda_.10} parent=11 // pred_region
        _
      $region16: #{_lambda_.10} parent=11 // pred_fallthru
        _
      // Predicated region
      $region17: #{_lambda_.10} parent=11 // pred_check
        %p143 = pneg %p78
      $region18: #{_lambda_.10} parent=11 // pred_check_branch
        %145 = sbr.rel (%p143) target = $region20
      $region19: #{_lambda_.10} parent=11 // pred_region
        _
      $region20: #{_lambda_.10} parent=11 // pred_fallthru
        _
      // Predicated region
      $region21: #{_lambda_.10} parent=11 // pred_check
        %p146 = pneg %p99
      $region22: #{_lambda_.10} parent=11 // pred_check_branch
        %148 = sbr.rel (%p146) target = $region24
      $region23: #{_lambda_.10} parent=11 // pred_region
        _
      $region24: #{_lambda_.10} parent=11 // pred_fallthru
        _
    $region12: #{_lambda_.10} parent=5 // pred_fallthru
      _
    %p149 = scmp.lt.s32.totalorder %s10, 2
    // Predicated region
    $region25: #{_lambda_.10} parent=5 // pred_check
      %p150 = pneg %p149
    $region26: #{_lambda_.10} parent=5 // pred_check_branch
      %152 = sbr.rel (%p150) target = $region28
    $region27: #{_lambda_.10} parent=5 // pred_region
      // Predicated region
      $region29: #{_lambda_.10} parent=27 // pred_check
        %p153 = pneg %p30
      $region30: #{_lambda_.10} parent=27 // pred_check_branch
        %155 = sbr.rel (%p153) target = $region32
      $region31: #{_lambda_.10} parent=27 // pred_region
        %p156 = scmp.lt.s32.totalorder %s10, 1
        %s157 = scalar_select %p156, %s10, 1
        %s158 = smul.addr %s157, 51
        %s159 = smul.addr %s158, 4
        %s160 = scalar_lea.vmem %s0, %s159
      $region32: #{_lambda_.10} parent=27 // pred_fallthru
        _
    $region28: #{_lambda_.10} parent=5 // pred_fallthru
      _
    %p161 = scmp.le.s32.totalorder 1, %s10
    %p162 = scmp.lt.s32.totalorder %s10, 3
    %p163 = pnand %p161, %p162
    %p164 = pneg %p163
    // Predicated region
    $region33: #{_lambda_.10} parent=5 // pred_check
      _
    $region34: #{_lambda_.10} parent=5 // pred_check_branch
      %166 = sbr.rel (%p163) target = $region36
    $region35: #{_lambda_.10} parent=5 // pred_region
      %s167 = ssub.s32 %s10, 1
      %p168 = scmp.lt.s32.totalorder %s15, 1
      %s169 = scalar_select %p168, %s15, 1
      %s170 = smul.addr %s169, 51
      %s171 = smul.addr %s170, 4
      %s172 = scalar_lea.vmem %s0, %s171
      %p173 = pneg %p36
      %p174 = pneg %p33
      %p175 = pneg %p57
      %p176 = pneg %p54
      %p177 = pneg %p78
      %p178 = pneg %p75
      %p179 = pneg %p99
      %p180 = pneg %p96
      %p181 = pneg %p125
      %p182 = pneg %p122
      %p183 = scmp.lt.s32.totalorder %s15, 1
      %s184 = scalar_select %p183, %s15, 1
      %s185 = smul.addr %s184, 32
      %s186 = smul.addr %s185, 8
      %s187 = scalar_lea.vmem %s4, %s186
      %p188 = scmp.lt.s32.totalorder %s15, 1
      %s189 = scalar_select %p188, %s15, 1
      %s190 = smul.addr %s189, 51
      %s191 = smul.addr %s190, 4
      %s192 = scalar_lea.vmem %s0, %s191
      %p193 = scmp.lt.s32.totalorder %s15, 1
      %s194 = scalar_select %p193, %s15, 1
      %s195 = smul.addr %s194, 32
      %s196 = smul.addr %s195, 8
      %s197 = scalar_lea.vmem %s4, %s196
      %v199 = vld [vmem:[%s192] sm:$0xf]
      %v200 = vld [vmem:[%s192 + $0x4] sm:$0xf]
      %v201 = vld [vmem:[%s192 + $0x8] sm:$0x1]
      %v202 = vld [vmem:[%s192 + $0xc] sm:$0xf]
      %v203 = vld [vmem:[%s192 + $0x10] sm:$0xf]
      %v204 = vld [vmem:[%s192 + $0x14] sm:$0x1]
      %v205 = vld [vmem:[%s192 + $0x18] sm:$0xf]
      %v206 = vld [vmem:[%s192 + $0x1c] sm:$0xf]
      %v207 = vld [vmem:[%s192 + $0x20] sm:$0x1]
      %v208 = vld [vmem:[%s192 + $0x24] sm:$0xf]
      %v209 = vld [vmem:[%s192 + $0x28] sm:$0xf]
      %v210 = vld [vmem:[%s192 + $0x2c] sm:$0x1]
      %v211 = vld [vmem:[%s192 + $0x30] sm:$0xf]
      %v212 = vld [vmem:[%s192 + $0x34] sm:$0xf]
      %v213 = vld [vmem:[%s192 + $0x38] sm:$0x1]
      %v214 = vld [vmem:[%s192 + $0x3c] sm:$0xf]
      %v215 = vld [vmem:[%s192 + $0x40] sm:$0xf]
      %v216 = vld [vmem:[%s192 + $0x44] sm:$0x1]
      %v217 = vld [vmem:[%s192 + $0x48] sm:$0xf]
      %v218 = vld [vmem:[%s192 + $0x4c] sm:$0xf]
      %v219 = vld [vmem:[%s192 + $0x50] sm:$0x1]
      %v220 = vld [vmem:[%s192 + $0x54] sm:$0xf]
      %v221 = vld [vmem:[%s192 + $0x58] sm:$0xf]
      %v222 = vld [vmem:[%s192 + $0x5c] sm:$0x1]
      %v223 = vld [vmem:[%s192 + $0x60] sm:$0xf]
      %v224 = vld [vmem:[%s192 + $0x64] sm:$0xf]
      %v225 = vld [vmem:[%s192 + $0x68] sm:$0x1]
      %v226 = vld [vmem:[%s192 + $0x6c] sm:$0xf]
      %v227 = vld [vmem:[%s192 + $0x70] sm:$0xf]
      %v228 = vld [vmem:[%s192 + $0x74] sm:$0x1]
      %v229 = vld [vmem:[%s192 + $0x78] sm:$0xf]
      %v230 = vld [vmem:[%s192 + $0x7c] sm:$0xf]
      %v231 = vld [vmem:[%s192 + $0x80] sm:$0x1]
      %v232 = vld [vmem:[%s192 + $0x84] sm:$0xf]
      %v233 = vld [vmem:[%s192 + $0x88] sm:$0xf]
      %v234 = vld [vmem:[%s192 + $0x8c] sm:$0x1]
      %v235 = vld [vmem:[%s192 + $0x90] sm:$0xf]
      %v236 = vld [vmem:[%s192 + $0x94] sm:$0xf]
      %v237 = vld [vmem:[%s192 + $0x98] sm:$0x1]
      %v238 = vld [vmem:[%s192 + $0x9c] sm:$0xf]
      %v239 = vld [vmem:[%s192 + $0xa0] sm:$0xf]
      %v240 = vld [vmem:[%s192 + $0xa4] sm:$0x1]
      %v241 = vld [vmem:[%s192 + $0xa8] sm:$0xf]
      %v242 = vld [vmem:[%s192 + $0xac] sm:$0xf]
      %v243 = vld [vmem:[%s192 + $0xb0] sm:$0x1]
      %v244 = vld [vmem:[%s192 + $0xb4] sm:$0xf]
      %v245 = vld [vmem:[%s192 + $0xb8] sm:$0xf]
      %v246 = vld [vmem:[%s192 + $0xbc] sm:$0x1]
      %v247 = vld [vmem:[%s192 + $0xc0] sm:$0xf]
      %v248 = vld [vmem:[%s192 + $0xc4] sm:$0xf]
      %v249 = vld [vmem:[%s192 + $0xc8] sm:$0x1]
      %v282 = vunpack.c.l.b16 %v199
      %v283 = vunpack.c.l.b16 %v200
      %v284 = vunpack.c.l.b16 %v202
      %v285 = vunpack.c.l.b16 %v203
      %v286 = vunpack.c.l.b16 %v205
      %v287 = vunpack.c.l.b16 %v206
      %v288 = vunpack.c.l.b16 %v208
      %v289 = vunpack.c.l.b16 %v209
      %v290 = vunpack.c.l.b16 %v211
      %v291 = vunpack.c.l.b16 %v212
      %v292 = vunpack.c.l.b16 %v214
      %v293 = vunpack.c.l.b16 %v215
      %v294 = vunpack.c.l.b16 %v217
      %v295 = vunpack.c.l.b16 %v218
      %v296 = vunpack.c.l.b16 %v220
      %v297 = vunpack.c.l.b16 %v221
      %v298 = vunpack.c.l.b16 %v223
      %v299 = vunpack.c.l.b16 %v224
      %v300 = vunpack.c.l.b16 %v226
      %v301 = vunpack.c.l.b16 %v227
      %v302 = vunpack.c.l.b16 %v229
      %v303 = vunpack.c.l.b16 %v230
      %v304 = vunpack.c.l.b16 %v232
      %v305 = vunpack.c.l.b16 %v233
      %v306 = vunpack.c.l.b16 %v235
      %v307 = vunpack.c.l.b16 %v236
      %v308 = vunpack.c.l.b16 %v238
      %v309 = vunpack.c.l.b16 %v239
      %v310 = vunpack.c.l.b16 %v241
      %v311 = vunpack.c.l.b16 %v242
      %v312 = vunpack.c.l.b16 %v244
      %v313 = vunpack.c.l.b16 %v245
      %v314 = vpack.c.b16 %v283, %v282
      %v315 = vpack.c.b16 %v285, %v284
      %v316 = vpack.c.b16 %v287, %v286
      %v317 = vpack.c.b16 %v289, %v288
      %v318 = vpack.c.b16 %v291, %v290
      %v319 = vpack.c.b16 %v293, %v292
      %v320 = vpack.c.b16 %v295, %v294
      %v321 = vpack.c.b16 %v297, %v296
      %v322 = vpack.c.b16 %v299, %v298
      %v323 = vpack.c.b16 %v301, %v300
      %v324 = vpack.c.b16 %v303, %v302
      %v325 = vpack.c.b16 %v305, %v304
      %v326 = vpack.c.b16 %v307, %v306
      %v327 = vpack.c.b16 %v309, %v308
      %v328 = vpack.c.b16 %v311, %v310
      %v329 = vpack.c.b16 %v313, %v312
      %v346 = vunpack.c.l.b16 %v201
      %v347 = vunpack.c.l.b16 %v204
      %v348 = vunpack.c.l.b16 %v207
      %v349 = vunpack.c.l.b16 %v210
      %v350 = vunpack.c.l.b16 %v213
      %v351 = vunpack.c.l.b16 %v216
      %v352 = vunpack.c.l.b16 %v219
      %v353 = vunpack.c.l.b16 %v222
      %v354 = vunpack.c.l.b16 %v225
      %v355 = vunpack.c.l.b16 %v228
      %v356 = vunpack.c.l.b16 %v231
      %v357 = vunpack.c.l.b16 %v234
      %v358 = vunpack.c.l.b16 %v237
      %v359 = vunpack.c.l.b16 %v240
      %v360 = vunpack.c.l.b16 %v243
      %v361 = vunpack.c.l.b16 %v246
      %v362 = vpack.c.b16 %v346, %v346
      %v363 = vpack.c.b16 %v347, %v347
      %v364 = vpack.c.b16 %v348, %v348
      %v365 = vpack.c.b16 %v349, %v349
      %v366 = vpack.c.b16 %v350, %v350
      %v367 = vpack.c.b16 %v351, %v351
      %v368 = vpack.c.b16 %v352, %v352
      %v369 = vpack.c.b16 %v353, %v353
      %v370 = vpack.c.b16 %v354, %v354
      %v371 = vpack.c.b16 %v355, %v355
      %v372 = vpack.c.b16 %v356, %v356
      %v373 = vpack.c.b16 %v357, %v357
      %v374 = vpack.c.b16 %v358, %v358
      %v375 = vpack.c.b16 %v359, %v359
      %v376 = vpack.c.b16 %v360, %v360
      %v377 = vpack.c.b16 %v361, %v361
      %vm378 = vsmask.f32 7424
      %v380 = vshrl.u32 %v314, 16
      %v382 = vshll.u32 %v314, 16
      %v384 = vrot.slane %v382, 1
      %v385 = vor.u32 %v380, %v384
      %v387 = vshll.u32 %v362, 16
      %v389 = vrot.slane %v387, 1
      %v390 = vsel %vm378, %v385, %v389
      %v392 = vshrl.u32 %v315, 16
      %v394 = vshll.u32 %v315, 16
      %v396 = vrot.slane %v394, 1
      %v397 = vor.u32 %v392, %v396
      %v399 = vshll.u32 %v363, 16
      %v401 = vrot.slane %v399, 1
      %v402 = vsel %vm378, %v397, %v401
      %v404 = vshrl.u32 %v316, 16
      %v406 = vshll.u32 %v316, 16
      %v408 = vrot.slane %v406, 1
      %v409 = vor.u32 %v404, %v408
      %v411 = vshll.u32 %v364, 16
      %v413 = vrot.slane %v411, 1
      %v414 = vsel %vm378, %v409, %v413
      %v416 = vshrl.u32 %v317, 16
      %v418 = vshll.u32 %v317, 16
      %v420 = vrot.slane %v418, 1
      %v421 = vor.u32 %v416, %v420
      %v423 = vshll.u32 %v365, 16
      %v425 = vrot.slane %v423, 1
      %v426 = vsel %vm378, %v421, %v425
      %v428 = vshrl.u32 %v318, 16
      %v430 = vshll.u32 %v318, 16
      %v432 = vrot.slane %v430, 1
      %v433 = vor.u32 %v428, %v432
      %v435 = vshll.u32 %v366, 16
      %v437 = vrot.slane %v435, 1
      %v438 = vsel %vm378, %v433, %v437
      %v440 = vshrl.u32 %v319, 16
      %v442 = vshll.u32 %v319, 16
      %v444 = vrot.slane %v442, 1
      %v445 = vor.u32 %v440, %v444
      %v447 = vshll.u32 %v367, 16
      %v449 = vrot.slane %v447, 1
      %v450 = vsel %vm378, %v445, %v449
      %v452 = vshrl.u32 %v320, 16
      %v454 = vshll.u32 %v320, 16
      %v456 = vrot.slane %v454, 1
      %v457 = vor.u32 %v452, %v456
      %v459 = vshll.u32 %v368, 16
      %v461 = vrot.slane %v459, 1
      %v462 = vsel %vm378, %v457, %v461
      %v464 = vshrl.u32 %v321, 16
      %v466 = vshll.u32 %v321, 16
      %v468 = vrot.slane %v466, 1
      %v469 = vor.u32 %v464, %v468
      %v471 = vshll.u32 %v369, 16
      %v473 = vrot.slane %v471, 1
      %v474 = vsel %vm378, %v469, %v473
      %v476 = vshrl.u32 %v322, 16
      %v478 = vshll.u32 %v322, 16
      %v480 = vrot.slane %v478, 1
      %v481 = vor.u32 %v476, %v480
      %v483 = vshll.u32 %v370, 16
      %v485 = vrot.slane %v483, 1
      %v486 = vsel %vm378, %v481, %v485
      %v488 = vshrl.u32 %v323, 16
      %v490 = vshll.u32 %v323, 16
      %v492 = vrot.slane %v490, 1
      %v493 = vor.u32 %v488, %v492
      %v495 = vshll.u32 %v371, 16
      %v497 = vrot.slane %v495, 1
      %v498 = vsel %vm378, %v493, %v497
      %v500 = vshrl.u32 %v324, 16
      %v502 = vshll.u32 %v324, 16
      %v504 = vrot.slane %v502, 1
      %v505 = vor.u32 %v500, %v504
      %v507 = vshll.u32 %v372, 16
      %v509 = vrot.slane %v507, 1
      %v510 = vsel %vm378, %v505, %v509
      %v512 = vshrl.u32 %v325, 16
      %v514 = vshll.u32 %v325, 16
      %v516 = vrot.slane %v514, 1
      %v517 = vor.u32 %v512, %v516
      %v519 = vshll.u32 %v373, 16
      %v521 = vrot.slane %v519, 1
      %v522 = vsel %vm378, %v517, %v521
      %v524 = vshrl.u32 %v326, 16
      %v526 = vshll.u32 %v326, 16
      %v528 = vrot.slane %v526, 1
      %v529 = vor.u32 %v524, %v528
      %v531 = vshll.u32 %v374, 16
      %v533 = vrot.slane %v531, 1
      %v534 = vsel %vm378, %v529, %v533
      %v536 = vshrl.u32 %v327, 16
      %v538 = vshll.u32 %v327, 16
      %v540 = vrot.slane %v538, 1
      %v541 = vor.u32 %v536, %v540
      %v543 = vshll.u32 %v375, 16
      %v545 = vrot.slane %v543, 1
      %v546 = vsel %vm378, %v541, %v545
      %v548 = vshrl.u32 %v328, 16
      %v550 = vshll.u32 %v328, 16
      %v552 = vrot.slane %v550, 1
      %v553 = vor.u32 %v548, %v552
      %v555 = vshll.u32 %v376, 16
      %v557 = vrot.slane %v555, 1
      %v558 = vsel %vm378, %v553, %v557
      %v560 = vshrl.u32 %v329, 16
      %v562 = vshll.u32 %v329, 16
      %v564 = vrot.slane %v562, 1
      %v565 = vor.u32 %v560, %v564
      %v567 = vshll.u32 %v377, 16
      %v569 = vrot.slane %v567, 1
      %v570 = vsel %vm378, %v565, %v569
      %571 = vrot.lane.b32.xlu0 %v390, 12
      %v572 = vpop.permute.xlu0 %571
      %573 = vrot.lane.b32.xlu0 %v402, 12
      %v574 = vpop.permute.xlu0 %573
      %575 = vrot.lane.b32.xlu0 %v414, 12
      %v576 = vpop.permute.xlu0 %575
      %577 = vrot.lane.b32.xlu0 %v426, 12
      %v578 = vpop.permute.xlu0 %577
      %579 = vrot.lane.b32.xlu0 %v438, 12
      %v580 = vpop.permute.xlu0 %579
      %581 = vrot.lane.b32.xlu0 %v450, 12
      %v582 = vpop.permute.xlu0 %581
      %583 = vrot.lane.b32.xlu0 %v462, 12
      %v584 = vpop.permute.xlu0 %583
      %585 = vrot.lane.b32.xlu0 %v474, 12
      %v586 = vpop.permute.xlu0 %585
      %587 = vrot.lane.b32.xlu0 %v486, 12
      %v588 = vpop.permute.xlu0 %587
      %589 = vrot.lane.b32.xlu0 %v498, 12
      %v590 = vpop.permute.xlu0 %589
      %591 = vrot.lane.b32.xlu0 %v510, 12
      %v592 = vpop.permute.xlu0 %591
      %593 = vrot.lane.b32.xlu0 %v522, 12
      %v594 = vpop.permute.xlu0 %593
      %595 = vrot.lane.b32.xlu0 %v534, 12
      %v596 = vpop.permute.xlu0 %595
      %597 = vrot.lane.b32.xlu0 %v546, 12
      %v598 = vpop.permute.xlu0 %597
      %599 = vrot.lane.b32.xlu0 %v558, 12
      %v600 = vpop.permute.xlu0 %599
      %601 = vrot.lane.b32.xlu0 %v570, 12
      %v602 = vpop.permute.xlu0 %601
      %v605 = vunpack.c.l.b16 %v247
      %v606 = vunpack.c.l.b16 %v248
      %v607 = vpack.c.b16 %v606, %v605
      %608 = vrot.lane.b32.xlu0 %v315, 24
      %v609 = vpop.permute.xlu0 %608
      %610 = vrot.lane.b32.xlu0 %v316, 24
      %v611 = vpop.permute.xlu0 %610
      %612 = vrot.lane.b32.xlu0 %v317, 24
      %v613 = vpop.permute.xlu0 %612
      %614 = vrot.lane.b32.xlu0 %v318, 24
      %v615 = vpop.permute.xlu0 %614
      %616 = vrot.lane.b32.xlu0 %v319, 24
      %v617 = vpop.permute.xlu0 %616
      %618 = vrot.lane.b32.xlu0 %v320, 24
      %v619 = vpop.permute.xlu0 %618
      %620 = vrot.lane.b32.xlu0 %v321, 24
      %v621 = vpop.permute.xlu0 %620
      %622 = vrot.lane.b32.xlu0 %v322, 24
      %v623 = vpop.permute.xlu0 %622
      %624 = vrot.lane.b32.xlu0 %v323, 24
      %v625 = vpop.permute.xlu0 %624
      %626 = vrot.lane.b32.xlu0 %v324, 24
      %v627 = vpop.permute.xlu0 %626
      %628 = vrot.lane.b32.xlu0 %v325, 24
      %v629 = vpop.permute.xlu0 %628
      %630 = vrot.lane.b32.xlu0 %v326, 24
      %v631 = vpop.permute.xlu0 %630
      %632 = vrot.lane.b32.xlu0 %v327, 24
      %v633 = vpop.permute.xlu0 %632
      %634 = vrot.lane.b32.xlu0 %v328, 24
      %v635 = vpop.permute.xlu0 %634
      %636 = vrot.lane.b32.xlu0 %v329, 24
      %v637 = vpop.permute.xlu0 %636
      %638 = vrot.lane.b32.xlu0 %v607, 24
      %v639 = vpop.permute.xlu0 %638
      %v641 = vunpack.c.l.b16 %v249
      %v642 = vpack.c.b16 %v641, %v641
      %v644 = vshrl.u32 %v607, 16
      %v646 = vshll.u32 %v607, 16
      %v648 = vrot.slane %v646, 1
      %v649 = vor.u32 %v644, %v648
      %v651 = vshll.u32 %v642, 16
      %v653 = vrot.slane %v651, 1
      %v654 = vsel %vm378, %v649, %v653
      %655 = vrot.lane.b32.xlu0 %v402, 36
      %v656 = vpop.permute.xlu0 %655
      %657 = vrot.lane.b32.xlu0 %v414, 36
      %v658 = vpop.permute.xlu0 %657
      %659 = vrot.lane.b32.xlu0 %v426, 36
      %v660 = vpop.permute.xlu0 %659
      %661 = vrot.lane.b32.xlu0 %v438, 36
      %v662 = vpop.permute.xlu0 %661
      %663 = vrot.lane.b32.xlu0 %v450, 36
      %v664 = vpop.permute.xlu0 %663
      %665 = vrot.lane.b32.xlu0 %v462, 36
      %v666 = vpop.permute.xlu0 %665
      %667 = vrot.lane.b32.xlu0 %v474, 36
      %v668 = vpop.permute.xlu0 %667
      %669 = vrot.lane.b32.xlu0 %v486, 36
      %v670 = vpop.permute.xlu0 %669
      %671 = vrot.lane.b32.xlu0 %v498, 36
      %v672 = vpop.permute.xlu0 %671
      %673 = vrot.lane.b32.xlu0 %v510, 36
      %v674 = vpop.permute.xlu0 %673
      %675 = vrot.lane.b32.xlu0 %v522, 36
      %v676 = vpop.permute.xlu0 %675
      %677 = vrot.lane.b32.xlu0 %v534, 36
      %v678 = vpop.permute.xlu0 %677
      %679 = vrot.lane.b32.xlu0 %v546, 36
      %v680 = vpop.permute.xlu0 %679
      %681 = vrot.lane.b32.xlu0 %v558, 36
      %v682 = vpop.permute.xlu0 %681
      %683 = vrot.lane.b32.xlu0 %v570, 36
      %v684 = vpop.permute.xlu0 %683
      %685 = vrot.lane.b32.xlu0 %v654, 36
      %v686 = vpop.permute.xlu0 %685
      %vm687 = vcmask 97280
      %v689 = vsel %vm687, %v314, %v572
      %v691 = vsel %vm687, %v315, %v574
      %v693 = vsel %vm687, %v316, %v576
      %v695 = vsel %vm687, %v317, %v578
      %v697 = vsel %vm687, %v318, %v580
      %v699 = vsel %vm687, %v319, %v582
      %v701 = vsel %vm687, %v320, %v584
      %v703 = vsel %vm687, %v321, %v586
      %v705 = vsel %vm687, %v322, %v588
      %v707 = vsel %vm687, %v323, %v590
      %v709 = vsel %vm687, %v324, %v592
      %v711 = vsel %vm687, %v325, %v594
      %v713 = vsel %vm687, %v326, %v596
      %v715 = vsel %vm687, %v327, %v598
      %v717 = vsel %vm687, %v328, %v600
      %v719 = vsel %vm687, %v329, %v602
      %vm720 = vcmask 195584
      %v722 = vsel %vm720, %v689, %v609
      %v724 = vsel %vm720, %v691, %v611
      %v726 = vsel %vm720, %v693, %v613
      %v728 = vsel %vm720, %v695, %v615
      %v730 = vsel %vm720, %v697, %v617
      %v732 = vsel %vm720, %v699, %v619
      %v734 = vsel %vm720, %v701, %v621
      %v736 = vsel %vm720, %v703, %v623
      %v738 = vsel %vm720, %v705, %v625
      %v740 = vsel %vm720, %v707, %v627
      %v742 = vsel %vm720, %v709, %v629
      %v744 = vsel %vm720, %v711, %v631
      %v746 = vsel %vm720, %v713, %v633
      %v748 = vsel %vm720, %v715, %v635
      %v750 = vsel %vm720, %v717, %v637
      %v752 = vsel %vm720, %v719, %v639
      %vm753 = vcmask 293888
      %v755 = vsel %vm753, %v722, %v656
      %v757 = vsel %vm753, %v724, %v658
      %v759 = vsel %vm753, %v726, %v660
      %v761 = vsel %vm753, %v728, %v662
      %v763 = vsel %vm753, %v730, %v664
      %v765 = vsel %vm753, %v732, %v666
      %v767 = vsel %vm753, %v734, %v668
      %v769 = vsel %vm753, %v736, %v670
      %v771 = vsel %vm753, %v738, %v672
      %v773 = vsel %vm753, %v740, %v674
      %v775 = vsel %vm753, %v742, %v676
      %v777 = vsel %vm753, %v744, %v678
      %v779 = vsel %vm753, %v746, %v680
      %v781 = vsel %vm753, %v748, %v682
      %v783 = vsel %vm753, %v750, %v684
      %v785 = vsel %vm753, %v752, %v686
      %v786 = vld [vmem:[%s1] sm:$0xf]
      %v787 = vld [vmem:[%s1 + $0x4] sm:$0xf]
      %v788 = vld [vmem:[%s1 + $0x8] sm:$0xf]
      %v789 = vld [vmem:[%s1 + $0xc] sm:$0xf]
      %v790 = vld [vmem:[%s1 + $0x10] sm:$0xf]
      %v791 = vld [vmem:[%s1 + $0x14] sm:$0xf]
      %v798 = vunpack.c.l.b16 %v786
      %v799 = vunpack.c.l.b16 %v787
      %v800 = vunpack.c.l.b16 %v788
      %v801 = vunpack.c.l.b16 %v789
      %v802 = vunpack.c.l.b16 %v790
      %v803 = vunpack.c.l.b16 %v791
      %v804 = vpack.c.b16 %v799, %v798
      %v805 = vpack.c.b16 %v801, %v800
      %v806 = vpack.c.b16 %v803, %v802
      %vm810 = vcmask 392192
      %v811 = vsel %vm810, %v755, 0
      %v813 = vsel %vm810, %v757, 0
      %v815 = vsel %vm810, %v759, 0
      %v817 = vsel %vm810, %v761, 0
      %v819 = vsel %vm810, %v763, 0
      %v821 = vsel %vm810, %v765, 0
      %v823 = vsel %vm810, %v767, 0
      %v825 = vsel %vm810, %v769, 0
      %v827 = vsel %vm810, %v771, 0
      %v829 = vsel %vm810, %v773, 0
      %v831 = vsel %vm810, %v775, 0
      %v833 = vsel %vm810, %v777, 0
      %v835 = vsel %vm810, %v779, 0
      %v837 = vsel %vm810, %v781, 0
      %v839 = vsel %vm810, %v783, 0
      %v841 = vsel %vm810, %v785, 0
      %843 = vmatprep.subr.bf16.mxu0 0
      %844 = vmatpush1.bf16.msra.mxu0 0
      %845 = vmatprep.subr.bf16.mxu0 0
      %846 = vmatpush1.bf16.msra.mxu0 0
      %847 = vmatprep.subr.bf16.mxu0 0
      %848 = vmatpush1.bf16.msra.mxu0 0
      %849 = vmatprep.subr.bf16.mxu0 0
      %850 = vmatpush1.bf16.msra.mxu0 0
      %851 = vmatprep.subr.bf16.mxu0 0
      %852 = vmatpush1.bf16.msra.mxu0 0
      %853 = vmatprep.subr.bf16.mxu0 0
      %854 = vmatpush1.bf16.msra.mxu0 %v806
      %855 = vmatprep.subr.bf16.mxu0 0
      %856 = vmatpush1.bf16.msra.mxu0 %v805
      %857 = vmatprep.subr.bf16.mxu0 0
      %858 = vmatpush1.bf16.msra.mxu0 %v804
      %859 = vmatprep.subr.bf16.mxu0 0
      %860 = vmatpush2.bf16.msra.mxu0 0
      %861 = vmatprep.subr.bf16.mxu0 0
      %862 = vmatpush2.bf16.msra.mxu0 0
      %863 = vmatprep.subr.bf16.mxu0 0
      %864 = vmatpush2.bf16.msra.mxu0 0
      %865 = vmatprep.subr.bf16.mxu0 0
      %866 = vmatpush2.bf16.msra.mxu0 0
      %867 = vmatprep.subr.bf16.mxu0 0
      %868 = vmatpush2.bf16.msra.mxu0 0
      %869 = vmatprep.subr.bf16.mxu0 0
      %870 = vmatpush2.bf16.msra.mxu0 0
      %871 = vmatprep.subr.bf16.mxu0 0
      %872 = vmatpush2.bf16.msra.mxu0 0
      %873 = vmatprep.subr.bf16.mxu0 0
      %874 = vmatpush2.bf16.msra.mxu0 0
      %875 = vmatprep.mubr.bf16.mxu0 0
      %876 = vmatmul.mubr.bf16.gmra.mxu0 %v811
      %v877 = vpop.f32.mrf.mxu0
      %v878 = vadd.f32 0.0, %v877
      %v879 = vpop.f32.mrf.mxu0
      %v880 = vpop.f32.mrf.mxu0
      %v881 = vadd.f32 0.0, %v880
      %v882 = vpop.f32.mrf.mxu0
      %883 = vmatprep.mubr.bf16.mxu0 0
      %884 = vmatmul.mubr.bf16.gmra.mxu0 %v813
      %v885 = vpop.f32.mrf.mxu0
      %v886 = vadd.f32 0.0, %v885
      %v887 = vpop.f32.mrf.mxu0
      %v888 = vpop.f32.mrf.mxu0
      %v889 = vadd.f32 0.0, %v888
      %v890 = vpop.f32.mrf.mxu0
      %891 = vmatprep.mubr.bf16.mxu0 0
      %892 = vmatmul.mubr.bf16.gmra.mxu0 %v815
      %v893 = vpop.f32.mrf.mxu0
      %v894 = vadd.f32 0.0, %v893
      %v895 = vpop.f32.mrf.mxu0
      %v896 = vpop.f32.mrf.mxu0
      %v897 = vadd.f32 0.0, %v896
      %v898 = vpop.f32.mrf.mxu0
      %899 = vmatprep.mubr.bf16.mxu0 0
      %900 = vmatmul.mubr.bf16.gmra.mxu0 %v817
      %v901 = vpop.f32.mrf.mxu0
      %v902 = vadd.f32 0.0, %v901
      %v903 = vpop.f32.mrf.mxu0
      %v904 = vpop.f32.mrf.mxu0
      %v905 = vadd.f32 0.0, %v904
      %v906 = vpop.f32.mrf.mxu0
      %907 = vmatprep.mubr.bf16.mxu0 0
      %908 = vmatmul.mubr.bf16.gmra.mxu0 %v819
      %v909 = vpop.f32.mrf.mxu0
      %v910 = vadd.f32 0.0, %v909
      %v911 = vpop.f32.mrf.mxu0
      %v912 = vpop.f32.mrf.mxu0
      %v913 = vadd.f32 0.0, %v912
      %v914 = vpop.f32.mrf.mxu0
      %915 = vmatprep.mubr.bf16.mxu0 0
      %916 = vmatmul.mubr.bf16.gmra.mxu0 %v821
      %v917 = vpop.f32.mrf.mxu0
      %v918 = vadd.f32 0.0, %v917
      %v919 = vpop.f32.mrf.mxu0
      %v920 = vpop.f32.mrf.mxu0
      %v921 = vadd.f32 0.0, %v920
      %v922 = vpop.f32.mrf.mxu0
      %923 = vmatprep.mubr.bf16.mxu0 0
      %924 = vmatmul.mubr.bf16.gmra.mxu0 %v823
      %v925 = vpop.f32.mrf.mxu0
      %v926 = vadd.f32 0.0, %v925
      %v927 = vpop.f32.mrf.mxu0
      %v928 = vpop.f32.mrf.mxu0
      %v929 = vadd.f32 0.0, %v928
      %v930 = vpop.f32.mrf.mxu0
      %931 = vmatprep.mubr.bf16.mxu0 0
      %932 = vmatmul.mubr.bf16.gmra.mxu0 %v825
      %v933 = vpop.f32.mrf.mxu0
      %v934 = vadd.f32 0.0, %v933
      %v935 = vpop.f32.mrf.mxu0
      %v936 = vpop.f32.mrf.mxu0
      %v937 = vadd.f32 0.0, %v936
      %v938 = vpop.f32.mrf.mxu0
      %939 = vmatprep.mubr.bf16.mxu0 0
      %940 = vmatmul.mubr.bf16.gmra.mxu0 %v827
      %v941 = vpop.f32.mrf.mxu0
      %v942 = vadd.f32 0.0, %v941
      %v943 = vpop.f32.mrf.mxu0
      %v944 = vpop.f32.mrf.mxu0
      %v945 = vadd.f32 0.0, %v944
      %v946 = vpop.f32.mrf.mxu0
      %947 = vmatprep.mubr.bf16.mxu0 0
      %948 = vmatmul.mubr.bf16.gmra.mxu0 %v829
      %v949 = vpop.f32.mrf.mxu0
      %v950 = vadd.f32 0.0, %v949
      %v951 = vpop.f32.mrf.mxu0
      %v952 = vpop.f32.mrf.mxu0
      %v953 = vadd.f32 0.0, %v952
      %v954 = vpop.f32.mrf.mxu0
      %955 = vmatprep.mubr.bf16.mxu0 0
      %956 = vmatmul.mubr.bf16.gmra.mxu0 %v831
      %v957 = vpop.f32.mrf.mxu0
      %v958 = vadd.f32 0.0, %v957
      %v959 = vpop.f32.mrf.mxu0
      %v960 = vpop.f32.mrf.mxu0
      %v961 = vadd.f32 0.0, %v960
      %v962 = vpop.f32.mrf.mxu0
      %963 = vmatprep.mubr.bf16.mxu0 0
      %964 = vmatmul.mubr.bf16.gmra.mxu0 %v833
      %v965 = vpop.f32.mrf.mxu0
      %v966 = vadd.f32 0.0, %v965
      %v967 = vpop.f32.mrf.mxu0
      %v968 = vpop.f32.mrf.mxu0
      %v969 = vadd.f32 0.0, %v968
      %v970 = vpop.f32.mrf.mxu0
      %971 = vmatprep.mubr.bf16.mxu0 0
      %972 = vmatmul.mubr.bf16.gmra.mxu0 %v835
      %v973 = vpop.f32.mrf.mxu0
      %v974 = vadd.f32 0.0, %v973
      %v975 = vpop.f32.mrf.mxu0
      %v976 = vpop.f32.mrf.mxu0
      %v977 = vadd.f32 0.0, %v976
      %v978 = vpop.f32.mrf.mxu0
      %979 = vmatprep.mubr.bf16.mxu0 0
      %980 = vmatmul.mubr.bf16.gmra.mxu0 %v837
      %v981 = vpop.f32.mrf.mxu0
      %v982 = vadd.f32 0.0, %v981
      %v983 = vpop.f32.mrf.mxu0
      %v984 = vpop.f32.mrf.mxu0
      %v985 = vadd.f32 0.0, %v984
      %v986 = vpop.f32.mrf.mxu0
      %987 = vmatprep.mubr.bf16.mxu0 0
      %988 = vmatmul.mubr.bf16.gmra.mxu0 %v839
      %v989 = vpop.f32.mrf.mxu0
      %v990 = vadd.f32 0.0, %v989
      %v991 = vpop.f32.mrf.mxu0
      %v992 = vpop.f32.mrf.mxu0
      %v993 = vadd.f32 0.0, %v992
      %v994 = vpop.f32.mrf.mxu0
      %995 = vmatprep.mubr.bf16.mxu0 0
      %996 = vmatmul.mubr.bf16.gmra.mxu0 %v841
      %v997 = vpop.f32.mrf.mxu0
      %v998 = vadd.f32 0.0, %v997
      %v999 = vpop.f32.mrf.mxu0
      %v1000 = vpop.f32.mrf.mxu0
      %v1001 = vadd.f32 0.0, %v1000
      %v1002 = vpop.f32.mrf.mxu0
      %1003 = vdwg.mxu0
      %v1004 = vld [vmem:[%s2] sm:$0x1]
      %v1006 = vlaneseq
      %v1007 = vshrl.u32 %v1006, 7
      %v1008 = vsub.s32 0, %v1007
      %v1009 = vrot.slane %v1004, %v1008
      %v1011 = vmul.f32 %v878, %v1009
      %v1012 = vmul.f32 %v881, %v1009
      %v1013 = vmul.f32 %v886, %v1009
      %v1014 = vmul.f32 %v889, %v1009
      %v1015 = vmul.f32 %v894, %v1009
      %v1016 = vmul.f32 %v897, %v1009
      %v1017 = vmul.f32 %v902, %v1009
      %v1018 = vmul.f32 %v905, %v1009
      %v1019 = vmul.f32 %v910, %v1009
      %v1020 = vmul.f32 %v913, %v1009
      %v1021 = vmul.f32 %v918, %v1009
      %v1022 = vmul.f32 %v921, %v1009
      %v1023 = vmul.f32 %v926, %v1009
      %v1024 = vmul.f32 %v929, %v1009
      %v1025 = vmul.f32 %v934, %v1009
      %v1026 = vmul.f32 %v937, %v1009
      %v1027 = vmul.f32 %v942, %v1009
      %v1028 = vmul.f32 %v945, %v1009
      %v1029 = vmul.f32 %v950, %v1009
      %v1030 = vmul.f32 %v953, %v1009
      %v1031 = vmul.f32 %v958, %v1009
      %v1032 = vmul.f32 %v961, %v1009
      %v1033 = vmul.f32 %v966, %v1009
      %v1034 = vmul.f32 %v969, %v1009
      %v1035 = vmul.f32 %v974, %v1009
      %v1036 = vmul.f32 %v977, %v1009
      %v1037 = vmul.f32 %v982, %v1009
      %v1038 = vmul.f32 %v985, %v1009
      %v1039 = vmul.f32 %v990, %v1009
      %v1040 = vmul.f32 %v993, %v1009
      %v1041 = vmul.f32 %v998, %v1009
      %v1042 = vmul.f32 %v1001, %v1009
      %v1043 = vld [vmem:[%s3] sm:$0x1]
      %v1045 = vlaneseq
      %v1046 = vshrl.u32 %v1045, 7
      %v1047 = vsub.s32 0, %v1046
      %v1048 = vrot.slane %v1043, %v1047
      %v1050 = vadd.f32 %v1011, %v1048
      %v1051 = vadd.f32 %v1012, %v1048
      %v1052 = vadd.f32 %v1013, %v1048
      %v1053 = vadd.f32 %v1014, %v1048
      %v1054 = vadd.f32 %v1015, %v1048
      %v1055 = vadd.f32 %v1016, %v1048
      %v1056 = vadd.f32 %v1017, %v1048
      %v1057 = vadd.f32 %v1018, %v1048
      %v1058 = vadd.f32 %v1019, %v1048
      %v1059 = vadd.f32 %v1020, %v1048
      %v1060 = vadd.f32 %v1021, %v1048
      %v1061 = vadd.f32 %v1022, %v1048
      %v1062 = vadd.f32 %v1023, %v1048
      %v1063 = vadd.f32 %v1024, %v1048
      %v1064 = vadd.f32 %v1025, %v1048
      %v1065 = vadd.f32 %v1026, %v1048
      %v1066 = vadd.f32 %v1027, %v1048
      %v1067 = vadd.f32 %v1028, %v1048
      %v1068 = vadd.f32 %v1029, %v1048
      %v1069 = vadd.f32 %v1030, %v1048
      %v1070 = vadd.f32 %v1031, %v1048
      %v1071 = vadd.f32 %v1032, %v1048
      %v1072 = vadd.f32 %v1033, %v1048
      %v1073 = vadd.f32 %v1034, %v1048
      %v1074 = vadd.f32 %v1035, %v1048
      %v1075 = vadd.f32 %v1036, %v1048
      %v1076 = vadd.f32 %v1037, %v1048
      %v1077 = vadd.f32 %v1038, %v1048
      %v1078 = vadd.f32 %v1039, %v1048
      %v1079 = vadd.f32 %v1040, %v1048
      %v1080 = vadd.f32 %v1041, %v1048
      %v1081 = vadd.f32 %v1042, %v1048
      %v1082 = vmax.f32 %v1050, 0.0
      %v1083 = vmax.f32 %v1051, 0.0
      %v1084 = vmax.f32 %v1052, 0.0
      %v1085 = vmax.f32 %v1053, 0.0
      %v1086 = vmax.f32 %v1054, 0.0
      %v1087 = vmax.f32 %v1055, 0.0
      %v1088 = vmax.f32 %v1056, 0.0
      %v1089 = vmax.f32 %v1057, 0.0
      %v1090 = vmax.f32 %v1058, 0.0
      %v1091 = vmax.f32 %v1059, 0.0
      %v1092 = vmax.f32 %v1060, 0.0
      %v1093 = vmax.f32 %v1061, 0.0
      %v1094 = vmax.f32 %v1062, 0.0
      %v1095 = vmax.f32 %v1063, 0.0
      %v1096 = vmax.f32 %v1064, 0.0
      %v1097 = vmax.f32 %v1065, 0.0
      %v1098 = vmax.f32 %v1066, 0.0
      %v1099 = vmax.f32 %v1067, 0.0
      %v1100 = vmax.f32 %v1068, 0.0
      %v1101 = vmax.f32 %v1069, 0.0
      %v1102 = vmax.f32 %v1070, 0.0
      %v1103 = vmax.f32 %v1071, 0.0
      %v1104 = vmax.f32 %v1072, 0.0
      %v1105 = vmax.f32 %v1073, 0.0
      %v1106 = vmax.f32 %v1074, 0.0
      %v1107 = vmax.f32 %v1075, 0.0
      %v1108 = vmax.f32 %v1076, 0.0
      %v1109 = vmax.f32 %v1077, 0.0
      %v1110 = vmax.f32 %v1078, 0.0
      %v1111 = vmax.f32 %v1079, 0.0
      %v1112 = vmax.f32 %v1080, 0.0
      %v1113 = vmax.f32 %v1081, 0.0
      %vm1114 = vcmask 523264
      %1115 = vst.msk [vmem:[%s197] sm:$0xff] %vm1114, %v1082
      %1116 = vst.msk [vmem:[%s197 + $0x8] sm:$0xff] %vm1114, %v1083
      %1117 = vst.msk [vmem:[%s197 + $0x10] sm:$0xff] %vm1114, %v1084
      %1118 = vst.msk [vmem:[%s197 + $0x18] sm:$0xff] %vm1114, %v1085
      %1119 = vst.msk [vmem:[%s197 + $0x20] sm:$0xff] %vm1114, %v1086
      %1120 = vst.msk [vmem:[%s197 + $0x28] sm:$0xff] %vm1114, %v1087
      %1121 = vst.msk [vmem:[%s197 + $0x30] sm:$0xff] %vm1114, %v1088
      %1122 = vst.msk [vmem:[%s197 + $0x38] sm:$0xff] %vm1114, %v1089
      %1123 = vst.msk [vmem:[%s197 + $0x40] sm:$0xff] %vm1114, %v1090
      %1124 = vst.msk [vmem:[%s197 + $0x48] sm:$0xff] %vm1114, %v1091
      %1125 = vst.msk [vmem:[%s197 + $0x50] sm:$0xff] %vm1114, %v1092
      %1126 = vst.msk [vmem:[%s197 + $0x58] sm:$0xff] %vm1114, %v1093
      %1127 = vst.msk [vmem:[%s197 + $0x60] sm:$0xff] %vm1114, %v1094
      %1128 = vst.msk [vmem:[%s197 + $0x68] sm:$0xff] %vm1114, %v1095
      %1129 = vst.msk [vmem:[%s197 + $0x70] sm:$0xff] %vm1114, %v1096
      %1130 = vst.msk [vmem:[%s197 + $0x78] sm:$0xff] %vm1114, %v1097
      %1131 = vst.msk [vmem:[%s197 + $0x80] sm:$0xff] %vm1114, %v1098
      %1132 = vst.msk [vmem:[%s197 + $0x88] sm:$0xff] %vm1114, %v1099
      %1133 = vst.msk [vmem:[%s197 + $0x90] sm:$0xff] %vm1114, %v1100
      %1134 = vst.msk [vmem:[%s197 + $0x98] sm:$0xff] %vm1114, %v1101
      %1135 = vst.msk [vmem:[%s197 + $0xa0] sm:$0xff] %vm1114, %v1102
      %1136 = vst.msk [vmem:[%s197 + $0xa8] sm:$0xff] %vm1114, %v1103
      %1137 = vst.msk [vmem:[%s197 + $0xb0] sm:$0xff] %vm1114, %v1104
      %1138 = vst.msk [vmem:[%s197 + $0xb8] sm:$0xff] %vm1114, %v1105
      %1139 = vst.msk [vmem:[%s197 + $0xc0] sm:$0xff] %vm1114, %v1106
      %1140 = vst.msk [vmem:[%s197 + $0xc8] sm:$0xff] %vm1114, %v1107
      %1141 = vst.msk [vmem:[%s197 + $0xd0] sm:$0xff] %vm1114, %v1108
      %1142 = vst.msk [vmem:[%s197 + $0xd8] sm:$0xff] %vm1114, %v1109
      %1143 = vst.msk [vmem:[%s197 + $0xe0] sm:$0xff] %vm1114, %v1110
      %1144 = vst.msk [vmem:[%s197 + $0xe8] sm:$0xff] %vm1114, %v1111
      %1145 = vst.msk [vmem:[%s197 + $0xf0] sm:$0xff] %vm1114, %v1112
      %1146 = vst.msk [vmem:[%s197 + $0xf8] sm:$0xff] %vm1114, %v1113
      %p1147 = scmp.lt.s32.totalorder %s15, 1
      %s1148 = scalar_select %p1147, %s15, 1
      %s1149 = smul.addr %s1148, 32
      %s1150 = smul.addr %s1149, 8
      %s1151 = scalar_lea.vmem %s4, %s1150
      // Predicated region
      $region37: #{_lambda_.10} parent=35 // pred_check
        %p1152 = pneg %p122
      $region38: #{_lambda_.10} parent=35 // pred_check_branch
        %1154 = sbr.rel (%p1152) target = $region40
      $region39: #{_lambda_.10} parent=35 // pred_region
        _
      $region40: #{_lambda_.10} parent=35 // pred_fallthru
        _
    $region36: #{_lambda_.10} parent=5 // pred_fallthru
      _
    %p1155 = scmp.le.s32.totalorder 2, %s10
    // Predicated region
    $region41: #{_lambda_.10} parent=5 // pred_check
      %p1156 = pneg %p1155
    $region42: #{_lambda_.10} parent=5 // pred_check_branch
      %1158 = sbr.rel (%p1156) target = $region44
    $region43: #{_lambda_.10} parent=5 // pred_region
      %s1159 = ssub.s32 %s10, 2
      // Predicated region
      $region45: #{_lambda_.10} parent=43 // pred_check
        %p1160 = pneg %p128
      $region46: #{_lambda_.10} parent=43 // pred_check_branch
        %1162 = sbr.rel (%p1160) target = $region48
      $region47: #{_lambda_.10} parent=43 // pred_region
        %p1163 = scmp.lt.s32.totalorder %s16, 1
        %s1164 = scalar_select %p1163, %s16, 1
        %s1165 = smul.addr %s1164, 32
        %s1166 = smul.addr %s1165, 8
        %s1167 = scalar_lea.vmem %s4, %s1166
      $region48: #{_lambda_.10} parent=43 // pred_fallthru
        _
    $region44: #{_lambda_.10} parent=5 // pred_fallthru
      _
  $region6: #{_lambda_.10} parent=0 // loop_footer
    %s14 = sadd.s32 1, %s10
  $region7: #{_lambda_.10} parent=0 // loop_footer_branch
    %9 = sbr.rel target = $region3
  $region8: #{_lambda_.10} parent=0 // loop_exit
    _

// kernel: _lambda_.11
$region0: #{_lambda_.11}
  #allocation0 [shape = 'u32[]', space=smem, size = 0x4, offset = 0x4, fixed_abs, tag = 'smem constant byte address 0x4 - core index']
  #allocation1 [shape = 'u32[144,128]{1,0:T(1,128)}', space=vmem, size = 0x12000, scoped, tag = 'internal scratch']
  %s0 = inlined_call_operand.vmem [shape: bf16[2,18,18,64], index: 0, kind: input, shape index: {}]
  %s1 = inlined_call_operand.vmem [shape: bf16[576,64], index: 1, kind: input, shape index: {}]
  %s2 = inlined_call_operand.vmem [shape: f32[1,64], index: 2, kind: input, shape index: {}]
  %s3 = inlined_call_operand.vmem [shape: f32[1,64], index: 3, kind: input, shape index: {}]
  %s4 = inlined_call_operand.vmem [shape: f32[2,256,64], index: 4, kind: output, shape index: {}]
  %s5 = sld [smem:[#allocation0]]
  $region49: #{_lambda_.11} parent=0
    _
  %s7 = ssub.s32 1, %s5
  %s8 = scalar_select 0, %s7, %s5
  loop: start=0, step=1, limit=4
  $region2: #{_lambda_.11} parent=0 // loop_pre_header
    _
  $region3: #{_lambda_.11} parent=0 // loop_header
    %s10 = sphi 0, %s14
    %p11 = scmp.ge.s32.totalorder %s10, 4
    %s20 = sphi 0, %s22
    %s23 = sphi 0, %s20
    %s24 = sphi 0, %s23
    %s40 = sphi 0, %s24
    %s44 = sphi 0, %s44
    %s46 = sphi 0, %s44
    %s47 = sphi 0, %s46
    %s61 = sphi 0, %s47
    %s65 = sphi 0, %s65
    %s67 = sphi 0, %s65
    %s68 = sphi 0, %s67
    %s82 = sphi 0, %s68
    %s86 = sphi 0, %s86
    %s88 = sphi 0, %s86
    %s89 = sphi 0, %s88
    %s103 = sphi 0, %s89
    %s109 = sphi 0, %s111
    %s112 = sphi 0, %s109
    %s113 = sphi 0, %s112
    %s129 = sphi 0, %s113
  $region4: #{_lambda_.11} parent=0 // loop_header_branch
    %13 = sbr.rel (%p11) target = $region8
  $region5: #{_lambda_.11} parent=0 // loop_body
    %s15 = ssub.s32 %s10, 1
    %s16 = ssub.s32 %s10, 2
    %s17 = sadd.s32 %s10, 1
    %s18 = ssub.s32 %s10, %s17
    %p19 = scmp.eq.s32.totalorder %s18, 0
    %s21 = sadd.s32 %s20, 1
    %s22 = scalar_select %p19, %s20, %s21
    %p25 = pneg %p19
    %p26 = scmp.eq.s32.totalorder %s10, 1
    %p27 = por %p25, %p26
    %p28 = scmp.ne.s32.totalorder %s20, %s23
    %p29 = scmp.eq.s32.totalorder %s10, 0
    %p30 = por %p28, %p29
    %p31 = scmp.ne.s32.totalorder %s20, %s23
    %p32 = scmp.eq.s32.totalorder %s15, 1
    %p33 = por %p31, %p32
    %p34 = scmp.ne.s32.totalorder %s23, %s24
    %p35 = scmp.eq.s32.totalorder %s15, 0
    %p36 = por %p34, %p35
    %p37 = scmp.ne.s32.totalorder %s23, %s24
    %p38 = scmp.eq.s32.totalorder %s16, 1
    %p39 = por %p37, %p38
    %p41 = scmp.ne.s32.totalorder %s24, %s40
    %p42 = scmp.eq.s32.totalorder %s16, 0
    %p43 = por %p41, %p42
    %s45 = sadd.s32 %s44, 1
    %p48 = scmp.eq.s32.totalorder %s10, 1
    %p49 = scmp.ne.s32.totalorder %s44, %s46
    %p50 = scmp.eq.s32.totalorder %s10, 0
    %p51 = por %p49, %p50
    %p52 = scmp.ne.s32.totalorder %s44, %s46
    %p53 = scmp.eq.s32.totalorder %s15, 1
    %p54 = por %p52, %p53
    %p55 = scmp.ne.s32.totalorder %s46, %s47
    %p56 = scmp.eq.s32.totalorder %s15, 0
    %p57 = por %p55, %p56
    %p58 = scmp.ne.s32.totalorder %s46, %s47
    %p59 = scmp.eq.s32.totalorder %s16, 1
    %p60 = por %p58, %p59
    %p62 = scmp.ne.s32.totalorder %s47, %s61
    %p63 = scmp.eq.s32.totalorder %s16, 0
    %p64 = por %p62, %p63
    %s66 = sadd.s32 %s65, 1
    %p69 = scmp.eq.s32.totalorder %s10, 1
    %p70 = scmp.ne.s32.totalorder %s65, %s67
    %p71 = scmp.eq.s32.totalorder %s10, 0
    %p72 = por %p70, %p71
    %p73 = scmp.ne.s32.totalorder %s65, %s67
    %p74 = scmp.eq.s32.totalorder %s15, 1
    %p75 = por %p73, %p74
    %p76 = scmp.ne.s32.totalorder %s67, %s68
    %p77 = scmp.eq.s32.totalorder %s15, 0
    %p78 = por %p76, %p77
    %p79 = scmp.ne.s32.totalorder %s67, %s68
    %p80 = scmp.eq.s32.totalorder %s16, 1
    %p81 = por %p79, %p80
    %p83 = scmp.ne.s32.totalorder %s68, %s82
    %p84 = scmp.eq.s32.totalorder %s16, 0
    %p85 = por %p83, %p84
    %s87 = sadd.s32 %s86, 1
    %p90 = scmp.eq.s32.totalorder %s10, 1
    %p91 = scmp.ne.s32.totalorder %s86, %s88
    %p92 = scmp.eq.s32.totalorder %s10, 0
    %p93 = por %p91, %p92
    %p94 = scmp.ne.s32.totalorder %s86, %s88
    %p95 = scmp.eq.s32.totalorder %s15, 1
    %p96 = por %p94, %p95
    %p97 = scmp.ne.s32.totalorder %s88, %s89
    %p98 = scmp.eq.s32.totalorder %s15, 0
    %p99 = por %p97, %p98
    %p100 = scmp.ne.s32.totalorder %s88, %s89
    %p101 = scmp.eq.s32.totalorder %s16, 1
    %p102 = por %p100, %p101
    %p104 = scmp.ne.s32.totalorder %s89, %s103
    %p105 = scmp.eq.s32.totalorder %s16, 0
    %p106 = por %p104, %p105
    %s107 = ssub.s32 %s10, %s17
    %p108 = scmp.eq.s32.totalorder %s107, 0
    %s110 = sadd.s32 %s109, 1
    %s111 = scalar_select %p108, %s109, %s110
    %p114 = pneg %p108
    %p115 = scmp.eq.s32.totalorder %s10, 1
    %p116 = por %p114, %p115
    %p117 = scmp.ne.s32.totalorder %s109, %s112
    %p118 = scmp.eq.s32.totalorder %s10, 0
    %p119 = por %p117, %p118
    %p120 = scmp.ne.s32.totalorder %s109, %s112
    %p121 = scmp.eq.s32.totalorder %s15, 1
    %p122 = por %p120, %p121
    %p123 = scmp.ne.s32.totalorder %s112, %s113
    %p124 = scmp.eq.s32.totalorder %s15, 0
    %p125 = por %p123, %p124
    %p126 = scmp.ne.s32.totalorder %s112, %s113
    %p127 = scmp.eq.s32.totalorder %s16, 1
    %p128 = por %p126, %p127
    %p130 = scmp.ne.s32.totalorder %s113, %s129
    %p131 = scmp.eq.s32.totalorder %s16, 0
    %p132 = por %p130, %p131
    %p133 = scmp.le.s32.totalorder 1, %s10
    %p134 = scmp.lt.s32.totalorder %s10, 3
    %p135 = pnand %p133, %p134
    %p136 = pneg %p135
    // Predicated region
    $region9: #{_lambda_.11} parent=5 // pred_check
      _
    $region10: #{_lambda_.11} parent=5 // pred_check_branch
      %138 = sbr.rel (%p135) target = $region12
    $region11: #{_lambda_.11} parent=5 // pred_region
      %s139 = ssub.s32 %s10, 1
      // Predicated region
      $region13: #{_lambda_.11} parent=11 // pred_check
        %p140 = pneg %p57
      $region14: #{_lambda_.11} parent=11 // pred_check_branch
        %142 = sbr.rel (%p140) target = $region16
      $region15: #{_lambda_.11} parent=11 // pred_region
        _
      $region16: #{_lambda_.11} parent=11 // pred_fallthru
        _
      // Predicated region
      $region17: #{_lambda_.11} parent=11 // pred_check
        %p143 = pneg %p78
      $region18: #{_lambda_.11} parent=11 // pred_check_branch
        %145 = sbr.rel (%p143) target = $region20
      $region19: #{_lambda_.11} parent=11 // pred_region
        _
      $region20: #{_lambda_.11} parent=11 // pred_fallthru
        _
      // Predicated region
      $region21: #{_lambda_.11} parent=11 // pred_check
        %p146 = pneg %p99
      $region22: #{_lambda_.11} parent=11 // pred_check_branch
        %148 = sbr.rel (%p146) target = $region24
      $region23: #{_lambda_.11} parent=11 // pred_region
        _
      $region24: #{_lambda_.11} parent=11 // pred_fallthru
        _
    $region12: #{_lambda_.11} parent=5 // pred_fallthru
      _
    %p149 = scmp.lt.s32.totalorder %s10, 2
    // Predicated region
    $region25: #{_lambda_.11} parent=5 // pred_check
      %p150 = pneg %p149
    $region26: #{_lambda_.11} parent=5 // pred_check_branch
      %152 = sbr.rel (%p150) target = $region28
    $region27: #{_lambda_.11} parent=5 // pred_region
      // Predicated region
      $region29: #{_lambda_.11} parent=27 // pred_check
        %p153 = pneg %p30
      $region30: #{_lambda_.11} parent=27 // pred_check_branch
        %155 = sbr.rel (%p153) target = $region32
      $region31: #{_lambda_.11} parent=27 // pred_region
        %p156 = scmp.lt.s32.totalorder %s10, 1
        %s157 = scalar_select %p156, %s10, 1
        %s158 = smul.addr %s157, 54
        %s159 = smul.addr %s158, 4
        %s160 = scalar_lea.vmem %s0, %s159
      $region32: #{_lambda_.11} parent=27 // pred_fallthru
        _
    $region28: #{_lambda_.11} parent=5 // pred_fallthru
      _
    %p161 = scmp.le.s32.totalorder 1, %s10
    %p162 = scmp.lt.s32.totalorder %s10, 3
    %p163 = pnand %p161, %p162
    %p164 = pneg %p163
    // Predicated region
    $region33: #{_lambda_.11} parent=5 // pred_check
      _
    $region34: #{_lambda_.11} parent=5 // pred_check_branch
      %166 = sbr.rel (%p163) target = $region36
    $region35: #{_lambda_.11} parent=5 // pred_region
      %s167 = ssub.s32 %s10, 1
      %p168 = scmp.lt.s32.totalorder %s15, 1
      %s169 = scalar_select %p168, %s15, 1
      %s170 = smul.addr %s169, 54
      %s171 = smul.addr %s170, 4
      %s172 = scalar_lea.vmem %s0, %s171
      %p173 = pneg %p36
      %p174 = pneg %p33
      %p175 = pneg %p57
      %p176 = pneg %p54
      %p177 = pneg %p78
      %p178 = pneg %p75
      %p179 = pneg %p99
      %p180 = pneg %p96
      %p181 = pneg %p125
      %p182 = pneg %p122
      %p183 = scmp.lt.s32.totalorder %s15, 1
      %s184 = scalar_select %p183, %s15, 1
      %s185 = smul.addr %s184, 32
      %s186 = smul.addr %s185, 8
      %s187 = scalar_lea.vmem %s4, %s186
      %p188 = scmp.lt.s32.totalorder %s15, 1
      %s189 = scalar_select %p188, %s15, 1
      %s190 = smul.addr %s189, 54
      %s191 = smul.addr %s190, 4
      %s192 = scalar_lea.vmem %s0, %s191
      %p193 = scmp.lt.s32.totalorder %s15, 1
      %s194 = scalar_select %p193, %s15, 1
      %s195 = smul.addr %s194, 32
      %s196 = smul.addr %s195, 8
      %s197 = scalar_lea.vmem %s4, %s196
      %v199 = vld [vmem:[%s192] sm:$0xf]
      %v200 = vld [vmem:[%s192 + $0x4] sm:$0xf]
      %v201 = vld [vmem:[%s192 + $0x8] sm:$0x1]
      %v202 = vld [vmem:[%s192 + $0xc] sm:$0xf]
      %v203 = vld [vmem:[%s192 + $0x10] sm:$0xf]
      %v204 = vld [vmem:[%s192 + $0x14] sm:$0x1]
      %v205 = vld [vmem:[%s192 + $0x18] sm:$0xf]
      %v206 = vld [vmem:[%s192 + $0x1c] sm:$0xf]
      %v207 = vld [vmem:[%s192 + $0x20] sm:$0x1]
      %v208 = vld [vmem:[%s192 + $0x24] sm:$0xf]
      %v209 = vld [vmem:[%s192 + $0x28] sm:$0xf]
      %v210 = vld [vmem:[%s192 + $0x2c] sm:$0x1]
      %v211 = vld [vmem:[%s192 + $0x30] sm:$0xf]
      %v212 = vld [vmem:[%s192 + $0x34] sm:$0xf]
      %v213 = vld [vmem:[%s192 + $0x38] sm:$0x1]
      %v214 = vld [vmem:[%s192 + $0x3c] sm:$0xf]
      %v215 = vld [vmem:[%s192 + $0x40] sm:$0xf]
      %v216 = vld [vmem:[%s192 + $0x44] sm:$0x1]
      %v217 = vld [vmem:[%s192 + $0x48] sm:$0xf]
      %v218 = vld [vmem:[%s192 + $0x4c] sm:$0xf]
      %v219 = vld [vmem:[%s192 + $0x50] sm:$0x1]
      %v220 = vld [vmem:[%s192 + $0x54] sm:$0xf]
      %v221 = vld [vmem:[%s192 + $0x58] sm:$0xf]
      %v222 = vld [vmem:[%s192 + $0x5c] sm:$0x1]
      %v223 = vld [vmem:[%s192 + $0x60] sm:$0xf]
      %v224 = vld [vmem:[%s192 + $0x64] sm:$0xf]
      %v225 = vld [vmem:[%s192 + $0x68] sm:$0x1]
      %v226 = vld [vmem:[%s192 + $0x6c] sm:$0xf]
      %v227 = vld [vmem:[%s192 + $0x70] sm:$0xf]
      %v228 = vld [vmem:[%s192 + $0x74] sm:$0x1]
      %v229 = vld [vmem:[%s192 + $0x78] sm:$0xf]
      %v230 = vld [vmem:[%s192 + $0x7c] sm:$0xf]
      %v231 = vld [vmem:[%s192 + $0x80] sm:$0x1]
      %v232 = vld [vmem:[%s192 + $0x84] sm:$0xf]
      %v233 = vld [vmem:[%s192 + $0x88] sm:$0xf]
      %v234 = vld [vmem:[%s192 + $0x8c] sm:$0x1]
      %v235 = vld [vmem:[%s192 + $0x90] sm:$0xf]
      %v236 = vld [vmem:[%s192 + $0x94] sm:$0xf]
      %v237 = vld [vmem:[%s192 + $0x98] sm:$0x1]
      %v238 = vld [vmem:[%s192 + $0x9c] sm:$0xf]
      %v239 = vld [vmem:[%s192 + $0xa0] sm:$0xf]
      %v240 = vld [vmem:[%s192 + $0xa4] sm:$0x1]
      %v241 = vld [vmem:[%s192 + $0xa8] sm:$0xf]
      %v242 = vld [vmem:[%s192 + $0xac] sm:$0xf]
      %v243 = vld [vmem:[%s192 + $0xb0] sm:$0x1]
      %v244 = vld [vmem:[%s192 + $0xb4] sm:$0xf]
      %v245 = vld [vmem:[%s192 + $0xb8] sm:$0xf]
      %v246 = vld [vmem:[%s192 + $0xbc] sm:$0x1]
      %v247 = vld [vmem:[%s192 + $0xc0] sm:$0xf]
      %v248 = vld [vmem:[%s192 + $0xc4] sm:$0xf]
      %v249 = vld [vmem:[%s192 + $0xc8] sm:$0x1]
      %v250 = vld [vmem:[%s192 + $0xcc] sm:$0xf]
      %v251 = vld [vmem:[%s192 + $0xd0] sm:$0xf]
      %v252 = vld [vmem:[%s192 + $0xd4] sm:$0x1]
      %v285 = vunpack.c.l.b16 %v199
      %v286 = vunpack.c.l.b16 %v200
      %v287 = vunpack.c.l.b16 %v202
      %v288 = vunpack.c.l.b16 %v203
      %v289 = vunpack.c.l.b16 %v205
      %v290 = vunpack.c.l.b16 %v206
      %v291 = vunpack.c.l.b16 %v208
      %v292 = vunpack.c.l.b16 %v209
      %v293 = vunpack.c.l.b16 %v211
      %v294 = vunpack.c.l.b16 %v212
      %v295 = vunpack.c.l.b16 %v214
      %v296 = vunpack.c.l.b16 %v215
      %v297 = vunpack.c.l.b16 %v217
      %v298 = vunpack.c.l.b16 %v218
      %v299 = vunpack.c.l.b16 %v220
      %v300 = vunpack.c.l.b16 %v221
      %v301 = vunpack.c.l.b16 %v223
      %v302 = vunpack.c.l.b16 %v224
      %v303 = vunpack.c.l.b16 %v226
      %v304 = vunpack.c.l.b16 %v227
      %v305 = vunpack.c.l.b16 %v229
      %v306 = vunpack.c.l.b16 %v230
      %v307 = vunpack.c.l.b16 %v232
      %v308 = vunpack.c.l.b16 %v233
      %v309 = vunpack.c.l.b16 %v235
      %v310 = vunpack.c.l.b16 %v236
      %v311 = vunpack.c.l.b16 %v238
      %v312 = vunpack.c.l.b16 %v239
      %v313 = vunpack.c.l.b16 %v241
      %v314 = vunpack.c.l.b16 %v242
      %v315 = vunpack.c.l.b16 %v244
      %v316 = vunpack.c.l.b16 %v245
      %v317 = vpack.c.b16 %v286, %v285
      %v318 = vpack.c.b16 %v288, %v287
      %v319 = vpack.c.b16 %v290, %v289
      %v320 = vpack.c.b16 %v292, %v291
      %v321 = vpack.c.b16 %v294, %v293
      %v322 = vpack.c.b16 %v296, %v295
      %v323 = vpack.c.b16 %v298, %v297
      %v324 = vpack.c.b16 %v300, %v299
      %v325 = vpack.c.b16 %v302, %v301
      %v326 = vpack.c.b16 %v304, %v303
      %v327 = vpack.c.b16 %v306, %v305
      %v328 = vpack.c.b16 %v308, %v307
      %v329 = vpack.c.b16 %v310, %v309
      %v330 = vpack.c.b16 %v312, %v311
      %v331 = vpack.c.b16 %v314, %v313
      %v332 = vpack.c.b16 %v316, %v315
      %v349 = vunpack.c.l.b16 %v201
      %v350 = vunpack.c.l.b16 %v204
      %v351 = vunpack.c.l.b16 %v207
      %v352 = vunpack.c.l.b16 %v210
      %v353 = vunpack.c.l.b16 %v213
      %v354 = vunpack.c.l.b16 %v216
      %v355 = vunpack.c.l.b16 %v219
      %v356 = vunpack.c.l.b16 %v222
      %v357 = vunpack.c.l.b16 %v225
      %v358 = vunpack.c.l.b16 %v228
      %v359 = vunpack.c.l.b16 %v231
      %v360 = vunpack.c.l.b16 %v234
      %v361 = vunpack.c.l.b16 %v237
      %v362 = vunpack.c.l.b16 %v240
      %v363 = vunpack.c.l.b16 %v243
      %v364 = vunpack.c.l.b16 %v246
      %v365 = vpack.c.b16 %v349, %v349
      %v366 = vpack.c.b16 %v350, %v350
      %v367 = vpack.c.b16 %v351, %v351
      %v368 = vpack.c.b16 %v352, %v352
      %v369 = vpack.c.b16 %v353, %v353
      %v370 = vpack.c.b16 %v354, %v354
      %v371 = vpack.c.b16 %v355, %v355
      %v372 = vpack.c.b16 %v356, %v356
      %v373 = vpack.c.b16 %v357, %v357
      %v374 = vpack.c.b16 %v358, %v358
      %v375 = vpack.c.b16 %v359, %v359
      %v376 = vpack.c.b16 %v360, %v360
      %v377 = vpack.c.b16 %v361, %v361
      %v378 = vpack.c.b16 %v362, %v362
      %v379 = vpack.c.b16 %v363, %v363
      %v380 = vpack.c.b16 %v364, %v364
      %vm381 = vsmask.f32 7424
      %v383 = vshrl.u32 %v317, 16
      %v385 = vshll.u32 %v317, 16
      %v387 = vrot.slane %v385, 1
      %v388 = vor.u32 %v383, %v387
      %v390 = vshll.u32 %v365, 16
      %v392 = vrot.slane %v390, 1
      %v393 = vsel %vm381, %v388, %v392
      %v395 = vshrl.u32 %v318, 16
      %v397 = vshll.u32 %v318, 16
      %v399 = vrot.slane %v397, 1
      %v400 = vor.u32 %v395, %v399
      %v402 = vshll.u32 %v366, 16
      %v404 = vrot.slane %v402, 1
      %v405 = vsel %vm381, %v400, %v404
      %v407 = vshrl.u32 %v319, 16
      %v409 = vshll.u32 %v319, 16
      %v411 = vrot.slane %v409, 1
      %v412 = vor.u32 %v407, %v411
      %v414 = vshll.u32 %v367, 16
      %v416 = vrot.slane %v414, 1
      %v417 = vsel %vm381, %v412, %v416
      %v419 = vshrl.u32 %v320, 16
      %v421 = vshll.u32 %v320, 16
      %v423 = vrot.slane %v421, 1
      %v424 = vor.u32 %v419, %v423
      %v426 = vshll.u32 %v368, 16
      %v428 = vrot.slane %v426, 1
      %v429 = vsel %vm381, %v424, %v428
      %v431 = vshrl.u32 %v321, 16
      %v433 = vshll.u32 %v321, 16
      %v435 = vrot.slane %v433, 1
      %v436 = vor.u32 %v431, %v435
      %v438 = vshll.u32 %v369, 16
      %v440 = vrot.slane %v438, 1
      %v441 = vsel %vm381, %v436, %v440
      %v443 = vshrl.u32 %v322, 16
      %v445 = vshll.u32 %v322, 16
      %v447 = vrot.slane %v445, 1
      %v448 = vor.u32 %v443, %v447
      %v450 = vshll.u32 %v370, 16
      %v452 = vrot.slane %v450, 1
      %v453 = vsel %vm381, %v448, %v452
      %v455 = vshrl.u32 %v323, 16
      %v457 = vshll.u32 %v323, 16
      %v459 = vrot.slane %v457, 1
      %v460 = vor.u32 %v455, %v459
      %v462 = vshll.u32 %v371, 16
      %v464 = vrot.slane %v462, 1
      %v465 = vsel %vm381, %v460, %v464
      %v467 = vshrl.u32 %v324, 16
      %v469 = vshll.u32 %v324, 16
      %v471 = vrot.slane %v469, 1
      %v472 = vor.u32 %v467, %v471
      %v474 = vshll.u32 %v372, 16
      %v476 = vrot.slane %v474, 1
      %v477 = vsel %vm381, %v472, %v476
      %v479 = vshrl.u32 %v325, 16
      %v481 = vshll.u32 %v325, 16
      %v483 = vrot.slane %v481, 1
      %v484 = vor.u32 %v479, %v483
      %v486 = vshll.u32 %v373, 16
      %v488 = vrot.slane %v486, 1
      %v489 = vsel %vm381, %v484, %v488
      %v491 = vshrl.u32 %v326, 16
      %v493 = vshll.u32 %v326, 16
      %v495 = vrot.slane %v493, 1
      %v496 = vor.u32 %v491, %v495
      %v498 = vshll.u32 %v374, 16
      %v500 = vrot.slane %v498, 1
      %v501 = vsel %vm381, %v496, %v500
      %v503 = vshrl.u32 %v327, 16
      %v505 = vshll.u32 %v327, 16
      %v507 = vrot.slane %v505, 1
      %v508 = vor.u32 %v503, %v507
      %v510 = vshll.u32 %v375, 16
      %v512 = vrot.slane %v510, 1
      %v513 = vsel %vm381, %v508, %v512
      %v515 = vshrl.u32 %v328, 16
      %v517 = vshll.u32 %v328, 16
      %v519 = vrot.slane %v517, 1
      %v520 = vor.u32 %v515, %v519
      %v522 = vshll.u32 %v376, 16
      %v524 = vrot.slane %v522, 1
      %v525 = vsel %vm381, %v520, %v524
      %v527 = vshrl.u32 %v329, 16
      %v529 = vshll.u32 %v329, 16
      %v531 = vrot.slane %v529, 1
      %v532 = vor.u32 %v527, %v531
      %v534 = vshll.u32 %v377, 16
      %v536 = vrot.slane %v534, 1
      %v537 = vsel %vm381, %v532, %v536
      %v539 = vshrl.u32 %v330, 16
      %v541 = vshll.u32 %v330, 16
      %v543 = vrot.slane %v541, 1
      %v544 = vor.u32 %v539, %v543
      %v546 = vshll.u32 %v378, 16
      %v548 = vrot.slane %v546, 1
      %v549 = vsel %vm381, %v544, %v548
      %v551 = vshrl.u32 %v331, 16
      %v553 = vshll.u32 %v331, 16
      %v555 = vrot.slane %v553, 1
      %v556 = vor.u32 %v551, %v555
      %v558 = vshll.u32 %v379, 16
      %v560 = vrot.slane %v558, 1
      %v561 = vsel %vm381, %v556, %v560
      %v563 = vshrl.u32 %v332, 16
      %v565 = vshll.u32 %v332, 16
      %v567 = vrot.slane %v565, 1
      %v568 = vor.u32 %v563, %v567
      %v570 = vshll.u32 %v380, 16
      %v572 = vrot.slane %v570, 1
      %v573 = vsel %vm381, %v568, %v572
      %574 = vrot.lane.b32.xlu0 %v393, 64
      %v575 = vpop.permute.xlu0 %574
      %576 = vrot.lane.b32.xlu0 %v405, 64
      %v577 = vpop.permute.xlu0 %576
      %578 = vrot.lane.b32.xlu0 %v417, 64
      %v579 = vpop.permute.xlu0 %578
      %580 = vrot.lane.b32.xlu0 %v429, 64
      %v581 = vpop.permute.xlu0 %580
      %582 = vrot.lane.b32.xlu0 %v441, 64
      %v583 = vpop.permute.xlu0 %582
      %584 = vrot.lane.b32.xlu0 %v453, 64
      %v585 = vpop.permute.xlu0 %584
      %586 = vrot.lane.b32.xlu0 %v465, 64
      %v587 = vpop.permute.xlu0 %586
      %588 = vrot.lane.b32.xlu0 %v477, 64
      %v589 = vpop.permute.xlu0 %588
      %590 = vrot.lane.b32.xlu0 %v489, 64
      %v591 = vpop.permute.xlu0 %590
      %592 = vrot.lane.b32.xlu0 %v501, 64
      %v593 = vpop.permute.xlu0 %592
      %594 = vrot.lane.b32.xlu0 %v513, 64
      %v595 = vpop.permute.xlu0 %594
      %596 = vrot.lane.b32.xlu0 %v525, 64
      %v597 = vpop.permute.xlu0 %596
      %598 = vrot.lane.b32.xlu0 %v537, 64
      %v599 = vpop.permute.xlu0 %598
      %600 = vrot.lane.b32.xlu0 %v549, 64
      %v601 = vpop.permute.xlu0 %600
      %602 = vrot.lane.b32.xlu0 %v561, 64
      %v603 = vpop.permute.xlu0 %602
      %604 = vrot.lane.b32.xlu0 %v573, 64
      %v605 = vpop.permute.xlu0 %604
      %vm606 = vcmask 1046528
      %v607 = vrot.slane %v317, 1
      %v608 = vrot.slane %v365, 1
      %v609 = vsel %vm606, %v607, %v608
      %v610 = vrot.slane %v318, 1
      %v611 = vrot.slane %v366, 1
      %v612 = vsel %vm606, %v610, %v611
      %v613 = vrot.slane %v319, 1
      %v614 = vrot.slane %v367, 1
      %v615 = vsel %vm606, %v613, %v614
      %v616 = vrot.slane %v320, 1
      %v617 = vrot.slane %v368, 1
      %v618 = vsel %vm606, %v616, %v617
      %v619 = vrot.slane %v321, 1
      %v620 = vrot.slane %v369, 1
      %v621 = vsel %vm606, %v619, %v620
      %v622 = vrot.slane %v322, 1
      %v623 = vrot.slane %v370, 1
      %v624 = vsel %vm606, %v622, %v623
      %v625 = vrot.slane %v323, 1
      %v626 = vrot.slane %v371, 1
      %v627 = vsel %vm606, %v625, %v626
      %v628 = vrot.slane %v324, 1
      %v629 = vrot.slane %v372, 1
      %v630 = vsel %vm606, %v628, %v629
      %v631 = vrot.slane %v325, 1
      %v632 = vrot.slane %v373, 1
      %v633 = vsel %vm606, %v631, %v632
      %v634 = vrot.slane %v326, 1
      %v635 = vrot.slane %v374, 1
      %v636 = vsel %vm606, %v634, %v635
      %v637 = vrot.slane %v327, 1
      %v638 = vrot.slane %v375, 1
      %v639 = vsel %vm606, %v637, %v638
      %v640 = vrot.slane %v328, 1
      %v641 = vrot.slane %v376, 1
      %v642 = vsel %vm606, %v640, %v641
      %v643 = vrot.slane %v329, 1
      %v644 = vrot.slane %v377, 1
      %v645 = vsel %vm606, %v643, %v644
      %v646 = vrot.slane %v330, 1
      %v647 = vrot.slane %v378, 1
      %v648 = vsel %vm606, %v646, %v647
      %v649 = vrot.slane %v331, 1
      %v650 = vrot.slane %v379, 1
      %v651 = vsel %vm606, %v649, %v650
      %v652 = vrot.slane %v332, 1
      %v653 = vrot.slane %v380, 1
      %v654 = vsel %vm606, %v652, %v653
      %v657 = vunpack.c.l.b16 %v247
      %v658 = vunpack.c.l.b16 %v248
      %v659 = vpack.c.b16 %v658, %v657
      %660 = vrot.lane.b32.xlu0 %v318, 64
      %v661 = vpop.permute.xlu0 %660
      %662 = vrot.lane.b32.xlu0 %v319, 64
      %v663 = vpop.permute.xlu0 %662
      %664 = vrot.lane.b32.xlu0 %v320, 64
      %v665 = vpop.permute.xlu0 %664
      %666 = vrot.lane.b32.xlu0 %v321, 64
      %v667 = vpop.permute.xlu0 %666
      %668 = vrot.lane.b32.xlu0 %v322, 64
      %v669 = vpop.permute.xlu0 %668
      %670 = vrot.lane.b32.xlu0 %v323, 64
      %v671 = vpop.permute.xlu0 %670
      %672 = vrot.lane.b32.xlu0 %v324, 64
      %v673 = vpop.permute.xlu0 %672
      %674 = vrot.lane.b32.xlu0 %v325, 64
      %v675 = vpop.permute.xlu0 %674
      %676 = vrot.lane.b32.xlu0 %v326, 64
      %v677 = vpop.permute.xlu0 %676
      %678 = vrot.lane.b32.xlu0 %v327, 64
      %v679 = vpop.permute.xlu0 %678
      %680 = vrot.lane.b32.xlu0 %v328, 64
      %v681 = vpop.permute.xlu0 %680
      %682 = vrot.lane.b32.xlu0 %v329, 64
      %v683 = vpop.permute.xlu0 %682
      %684 = vrot.lane.b32.xlu0 %v330, 64
      %v685 = vpop.permute.xlu0 %684
      %686 = vrot.lane.b32.xlu0 %v331, 64
      %v687 = vpop.permute.xlu0 %686
      %688 = vrot.lane.b32.xlu0 %v332, 64
      %v689 = vpop.permute.xlu0 %688
      %690 = vrot.lane.b32.xlu0 %v659, 64
      %v691 = vpop.permute.xlu0 %690
      %v693 = vunpack.c.l.b16 %v249
      %v694 = vpack.c.b16 %v693, %v693
      %v696 = vshrl.u32 %v659, 16
      %v698 = vshll.u32 %v659, 16
      %v700 = vrot.slane %v698, 1
      %v701 = vor.u32 %v696, %v700
      %v703 = vshll.u32 %v694, 16
      %v705 = vrot.slane %v703, 1
      %v706 = vsel %vm381, %v701, %v705
      %v707 = vrot.slane %v659, 1
      %v708 = vrot.slane %v694, 1
      %v709 = vsel %vm606, %v707, %v708
      %710 = vrot.lane.b32.xlu0 %v612, 64
      %v711 = vpop.permute.xlu0 %710
      %712 = vrot.lane.b32.xlu0 %v615, 64
      %v713 = vpop.permute.xlu0 %712
      %714 = vrot.lane.b32.xlu0 %v618, 64
      %v715 = vpop.permute.xlu0 %714
      %716 = vrot.lane.b32.xlu0 %v621, 64
      %v717 = vpop.permute.xlu0 %716
      %718 = vrot.lane.b32.xlu0 %v624, 64
      %v719 = vpop.permute.xlu0 %718
      %720 = vrot.lane.b32.xlu0 %v627, 64
      %v721 = vpop.permute.xlu0 %720
      %722 = vrot.lane.b32.xlu0 %v630, 64
      %v723 = vpop.permute.xlu0 %722
      %724 = vrot.lane.b32.xlu0 %v633, 64
      %v725 = vpop.permute.xlu0 %724
      %726 = vrot.lane.b32.xlu0 %v636, 64
      %v727 = vpop.permute.xlu0 %726
      %728 = vrot.lane.b32.xlu0 %v639, 64
      %v729 = vpop.permute.xlu0 %728
      %730 = vrot.lane.b32.xlu0 %v642, 64
      %v731 = vpop.permute.xlu0 %730
      %732 = vrot.lane.b32.xlu0 %v645, 64
      %v733 = vpop.permute.xlu0 %732
      %734 = vrot.lane.b32.xlu0 %v648, 64
      %v735 = vpop.permute.xlu0 %734
      %736 = vrot.lane.b32.xlu0 %v651, 64
      %v737 = vpop.permute.xlu0 %736
      %738 = vrot.lane.b32.xlu0 %v654, 64
      %v739 = vpop.permute.xlu0 %738
      %740 = vrot.lane.b32.xlu0 %v709, 64
      %v741 = vpop.permute.xlu0 %740
      %v744 = vunpack.c.l.b16 %v250
      %v745 = vunpack.c.l.b16 %v251
      %v746 = vpack.c.b16 %v745, %v744
      %v748 = vunpack.c.l.b16 %v252
      %v749 = vpack.c.b16 %v748, %v748
      %v751 = vshrl.u32 %v746, 16
      %v753 = vshll.u32 %v746, 16
      %v755 = vrot.slane %v753, 1
      %v756 = vor.u32 %v751, %v755
      %v758 = vshll.u32 %v749, 16
      %v760 = vrot.slane %v758, 1
      %v761 = vsel %vm381, %v756, %v760
      %762 = vrot.lane.b32.xlu0 %v706, 64
      %v763 = vpop.permute.xlu0 %762
      %764 = vrot.lane.b32.xlu0 %v761, 64
      %v765 = vpop.permute.xlu0 %764
      %v766 = vrot.slane %v746, 1
      %v767 = vrot.slane %v749, 1
      %v768 = vsel %vm606, %v766, %v767
      %vm769 = vcmask 523264
      %v771 = vsel %vm769, %v317, %v575
      %v774 = vsel %vm769, %v318, %v577
      %v777 = vsel %vm769, %v319, %v579
      %v780 = vsel %vm769, %v320, %v581
      %v783 = vsel %vm769, %v321, %v583
      %v786 = vsel %vm769, %v322, %v585
      %v789 = vsel %vm769, %v323, %v587
      %v792 = vsel %vm769, %v324, %v589
      %v795 = vsel %vm769, %v325, %v591
      %v798 = vsel %vm769, %v326, %v593
      %v801 = vsel %vm769, %v327, %v595
      %v804 = vsel %vm769, %v328, %v597
      %v807 = vsel %vm769, %v329, %v599
      %v810 = vsel %vm769, %v330, %v601
      %v813 = vsel %vm769, %v331, %v603
      %v816 = vsel %vm769, %v332, %v605
      %v820 = vsel %vm769, %v609, %v661
      %v824 = vsel %vm769, %v612, %v663
      %v828 = vsel %vm769, %v615, %v665
      %v832 = vsel %vm769, %v618, %v667
      %v836 = vsel %vm769, %v621, %v669
      %v840 = vsel %vm769, %v624, %v671
      %v844 = vsel %vm769, %v627, %v673
      %v848 = vsel %vm769, %v630, %v675
      %v852 = vsel %vm769, %v633, %v677
      %v856 = vsel %vm769, %v636, %v679
      %v860 = vsel %vm769, %v639, %v681
      %v864 = vsel %vm769, %v642, %v683
      %v868 = vsel %vm769, %v645, %v685
      %v872 = vsel %vm769, %v648, %v687
      %v876 = vsel %vm769, %v651, %v689
      %v880 = vsel %vm769, %v654, %v691
      %v884 = vsel %vm769, %v405, %v711
      %v888 = vsel %vm769, %v417, %v713
      %v892 = vsel %vm769, %v429, %v715
      %v896 = vsel %vm769, %v441, %v717
      %v900 = vsel %vm769, %v453, %v719
      %v904 = vsel %vm769, %v465, %v721
      %v908 = vsel %vm769, %v477, %v723
      %v912 = vsel %vm769, %v489, %v725
      %v916 = vsel %vm769, %v501, %v727
      %v920 = vsel %vm769, %v513, %v729
      %v924 = vsel %vm769, %v525, %v731
      %v928 = vsel %vm769, %v537, %v733
      %v932 = vsel %vm769, %v549, %v735
      %v936 = vsel %vm769, %v561, %v737
      %v940 = vsel %vm769, %v573, %v739
      %v944 = vsel %vm769, %v706, %v741
      %v947 = vsel %vm769, %v659, %v763
      %v950 = vsel %vm769, %v746, %v765
      %v952 = vld [vmem:[%s1] sm:$0xf]
      %v953 = vld [vmem:[%s1 + $0x4] sm:$0xf]
      %v954 = vld [vmem:[%s1 + $0x8] sm:$0xf]
      %v955 = vld [vmem:[%s1 + $0xc] sm:$0xf]
      %v956 = vld [vmem:[%s1 + $0x10] sm:$0xf]
      %v957 = vld [vmem:[%s1 + $0x14] sm:$0xf]
      %v958 = vld [vmem:[%s1 + $0x18] sm:$0xf]
      %v959 = vld [vmem:[%s1 + $0x1c] sm:$0xf]
      %v960 = vld [vmem:[%s1 + $0x20] sm:$0xf]
      %v961 = vld [vmem:[%s1 + $0x24] sm:$0xf]
      %v962 = vld [vmem:[%s1 + $0x28] sm:$0xf]
      %v963 = vld [vmem:[%s1 + $0x2c] sm:$0xf]
      %v964 = vld [vmem:[%s1 + $0x30] sm:$0xf]
      %v965 = vld [vmem:[%s1 + $0x34] sm:$0xf]
      %v966 = vld [vmem:[%s1 + $0x38] sm:$0xf]
      %v967 = vld [vmem:[%s1 + $0x3c] sm:$0xf]
      %v968 = vld [vmem:[%s1 + $0x40] sm:$0xf]
      %v969 = vld [vmem:[%s1 + $0x44] sm:$0xf]
      %v970 = vld [vmem:[%s1 + $0x48] sm:$0xf]
      %v971 = vld [vmem:[%s1 + $0x4c] sm:$0xf]
      %v972 = vld [vmem:[%s1 + $0x50] sm:$0xf]
      %v973 = vld [vmem:[%s1 + $0x54] sm:$0xf]
      %v974 = vld [vmem:[%s1 + $0x58] sm:$0xf]
      %v975 = vld [vmem:[%s1 + $0x5c] sm:$0xf]
      %v976 = vld [vmem:[%s1 + $0x60] sm:$0xf]
      %v977 = vld [vmem:[%s1 + $0x64] sm:$0xf]
      %v978 = vld [vmem:[%s1 + $0x68] sm:$0xf]
      %v979 = vld [vmem:[%s1 + $0x6c] sm:$0xf]
      %v980 = vld [vmem:[%s1 + $0x70] sm:$0xf]
      %v981 = vld [vmem:[%s1 + $0x74] sm:$0xf]
      %v982 = vld [vmem:[%s1 + $0x78] sm:$0xf]
      %v983 = vld [vmem:[%s1 + $0x7c] sm:$0xf]
      %v984 = vld [vmem:[%s1 + $0x80] sm:$0xf]
      %v985 = vld [vmem:[%s1 + $0x84] sm:$0xf]
      %v986 = vld [vmem:[%s1 + $0x88] sm:$0xf]
      %v987 = vld [vmem:[%s1 + $0x8c] sm:$0xf]
      %v988 = vld [vmem:[%s1 + $0x90] sm:$0xf]
      %v989 = vld [vmem:[%s1 + $0x94] sm:$0xf]
      %v990 = vld [vmem:[%s1 + $0x98] sm:$0xf]
      %v991 = vld [vmem:[%s1 + $0x9c] sm:$0xf]
      %v992 = vld [vmem:[%s1 + $0xa0] sm:$0xf]
      %v993 = vld [vmem:[%s1 + $0xa4] sm:$0xf]
      %v994 = vld [vmem:[%s1 + $0xa8] sm:$0xf]
      %v995 = vld [vmem:[%s1 + $0xac] sm:$0xf]
      %v996 = vld [vmem:[%s1 + $0xb0] sm:$0xf]
      %v997 = vld [vmem:[%s1 + $0xb4] sm:$0xf]
      %v998 = vld [vmem:[%s1 + $0xb8] sm:$0xf]
      %v999 = vld [vmem:[%s1 + $0xbc] sm:$0xf]
      %v1000 = vld [vmem:[%s1 + $0xc0] sm:$0xf]
      %v1001 = vld [vmem:[%s1 + $0xc4] sm:$0xf]
      %v1002 = vld [vmem:[%s1 + $0xc8] sm:$0xf]
      %v1003 = vld [vmem:[%s1 + $0xcc] sm:$0xf]
      %v1004 = vld [vmem:[%s1 + $0xd0] sm:$0xf]
      %v1005 = vld [vmem:[%s1 + $0xd4] sm:$0xf]
      %v1006 = vld [vmem:[%s1 + $0xd8] sm:$0xf]
      %v1007 = vld [vmem:[%s1 + $0xdc] sm:$0xf]
      %v1008 = vld [vmem:[%s1 + $0xe0] sm:$0xf]
      %v1009 = vld [vmem:[%s1 + $0xe4] sm:$0xf]
      %v1010 = vld [vmem:[%s1 + $0xe8] sm:$0xf]
      %v1011 = vld [vmem:[%s1 + $0xec] sm:$0xf]
      %v1012 = vld [vmem:[%s1 + $0xf0] sm:$0xf]
      %v1013 = vld [vmem:[%s1 + $0xf4] sm:$0xf]
      %v1014 = vld [vmem:[%s1 + $0xf8] sm:$0xf]
      %v1015 = vld [vmem:[%s1 + $0xfc] sm:$0xf]
      %v1016 = vld [vmem:[%s1 + $0x100] sm:$0xf]
      %v1017 = vld [vmem:[%s1 + $0x104] sm:$0xf]
      %v1018 = vld [vmem:[%s1 + $0x108] sm:$0xf]
      %v1019 = vld [vmem:[%s1 + $0x10c] sm:$0xf]
      %v1020 = vld [vmem:[%s1 + $0x110] sm:$0xf]
      %v1021 = vld [vmem:[%s1 + $0x114] sm:$0xf]
      %v1022 = vld [vmem:[%s1 + $0x118] sm:$0xf]
      %v1023 = vld [vmem:[%s1 + $0x11c] sm:$0xf]
      %v1096 = vunpack.c.l.b16 %v952
      %v1097 = vunpack.c.l.b16 %v953
      %v1098 = vunpack.c.l.b16 %v954
      %v1099 = vunpack.c.l.b16 %v955
      %v1100 = vunpack.c.l.b16 %v956
      %v1101 = vunpack.c.l.b16 %v957
      %v1102 = vunpack.c.l.b16 %v958
      %v1103 = vunpack.c.l.b16 %v959
      %v1104 = vunpack.c.l.b16 %v960
      %v1105 = vunpack.c.l.b16 %v961
      %v1106 = vunpack.c.l.b16 %v962
      %v1107 = vunpack.c.l.b16 %v963
      %v1108 = vunpack.c.l.b16 %v964
      %v1109 = vunpack.c.l.b16 %v965
      %v1110 = vunpack.c.l.b16 %v966
      %v1111 = vunpack.c.l.b16 %v967
      %v1112 = vunpack.c.l.b16 %v968
      %v1113 = vunpack.c.l.b16 %v969
      %v1114 = vunpack.c.l.b16 %v970
      %v1115 = vunpack.c.l.b16 %v971
      %v1116 = vunpack.c.l.b16 %v972
      %v1117 = vunpack.c.l.b16 %v973
      %v1118 = vunpack.c.l.b16 %v974
      %v1119 = vunpack.c.l.b16 %v975
      %v1120 = vunpack.c.l.b16 %v976
      %v1121 = vunpack.c.l.b16 %v977
      %v1122 = vunpack.c.l.b16 %v978
      %v1123 = vunpack.c.l.b16 %v979
      %v1124 = vunpack.c.l.b16 %v980
      %v1125 = vunpack.c.l.b16 %v981
      %v1126 = vunpack.c.l.b16 %v982
      %v1127 = vunpack.c.l.b16 %v983
      %v1128 = vunpack.c.l.b16 %v984
      %v1129 = vunpack.c.l.b16 %v985
      %v1130 = vunpack.c.l.b16 %v986
      %v1131 = vunpack.c.l.b16 %v987
      %v1132 = vunpack.c.l.b16 %v988
      %v1133 = vunpack.c.l.b16 %v989
      %v1134 = vunpack.c.l.b16 %v990
      %v1135 = vunpack.c.l.b16 %v991
      %v1136 = vunpack.c.l.b16 %v992
      %v1137 = vunpack.c.l.b16 %v993
      %v1138 = vunpack.c.l.b16 %v994
      %v1139 = vunpack.c.l.b16 %v995
      %v1140 = vunpack.c.l.b16 %v996
      %v1141 = vunpack.c.l.b16 %v997
      %v1142 = vunpack.c.l.b16 %v998
      %v1143 = vunpack.c.l.b16 %v999
      %v1144 = vunpack.c.l.b16 %v1000
      %v1145 = vunpack.c.l.b16 %v1001
      %v1146 = vunpack.c.l.b16 %v1002
      %v1147 = vunpack.c.l.b16 %v1003
      %v1148 = vunpack.c.l.b16 %v1004
      %v1149 = vunpack.c.l.b16 %v1005
      %v1150 = vunpack.c.l.b16 %v1006
      %v1151 = vunpack.c.l.b16 %v1007
      %v1152 = vunpack.c.l.b16 %v1008
      %v1153 = vunpack.c.l.b16 %v1009
      %v1154 = vunpack.c.l.b16 %v1010
      %v1155 = vunpack.c.l.b16 %v1011
      %v1156 = vunpack.c.l.b16 %v1012
      %v1157 = vunpack.c.l.b16 %v1013
      %v1158 = vunpack.c.l.b16 %v1014
      %v1159 = vunpack.c.l.b16 %v1015
      %v1160 = vunpack.c.l.b16 %v1016
      %v1161 = vunpack.c.l.b16 %v1017
      %v1162 = vunpack.c.l.b16 %v1018
      %v1163 = vunpack.c.l.b16 %v1019
      %v1164 = vunpack.c.l.b16 %v1020
      %v1165 = vunpack.c.l.b16 %v1021
      %v1166 = vunpack.c.l.b16 %v1022
      %v1167 = vunpack.c.l.b16 %v1023
      %v1168 = vpack.c.b16 %v1097, %v1096
      %v1169 = vpack.c.b16 %v1099, %v1098
      %v1170 = vpack.c.b16 %v1101, %v1100
      %v1171 = vpack.c.b16 %v1103, %v1102
      %v1172 = vpack.c.b16 %v1105, %v1104
      %v1173 = vpack.c.b16 %v1107, %v1106
      %v1174 = vpack.c.b16 %v1109, %v1108
      %v1175 = vpack.c.b16 %v1111, %v1110
      %v1176 = vpack.c.b16 %v1113, %v1112
      %v1177 = vpack.c.b16 %v1115, %v1114
      %v1178 = vpack.c.b16 %v1117, %v1116
      %v1179 = vpack.c.b16 %v1119, %v1118
      %v1180 = vpack.c.b16 %v1121, %v1120
      %v1181 = vpack.c.b16 %v1123, %v1122
      %v1182 = vpack.c.b16 %v1125, %v1124
      %v1183 = vpack.c.b16 %v1127, %v1126
      %v1184 = vpack.c.b16 %v1129, %v1128
      %v1185 = vpack.c.b16 %v1131, %v1130
      %v1186 = vpack.c.b16 %v1133, %v1132
      %v1187 = vpack.c.b16 %v1135, %v1134
      %v1188 = vpack.c.b16 %v1137, %v1136
      %v1189 = vpack.c.b16 %v1139, %v1138
      %v1190 = vpack.c.b16 %v1141, %v1140
      %v1191 = vpack.c.b16 %v1143, %v1142
      %v1192 = vpack.c.b16 %v1145, %v1144
      %v1193 = vpack.c.b16 %v1147, %v1146
      %v1194 = vpack.c.b16 %v1149, %v1148
      %v1195 = vpack.c.b16 %v1151, %v1150
      %v1196 = vpack.c.b16 %v1153, %v1152
      %v1197 = vpack.c.b16 %v1155, %v1154
      %v1198 = vpack.c.b16 %v1157, %v1156
      %v1199 = vpack.c.b16 %v1159, %v1158
      %v1200 = vpack.c.b16 %v1161, %v1160
      %v1201 = vpack.c.b16 %v1163, %v1162
      %v1202 = vpack.c.b16 %v1165, %v1164
      %v1203 = vpack.c.b16 %v1167, %v1166
      %v1240 = vsel %vm769, %v615, 0
      %v1242 = vsel %vm769, %v618, 0
      %v1244 = vsel %vm769, %v621, 0
      %v1246 = vsel %vm769, %v624, 0
      %v1248 = vsel %vm769, %v627, 0
      %v1250 = vsel %vm769, %v630, 0
      %v1252 = vsel %vm769, %v633, 0
      %v1254 = vsel %vm769, %v636, 0
      %v1256 = vsel %vm769, %v639, 0
      %v1258 = vsel %vm769, %v642, 0
      %v1260 = vsel %vm769, %v645, 0
      %v1262 = vsel %vm769, %v648, 0
      %v1264 = vsel %vm769, %v651, 0
      %v1266 = vsel %vm769, %v654, 0
      %v1269 = vsel %vm769, %v709, 0
      %v1272 = vsel %vm769, %v768, 0
      %1274 = vmatprep.subr.bf16.mxu0 0
      %1275 = vmatpush1.bf16.msra.mxu0 %v1175
      %1276 = vmatprep.subr.bf16.mxu0 0
      %1277 = vmatpush1.bf16.msra.mxu0 %v1174
      %1278 = vmatprep.subr.bf16.mxu0 0
      %1279 = vmatpush1.bf16.msra.mxu0 %v1173
      %1280 = vmatprep.subr.bf16.mxu0 0
      %1281 = vmatpush1.bf16.msra.mxu0 %v1172
      %1282 = vmatprep.subr.bf16.mxu0 0
      %1283 = vmatpush1.bf16.msra.mxu0 %v1171
      %1284 = vmatprep.subr.bf16.mxu0 0
      %1285 = vmatpush1.bf16.msra.mxu0 %v1170
      %1286 = vmatprep.subr.bf16.mxu0 0
      %1287 = vmatpush1.bf16.msra.mxu0 %v1169
      %1288 = vmatprep.subr.bf16.mxu0 0
      %1289 = vmatpush1.bf16.msra.mxu0 %v1168
      %1290 = vmatprep.subr.bf16.mxu0 0
      %1291 = vmatpush2.bf16.msra.mxu0 %v1183
      %1292 = vmatprep.subr.bf16.mxu0 0
      %1293 = vmatpush2.bf16.msra.mxu0 %v1182
      %1294 = vmatprep.subr.bf16.mxu0 0
      %1295 = vmatpush2.bf16.msra.mxu0 %v1181
      %1296 = vmatprep.subr.bf16.mxu0 0
      %1297 = vmatpush2.bf16.msra.mxu0 %v1180
      %1298 = vmatprep.subr.bf16.mxu0 0
      %1299 = vmatpush2.bf16.msra.mxu0 %v1179
      %1300 = vmatprep.subr.bf16.mxu0 0
      %1301 = vmatpush2.bf16.msra.mxu0 %v1178
      %1302 = vmatprep.subr.bf16.mxu0 0
      %1303 = vmatpush2.bf16.msra.mxu0 %v1177
      %1304 = vmatprep.subr.bf16.mxu0 0
      %1305 = vmatpush2.bf16.msra.mxu0 %v1176
      %1306 = vmatprep.mubr.bf16.mxu0 %v820
      %1307 = vmatmul.mubr.bf16.gmra.mxu0 %v771
      %v1308 = vpop.f32.mrf.mxu0
      %v1309 = vadd.f32 0.0, %v1308
      %v1310 = vpop.f32.mrf.mxu0
      %v1311 = vpop.f32.mrf.mxu0
      %v1312 = vadd.f32 0.0, %v1311
      %v1313 = vpop.f32.mrf.mxu0
      %1314 = vmatprep.mubr.bf16.mxu0 %v824
      %1315 = vmatmul.mubr.bf16.gmra.mxu0 %v774
      %v1316 = vpop.f32.mrf.mxu0
      %v1317 = vadd.f32 0.0, %v1316
      %v1318 = vpop.f32.mrf.mxu0
      %v1319 = vpop.f32.mrf.mxu0
      %v1320 = vadd.f32 0.0, %v1319
      %v1321 = vpop.f32.mrf.mxu0
      %1322 = vmatprep.mubr.bf16.mxu0 %v828
      %1323 = vmatmul.mubr.bf16.gmra.mxu0 %v777
      %v1324 = vpop.f32.mrf.mxu0
      %v1325 = vadd.f32 0.0, %v1324
      %v1326 = vpop.f32.mrf.mxu0
      %v1327 = vpop.f32.mrf.mxu0
      %v1328 = vadd.f32 0.0, %v1327
      %v1329 = vpop.f32.mrf.mxu0
      %1330 = vmatprep.mubr.bf16.mxu0 %v832
      %1331 = vmatmul.mubr.bf16.gmra.mxu0 %v780
      %v1332 = vpop.f32.mrf.mxu0
      %v1333 = vadd.f32 0.0, %v1332
      %v1334 = vpop.f32.mrf.mxu0
      %v1335 = vpop.f32.mrf.mxu0
      %v1336 = vadd.f32 0.0, %v1335
      %v1337 = vpop.f32.mrf.mxu0
      %1338 = vmatprep.mubr.bf16.mxu0 %v836
      %1339 = vmatmul.mubr.bf16.gmra.mxu0 %v783
      %v1340 = vpop.f32.mrf.mxu0
      %v1341 = vadd.f32 0.0, %v1340
      %v1342 = vpop.f32.mrf.mxu0
      %v1343 = vpop.f32.mrf.mxu0
      %v1344 = vadd.f32 0.0, %v1343
      %v1345 = vpop.f32.mrf.mxu0
      %1346 = vmatprep.mubr.bf16.mxu0 %v840
      %1347 = vmatmul.mubr.bf16.gmra.mxu0 %v786
      %v1348 = vpop.f32.mrf.mxu0
      %v1349 = vadd.f32 0.0, %v1348
      %v1350 = vpop.f32.mrf.mxu0
      %v1351 = vpop.f32.mrf.mxu0
      %v1352 = vadd.f32 0.0, %v1351
      %v1353 = vpop.f32.mrf.mxu0
      %1354 = vmatprep.mubr.bf16.mxu0 %v844
      %1355 = vmatmul.mubr.bf16.gmra.mxu0 %v789
      %v1356 = vpop.f32.mrf.mxu0
      %v1357 = vadd.f32 0.0, %v1356
      %v1358 = vpop.f32.mrf.mxu0
      %v1359 = vpop.f32.mrf.mxu0
      %v1360 = vadd.f32 0.0, %v1359
      %v1361 = vpop.f32.mrf.mxu0
      %1362 = vmatprep.mubr.bf16.mxu0 %v848
      %1363 = vmatmul.mubr.bf16.gmra.mxu0 %v792
      %v1364 = vpop.f32.mrf.mxu0
      %v1365 = vadd.f32 0.0, %v1364
      %v1366 = vpop.f32.mrf.mxu0
      %v1367 = vpop.f32.mrf.mxu0
      %v1368 = vadd.f32 0.0, %v1367
      %v1369 = vpop.f32.mrf.mxu0
      %1370 = vmatprep.mubr.bf16.mxu0 %v852
      %1371 = vmatmul.mubr.bf16.gmra.mxu0 %v795
      %v1372 = vpop.f32.mrf.mxu0
      %v1373 = vadd.f32 0.0, %v1372
      %v1374 = vpop.f32.mrf.mxu0
      %v1375 = vpop.f32.mrf.mxu0
      %v1376 = vadd.f32 0.0, %v1375
      %v1377 = vpop.f32.mrf.mxu0
      %1378 = vmatprep.mubr.bf16.mxu0 %v856
      %1379 = vmatmul.mubr.bf16.gmra.mxu0 %v798
      %v1380 = vpop.f32.mrf.mxu0
      %v1381 = vadd.f32 0.0, %v1380
      %v1382 = vpop.f32.mrf.mxu0
      %v1383 = vpop.f32.mrf.mxu0
      %v1384 = vadd.f32 0.0, %v1383
      %v1385 = vpop.f32.mrf.mxu0
      %1386 = vmatprep.mubr.bf16.mxu0 %v860
      %1387 = vmatmul.mubr.bf16.gmra.mxu0 %v801
      %v1388 = vpop.f32.mrf.mxu0
      %v1389 = vadd.f32 0.0, %v1388
      %v1390 = vpop.f32.mrf.mxu0
      %v1391 = vpop.f32.mrf.mxu0
      %v1392 = vadd.f32 0.0, %v1391
      %v1393 = vpop.f32.mrf.mxu0
      %1394 = vmatprep.mubr.bf16.mxu0 %v864
      %1395 = vmatmul.mubr.bf16.gmra.mxu0 %v804
      %v1396 = vpop.f32.mrf.mxu0
      %v1397 = vadd.f32 0.0, %v1396
      %v1398 = vpop.f32.mrf.mxu0
      %v1399 = vpop.f32.mrf.mxu0
      %v1400 = vadd.f32 0.0, %v1399
      %v1401 = vpop.f32.mrf.mxu0
      %1402 = vmatprep.mubr.bf16.mxu0 %v868
      %1403 = vmatmul.mubr.bf16.gmra.mxu0 %v807
      %v1404 = vpop.f32.mrf.mxu0
      %v1405 = vadd.f32 0.0, %v1404
      %v1406 = vpop.f32.mrf.mxu0
      %v1407 = vpop.f32.mrf.mxu0
      %v1408 = vadd.f32 0.0, %v1407
      %v1409 = vpop.f32.mrf.mxu0
      %1410 = vmatprep.mubr.bf16.mxu0 %v872
      %1411 = vmatmul.mubr.bf16.gmra.mxu0 %v810
      %v1412 = vpop.f32.mrf.mxu0
      %v1413 = vadd.f32 0.0, %v1412
      %v1414 = vpop.f32.mrf.mxu0
      %v1415 = vpop.f32.mrf.mxu0
      %v1416 = vadd.f32 0.0, %v1415
      %v1417 = vpop.f32.mrf.mxu0
      %1418 = vmatprep.mubr.bf16.mxu0 %v876
      %1419 = vmatmul.mubr.bf16.gmra.mxu0 %v813
      %v1420 = vpop.f32.mrf.mxu0
      %v1421 = vadd.f32 0.0, %v1420
      %v1422 = vpop.f32.mrf.mxu0
      %v1423 = vpop.f32.mrf.mxu0
      %v1424 = vadd.f32 0.0, %v1423
      %v1425 = vpop.f32.mrf.mxu0
      %1426 = vmatprep.mubr.bf16.mxu0 %v880
      %1427 = vmatmul.mubr.bf16.gmra.mxu0 %v816
      %v1428 = vpop.f32.mrf.mxu0
      %v1429 = vadd.f32 0.0, %v1428
      %v1430 = vpop.f32.mrf.mxu0
      %v1431 = vpop.f32.mrf.mxu0
      %v1432 = vadd.f32 0.0, %v1431
      %v1433 = vpop.f32.mrf.mxu0
      %1434 = vdwg.mxu0
      %1435 = vmatprep.subr.bf16.mxu0 0
      %1436 = vmatpush1.bf16.msra.mxu0 %v1191
      %1437 = vmatprep.subr.bf16.mxu0 0
      %1438 = vmatpush1.bf16.msra.mxu0 %v1190
      %1439 = vmatprep.subr.bf16.mxu0 0
      %1440 = vmatpush1.bf16.msra.mxu0 %v1189
      %1441 = vmatprep.subr.bf16.mxu0 0
      %1442 = vmatpush1.bf16.msra.mxu0 %v1188
      %1443 = vmatprep.subr.bf16.mxu0 0
      %1444 = vmatpush1.bf16.msra.mxu0 %v1187
      %1445 = vmatprep.subr.bf16.mxu0 0
      %1446 = vmatpush1.bf16.msra.mxu0 %v1186
      %1447 = vmatprep.subr.bf16.mxu0 0
      %1448 = vmatpush1.bf16.msra.mxu0 %v1185
      %1449 = vmatprep.subr.bf16.mxu0 0
      %1450 = vmatpush1.bf16.msra.mxu0 %v1184
      %1451 = vmatprep.subr.bf16.mxu0 0
      %1452 = vmatpush2.bf16.msra.mxu0 %v1199
      %1453 = vmatprep.subr.bf16.mxu0 0
      %1454 = vmatpush2.bf16.msra.mxu0 %v1198
      %1455 = vmatprep.subr.bf16.mxu0 0
      %1456 = vmatpush2.bf16.msra.mxu0 %v1197
      %1457 = vmatprep.subr.bf16.mxu0 0
      %1458 = vmatpush2.bf16.msra.mxu0 %v1196
      %1459 = vmatprep.subr.bf16.mxu0 0
      %1460 = vmatpush2.bf16.msra.mxu0 %v1195
      %1461 = vmatprep.subr.bf16.mxu0 0
      %1462 = vmatpush2.bf16.msra.mxu0 %v1194
      %1463 = vmatprep.subr.bf16.mxu0 0
      %1464 = vmatpush2.bf16.msra.mxu0 %v1193
      %1465 = vmatprep.subr.bf16.mxu0 0
      %1466 = vmatpush2.bf16.msra.mxu0 %v1192
      %1467 = vmatprep.mubr.bf16.mxu0 %v777
      %1468 = vmatmul.mubr.bf16.gmra.mxu0 %v884
      %v1469 = vpop.f32.mrf.mxu0
      %v1470 = vadd.f32 %v1309, %v1469
      %v1471 = vpop.f32.mrf.mxu0
      %v1472 = vpop.f32.mrf.mxu0
      %v1473 = vadd.f32 %v1312, %v1472
      %v1474 = vpop.f32.mrf.mxu0
      %1475 = vmatprep.mubr.bf16.mxu0 %v780
      %1476 = vmatmul.mubr.bf16.gmra.mxu0 %v888
      %v1477 = vpop.f32.mrf.mxu0
      %v1478 = vadd.f32 %v1317, %v1477
      %v1479 = vpop.f32.mrf.mxu0
      %v1480 = vpop.f32.mrf.mxu0
      %v1481 = vadd.f32 %v1320, %v1480
      %v1482 = vpop.f32.mrf.mxu0
      %1483 = vmatprep.mubr.bf16.mxu0 %v783
      %1484 = vmatmul.mubr.bf16.gmra.mxu0 %v892
      %v1485 = vpop.f32.mrf.mxu0
      %v1486 = vadd.f32 %v1325, %v1485
      %v1487 = vpop.f32.mrf.mxu0
      %v1488 = vpop.f32.mrf.mxu0
      %v1489 = vadd.f32 %v1328, %v1488
      %v1490 = vpop.f32.mrf.mxu0
      %1491 = vmatprep.mubr.bf16.mxu0 %v786
      %1492 = vmatmul.mubr.bf16.gmra.mxu0 %v896
      %v1493 = vpop.f32.mrf.mxu0
      %v1494 = vadd.f32 %v1333, %v1493
      %v1495 = vpop.f32.mrf.mxu0
      %v1496 = vpop.f32.mrf.mxu0
      %v1497 = vadd.f32 %v1336, %v1496
      %v1498 = vpop.f32.mrf.mxu0
      %1499 = vmatprep.mubr.bf16.mxu0 %v789
      %1500 = vmatmul.mubr.bf16.gmra.mxu0 %v900
      %v1501 = vpop.f32.mrf.mxu0
      %v1502 = vadd.f32 %v1341, %v1501
      %v1503 = vpop.f32.mrf.mxu0
      %v1504 = vpop.f32.mrf.mxu0
      %v1505 = vadd.f32 %v1344, %v1504
      %v1506 = vpop.f32.mrf.mxu0
      %1507 = vmatprep.mubr.bf16.mxu0 %v792
      %1508 = vmatmul.mubr.bf16.gmra.mxu0 %v904
      %v1509 = vpop.f32.mrf.mxu0
      %v1510 = vadd.f32 %v1349, %v1509
      %v1511 = vpop.f32.mrf.mxu0
      %v1512 = vpop.f32.mrf.mxu0
      %v1513 = vadd.f32 %v1352, %v1512
      %v1514 = vpop.f32.mrf.mxu0
      %1515 = vmatprep.mubr.bf16.mxu0 %v795
      %1516 = vmatmul.mubr.bf16.gmra.mxu0 %v908
      %v1517 = vpop.f32.mrf.mxu0
      %v1518 = vadd.f32 %v1357, %v1517
      %v1519 = vpop.f32.mrf.mxu0
      %v1520 = vpop.f32.mrf.mxu0
      %v1521 = vadd.f32 %v1360, %v1520
      %v1522 = vpop.f32.mrf.mxu0
      %1523 = vmatprep.mubr.bf16.mxu0 %v798
      %1524 = vmatmul.mubr.bf16.gmra.mxu0 %v912
      %v1525 = vpop.f32.mrf.mxu0
      %v1526 = vadd.f32 %v1365, %v1525
      %v1527 = vpop.f32.mrf.mxu0
      %v1528 = vpop.f32.mrf.mxu0
      %v1529 = vadd.f32 %v1368, %v1528
      %v1530 = vpop.f32.mrf.mxu0
      %1531 = vmatprep.mubr.bf16.mxu0 %v801
      %1532 = vmatmul.mubr.bf16.gmra.mxu0 %v916
      %v1533 = vpop.f32.mrf.mxu0
      %v1534 = vadd.f32 %v1373, %v1533
      %v1535 = vpop.f32.mrf.mxu0
      %v1536 = vpop.f32.mrf.mxu0
      %v1537 = vadd.f32 %v1376, %v1536
      %v1538 = vpop.f32.mrf.mxu0
      %1539 = vmatprep.mubr.bf16.mxu0 %v804
      %1540 = vmatmul.mubr.bf16.gmra.mxu0 %v920
      %v1541 = vpop.f32.mrf.mxu0
      %v1542 = vadd.f32 %v1381, %v1541
      %v1543 = vpop.f32.mrf.mxu0
      %v1544 = vpop.f32.mrf.mxu0
      %v1545 = vadd.f32 %v1384, %v1544
      %v1546 = vpop.f32.mrf.mxu0
      %1547 = vmatprep.mubr.bf16.mxu0 %v807
      %1548 = vmatmul.mubr.bf16.gmra.mxu0 %v924
      %v1549 = vpop.f32.mrf.mxu0
      %v1550 = vadd.f32 %v1389, %v1549
      %v1551 = vpop.f32.mrf.mxu0
      %v1552 = vpop.f32.mrf.mxu0
      %v1553 = vadd.f32 %v1392, %v1552
      %v1554 = vpop.f32.mrf.mxu0
      %1555 = vmatprep.mubr.bf16.mxu0 %v810
      %1556 = vmatmul.mubr.bf16.gmra.mxu0 %v928
      %v1557 = vpop.f32.mrf.mxu0
      %v1558 = vadd.f32 %v1397, %v1557
      %v1559 = vpop.f32.mrf.mxu0
      %v1560 = vpop.f32.mrf.mxu0
      %v1561 = vadd.f32 %v1400, %v1560
      %v1562 = vpop.f32.mrf.mxu0
      %1563 = vmatprep.mubr.bf16.mxu0 %v813
      %1564 = vmatmul.mubr.bf16.gmra.mxu0 %v932
      %v1565 = vpop.f32.mrf.mxu0
      %v1566 = vadd.f32 %v1405, %v1565
      %v1567 = vpop.f32.mrf.mxu0
      %v1568 = vpop.f32.mrf.mxu0
      %v1569 = vadd.f32 %v1408, %v1568
      %v1570 = vpop.f32.mrf.mxu0
      %1571 = vmatprep.mubr.bf16.mxu0 %v816
      %1572 = vmatmul.mubr.bf16.gmra.mxu0 %v936
      %v1573 = vpop.f32.mrf.mxu0
      %v1574 = vadd.f32 %v1413, %v1573
      %v1575 = vpop.f32.mrf.mxu0
      %v1576 = vpop.f32.mrf.mxu0
      %v1577 = vadd.f32 %v1416, %v1576
      %v1578 = vpop.f32.mrf.mxu0
      %1579 = vmatprep.mubr.bf16.mxu0 %v947
      %1580 = vmatmul.mubr.bf16.gmra.mxu0 %v940
      %v1581 = vpop.f32.mrf.mxu0
      %v1582 = vadd.f32 %v1421, %v1581
      %v1583 = vpop.f32.mrf.mxu0
      %v1584 = vpop.f32.mrf.mxu0
      %v1585 = vadd.f32 %v1424, %v1584
      %v1586 = vpop.f32.mrf.mxu0
      %1587 = vmatprep.mubr.bf16.mxu0 %v950
      %1588 = vmatmul.mubr.bf16.gmra.mxu0 %v944
      %v1589 = vpop.f32.mrf.mxu0
      %v1590 = vadd.f32 %v1429, %v1589
      %v1591 = vpop.f32.mrf.mxu0
      %v1592 = vpop.f32.mrf.mxu0
      %v1593 = vadd.f32 %v1432, %v1592
      %v1594 = vpop.f32.mrf.mxu0
      %1595 = vdwg.mxu0
      %1596 = vmatprep.subr.bf16.mxu0 0
      %1597 = vmatpush1.bf16.msra.mxu0 0
      %1598 = vmatprep.subr.bf16.mxu0 0
      %1599 = vmatpush1.bf16.msra.mxu0 0
      %1600 = vmatprep.subr.bf16.mxu0 0
      %1601 = vmatpush1.bf16.msra.mxu0 0
      %1602 = vmatprep.subr.bf16.mxu0 0
      %1603 = vmatpush1.bf16.msra.mxu0 0
      %1604 = vmatprep.subr.bf16.mxu0 0
      %1605 = vmatpush1.bf16.msra.mxu0 %v1203
      %1606 = vmatprep.subr.bf16.mxu0 0
      %1607 = vmatpush1.bf16.msra.mxu0 %v1202
      %1608 = vmatprep.subr.bf16.mxu0 0
      %1609 = vmatpush1.bf16.msra.mxu0 %v1201
      %1610 = vmatprep.subr.bf16.mxu0 0
      %1611 = vmatpush1.bf16.msra.mxu0 %v1200
      %1612 = vmatprep.subr.bf16.mxu0 0
      %1613 = vmatpush2.bf16.msra.mxu0 0
      %1614 = vmatprep.subr.bf16.mxu0 0
      %1615 = vmatpush2.bf16.msra.mxu0 0
      %1616 = vmatprep.subr.bf16.mxu0 0
      %1617 = vmatpush2.bf16.msra.mxu0 0
      %1618 = vmatprep.subr.bf16.mxu0 0
      %1619 = vmatpush2.bf16.msra.mxu0 0
      %1620 = vmatprep.subr.bf16.mxu0 0
      %1621 = vmatpush2.bf16.msra.mxu0 0
      %1622 = vmatprep.subr.bf16.mxu0 0
      %1623 = vmatpush2.bf16.msra.mxu0 0
      %1624 = vmatprep.subr.bf16.mxu0 0
      %1625 = vmatpush2.bf16.msra.mxu0 0
      %1626 = vmatprep.subr.bf16.mxu0 0
      %1627 = vmatpush2.bf16.msra.mxu0 0
      %1628 = vmatprep.mubr.bf16.mxu0 0
      %1629 = vmatmul.mubr.bf16.gmra.mxu0 %v1240
      %v1630 = vpop.f32.mrf.mxu0
      %v1631 = vadd.f32 %v1470, %v1630
      %v1632 = vpop.f32.mrf.mxu0
      %v1633 = vpop.f32.mrf.mxu0
      %v1634 = vadd.f32 %v1473, %v1633
      %v1635 = vpop.f32.mrf.mxu0
      %1636 = vmatprep.mubr.bf16.mxu0 0
      %1637 = vmatmul.mubr.bf16.gmra.mxu0 %v1242
      %v1638 = vpop.f32.mrf.mxu0
      %v1639 = vadd.f32 %v1478, %v1638
      %v1640 = vpop.f32.mrf.mxu0
      %v1641 = vpop.f32.mrf.mxu0
      %v1642 = vadd.f32 %v1481, %v1641
      %v1643 = vpop.f32.mrf.mxu0
      %1644 = vmatprep.mubr.bf16.mxu0 0
      %1645 = vmatmul.mubr.bf16.gmra.mxu0 %v1244
      %v1646 = vpop.f32.mrf.mxu0
      %v1647 = vadd.f32 %v1486, %v1646
      %v1648 = vpop.f32.mrf.mxu0
      %v1649 = vpop.f32.mrf.mxu0
      %v1650 = vadd.f32 %v1489, %v1649
      %v1651 = vpop.f32.mrf.mxu0
      %1652 = vmatprep.mubr.bf16.mxu0 0
      %1653 = vmatmul.mubr.bf16.gmra.mxu0 %v1246
      %v1654 = vpop.f32.mrf.mxu0
      %v1655 = vadd.f32 %v1494, %v1654
      %v1656 = vpop.f32.mrf.mxu0
      %v1657 = vpop.f32.mrf.mxu0
      %v1658 = vadd.f32 %v1497, %v1657
      %v1659 = vpop.f32.mrf.mxu0
      %1660 = vmatprep.mubr.bf16.mxu0 0
      %1661 = vmatmul.mubr.bf16.gmra.mxu0 %v1248
      %v1662 = vpop.f32.mrf.mxu0
      %v1663 = vadd.f32 %v1502, %v1662
      %v1664 = vpop.f32.mrf.mxu0
      %v1665 = vpop.f32.mrf.mxu0
      %v1666 = vadd.f32 %v1505, %v1665
      %v1667 = vpop.f32.mrf.mxu0
      %1668 = vmatprep.mubr.bf16.mxu0 0
      %1669 = vmatmul.mubr.bf16.gmra.mxu0 %v1250
      %v1670 = vpop.f32.mrf.mxu0
      %v1671 = vadd.f32 %v1510, %v1670
      %v1672 = vpop.f32.mrf.mxu0
      %v1673 = vpop.f32.mrf.mxu0
      %v1674 = vadd.f32 %v1513, %v1673
      %v1675 = vpop.f32.mrf.mxu0
      %1676 = vmatprep.mubr.bf16.mxu0 0
      %1677 = vmatmul.mubr.bf16.gmra.mxu0 %v1252
      %v1678 = vpop.f32.mrf.mxu0
      %v1679 = vadd.f32 %v1518, %v1678
      %v1680 = vpop.f32.mrf.mxu0
      %v1681 = vpop.f32.mrf.mxu0
      %v1682 = vadd.f32 %v1521, %v1681
      %v1683 = vpop.f32.mrf.mxu0
      %1684 = vmatprep.mubr.bf16.mxu0 0
      %1685 = vmatmul.mubr.bf16.gmra.mxu0 %v1254
      %v1686 = vpop.f32.mrf.mxu0
      %v1687 = vadd.f32 %v1526, %v1686
      %v1688 = vpop.f32.mrf.mxu0
      %v1689 = vpop.f32.mrf.mxu0
      %v1690 = vadd.f32 %v1529, %v1689
      %v1691 = vpop.f32.mrf.mxu0
      %1692 = vmatprep.mubr.bf16.mxu0 0
      %1693 = vmatmul.mubr.bf16.gmra.mxu0 %v1256
      %v1694 = vpop.f32.mrf.mxu0
      %v1695 = vadd.f32 %v1534, %v1694
      %v1696 = vpop.f32.mrf.mxu0
      %v1697 = vpop.f32.mrf.mxu0
      %v1698 = vadd.f32 %v1537, %v1697
      %v1699 = vpop.f32.mrf.mxu0
      %1700 = vmatprep.mubr.bf16.mxu0 0
      %1701 = vmatmul.mubr.bf16.gmra.mxu0 %v1258
      %v1702 = vpop.f32.mrf.mxu0
      %v1703 = vadd.f32 %v1542, %v1702
      %v1704 = vpop.f32.mrf.mxu0
      %v1705 = vpop.f32.mrf.mxu0
      %v1706 = vadd.f32 %v1545, %v1705
      %v1707 = vpop.f32.mrf.mxu0
      %1708 = vmatprep.mubr.bf16.mxu0 0
      %1709 = vmatmul.mubr.bf16.gmra.mxu0 %v1260
      %v1710 = vpop.f32.mrf.mxu0
      %v1711 = vadd.f32 %v1550, %v1710
      %v1712 = vpop.f32.mrf.mxu0
      %v1713 = vpop.f32.mrf.mxu0
      %v1714 = vadd.f32 %v1553, %v1713
      %v1715 = vpop.f32.mrf.mxu0
      %1716 = vmatprep.mubr.bf16.mxu0 0
      %1717 = vmatmul.mubr.bf16.gmra.mxu0 %v1262
      %v1718 = vpop.f32.mrf.mxu0
      %v1719 = vadd.f32 %v1558, %v1718
      %v1720 = vpop.f32.mrf.mxu0
      %v1721 = vpop.f32.mrf.mxu0
      %v1722 = vadd.f32 %v1561, %v1721
      %v1723 = vpop.f32.mrf.mxu0
      %1724 = vmatprep.mubr.bf16.mxu0 0
      %1725 = vmatmul.mubr.bf16.gmra.mxu0 %v1264
      %v1726 = vpop.f32.mrf.mxu0
      %v1727 = vadd.f32 %v1566, %v1726
      %v1728 = vpop.f32.mrf.mxu0
      %v1729 = vpop.f32.mrf.mxu0
      %v1730 = vadd.f32 %v1569, %v1729
      %v1731 = vpop.f32.mrf.mxu0
      %1732 = vmatprep.mubr.bf16.mxu0 0
      %1733 = vmatmul.mubr.bf16.gmra.mxu0 %v1266
      %v1734 = vpop.f32.mrf.mxu0
      %v1735 = vadd.f32 %v1574, %v1734
      %v1736 = vpop.f32.mrf.mxu0
      %v1737 = vpop.f32.mrf.mxu0
      %v1738 = vadd.f32 %v1577, %v1737
      %v1739 = vpop.f32.mrf.mxu0
      %1740 = vmatprep.mubr.bf16.mxu0 0
      %1741 = vmatmul.mubr.bf16.gmra.mxu0 %v1269
      %v1742 = vpop.f32.mrf.mxu0
      %v1743 = vadd.f32 %v1582, %v1742
      %v1744 = vpop.f32.mrf.mxu0
      %v1745 = vpop.f32.mrf.mxu0
      %v1746 = vadd.f32 %v1585, %v1745
      %v1747 = vpop.f32.mrf.mxu0
      %1748 = vmatprep.mubr.bf16.mxu0 0
      %1749 = vmatmul.mubr.bf16.gmra.mxu0 %v1272
      %v1750 = vpop.f32.mrf.mxu0
      %v1751 = vadd.f32 %v1590, %v1750
      %v1752 = vpop.f32.mrf.mxu0
      %v1753 = vpop.f32.mrf.mxu0
      %v1754 = vadd.f32 %v1593, %v1753
      %v1755 = vpop.f32.mrf.mxu0
      %1756 = vdwg.mxu0
      %v1757 = vld [vmem:[%s2] sm:$0x1]
      %v1759 = vlaneseq
      %v1760 = vshrl.u32 %v1759, 7
      %v1761 = vsub.s32 0, %v1760
      %v1762 = vrot.slane %v1757, %v1761
      %v1764 = vmul.f32 %v1631, %v1762
      %v1765 = vmul.f32 %v1634, %v1762
      %v1766 = vmul.f32 %v1639, %v1762
      %v1767 = vmul.f32 %v1642, %v1762
      %v1768 = vmul.f32 %v1647, %v1762
      %v1769 = vmul.f32 %v1650, %v1762
      %v1770 = vmul.f32 %v1655, %v1762
      %v1771 = vmul.f32 %v1658, %v1762
      %v1772 = vmul.f32 %v1663, %v1762
      %v1773 = vmul.f32 %v1666, %v1762
      %v1774 = vmul.f32 %v1671, %v1762
      %v1775 = vmul.f32 %v1674, %v1762
      %v1776 = vmul.f32 %v1679, %v1762
      %v1777 = vmul.f32 %v1682, %v1762
      %v1778 = vmul.f32 %v1687, %v1762
      %v1779 = vmul.f32 %v1690, %v1762
      %v1780 = vmul.f32 %v1695, %v1762
      %v1781 = vmul.f32 %v1698, %v1762
      %v1782 = vmul.f32 %v1703, %v1762
      %v1783 = vmul.f32 %v1706, %v1762
      %v1784 = vmul.f32 %v1711, %v1762
      %v1785 = vmul.f32 %v1714, %v1762
      %v1786 = vmul.f32 %v1719, %v1762
      %v1787 = vmul.f32 %v1722, %v1762
      %v1788 = vmul.f32 %v1727, %v1762
      %v1789 = vmul.f32 %v1730, %v1762
      %v1790 = vmul.f32 %v1735, %v1762
      %v1791 = vmul.f32 %v1738, %v1762
      %v1792 = vmul.f32 %v1743, %v1762
      %v1793 = vmul.f32 %v1746, %v1762
      %v1794 = vmul.f32 %v1751, %v1762
      %v1795 = vmul.f32 %v1754, %v1762
      %v1796 = vld [vmem:[%s3] sm:$0x1]
      %v1798 = vlaneseq
      %v1799 = vshrl.u32 %v1798, 7
      %v1800 = vsub.s32 0, %v1799
      %v1801 = vrot.slane %v1796, %v1800
      %v1803 = vadd.f32 %v1764, %v1801
      %v1804 = vadd.f32 %v1765, %v1801
      %v1805 = vadd.f32 %v1766, %v1801
      %v1806 = vadd.f32 %v1767, %v1801
      %v1807 = vadd.f32 %v1768, %v1801
      %v1808 = vadd.f32 %v1769, %v1801
      %v1809 = vadd.f32 %v1770, %v1801
      %v1810 = vadd.f32 %v1771, %v1801
      %v1811 = vadd.f32 %v1772, %v1801
      %v1812 = vadd.f32 %v1773, %v1801
      %v1813 = vadd.f32 %v1774, %v1801
      %v1814 = vadd.f32 %v1775, %v1801
      %v1815 = vadd.f32 %v1776, %v1801
      %v1816 = vadd.f32 %v1777, %v1801
      %v1817 = vadd.f32 %v1778, %v1801
      %v1818 = vadd.f32 %v1779, %v1801
      %v1819 = vadd.f32 %v1780, %v1801
      %v1820 = vadd.f32 %v1781, %v1801
      %v1821 = vadd.f32 %v1782, %v1801
      %v1822 = vadd.f32 %v1783, %v1801
      %v1823 = vadd.f32 %v1784, %v1801
      %v1824 = vadd.f32 %v1785, %v1801
      %v1825 = vadd.f32 %v1786, %v1801
      %v1826 = vadd.f32 %v1787, %v1801
      %v1827 = vadd.f32 %v1788, %v1801
      %v1828 = vadd.f32 %v1789, %v1801
      %v1829 = vadd.f32 %v1790, %v1801
      %v1830 = vadd.f32 %v1791, %v1801
      %v1831 = vadd.f32 %v1792, %v1801
      %v1832 = vadd.f32 %v1793, %v1801
      %v1833 = vadd.f32 %v1794, %v1801
      %v1834 = vadd.f32 %v1795, %v1801
      %v1835 = vmax.f32 %v1803, 0.0
      %v1836 = vmax.f32 %v1804, 0.0
      %v1837 = vmax.f32 %v1805, 0.0
      %v1838 = vmax.f32 %v1806, 0.0
      %v1839 = vmax.f32 %v1807, 0.0
      %v1840 = vmax.f32 %v1808, 0.0
      %v1841 = vmax.f32 %v1809, 0.0
      %v1842 = vmax.f32 %v1810, 0.0
      %v1843 = vmax.f32 %v1811, 0.0
      %v1844 = vmax.f32 %v1812, 0.0
      %v1845 = vmax.f32 %v1813, 0.0
      %v1846 = vmax.f32 %v1814, 0.0
      %v1847 = vmax.f32 %v1815, 0.0
      %v1848 = vmax.f32 %v1816, 0.0
      %v1849 = vmax.f32 %v1817, 0.0
      %v1850 = vmax.f32 %v1818, 0.0
      %v1851 = vmax.f32 %v1819, 0.0
      %v1852 = vmax.f32 %v1820, 0.0
      %v1853 = vmax.f32 %v1821, 0.0
      %v1854 = vmax.f32 %v1822, 0.0
      %v1855 = vmax.f32 %v1823, 0.0
      %v1856 = vmax.f32 %v1824, 0.0
      %v1857 = vmax.f32 %v1825, 0.0
      %v1858 = vmax.f32 %v1826, 0.0
      %v1859 = vmax.f32 %v1827, 0.0
      %v1860 = vmax.f32 %v1828, 0.0
      %v1861 = vmax.f32 %v1829, 0.0
      %v1862 = vmax.f32 %v1830, 0.0
      %v1863 = vmax.f32 %v1831, 0.0
      %v1864 = vmax.f32 %v1832, 0.0
      %v1865 = vmax.f32 %v1833, 0.0
      %v1866 = vmax.f32 %v1834, 0.0
      %1867 = vst.msk [vmem:[%s197] sm:$0xff] %vm769, %v1835
      %1868 = vst.msk [vmem:[%s197 + $0x8] sm:$0xff] %vm769, %v1836
      %1869 = vst.msk [vmem:[%s197 + $0x10] sm:$0xff] %vm769, %v1837
      %1870 = vst.msk [vmem:[%s197 + $0x18] sm:$0xff] %vm769, %v1838
      %1871 = vst.msk [vmem:[%s197 + $0x20] sm:$0xff] %vm769, %v1839
      %1872 = vst.msk [vmem:[%s197 + $0x28] sm:$0xff] %vm769, %v1840
      %1873 = vst.msk [vmem:[%s197 + $0x30] sm:$0xff] %vm769, %v1841
      %1874 = vst.msk [vmem:[%s197 + $0x38] sm:$0xff] %vm769, %v1842
      %1875 = vst.msk [vmem:[%s197 + $0x40] sm:$0xff] %vm769, %v1843
      %1876 = vst.msk [vmem:[%s197 + $0x48] sm:$0xff] %vm769, %v1844
      %1877 = vst.msk [vmem:[%s197 + $0x50] sm:$0xff] %vm769, %v1845
      %1878 = vst.msk [vmem:[%s197 + $0x58] sm:$0xff] %vm769, %v1846
      %1879 = vst.msk [vmem:[%s197 + $0x60] sm:$0xff] %vm769, %v1847
      %1880 = vst.msk [vmem:[%s197 + $0x68] sm:$0xff] %vm769, %v1848
      %1881 = vst.msk [vmem:[%s197 + $0x70] sm:$0xff] %vm769, %v1849
      %1882 = vst.msk [vmem:[%s197 + $0x78] sm:$0xff] %vm769, %v1850
      %1883 = vst.msk [vmem:[%s197 + $0x80] sm:$0xff] %vm769, %v1851
      %1884 = vst.msk [vmem:[%s197 + $0x88] sm:$0xff] %vm769, %v1852
      %1885 = vst.msk [vmem:[%s197 + $0x90] sm:$0xff] %vm769, %v1853
      %1886 = vst.msk [vmem:[%s197 + $0x98] sm:$0xff] %vm769, %v1854
      %1887 = vst.msk [vmem:[%s197 + $0xa0] sm:$0xff] %vm769, %v1855
      %1888 = vst.msk [vmem:[%s197 + $0xa8] sm:$0xff] %vm769, %v1856
      %1889 = vst.msk [vmem:[%s197 + $0xb0] sm:$0xff] %vm769, %v1857
      %1890 = vst.msk [vmem:[%s197 + $0xb8] sm:$0xff] %vm769, %v1858
      %1891 = vst.msk [vmem:[%s197 + $0xc0] sm:$0xff] %vm769, %v1859
      %1892 = vst.msk [vmem:[%s197 + $0xc8] sm:$0xff] %vm769, %v1860
      %1893 = vst.msk [vmem:[%s197 + $0xd0] sm:$0xff] %vm769, %v1861
      %1894 = vst.msk [vmem:[%s197 + $0xd8] sm:$0xff] %vm769, %v1862
      %1895 = vst.msk [vmem:[%s197 + $0xe0] sm:$0xff] %vm769, %v1863
      %1896 = vst.msk [vmem:[%s197 + $0xe8] sm:$0xff] %vm769, %v1864
      %1897 = vst.msk [vmem:[%s197 + $0xf0] sm:$0xff] %vm769, %v1865
      %1898 = vst.msk [vmem:[%s197 + $0xf8] sm:$0xff] %vm769, %v1866
      %p1899 = scmp.lt.s32.totalorder %s15, 1
      %s1900 = scalar_select %p1899, %s15, 1
      %s1901 = smul.addr %s1900, 32
      %s1902 = smul.addr %s1901, 8
      %s1903 = scalar_lea.vmem %s4, %s1902
      // Predicated region
      $region37: #{_lambda_.11} parent=35 // pred_check
        %p1904 = pneg %p122
      $region38: #{_lambda_.11} parent=35 // pred_check_branch
        %1906 = sbr.rel (%p1904) target = $region40
      $region39: #{_lambda_.11} parent=35 // pred_region
        _
      $region40: #{_lambda_.11} parent=35 // pred_fallthru
        _
    $region36: #{_lambda_.11} parent=5 // pred_fallthru
      _
    %p1907 = scmp.le.s32.totalorder 2, %s10
    // Predicated region
    $region41: #{_lambda_.11} parent=5 // pred_check
      %p1908 = pneg %p1907
    $region42: #{_lambda_.11} parent=5 // pred_check_branch
      %1910 = sbr.rel (%p1908) target = $region44
    $region43: #{_lambda_.11} parent=5 // pred_region
      %s1911 = ssub.s32 %s10, 2
      // Predicated region
      $region45: #{_lambda_.11} parent=43 // pred_check
        %p1912 = pneg %p128
      $region46: #{_lambda_.11} parent=43 // pred_check_branch
        %1914 = sbr.rel (%p1912) target = $region48
      $region47: #{_lambda_.11} parent=43 // pred_region
        %p1915 = scmp.lt.s32.totalorder %s16, 1
        %s1916 = scalar_select %p1915, %s16, 1
        %s1917 = smul.addr %s1916, 32
        %s1918 = smul.addr %s1917, 8
        %s1919 = scalar_lea.vmem %s4, %s1918
      $region48: #{_lambda_.11} parent=43 // pred_fallthru
        _
    $region44: #{_lambda_.11} parent=5 // pred_fallthru
      _
  $region6: #{_lambda_.11} parent=0 // loop_footer
    %s14 = sadd.s32 1, %s10
  $region7: #{_lambda_.11} parent=0 // loop_footer_branch
    %9 = sbr.rel target = $region3
  $region8: #{_lambda_.11} parent=0 // loop_exit
    _

// kernel: _lambda_.12
$region0: #{_lambda_.12}
  #allocation0 [shape = 'u32[]', space=smem, size = 0x4, offset = 0x4, fixed_abs, tag = 'smem constant byte address 0x4 - core index']
  #allocation1 [shape = 'u32[144,128]{1,0:T(1,128)}', space=vmem, size = 0x12000, scoped, tag = 'internal scratch']
  %s0 = inlined_call_operand.vmem [shape: bf16[2,9,9,256], index: 0, kind: input, shape index: {}]
  %s1 = inlined_call_operand.vmem [shape: bf16[1024,32], index: 1, kind: input, shape index: {}]
  %s2 = inlined_call_operand.vmem [shape: f32[1,32], index: 2, kind: input, shape index: {}]
  %s3 = inlined_call_operand.vmem [shape: f32[1,32], index: 3, kind: input, shape index: {}]
  %s4 = inlined_call_operand.vmem [shape: f32[2,64,32], index: 4, kind: output, shape index: {}]
  %s5 = sld [smem:[#allocation0]]
  $region49: #{_lambda_.12} parent=0
    _
  %s7 = ssub.s32 1, %s5
  %s8 = scalar_select 0, %s7, %s5
  loop: start=0, step=1, limit=4
  $region2: #{_lambda_.12} parent=0 // loop_pre_header
    _
  $region3: #{_lambda_.12} parent=0 // loop_header
    %s10 = sphi 0, %s14
    %p11 = scmp.ge.s32.totalorder %s10, 4
    %s20 = sphi 0, %s22
    %s23 = sphi 0, %s20
    %s24 = sphi 0, %s23
    %s40 = sphi 0, %s24
    %s44 = sphi 0, %s44
    %s46 = sphi 0, %s44
    %s47 = sphi 0, %s46
    %s61 = sphi 0, %s47
    %s65 = sphi 0, %s65
    %s67 = sphi 0, %s65
    %s68 = sphi 0, %s67
    %s82 = sphi 0, %s68
    %s86 = sphi 0, %s86
    %s88 = sphi 0, %s86
    %s89 = sphi 0, %s88
    %s103 = sphi 0, %s89
    %s109 = sphi 0, %s111
    %s112 = sphi 0, %s109
    %s113 = sphi 0, %s112
    %s129 = sphi 0, %s113
  $region4: #{_lambda_.12} parent=0 // loop_header_branch
    %13 = sbr.rel (%p11) target = $region8
  $region5: #{_lambda_.12} parent=0 // loop_body
    %s15 = ssub.s32 %s10, 1
    %s16 = ssub.s32 %s10, 2
    %s17 = sadd.s32 %s10, 1
    %s18 = ssub.s32 %s10, %s17
    %p19 = scmp.eq.s32.totalorder %s18, 0
    %s21 = sadd.s32 %s20, 1
    %s22 = scalar_select %p19, %s20, %s21
    %p25 = pneg %p19
    %p26 = scmp.eq.s32.totalorder %s10, 1
    %p27 = por %p25, %p26
    %p28 = scmp.ne.s32.totalorder %s20, %s23
    %p29 = scmp.eq.s32.totalorder %s10, 0
    %p30 = por %p28, %p29
    %p31 = scmp.ne.s32.totalorder %s20, %s23
    %p32 = scmp.eq.s32.totalorder %s15, 1
    %p33 = por %p31, %p32
    %p34 = scmp.ne.s32.totalorder %s23, %s24
    %p35 = scmp.eq.s32.totalorder %s15, 0
    %p36 = por %p34, %p35
    %p37 = scmp.ne.s32.totalorder %s23, %s24
    %p38 = scmp.eq.s32.totalorder %s16, 1
    %p39 = por %p37, %p38
    %p41 = scmp.ne.s32.totalorder %s24, %s40
    %p42 = scmp.eq.s32.totalorder %s16, 0
    %p43 = por %p41, %p42
    %s45 = sadd.s32 %s44, 1
    %p48 = scmp.eq.s32.totalorder %s10, 1
    %p49 = scmp.ne.s32.totalorder %s44, %s46
    %p50 = scmp.eq.s32.totalorder %s10, 0
    %p51 = por %p49, %p50
    %p52 = scmp.ne.s32.totalorder %s44, %s46
    %p53 = scmp.eq.s32.totalorder %s15, 1
    %p54 = por %p52, %p53
    %p55 = scmp.ne.s32.totalorder %s46, %s47
    %p56 = scmp.eq.s32.totalorder %s15, 0
    %p57 = por %p55, %p56
    %p58 = scmp.ne.s32.totalorder %s46, %s47
    %p59 = scmp.eq.s32.totalorder %s16, 1
    %p60 = por %p58, %p59
    %p62 = scmp.ne.s32.totalorder %s47, %s61
    %p63 = scmp.eq.s32.totalorder %s16, 0
    %p64 = por %p62, %p63
    %s66 = sadd.s32 %s65, 1
    %p69 = scmp.eq.s32.totalorder %s10, 1
    %p70 = scmp.ne.s32.totalorder %s65, %s67
    %p71 = scmp.eq.s32.totalorder %s10, 0
    %p72 = por %p70, %p71
    %p73 = scmp.ne.s32.totalorder %s65, %s67
    %p74 = scmp.eq.s32.totalorder %s15, 1
    %p75 = por %p73, %p74
    %p76 = scmp.ne.s32.totalorder %s67, %s68
    %p77 = scmp.eq.s32.totalorder %s15, 0
    %p78 = por %p76, %p77
    %p79 = scmp.ne.s32.totalorder %s67, %s68
    %p80 = scmp.eq.s32.totalorder %s16, 1
    %p81 = por %p79, %p80
    %p83 = scmp.ne.s32.totalorder %s68, %s82
    %p84 = scmp.eq.s32.totalorder %s16, 0
    %p85 = por %p83, %p84
    %s87 = sadd.s32 %s86, 1
    %p90 = scmp.eq.s32.totalorder %s10, 1
    %p91 = scmp.ne.s32.totalorder %s86, %s88
    %p92 = scmp.eq.s32.totalorder %s10, 0
    %p93 = por %p91, %p92
    %p94 = scmp.ne.s32.totalorder %s86, %s88
    %p95 = scmp.eq.s32.totalorder %s15, 1
    %p96 = por %p94, %p95
    %p97 = scmp.ne.s32.totalorder %s88, %s89
    %p98 = scmp.eq.s32.totalorder %s15, 0
    %p99 = por %p97, %p98
    %p100 = scmp.ne.s32.totalorder %s88, %s89
    %p101 = scmp.eq.s32.totalorder %s16, 1
    %p102 = por %p100, %p101
    %p104 = scmp.ne.s32.totalorder %s89, %s103
    %p105 = scmp.eq.s32.totalorder %s16, 0
    %p106 = por %p104, %p105
    %s107 = ssub.s32 %s10, %s17
    %p108 = scmp.eq.s32.totalorder %s107, 0
    %s110 = sadd.s32 %s109, 1
    %s111 = scalar_select %p108, %s109, %s110
    %p114 = pneg %p108
    %p115 = scmp.eq.s32.totalorder %s10, 1
    %p116 = por %p114, %p115
    %p117 = scmp.ne.s32.totalorder %s109, %s112
    %p118 = scmp.eq.s32.totalorder %s10, 0
    %p119 = por %p117, %p118
    %p120 = scmp.ne.s32.totalorder %s109, %s112
    %p121 = scmp.eq.s32.totalorder %s15, 1
    %p122 = por %p120, %p121
    %p123 = scmp.ne.s32.totalorder %s112, %s113
    %p124 = scmp.eq.s32.totalorder %s15, 0
    %p125 = por %p123, %p124
    %p126 = scmp.ne.s32.totalorder %s112, %s113
    %p127 = scmp.eq.s32.totalorder %s16, 1
    %p128 = por %p126, %p127
    %p130 = scmp.ne.s32.totalorder %s113, %s129
    %p131 = scmp.eq.s32.totalorder %s16, 0
    %p132 = por %p130, %p131
    %p133 = scmp.le.s32.totalorder 1, %s10
    %p134 = scmp.lt.s32.totalorder %s10, 3
    %p135 = pnand %p133, %p134
    %p136 = pneg %p135
    // Predicated region
    $region9: #{_lambda_.12} parent=5 // pred_check
      _
    $region10: #{_lambda_.12} parent=5 // pred_check_branch
      %138 = sbr.rel (%p135) target = $region12
    $region11: #{_lambda_.12} parent=5 // pred_region
      %s139 = ssub.s32 %s10, 1
      // Predicated region
      $region13: #{_lambda_.12} parent=11 // pred_check
        %p140 = pneg %p57
      $region14: #{_lambda_.12} parent=11 // pred_check_branch
        %142 = sbr.rel (%p140) target = $region16
      $region15: #{_lambda_.12} parent=11 // pred_region
        _
      $region16: #{_lambda_.12} parent=11 // pred_fallthru
        _
      // Predicated region
      $region17: #{_lambda_.12} parent=11 // pred_check
        %p143 = pneg %p78
      $region18: #{_lambda_.12} parent=11 // pred_check_branch
        %145 = sbr.rel (%p143) target = $region20
      $region19: #{_lambda_.12} parent=11 // pred_region
        _
      $region20: #{_lambda_.12} parent=11 // pred_fallthru
        _
      // Predicated region
      $region21: #{_lambda_.12} parent=11 // pred_check
        %p146 = pneg %p99
      $region22: #{_lambda_.12} parent=11 // pred_check_branch
        %148 = sbr.rel (%p146) target = $region24
      $region23: #{_lambda_.12} parent=11 // pred_region
        _
      $region24: #{_lambda_.12} parent=11 // pred_fallthru
        _
    $region12: #{_lambda_.12} parent=5 // pred_fallthru
      _
    %p149 = scmp.lt.s32.totalorder %s10, 2
    // Predicated region
    $region25: #{_lambda_.12} parent=5 // pred_check
      %p150 = pneg %p149
    $region26: #{_lambda_.12} parent=5 // pred_check_branch
      %152 = sbr.rel (%p150) target = $region28
    $region27: #{_lambda_.12} parent=5 // pred_region
      // Predicated region
      $region29: #{_lambda_.12} parent=27 // pred_check
        %p153 = pneg %p30
      $region30: #{_lambda_.12} parent=27 // pred_check_branch
        %155 = sbr.rel (%p153) target = $region32
      $region31: #{_lambda_.12} parent=27 // pred_region
        %p156 = scmp.lt.s32.totalorder %s10, 1
        %s157 = scalar_select %p156, %s10, 1
        %s158 = smul.addr %s157, 36
        %s159 = smul.addr %s158, 4
        %s160 = scalar_lea.vmem %s0, %s159
      $region32: #{_lambda_.12} parent=27 // pred_fallthru
        _
    $region28: #{_lambda_.12} parent=5 // pred_fallthru
      _
    %p161 = scmp.le.s32.totalorder 1, %s10
    %p162 = scmp.lt.s32.totalorder %s10, 3
    %p163 = pnand %p161, %p162
    %p164 = pneg %p163
    // Predicated region
    $region33: #{_lambda_.12} parent=5 // pred_check
      _
    $region34: #{_lambda_.12} parent=5 // pred_check_branch
      %166 = sbr.rel (%p163) target = $region36
    $region35: #{_lambda_.12} parent=5 // pred_region
      %s167 = ssub.s32 %s10, 1
      %p168 = scmp.lt.s32.totalorder %s15, 1
      %s169 = scalar_select %p168, %s15, 1
      %s170 = smul.addr %s169, 36
      %s171 = smul.addr %s170, 4
      %s172 = scalar_lea.vmem %s0, %s171
      %p173 = pneg %p36
      %p174 = pneg %p33
      %p175 = pneg %p57
      %p176 = pneg %p54
      %p177 = pneg %p78
      %p178 = pneg %p75
      %p179 = pneg %p99
      %p180 = pneg %p96
      %p181 = pneg %p125
      %p182 = pneg %p122
      %p183 = scmp.lt.s32.totalorder %s15, 1
      %s184 = scalar_select %p183, %s15, 1
      %s185 = smul.addr %s184, 8
      %s186 = smul.addr %s185, 8
      %s187 = scalar_lea.vmem %s4, %s186
      %p188 = scmp.lt.s32.totalorder %s15, 1
      %s189 = scalar_select %p188, %s15, 1
      %s190 = smul.addr %s189, 36
      %s191 = smul.addr %s190, 4
      %s192 = scalar_lea.vmem %s0, %s191
      %p193 = scmp.lt.s32.totalorder %s15, 1
      %s194 = scalar_select %p193, %s15, 1
      %s195 = smul.addr %s194, 8
      %s196 = smul.addr %s195, 8
      %s197 = scalar_lea.vmem %s4, %s196
      %v199 = vld [vmem:[%s192] sm:$0xff]
      %v200 = vld [vmem:[%s192 + $0x8] sm:$0x11]
      %v201 = vld [vmem:[%s192 + $0x10] sm:$0xff]
      %v202 = vld [vmem:[%s192 + $0x18] sm:$0x11]
      %v203 = vld [vmem:[%s192 + $0x20] sm:$0xff]
      %v204 = vld [vmem:[%s192 + $0x28] sm:$0x11]
      %v205 = vld [vmem:[%s192 + $0x30] sm:$0xff]
      %v206 = vld [vmem:[%s192 + $0x38] sm:$0x11]
      %v207 = vld [vmem:[%s192 + $0x40] sm:$0xff]
      %v208 = vld [vmem:[%s192 + $0x48] sm:$0x11]
      %v209 = vld [vmem:[%s192 + $0x50] sm:$0xff]
      %v210 = vld [vmem:[%s192 + $0x58] sm:$0x11]
      %v211 = vld [vmem:[%s192 + $0x60] sm:$0xff]
      %v212 = vld [vmem:[%s192 + $0x68] sm:$0x11]
      %v213 = vld [vmem:[%s192 + $0x70] sm:$0xff]
      %v214 = vld [vmem:[%s192 + $0x78] sm:$0x11]
      %v215 = vld [vmem:[%s192 + $0x80] sm:$0xff]
      %v216 = vld [vmem:[%s192 + $0x88] sm:$0x11]
      %v225 = vunpack.c.l.b16 %v199
      %v226 = vunpack.c.h.b16 %v199
      %v227 = vunpack.c.l.b16 %v201
      %v228 = vunpack.c.h.b16 %v201
      %v229 = vunpack.c.l.b16 %v203
      %v230 = vunpack.c.h.b16 %v203
      %v231 = vunpack.c.l.b16 %v205
      %v232 = vunpack.c.h.b16 %v205
      %v233 = vunpack.c.l.b16 %v207
      %v234 = vunpack.c.h.b16 %v207
      %v235 = vunpack.c.l.b16 %v209
      %v236 = vunpack.c.h.b16 %v209
      %v237 = vunpack.c.l.b16 %v211
      %v238 = vunpack.c.h.b16 %v211
      %v239 = vunpack.c.l.b16 %v213
      %v240 = vunpack.c.h.b16 %v213
      %v249 = vunpack.c.l.b16 %v200
      %v250 = vunpack.c.h.b16 %v200
      %v251 = vunpack.c.l.b16 %v202
      %v252 = vunpack.c.h.b16 %v202
      %v253 = vunpack.c.l.b16 %v204
      %v254 = vunpack.c.h.b16 %v204
      %v255 = vunpack.c.l.b16 %v206
      %v256 = vunpack.c.h.b16 %v206
      %v257 = vunpack.c.l.b16 %v208
      %v258 = vunpack.c.h.b16 %v208
      %v259 = vunpack.c.l.b16 %v210
      %v260 = vunpack.c.h.b16 %v210
      %v261 = vunpack.c.l.b16 %v212
      %v262 = vunpack.c.h.b16 %v212
      %v263 = vunpack.c.l.b16 %v214
      %v264 = vunpack.c.h.b16 %v214
      %v265 = vpack.c.b16 %v249, %v225
      %v266 = vpack.c.b16 %v250, %v226
      %v267 = vpack.c.b16 %v251, %v227
      %v268 = vpack.c.b16 %v252, %v228
      %v269 = vpack.c.b16 %v253, %v229
      %v270 = vpack.c.b16 %v254, %v230
      %v271 = vpack.c.b16 %v255, %v231
      %v272 = vpack.c.b16 %v256, %v232
      %v273 = vpack.c.b16 %v257, %v233
      %v274 = vpack.c.b16 %v258, %v234
      %v275 = vpack.c.b16 %v259, %v235
      %v276 = vpack.c.b16 %v260, %v236
      %v277 = vpack.c.b16 %v261, %v237
      %v278 = vpack.c.b16 %v262, %v238
      %v279 = vpack.c.b16 %v263, %v239
      %v280 = vpack.c.b16 %v264, %v240
      %v282 = vshrl.u32 %v265, 16
      %v284 = vshll.u32 %v265, 16
      %v286 = vrot.slane %v284, 1
      %v287 = vor.u32 %v282, %v286
      %v289 = vshrl.u32 %v266, 16
      %v291 = vshll.u32 %v266, 16
      %v293 = vrot.slane %v291, 1
      %v294 = vor.u32 %v289, %v293
      %v296 = vshrl.u32 %v267, 16
      %v298 = vshll.u32 %v267, 16
      %v300 = vrot.slane %v298, 1
      %v301 = vor.u32 %v296, %v300
      %v303 = vshrl.u32 %v268, 16
      %v305 = vshll.u32 %v268, 16
      %v307 = vrot.slane %v305, 1
      %v308 = vor.u32 %v303, %v307
      %v310 = vshrl.u32 %v269, 16
      %v312 = vshll.u32 %v269, 16
      %v314 = vrot.slane %v312, 1
      %v315 = vor.u32 %v310, %v314
      %v317 = vshrl.u32 %v270, 16
      %v319 = vshll.u32 %v270, 16
      %v321 = vrot.slane %v319, 1
      %v322 = vor.u32 %v317, %v321
      %v324 = vshrl.u32 %v271, 16
      %v326 = vshll.u32 %v271, 16
      %v328 = vrot.slane %v326, 1
      %v329 = vor.u32 %v324, %v328
      %v331 = vshrl.u32 %v272, 16
      %v333 = vshll.u32 %v272, 16
      %v335 = vrot.slane %v333, 1
      %v336 = vor.u32 %v331, %v335
      %v338 = vshrl.u32 %v273, 16
      %v340 = vshll.u32 %v273, 16
      %v342 = vrot.slane %v340, 1
      %v343 = vor.u32 %v338, %v342
      %v345 = vshrl.u32 %v274, 16
      %v347 = vshll.u32 %v274, 16
      %v349 = vrot.slane %v347, 1
      %v350 = vor.u32 %v345, %v349
      %v352 = vshrl.u32 %v275, 16
      %v354 = vshll.u32 %v275, 16
      %v356 = vrot.slane %v354, 1
      %v357 = vor.u32 %v352, %v356
      %v359 = vshrl.u32 %v276, 16
      %v361 = vshll.u32 %v276, 16
      %v363 = vrot.slane %v361, 1
      %v364 = vor.u32 %v359, %v363
      %v366 = vshrl.u32 %v277, 16
      %v368 = vshll.u32 %v277, 16
      %v370 = vrot.slane %v368, 1
      %v371 = vor.u32 %v366, %v370
      %v373 = vshrl.u32 %v278, 16
      %v375 = vshll.u32 %v278, 16
      %v377 = vrot.slane %v375, 1
      %v378 = vor.u32 %v373, %v377
      %v380 = vshrl.u32 %v279, 16
      %v382 = vshll.u32 %v279, 16
      %v384 = vrot.slane %v382, 1
      %v385 = vor.u32 %v380, %v384
      %v387 = vshrl.u32 %v280, 16
      %v389 = vshll.u32 %v280, 16
      %v391 = vrot.slane %v389, 1
      %v392 = vor.u32 %v387, %v391
      %v394 = vunpack.c.l.b16 %v215
      %v395 = vunpack.c.h.b16 %v215
      %v397 = vunpack.c.l.b16 %v216
      %v398 = vunpack.c.h.b16 %v216
      %v399 = vpack.c.b16 %v397, %v394
      %v400 = vpack.c.b16 %v398, %v395
      %v402 = vshrl.u32 %v399, 16
      %v404 = vshll.u32 %v399, 16
      %v406 = vrot.slane %v404, 1
      %v407 = vor.u32 %v402, %v406
      %v409 = vshrl.u32 %v400, 16
      %v411 = vshll.u32 %v400, 16
      %v413 = vrot.slane %v411, 1
      %v414 = vor.u32 %v409, %v413
      %v415 = vunpack.c.l.b16 %v287
      %v416 = vunpack.c.l.b16 %v294
      %v417 = vunpack.c.l.b16 %v301
      %v418 = vunpack.c.l.b16 %v308
      %v419 = vunpack.c.l.b16 %v315
      %v420 = vunpack.c.l.b16 %v322
      %v421 = vunpack.c.l.b16 %v329
      %v422 = vunpack.c.l.b16 %v336
      %v423 = vunpack.c.l.b16 %v343
      %v424 = vunpack.c.l.b16 %v350
      %v425 = vunpack.c.l.b16 %v357
      %v426 = vunpack.c.l.b16 %v364
      %v427 = vunpack.c.l.b16 %v371
      %v428 = vunpack.c.l.b16 %v378
      %v429 = vunpack.c.l.b16 %v385
      %v430 = vunpack.c.l.b16 %v392
      %v431 = vunpack.c.l.b16 %v407
      %v432 = vunpack.c.l.b16 %v414
      %v433 = vld [vmem:[%s1] sm:$0xf]
      %v434 = vld [vmem:[%s1 + $0x4] sm:$0xf]
      %v435 = vld [vmem:[%s1 + $0x8] sm:$0xf]
      %v436 = vld [vmem:[%s1 + $0xc] sm:$0xf]
      %v437 = vld [vmem:[%s1 + $0x10] sm:$0xf]
      %v438 = vld [vmem:[%s1 + $0x14] sm:$0xf]
      %v439 = vld [vmem:[%s1 + $0x18] sm:$0xf]
      %v440 = vld [vmem:[%s1 + $0x1c] sm:$0xf]
      %v441 = vld [vmem:[%s1 + $0x20] sm:$0xf]
      %v442 = vld [vmem:[%s1 + $0x24] sm:$0xf]
      %v443 = vld [vmem:[%s1 + $0x28] sm:$0xf]
      %v444 = vld [vmem:[%s1 + $0x2c] sm:$0xf]
      %v445 = vld [vmem:[%s1 + $0x30] sm:$0xf]
      %v446 = vld [vmem:[%s1 + $0x34] sm:$0xf]
      %v447 = vld [vmem:[%s1 + $0x38] sm:$0xf]
      %v448 = vld [vmem:[%s1 + $0x3c] sm:$0xf]
      %v449 = vld [vmem:[%s1 + $0x40] sm:$0xf]
      %v450 = vld [vmem:[%s1 + $0x44] sm:$0xf]
      %v451 = vld [vmem:[%s1 + $0x48] sm:$0xf]
      %v452 = vld [vmem:[%s1 + $0x4c] sm:$0xf]
      %v453 = vld [vmem:[%s1 + $0x50] sm:$0xf]
      %v454 = vld [vmem:[%s1 + $0x54] sm:$0xf]
      %v455 = vld [vmem:[%s1 + $0x58] sm:$0xf]
      %v456 = vld [vmem:[%s1 + $0x5c] sm:$0xf]
      %v457 = vld [vmem:[%s1 + $0x60] sm:$0xf]
      %v458 = vld [vmem:[%s1 + $0x64] sm:$0xf]
      %v459 = vld [vmem:[%s1 + $0x68] sm:$0xf]
      %v460 = vld [vmem:[%s1 + $0x6c] sm:$0xf]
      %v461 = vld [vmem:[%s1 + $0x70] sm:$0xf]
      %v462 = vld [vmem:[%s1 + $0x74] sm:$0xf]
      %v463 = vld [vmem:[%s1 + $0x78] sm:$0xf]
      %v464 = vld [vmem:[%s1 + $0x7c] sm:$0xf]
      %v465 = vld [vmem:[%s1 + $0x80] sm:$0xf]
      %v466 = vld [vmem:[%s1 + $0x84] sm:$0xf]
      %v467 = vld [vmem:[%s1 + $0x88] sm:$0xf]
      %v468 = vld [vmem:[%s1 + $0x8c] sm:$0xf]
      %v469 = vld [vmem:[%s1 + $0x90] sm:$0xf]
      %v470 = vld [vmem:[%s1 + $0x94] sm:$0xf]
      %v471 = vld [vmem:[%s1 + $0x98] sm:$0xf]
      %v472 = vld [vmem:[%s1 + $0x9c] sm:$0xf]
      %v473 = vld [vmem:[%s1 + $0xa0] sm:$0xf]
      %v474 = vld [vmem:[%s1 + $0xa4] sm:$0xf]
      %v475 = vld [vmem:[%s1 + $0xa8] sm:$0xf]
      %v476 = vld [vmem:[%s1 + $0xac] sm:$0xf]
      %v477 = vld [vmem:[%s1 + $0xb0] sm:$0xf]
      %v478 = vld [vmem:[%s1 + $0xb4] sm:$0xf]
      %v479 = vld [vmem:[%s1 + $0xb8] sm:$0xf]
      %v480 = vld [vmem:[%s1 + $0xbc] sm:$0xf]
      %v481 = vld [vmem:[%s1 + $0xc0] sm:$0xf]
      %v482 = vld [vmem:[%s1 + $0xc4] sm:$0xf]
      %v483 = vld [vmem:[%s1 + $0xc8] sm:$0xf]
      %v484 = vld [vmem:[%s1 + $0xcc] sm:$0xf]
      %v485 = vld [vmem:[%s1 + $0xd0] sm:$0xf]
      %v486 = vld [vmem:[%s1 + $0xd4] sm:$0xf]
      %v487 = vld [vmem:[%s1 + $0xd8] sm:$0xf]
      %v488 = vld [vmem:[%s1 + $0xdc] sm:$0xf]
      %v489 = vld [vmem:[%s1 + $0xe0] sm:$0xf]
      %v490 = vld [vmem:[%s1 + $0xe4] sm:$0xf]
      %v491 = vld [vmem:[%s1 + $0xe8] sm:$0xf]
      %v492 = vld [vmem:[%s1 + $0xec] sm:$0xf]
      %v493 = vld [vmem:[%s1 + $0xf0] sm:$0xf]
      %v494 = vld [vmem:[%s1 + $0xf4] sm:$0xf]
      %v495 = vld [vmem:[%s1 + $0xf8] sm:$0xf]
      %v496 = vld [vmem:[%s1 + $0xfc] sm:$0xf]
      %v497 = vld [vmem:[%s1 + $0x100] sm:$0xf]
      %v498 = vld [vmem:[%s1 + $0x104] sm:$0xf]
      %v499 = vld [vmem:[%s1 + $0x108] sm:$0xf]
      %v500 = vld [vmem:[%s1 + $0x10c] sm:$0xf]
      %v501 = vld [vmem:[%s1 + $0x110] sm:$0xf]
      %v502 = vld [vmem:[%s1 + $0x114] sm:$0xf]
      %v503 = vld [vmem:[%s1 + $0x118] sm:$0xf]
      %v504 = vld [vmem:[%s1 + $0x11c] sm:$0xf]
      %v505 = vld [vmem:[%s1 + $0x120] sm:$0xf]
      %v506 = vld [vmem:[%s1 + $0x124] sm:$0xf]
      %v507 = vld [vmem:[%s1 + $0x128] sm:$0xf]
      %v508 = vld [vmem:[%s1 + $0x12c] sm:$0xf]
      %v509 = vld [vmem:[%s1 + $0x130] sm:$0xf]
      %v510 = vld [vmem:[%s1 + $0x134] sm:$0xf]
      %v511 = vld [vmem:[%s1 + $0x138] sm:$0xf]
      %v512 = vld [vmem:[%s1 + $0x13c] sm:$0xf]
      %v513 = vld [vmem:[%s1 + $0x140] sm:$0xf]
      %v514 = vld [vmem:[%s1 + $0x144] sm:$0xf]
      %v515 = vld [vmem:[%s1 + $0x148] sm:$0xf]
      %v516 = vld [vmem:[%s1 + $0x14c] sm:$0xf]
      %v517 = vld [vmem:[%s1 + $0x150] sm:$0xf]
      %v518 = vld [vmem:[%s1 + $0x154] sm:$0xf]
      %v519 = vld [vmem:[%s1 + $0x158] sm:$0xf]
      %v520 = vld [vmem:[%s1 + $0x15c] sm:$0xf]
      %v521 = vld [vmem:[%s1 + $0x160] sm:$0xf]
      %v522 = vld [vmem:[%s1 + $0x164] sm:$0xf]
      %v523 = vld [vmem:[%s1 + $0x168] sm:$0xf]
      %v524 = vld [vmem:[%s1 + $0x16c] sm:$0xf]
      %v525 = vld [vmem:[%s1 + $0x170] sm:$0xf]
      %v526 = vld [vmem:[%s1 + $0x174] sm:$0xf]
      %v527 = vld [vmem:[%s1 + $0x178] sm:$0xf]
      %v528 = vld [vmem:[%s1 + $0x17c] sm:$0xf]
      %v529 = vld [vmem:[%s1 + $0x180] sm:$0xf]
      %v530 = vld [vmem:[%s1 + $0x184] sm:$0xf]
      %v531 = vld [vmem:[%s1 + $0x188] sm:$0xf]
      %v532 = vld [vmem:[%s1 + $0x18c] sm:$0xf]
      %v533 = vld [vmem:[%s1 + $0x190] sm:$0xf]
      %v534 = vld [vmem:[%s1 + $0x194] sm:$0xf]
      %v535 = vld [vmem:[%s1 + $0x198] sm:$0xf]
      %v536 = vld [vmem:[%s1 + $0x19c] sm:$0xf]
      %v537 = vld [vmem:[%s1 + $0x1a0] sm:$0xf]
      %v538 = vld [vmem:[%s1 + $0x1a4] sm:$0xf]
      %v539 = vld [vmem:[%s1 + $0x1a8] sm:$0xf]
      %v540 = vld [vmem:[%s1 + $0x1ac] sm:$0xf]
      %v541 = vld [vmem:[%s1 + $0x1b0] sm:$0xf]
      %v542 = vld [vmem:[%s1 + $0x1b4] sm:$0xf]
      %v543 = vld [vmem:[%s1 + $0x1b8] sm:$0xf]
      %v544 = vld [vmem:[%s1 + $0x1bc] sm:$0xf]
      %v545 = vld [vmem:[%s1 + $0x1c0] sm:$0xf]
      %v546 = vld [vmem:[%s1 + $0x1c4] sm:$0xf]
      %v547 = vld [vmem:[%s1 + $0x1c8] sm:$0xf]
      %v548 = vld [vmem:[%s1 + $0x1cc] sm:$0xf]
      %v549 = vld [vmem:[%s1 + $0x1d0] sm:$0xf]
      %v550 = vld [vmem:[%s1 + $0x1d4] sm:$0xf]
      %v551 = vld [vmem:[%s1 + $0x1d8] sm:$0xf]
      %v552 = vld [vmem:[%s1 + $0x1dc] sm:$0xf]
      %v553 = vld [vmem:[%s1 + $0x1e0] sm:$0xf]
      %v554 = vld [vmem:[%s1 + $0x1e4] sm:$0xf]
      %v555 = vld [vmem:[%s1 + $0x1e8] sm:$0xf]
      %v556 = vld [vmem:[%s1 + $0x1ec] sm:$0xf]
      %v557 = vld [vmem:[%s1 + $0x1f0] sm:$0xf]
      %v558 = vld [vmem:[%s1 + $0x1f4] sm:$0xf]
      %v559 = vld [vmem:[%s1 + $0x1f8] sm:$0xf]
      %v560 = vld [vmem:[%s1 + $0x1fc] sm:$0xf]
      %v561 = vpack.c.b16 %v227, %v225
      %v562 = vpack.c.b16 %v228, %v226
      %v563 = vpack.c.b16 %v417, %v415
      %v564 = vpack.c.b16 %v418, %v416
      %v565 = vpack.c.b16 %v229, %v227
      %v566 = vpack.c.b16 %v230, %v228
      %v567 = vpack.c.b16 %v419, %v417
      %v568 = vpack.c.b16 %v420, %v418
      %v569 = vpack.c.b16 %v231, %v229
      %v570 = vpack.c.b16 %v232, %v230
      %v571 = vpack.c.b16 %v421, %v419
      %v572 = vpack.c.b16 %v422, %v420
      %v573 = vpack.c.b16 %v233, %v231
      %v574 = vpack.c.b16 %v234, %v232
      %v575 = vpack.c.b16 %v423, %v421
      %v576 = vpack.c.b16 %v424, %v422
      %v577 = vpack.c.b16 %v235, %v233
      %v578 = vpack.c.b16 %v236, %v234
      %v579 = vpack.c.b16 %v425, %v423
      %v580 = vpack.c.b16 %v426, %v424
      %v581 = vpack.c.b16 %v237, %v235
      %v582 = vpack.c.b16 %v238, %v236
      %v583 = vpack.c.b16 %v427, %v425
      %v584 = vpack.c.b16 %v428, %v426
      %v585 = vpack.c.b16 %v239, %v237
      %v586 = vpack.c.b16 %v240, %v238
      %v587 = vpack.c.b16 %v429, %v427
      %v588 = vpack.c.b16 %v430, %v428
      %v589 = vpack.c.b16 %v394, %v239
      %v590 = vpack.c.b16 %v395, %v240
      %v591 = vpack.c.b16 %v431, %v429
      %v592 = vpack.c.b16 %v432, %v430
      %v753 = vunpack.c.l.b16 %v433
      %v754 = vunpack.c.l.b16 %v434
      %v755 = vunpack.c.l.b16 %v435
      %v756 = vunpack.c.l.b16 %v436
      %v757 = vunpack.c.l.b16 %v437
      %v758 = vunpack.c.l.b16 %v438
      %v759 = vunpack.c.l.b16 %v439
      %v760 = vunpack.c.l.b16 %v440
      %v761 = vunpack.c.l.b16 %v441
      %v762 = vunpack.c.l.b16 %v442
      %v763 = vunpack.c.l.b16 %v443
      %v764 = vunpack.c.l.b16 %v444
      %v765 = vunpack.c.l.b16 %v445
      %v766 = vunpack.c.l.b16 %v446
      %v767 = vunpack.c.l.b16 %v447
      %v768 = vunpack.c.l.b16 %v448
      %v769 = vunpack.c.l.b16 %v449
      %v770 = vunpack.c.l.b16 %v450
      %v771 = vunpack.c.l.b16 %v451
      %v772 = vunpack.c.l.b16 %v452
      %v773 = vunpack.c.l.b16 %v453
      %v774 = vunpack.c.l.b16 %v454
      %v775 = vunpack.c.l.b16 %v455
      %v776 = vunpack.c.l.b16 %v456
      %v777 = vunpack.c.l.b16 %v457
      %v778 = vunpack.c.l.b16 %v458
      %v779 = vunpack.c.l.b16 %v459
      %v780 = vunpack.c.l.b16 %v460
      %v781 = vunpack.c.l.b16 %v461
      %v782 = vunpack.c.l.b16 %v462
      %v783 = vunpack.c.l.b16 %v463
      %v784 = vunpack.c.l.b16 %v464
      %v785 = vunpack.c.l.b16 %v465
      %v786 = vunpack.c.l.b16 %v466
      %v787 = vunpack.c.l.b16 %v467
      %v788 = vunpack.c.l.b16 %v468
      %v789 = vunpack.c.l.b16 %v469
      %v790 = vunpack.c.l.b16 %v470
      %v791 = vunpack.c.l.b16 %v471
      %v792 = vunpack.c.l.b16 %v472
      %v793 = vunpack.c.l.b16 %v473
      %v794 = vunpack.c.l.b16 %v474
      %v795 = vunpack.c.l.b16 %v475
      %v796 = vunpack.c.l.b16 %v476
      %v797 = vunpack.c.l.b16 %v477
      %v798 = vunpack.c.l.b16 %v478
      %v799 = vunpack.c.l.b16 %v479
      %v800 = vunpack.c.l.b16 %v480
      %v801 = vunpack.c.l.b16 %v481
      %v802 = vunpack.c.l.b16 %v482
      %v803 = vunpack.c.l.b16 %v483
      %v804 = vunpack.c.l.b16 %v484
      %v805 = vunpack.c.l.b16 %v485
      %v806 = vunpack.c.l.b16 %v486
      %v807 = vunpack.c.l.b16 %v487
      %v808 = vunpack.c.l.b16 %v488
      %v809 = vunpack.c.l.b16 %v489
      %v810 = vunpack.c.l.b16 %v490
      %v811 = vunpack.c.l.b16 %v491
      %v812 = vunpack.c.l.b16 %v492
      %v813 = vunpack.c.l.b16 %v493
      %v814 = vunpack.c.l.b16 %v494
      %v815 = vunpack.c.l.b16 %v495
      %v816 = vunpack.c.l.b16 %v496
      %v817 = vunpack.c.l.b16 %v497
      %v818 = vunpack.c.l.b16 %v498
      %v819 = vunpack.c.l.b16 %v499
      %v820 = vunpack.c.l.b16 %v500
      %v821 = vunpack.c.l.b16 %v501
      %v822 = vunpack.c.l.b16 %v502
      %v823 = vunpack.c.l.b16 %v503
      %v824 = vunpack.c.l.b16 %v504
      %v825 = vunpack.c.l.b16 %v505
      %v826 = vunpack.c.l.b16 %v506
      %v827 = vunpack.c.l.b16 %v507
      %v828 = vunpack.c.l.b16 %v508
      %v829 = vunpack.c.l.b16 %v509
      %v830 = vunpack.c.l.b16 %v510
      %v831 = vunpack.c.l.b16 %v511
      %v832 = vunpack.c.l.b16 %v512
      %v833 = vunpack.c.l.b16 %v513
      %v834 = vunpack.c.l.b16 %v514
      %v835 = vunpack.c.l.b16 %v515
      %v836 = vunpack.c.l.b16 %v516
      %v837 = vunpack.c.l.b16 %v517
      %v838 = vunpack.c.l.b16 %v518
      %v839 = vunpack.c.l.b16 %v519
      %v840 = vunpack.c.l.b16 %v520
      %v841 = vunpack.c.l.b16 %v521
      %v842 = vunpack.c.l.b16 %v522
      %v843 = vunpack.c.l.b16 %v523
      %v844 = vunpack.c.l.b16 %v524
      %v845 = vunpack.c.l.b16 %v525
      %v846 = vunpack.c.l.b16 %v526
      %v847 = vunpack.c.l.b16 %v527
      %v848 = vunpack.c.l.b16 %v528
      %v849 = vunpack.c.l.b16 %v529
      %v850 = vunpack.c.l.b16 %v530
      %v851 = vunpack.c.l.b16 %v531
      %v852 = vunpack.c.l.b16 %v532
      %v853 = vunpack.c.l.b16 %v533
      %v854 = vunpack.c.l.b16 %v534
      %v855 = vunpack.c.l.b16 %v535
      %v856 = vunpack.c.l.b16 %v536
      %v857 = vunpack.c.l.b16 %v537
      %v858 = vunpack.c.l.b16 %v538
      %v859 = vunpack.c.l.b16 %v539
      %v860 = vunpack.c.l.b16 %v540
      %v861 = vunpack.c.l.b16 %v541
      %v862 = vunpack.c.l.b16 %v542
      %v863 = vunpack.c.l.b16 %v543
      %v864 = vunpack.c.l.b16 %v544
      %v865 = vunpack.c.l.b16 %v545
      %v866 = vunpack.c.l.b16 %v546
      %v867 = vunpack.c.l.b16 %v547
      %v868 = vunpack.c.l.b16 %v548
      %v869 = vunpack.c.l.b16 %v549
      %v870 = vunpack.c.l.b16 %v550
      %v871 = vunpack.c.l.b16 %v551
      %v872 = vunpack.c.l.b16 %v552
      %v873 = vunpack.c.l.b16 %v553
      %v874 = vunpack.c.l.b16 %v554
      %v875 = vunpack.c.l.b16 %v555
      %v876 = vunpack.c.l.b16 %v556
      %v877 = vunpack.c.l.b16 %v557
      %v878 = vunpack.c.l.b16 %v558
      %v879 = vunpack.c.l.b16 %v559
      %v880 = vunpack.c.l.b16 %v560
      %v881 = vpack.c.b16 %v754, %v753
      %v882 = vpack.c.b16 %v756, %v755
      %v883 = vpack.c.b16 %v758, %v757
      %v884 = vpack.c.b16 %v760, %v759
      %v885 = vpack.c.b16 %v762, %v761
      %v886 = vpack.c.b16 %v764, %v763
      %v887 = vpack.c.b16 %v766, %v765
      %v888 = vpack.c.b16 %v768, %v767
      %v889 = vpack.c.b16 %v770, %v769
      %v890 = vpack.c.b16 %v772, %v771
      %v891 = vpack.c.b16 %v774, %v773
      %v892 = vpack.c.b16 %v776, %v775
      %v893 = vpack.c.b16 %v778, %v777
      %v894 = vpack.c.b16 %v780, %v779
      %v895 = vpack.c.b16 %v782, %v781
      %v896 = vpack.c.b16 %v784, %v783
      %v897 = vpack.c.b16 %v786, %v785
      %v898 = vpack.c.b16 %v788, %v787
      %v899 = vpack.c.b16 %v790, %v789
      %v900 = vpack.c.b16 %v792, %v791
      %v901 = vpack.c.b16 %v794, %v793
      %v902 = vpack.c.b16 %v796, %v795
      %v903 = vpack.c.b16 %v798, %v797
      %v904 = vpack.c.b16 %v800, %v799
      %v905 = vpack.c.b16 %v802, %v801
      %v906 = vpack.c.b16 %v804, %v803
      %v907 = vpack.c.b16 %v806, %v805
      %v908 = vpack.c.b16 %v808, %v807
      %v909 = vpack.c.b16 %v810, %v809
      %v910 = vpack.c.b16 %v812, %v811
      %v911 = vpack.c.b16 %v814, %v813
      %v912 = vpack.c.b16 %v816, %v815
      %v913 = vpack.c.b16 %v818, %v817
      %v914 = vpack.c.b16 %v820, %v819
      %v915 = vpack.c.b16 %v822, %v821
      %v916 = vpack.c.b16 %v824, %v823
      %v917 = vpack.c.b16 %v826, %v825
      %v918 = vpack.c.b16 %v828, %v827
      %v919 = vpack.c.b16 %v830, %v829
      %v920 = vpack.c.b16 %v832, %v831
      %v921 = vpack.c.b16 %v834, %v833
      %v922 = vpack.c.b16 %v836, %v835
      %v923 = vpack.c.b16 %v838, %v837
      %v924 = vpack.c.b16 %v840, %v839
      %v925 = vpack.c.b16 %v842, %v841
      %v926 = vpack.c.b16 %v844, %v843
      %v927 = vpack.c.b16 %v846, %v845
      %v928 = vpack.c.b16 %v848, %v847
      %v929 = vpack.c.b16 %v850, %v849
      %v930 = vpack.c.b16 %v852, %v851
      %v931 = vpack.c.b16 %v854, %v853
      %v932 = vpack.c.b16 %v856, %v855
      %v933 = vpack.c.b16 %v858, %v857
      %v934 = vpack.c.b16 %v860, %v859
      %v935 = vpack.c.b16 %v862, %v861
      %v936 = vpack.c.b16 %v864, %v863
      %v937 = vpack.c.b16 %v866, %v865
      %v938 = vpack.c.b16 %v868, %v867
      %v939 = vpack.c.b16 %v870, %v869
      %v940 = vpack.c.b16 %v872, %v871
      %v941 = vpack.c.b16 %v874, %v873
      %v942 = vpack.c.b16 %v876, %v875
      %v943 = vpack.c.b16 %v878, %v877
      %v944 = vpack.c.b16 %v880, %v879
      %1009 = vmatprep.subr.bf16.mxu0 0
      %1010 = vmatpush1.bf16.msra.mxu0 %v888
      %1011 = vmatprep.subr.bf16.mxu0 0
      %1012 = vmatpush1.bf16.msra.mxu0 %v887
      %1013 = vmatprep.subr.bf16.mxu0 0
      %1014 = vmatpush1.bf16.msra.mxu0 %v886
      %1015 = vmatprep.subr.bf16.mxu0 0
      %1016 = vmatpush1.bf16.msra.mxu0 %v885
      %1017 = vmatprep.subr.bf16.mxu0 0
      %1018 = vmatpush1.bf16.msra.mxu0 %v884
      %1019 = vmatprep.subr.bf16.mxu0 0
      %1020 = vmatpush1.bf16.msra.mxu0 %v883
      %1021 = vmatprep.subr.bf16.mxu0 0
      %1022 = vmatpush1.bf16.msra.mxu0 %v882
      %1023 = vmatprep.subr.bf16.mxu0 0
      %1024 = vmatpush1.bf16.msra.mxu0 %v881
      %1025 = vmatprep.subr.bf16.mxu0 0
      %1026 = vmatpush2.bf16.msra.mxu0 %v896
      %1027 = vmatprep.subr.bf16.mxu0 0
      %1028 = vmatpush2.bf16.msra.mxu0 %v895
      %1029 = vmatprep.subr.bf16.mxu0 0
      %1030 = vmatpush2.bf16.msra.mxu0 %v894
      %1031 = vmatprep.subr.bf16.mxu0 0
      %1032 = vmatpush2.bf16.msra.mxu0 %v893
      %1033 = vmatprep.subr.bf16.mxu0 0
      %1034 = vmatpush2.bf16.msra.mxu0 %v892
      %1035 = vmatprep.subr.bf16.mxu0 0
      %1036 = vmatpush2.bf16.msra.mxu0 %v891
      %1037 = vmatprep.subr.bf16.mxu0 0
      %1038 = vmatpush2.bf16.msra.mxu0 %v890
      %1039 = vmatprep.subr.bf16.mxu0 0
      %1040 = vmatpush2.bf16.msra.mxu0 %v889
      %1041 = vmatprep.mubr.bf16.mxu0 %v562
      %1042 = vmatmul.mubr.bf16.gmra.mxu0 %v561
      %v1043 = vpop.f32.mrf.mxu0
      %v1044 = vadd.f32 0.0, %v1043
      %v1045 = vpop.f32.mrf.mxu0
      %v1046 = vpop.f32.mrf.mxu0
      %v1047 = vadd.f32 0.0, %v1046
      %v1048 = vpop.f32.mrf.mxu0
      %1049 = vmatprep.mubr.bf16.mxu0 %v570
      %1050 = vmatmul.mubr.bf16.gmra.mxu0 %v569
      %v1051 = vpop.f32.mrf.mxu0
      %v1052 = vadd.f32 0.0, %v1051
      %v1053 = vpop.f32.mrf.mxu0
      %v1054 = vpop.f32.mrf.mxu0
      %v1055 = vadd.f32 0.0, %v1054
      %v1056 = vpop.f32.mrf.mxu0
      %1057 = vmatprep.mubr.bf16.mxu0 %v578
      %1058 = vmatmul.mubr.bf16.gmra.mxu0 %v577
      %v1059 = vpop.f32.mrf.mxu0
      %v1060 = vadd.f32 0.0, %v1059
      %v1061 = vpop.f32.mrf.mxu0
      %v1062 = vpop.f32.mrf.mxu0
      %v1063 = vadd.f32 0.0, %v1062
      %v1064 = vpop.f32.mrf.mxu0
      %1065 = vmatprep.mubr.bf16.mxu0 %v586
      %1066 = vmatmul.mubr.bf16.gmra.mxu0 %v585
      %v1067 = vpop.f32.mrf.mxu0
      %v1068 = vadd.f32 0.0, %v1067
      %v1069 = vpop.f32.mrf.mxu0
      %v1070 = vpop.f32.mrf.mxu0
      %v1071 = vadd.f32 0.0, %v1070
      %v1072 = vpop.f32.mrf.mxu0
      %1073 = vdwg.mxu0
      %1074 = vmatprep.subr.bf16.mxu0 0
      %1075 = vmatpush1.bf16.msra.mxu0 %v904
      %1076 = vmatprep.subr.bf16.mxu0 0
      %1077 = vmatpush1.bf16.msra.mxu0 %v903
      %1078 = vmatprep.subr.bf16.mxu0 0
      %1079 = vmatpush1.bf16.msra.mxu0 %v902
      %1080 = vmatprep.subr.bf16.mxu0 0
      %1081 = vmatpush1.bf16.msra.mxu0 %v901
      %1082 = vmatprep.subr.bf16.mxu0 0
      %1083 = vmatpush1.bf16.msra.mxu0 %v900
      %1084 = vmatprep.subr.bf16.mxu0 0
      %1085 = vmatpush1.bf16.msra.mxu0 %v899
      %1086 = vmatprep.subr.bf16.mxu0 0
      %1087 = vmatpush1.bf16.msra.mxu0 %v898
      %1088 = vmatprep.subr.bf16.mxu0 0
      %1089 = vmatpush1.bf16.msra.mxu0 %v897
      %1090 = vmatprep.subr.bf16.mxu0 0
      %1091 = vmatpush2.bf16.msra.mxu0 %v912
      %1092 = vmatprep.subr.bf16.mxu0 0
      %1093 = vmatpush2.bf16.msra.mxu0 %v911
      %1094 = vmatprep.subr.bf16.mxu0 0
      %1095 = vmatpush2.bf16.msra.mxu0 %v910
      %1096 = vmatprep.subr.bf16.mxu0 0
      %1097 = vmatpush2.bf16.msra.mxu0 %v909
      %1098 = vmatprep.subr.bf16.mxu0 0
      %1099 = vmatpush2.bf16.msra.mxu0 %v908
      %1100 = vmatprep.subr.bf16.mxu0 0
      %1101 = vmatpush2.bf16.msra.mxu0 %v907
      %1102 = vmatprep.subr.bf16.mxu0 0
      %1103 = vmatpush2.bf16.msra.mxu0 %v906
      %1104 = vmatprep.subr.bf16.mxu0 0
      %1105 = vmatpush2.bf16.msra.mxu0 %v905
      %1106 = vmatprep.mubr.bf16.mxu0 %v564
      %1107 = vmatmul.mubr.bf16.gmra.mxu0 %v563
      %v1108 = vpop.f32.mrf.mxu0
      %v1109 = vadd.f32 %v1044, %v1108
      %v1110 = vpop.f32.mrf.mxu0
      %v1111 = vpop.f32.mrf.mxu0
      %v1112 = vadd.f32 %v1047, %v1111
      %v1113 = vpop.f32.mrf.mxu0
      %1114 = vmatprep.mubr.bf16.mxu0 %v572
      %1115 = vmatmul.mubr.bf16.gmra.mxu0 %v571
      %v1116 = vpop.f32.mrf.mxu0
      %v1117 = vadd.f32 %v1052, %v1116
      %v1118 = vpop.f32.mrf.mxu0
      %v1119 = vpop.f32.mrf.mxu0
      %v1120 = vadd.f32 %v1055, %v1119
      %v1121 = vpop.f32.mrf.mxu0
      %1122 = vmatprep.mubr.bf16.mxu0 %v580
      %1123 = vmatmul.mubr.bf16.gmra.mxu0 %v579
      %v1124 = vpop.f32.mrf.mxu0
      %v1125 = vadd.f32 %v1060, %v1124
      %v1126 = vpop.f32.mrf.mxu0
      %v1127 = vpop.f32.mrf.mxu0
      %v1128 = vadd.f32 %v1063, %v1127
      %v1129 = vpop.f32.mrf.mxu0
      %1130 = vmatprep.mubr.bf16.mxu0 %v588
      %1131 = vmatmul.mubr.bf16.gmra.mxu0 %v587
      %v1132 = vpop.f32.mrf.mxu0
      %v1133 = vadd.f32 %v1068, %v1132
      %v1134 = vpop.f32.mrf.mxu0
      %v1135 = vpop.f32.mrf.mxu0
      %v1136 = vadd.f32 %v1071, %v1135
      %v1137 = vpop.f32.mrf.mxu0
      %1138 = vdwg.mxu0
      %1139 = vmatprep.subr.bf16.mxu0 0
      %1140 = vmatpush1.bf16.msra.mxu0 %v920
      %1141 = vmatprep.subr.bf16.mxu0 0
      %1142 = vmatpush1.bf16.msra.mxu0 %v919
      %1143 = vmatprep.subr.bf16.mxu0 0
      %1144 = vmatpush1.bf16.msra.mxu0 %v918
      %1145 = vmatprep.subr.bf16.mxu0 0
      %1146 = vmatpush1.bf16.msra.mxu0 %v917
      %1147 = vmatprep.subr.bf16.mxu0 0
      %1148 = vmatpush1.bf16.msra.mxu0 %v916
      %1149 = vmatprep.subr.bf16.mxu0 0
      %1150 = vmatpush1.bf16.msra.mxu0 %v915
      %1151 = vmatprep.subr.bf16.mxu0 0
      %1152 = vmatpush1.bf16.msra.mxu0 %v914
      %1153 = vmatprep.subr.bf16.mxu0 0
      %1154 = vmatpush1.bf16.msra.mxu0 %v913
      %1155 = vmatprep.subr.bf16.mxu0 0
      %1156 = vmatpush2.bf16.msra.mxu0 %v928
      %1157 = vmatprep.subr.bf16.mxu0 0
      %1158 = vmatpush2.bf16.msra.mxu0 %v927
      %1159 = vmatprep.subr.bf16.mxu0 0
      %1160 = vmatpush2.bf16.msra.mxu0 %v926
      %1161 = vmatprep.subr.bf16.mxu0 0
      %1162 = vmatpush2.bf16.msra.mxu0 %v925
      %1163 = vmatprep.subr.bf16.mxu0 0
      %1164 = vmatpush2.bf16.msra.mxu0 %v924
      %1165 = vmatprep.subr.bf16.mxu0 0
      %1166 = vmatpush2.bf16.msra.mxu0 %v923
      %1167 = vmatprep.subr.bf16.mxu0 0
      %1168 = vmatpush2.bf16.msra.mxu0 %v922
      %1169 = vmatprep.subr.bf16.mxu0 0
      %1170 = vmatpush2.bf16.msra.mxu0 %v921
      %1171 = vmatprep.mubr.bf16.mxu0 %v566
      %1172 = vmatmul.mubr.bf16.gmra.mxu0 %v565
      %v1173 = vpop.f32.mrf.mxu0
      %v1174 = vadd.f32 %v1109, %v1173
      %v1175 = vpop.f32.mrf.mxu0
      %v1176 = vpop.f32.mrf.mxu0
      %v1177 = vadd.f32 %v1112, %v1176
      %v1178 = vpop.f32.mrf.mxu0
      %1179 = vmatprep.mubr.bf16.mxu0 %v574
      %1180 = vmatmul.mubr.bf16.gmra.mxu0 %v573
      %v1181 = vpop.f32.mrf.mxu0
      %v1182 = vadd.f32 %v1117, %v1181
      %v1183 = vpop.f32.mrf.mxu0
      %v1184 = vpop.f32.mrf.mxu0
      %v1185 = vadd.f32 %v1120, %v1184
      %v1186 = vpop.f32.mrf.mxu0
      %1187 = vmatprep.mubr.bf16.mxu0 %v582
      %1188 = vmatmul.mubr.bf16.gmra.mxu0 %v581
      %v1189 = vpop.f32.mrf.mxu0
      %v1190 = vadd.f32 %v1125, %v1189
      %v1191 = vpop.f32.mrf.mxu0
      %v1192 = vpop.f32.mrf.mxu0
      %v1193 = vadd.f32 %v1128, %v1192
      %v1194 = vpop.f32.mrf.mxu0
      %1195 = vmatprep.mubr.bf16.mxu0 %v590
      %1196 = vmatmul.mubr.bf16.gmra.mxu0 %v589
      %v1197 = vpop.f32.mrf.mxu0
      %v1198 = vadd.f32 %v1133, %v1197
      %v1199 = vpop.f32.mrf.mxu0
      %v1200 = vpop.f32.mrf.mxu0
      %v1201 = vadd.f32 %v1136, %v1200
      %v1202 = vpop.f32.mrf.mxu0
      %1203 = vdwg.mxu0
      %1204 = vmatprep.subr.bf16.mxu0 0
      %1205 = vmatpush1.bf16.msra.mxu0 %v936
      %1206 = vmatprep.subr.bf16.mxu0 0
      %1207 = vmatpush1.bf16.msra.mxu0 %v935
      %1208 = vmatprep.subr.bf16.mxu0 0
      %1209 = vmatpush1.bf16.msra.mxu0 %v934
      %1210 = vmatprep.subr.bf16.mxu0 0
      %1211 = vmatpush1.bf16.msra.mxu0 %v933
      %1212 = vmatprep.subr.bf16.mxu0 0
      %1213 = vmatpush1.bf16.msra.mxu0 %v932
      %1214 = vmatprep.subr.bf16.mxu0 0
      %1215 = vmatpush1.bf16.msra.mxu0 %v931
      %1216 = vmatprep.subr.bf16.mxu0 0
      %1217 = vmatpush1.bf16.msra.mxu0 %v930
      %1218 = vmatprep.subr.bf16.mxu0 0
      %1219 = vmatpush1.bf16.msra.mxu0 %v929
      %1220 = vmatprep.subr.bf16.mxu0 0
      %1221 = vmatpush2.bf16.msra.mxu0 %v944
      %1222 = vmatprep.subr.bf16.mxu0 0
      %1223 = vmatpush2.bf16.msra.mxu0 %v943
      %1224 = vmatprep.subr.bf16.mxu0 0
      %1225 = vmatpush2.bf16.msra.mxu0 %v942
      %1226 = vmatprep.subr.bf16.mxu0 0
      %1227 = vmatpush2.bf16.msra.mxu0 %v941
      %1228 = vmatprep.subr.bf16.mxu0 0
      %1229 = vmatpush2.bf16.msra.mxu0 %v940
      %1230 = vmatprep.subr.bf16.mxu0 0
      %1231 = vmatpush2.bf16.msra.mxu0 %v939
      %1232 = vmatprep.subr.bf16.mxu0 0
      %1233 = vmatpush2.bf16.msra.mxu0 %v938
      %1234 = vmatprep.subr.bf16.mxu0 0
      %1235 = vmatpush2.bf16.msra.mxu0 %v937
      %1236 = vmatprep.mubr.bf16.mxu0 %v568
      %1237 = vmatmul.mubr.bf16.gmra.mxu0 %v567
      %v1238 = vpop.f32.mrf.mxu0
      %v1239 = vadd.f32 %v1174, %v1238
      %v1240 = vpop.f32.mrf.mxu0
      %v1241 = vpop.f32.mrf.mxu0
      %v1242 = vadd.f32 %v1177, %v1241
      %v1243 = vpop.f32.mrf.mxu0
      %1244 = vmatprep.mubr.bf16.mxu0 %v576
      %1245 = vmatmul.mubr.bf16.gmra.mxu0 %v575
      %v1246 = vpop.f32.mrf.mxu0
      %v1247 = vadd.f32 %v1182, %v1246
      %v1248 = vpop.f32.mrf.mxu0
      %v1249 = vpop.f32.mrf.mxu0
      %v1250 = vadd.f32 %v1185, %v1249
      %v1251 = vpop.f32.mrf.mxu0
      %1252 = vmatprep.mubr.bf16.mxu0 %v584
      %1253 = vmatmul.mubr.bf16.gmra.mxu0 %v583
      %v1254 = vpop.f32.mrf.mxu0
      %v1255 = vadd.f32 %v1190, %v1254
      %v1256 = vpop.f32.mrf.mxu0
      %v1257 = vpop.f32.mrf.mxu0
      %v1258 = vadd.f32 %v1193, %v1257
      %v1259 = vpop.f32.mrf.mxu0
      %1260 = vmatprep.mubr.bf16.mxu0 %v592
      %1261 = vmatmul.mubr.bf16.gmra.mxu0 %v591
      %v1262 = vpop.f32.mrf.mxu0
      %v1263 = vadd.f32 %v1198, %v1262
      %v1264 = vpop.f32.mrf.mxu0
      %v1265 = vpop.f32.mrf.mxu0
      %v1266 = vadd.f32 %v1201, %v1265
      %v1267 = vpop.f32.mrf.mxu0
      %1268 = vdwg.mxu0
      %v1269 = vld [vmem:[%s2] sm:$0x1]
      %v1271 = vlaneseq
      %v1272 = vshrl.u32 %v1271, 7
      %v1273 = vsub.s32 0, %v1272
      %v1274 = vrot.slane %v1269, %v1273
      %v1276 = vmul.f32 %v1239, %v1274
      %v1277 = vmul.f32 %v1242, %v1274
      %v1278 = vmul.f32 %v1247, %v1274
      %v1279 = vmul.f32 %v1250, %v1274
      %v1280 = vmul.f32 %v1255, %v1274
      %v1281 = vmul.f32 %v1258, %v1274
      %v1282 = vmul.f32 %v1263, %v1274
      %v1283 = vmul.f32 %v1266, %v1274
      %v1284 = vld [vmem:[%s3] sm:$0x1]
      %v1286 = vlaneseq
      %v1287 = vshrl.u32 %v1286, 7
      %v1288 = vsub.s32 0, %v1287
      %v1289 = vrot.slane %v1284, %v1288
      %v1291 = vadd.f32 %v1276, %v1289
      %v1292 = vadd.f32 %v1277, %v1289
      %v1293 = vadd.f32 %v1278, %v1289
      %v1294 = vadd.f32 %v1279, %v1289
      %v1295 = vadd.f32 %v1280, %v1289
      %v1296 = vadd.f32 %v1281, %v1289
      %v1297 = vadd.f32 %v1282, %v1289
      %v1298 = vadd.f32 %v1283, %v1289
      %vm1299 = vcmask 261120
      %1300 = vst.msk [vmem:[%s197] sm:$0xff] %vm1299, %v1291
      %1301 = vst.msk [vmem:[%s197 + $0x8] sm:$0xff] %vm1299, %v1292
      %1302 = vst.msk [vmem:[%s197 + $0x10] sm:$0xff] %vm1299, %v1293
      %1303 = vst.msk [vmem:[%s197 + $0x18] sm:$0xff] %vm1299, %v1294
      %1304 = vst.msk [vmem:[%s197 + $0x20] sm:$0xff] %vm1299, %v1295
      %1305 = vst.msk [vmem:[%s197 + $0x28] sm:$0xff] %vm1299, %v1296
      %1306 = vst.msk [vmem:[%s197 + $0x30] sm:$0xff] %vm1299, %v1297
      %1307 = vst.msk [vmem:[%s197 + $0x38] sm:$0xff] %vm1299, %v1298
      %p1308 = scmp.lt.s32.totalorder %s15, 1
      %s1309 = scalar_select %p1308, %s15, 1
      %s1310 = smul.addr %s1309, 8
      %s1311 = smul.addr %s1310, 8
      %s1312 = scalar_lea.vmem %s4, %s1311
      // Predicated region
      $region37: #{_lambda_.12} parent=35 // pred_check
        %p1313 = pneg %p122
      $region38: #{_lambda_.12} parent=35 // pred_check_branch
        %1315 = sbr.rel (%p1313) target = $region40
      $region39: #{_lambda_.12} parent=35 // pred_region
        _
      $region40: #{_lambda_.12} parent=35 // pred_fallthru
        _
    $region36: #{_lambda_.12} parent=5 // pred_fallthru
      _
    %p1316 = scmp.le.s32.totalorder 2, %s10
    // Predicated region
    $region41: #{_lambda_.12} parent=5 // pred_check
      %p1317 = pneg %p1316
    $region42: #{_lambda_.12} parent=5 // pred_check_branch
      %1319 = sbr.rel (%p1317) target = $region44
    $region43: #{_lambda_.12} parent=5 // pred_region
      %s1320 = ssub.s32 %s10, 2
      // Predicated region
      $region45: #{_lambda_.12} parent=43 // pred_check
        %p1321 = pneg %p128
      $region46: #{_lambda_.12} parent=43 // pred_check_branch
        %1323 = sbr.rel (%p1321) target = $region48
      $region47: #{_lambda_.12} parent=43 // pred_region
        %p1324 = scmp.lt.s32.totalorder %s16, 1
        %s1325 = scalar_select %p1324, %s16, 1
        %s1326 = smul.addr %s1325, 8
        %s1327 = smul.addr %s1326, 8
        %s1328 = scalar_lea.vmem %s4, %s1327
      $region48: #{_lambda_.12} parent=43 // pred_fallthru
        _
    $region44: #{_lambda_.12} parent=5 // pred_fallthru
      _
  $region6: #{_lambda_.12} parent=0 // loop_footer
    %s14 = sadd.s32 1, %s10
  $region7: #{_lambda_.12} parent=0 // loop_footer_branch
    %9 = sbr.rel target = $region3
  $region8: #{_lambda_.12} parent=0 // loop_exit
    _

// kernel: _lambda_.13
$region0: #{_lambda_.13}
  #allocation0 [shape = 'u32[]', space=smem, size = 0x4, offset = 0x4, fixed_abs, tag = 'smem constant byte address 0x4 - core index']
  #allocation1 [shape = 'u32[144,128]{1,0:T(1,128)}', space=vmem, size = 0x12000, scoped, tag = 'internal scratch']
  %s0 = inlined_call_operand.vmem [shape: bf16[2,10,10,32], index: 0, kind: input, shape index: {}]
  %s1 = inlined_call_operand.vmem [shape: bf16[288,16], index: 1, kind: input, shape index: {}]
  %s2 = inlined_call_operand.vmem [shape: f32[1,16], index: 2, kind: input, shape index: {}]
  %s3 = inlined_call_operand.vmem [shape: f32[1,16], index: 3, kind: input, shape index: {}]
  %s4 = inlined_call_operand.vmem [shape: f32[2,64,16], index: 4, kind: output, shape index: {}]
  %s5 = sld [smem:[#allocation0]]
  $region49: #{_lambda_.13} parent=0
    _
  %s7 = ssub.s32 1, %s5
  %s8 = scalar_select 0, %s7, %s5
  loop: start=0, step=1, limit=4
  $region2: #{_lambda_.13} parent=0 // loop_pre_header
    _
  $region3: #{_lambda_.13} parent=0 // loop_header
    %s10 = sphi 0, %s14
    %p11 = scmp.ge.s32.totalorder %s10, 4
    %s20 = sphi 0, %s22
    %s23 = sphi 0, %s20
    %s24 = sphi 0, %s23
    %s40 = sphi 0, %s24
    %s44 = sphi 0, %s44
    %s46 = sphi 0, %s44
    %s47 = sphi 0, %s46
    %s61 = sphi 0, %s47
    %s65 = sphi 0, %s65
    %s67 = sphi 0, %s65
    %s68 = sphi 0, %s67
    %s82 = sphi 0, %s68
    %s86 = sphi 0, %s86
    %s88 = sphi 0, %s86
    %s89 = sphi 0, %s88
    %s103 = sphi 0, %s89
    %s109 = sphi 0, %s111
    %s112 = sphi 0, %s109
    %s113 = sphi 0, %s112
    %s129 = sphi 0, %s113
  $region4: #{_lambda_.13} parent=0 // loop_header_branch
    %13 = sbr.rel (%p11) target = $region8
  $region5: #{_lambda_.13} parent=0 // loop_body
    %s15 = ssub.s32 %s10, 1
    %s16 = ssub.s32 %s10, 2
    %s17 = sadd.s32 %s10, 1
    %s18 = ssub.s32 %s10, %s17
    %p19 = scmp.eq.s32.totalorder %s18, 0
    %s21 = sadd.s32 %s20, 1
    %s22 = scalar_select %p19, %s20, %s21
    %p25 = pneg %p19
    %p26 = scmp.eq.s32.totalorder %s10, 1
    %p27 = por %p25, %p26
    %p28 = scmp.ne.s32.totalorder %s20, %s23
    %p29 = scmp.eq.s32.totalorder %s10, 0
    %p30 = por %p28, %p29
    %p31 = scmp.ne.s32.totalorder %s20, %s23
    %p32 = scmp.eq.s32.totalorder %s15, 1
    %p33 = por %p31, %p32
    %p34 = scmp.ne.s32.totalorder %s23, %s24
    %p35 = scmp.eq.s32.totalorder %s15, 0
    %p36 = por %p34, %p35
    %p37 = scmp.ne.s32.totalorder %s23, %s24
    %p38 = scmp.eq.s32.totalorder %s16, 1
    %p39 = por %p37, %p38
    %p41 = scmp.ne.s32.totalorder %s24, %s40
    %p42 = scmp.eq.s32.totalorder %s16, 0
    %p43 = por %p41, %p42
    %s45 = sadd.s32 %s44, 1
    %p48 = scmp.eq.s32.totalorder %s10, 1
    %p49 = scmp.ne.s32.totalorder %s44, %s46
    %p50 = scmp.eq.s32.totalorder %s10, 0
    %p51 = por %p49, %p50
    %p52 = scmp.ne.s32.totalorder %s44, %s46
    %p53 = scmp.eq.s32.totalorder %s15, 1
    %p54 = por %p52, %p53
    %p55 = scmp.ne.s32.totalorder %s46, %s47
    %p56 = scmp.eq.s32.totalorder %s15, 0
    %p57 = por %p55, %p56
    %p58 = scmp.ne.s32.totalorder %s46, %s47
    %p59 = scmp.eq.s32.totalorder %s16, 1
    %p60 = por %p58, %p59
    %p62 = scmp.ne.s32.totalorder %s47, %s61
    %p63 = scmp.eq.s32.totalorder %s16, 0
    %p64 = por %p62, %p63
    %s66 = sadd.s32 %s65, 1
    %p69 = scmp.eq.s32.totalorder %s10, 1
    %p70 = scmp.ne.s32.totalorder %s65, %s67
    %p71 = scmp.eq.s32.totalorder %s10, 0
    %p72 = por %p70, %p71
    %p73 = scmp.ne.s32.totalorder %s65, %s67
    %p74 = scmp.eq.s32.totalorder %s15, 1
    %p75 = por %p73, %p74
    %p76 = scmp.ne.s32.totalorder %s67, %s68
    %p77 = scmp.eq.s32.totalorder %s15, 0
    %p78 = por %p76, %p77
    %p79 = scmp.ne.s32.totalorder %s67, %s68
    %p80 = scmp.eq.s32.totalorder %s16, 1
    %p81 = por %p79, %p80
    %p83 = scmp.ne.s32.totalorder %s68, %s82
    %p84 = scmp.eq.s32.totalorder %s16, 0
    %p85 = por %p83, %p84
    %s87 = sadd.s32 %s86, 1
    %p90 = scmp.eq.s32.totalorder %s10, 1
    %p91 = scmp.ne.s32.totalorder %s86, %s88
    %p92 = scmp.eq.s32.totalorder %s10, 0
    %p93 = por %p91, %p92
    %p94 = scmp.ne.s32.totalorder %s86, %s88
    %p95 = scmp.eq.s32.totalorder %s15, 1
    %p96 = por %p94, %p95
    %p97 = scmp.ne.s32.totalorder %s88, %s89
    %p98 = scmp.eq.s32.totalorder %s15, 0
    %p99 = por %p97, %p98
    %p100 = scmp.ne.s32.totalorder %s88, %s89
    %p101 = scmp.eq.s32.totalorder %s16, 1
    %p102 = por %p100, %p101
    %p104 = scmp.ne.s32.totalorder %s89, %s103
    %p105 = scmp.eq.s32.totalorder %s16, 0
    %p106 = por %p104, %p105
    %s107 = ssub.s32 %s10, %s17
    %p108 = scmp.eq.s32.totalorder %s107, 0
    %s110 = sadd.s32 %s109, 1
    %s111 = scalar_select %p108, %s109, %s110
    %p114 = pneg %p108
    %p115 = scmp.eq.s32.totalorder %s10, 1
    %p116 = por %p114, %p115
    %p117 = scmp.ne.s32.totalorder %s109, %s112
    %p118 = scmp.eq.s32.totalorder %s10, 0
    %p119 = por %p117, %p118
    %p120 = scmp.ne.s32.totalorder %s109, %s112
    %p121 = scmp.eq.s32.totalorder %s15, 1
    %p122 = por %p120, %p121
    %p123 = scmp.ne.s32.totalorder %s112, %s113
    %p124 = scmp.eq.s32.totalorder %s15, 0
    %p125 = por %p123, %p124
    %p126 = scmp.ne.s32.totalorder %s112, %s113
    %p127 = scmp.eq.s32.totalorder %s16, 1
    %p128 = por %p126, %p127
    %p130 = scmp.ne.s32.totalorder %s113, %s129
    %p131 = scmp.eq.s32.totalorder %s16, 0
    %p132 = por %p130, %p131
    %p133 = scmp.le.s32.totalorder 1, %s10
    %p134 = scmp.lt.s32.totalorder %s10, 3
    %p135 = pnand %p133, %p134
    %p136 = pneg %p135
    // Predicated region
    $region9: #{_lambda_.13} parent=5 // pred_check
      _
    $region10: #{_lambda_.13} parent=5 // pred_check_branch
      %138 = sbr.rel (%p135) target = $region12
    $region11: #{_lambda_.13} parent=5 // pred_region
      %s139 = ssub.s32 %s10, 1
      // Predicated region
      $region13: #{_lambda_.13} parent=11 // pred_check
        %p140 = pneg %p57
      $region14: #{_lambda_.13} parent=11 // pred_check_branch
        %142 = sbr.rel (%p140) target = $region16
      $region15: #{_lambda_.13} parent=11 // pred_region
        _
      $region16: #{_lambda_.13} parent=11 // pred_fallthru
        _
      // Predicated region
      $region17: #{_lambda_.13} parent=11 // pred_check
        %p143 = pneg %p78
      $region18: #{_lambda_.13} parent=11 // pred_check_branch
        %145 = sbr.rel (%p143) target = $region20
      $region19: #{_lambda_.13} parent=11 // pred_region
        _
      $region20: #{_lambda_.13} parent=11 // pred_fallthru
        _
      // Predicated region
      $region21: #{_lambda_.13} parent=11 // pred_check
        %p146 = pneg %p99
      $region22: #{_lambda_.13} parent=11 // pred_check_branch
        %148 = sbr.rel (%p146) target = $region24
      $region23: #{_lambda_.13} parent=11 // pred_region
        _
      $region24: #{_lambda_.13} parent=11 // pred_fallthru
        _
    $region12: #{_lambda_.13} parent=5 // pred_fallthru
      _
    %p149 = scmp.lt.s32.totalorder %s10, 2
    // Predicated region
    $region25: #{_lambda_.13} parent=5 // pred_check
      %p150 = pneg %p149
    $region26: #{_lambda_.13} parent=5 // pred_check_branch
      %152 = sbr.rel (%p150) target = $region28
    $region27: #{_lambda_.13} parent=5 // pred_region
      // Predicated region
      $region29: #{_lambda_.13} parent=27 // pred_check
        %p153 = pneg %p30
      $region30: #{_lambda_.13} parent=27 // pred_check_branch
        %155 = sbr.rel (%p153) target = $region32
      $region31: #{_lambda_.13} parent=27 // pred_region
        %p156 = scmp.lt.s32.totalorder %s10, 1
        %s157 = scalar_select %p156, %s10, 1
        %s158 = smul.addr %s157, 20
        %s159 = smul.addr %s158, 4
        %s160 = scalar_lea.vmem %s0, %s159
      $region32: #{_lambda_.13} parent=27 // pred_fallthru
        _
    $region28: #{_lambda_.13} parent=5 // pred_fallthru
      _
    %p161 = scmp.le.s32.totalorder 1, %s10
    %p162 = scmp.lt.s32.totalorder %s10, 3
    %p163 = pnand %p161, %p162
    %p164 = pneg %p163
    // Predicated region
    $region33: #{_lambda_.13} parent=5 // pred_check
      _
    $region34: #{_lambda_.13} parent=5 // pred_check_branch
      %166 = sbr.rel (%p163) target = $region36
    $region35: #{_lambda_.13} parent=5 // pred_region
      %s167 = ssub.s32 %s10, 1
      %p168 = scmp.lt.s32.totalorder %s15, 1
      %s169 = scalar_select %p168, %s15, 1
      %s170 = smul.addr %s169, 20
      %s171 = smul.addr %s170, 4
      %s172 = scalar_lea.vmem %s0, %s171
      %p173 = pneg %p36
      %p174 = pneg %p33
      %p175 = pneg %p57
      %p176 = pneg %p54
      %p177 = pneg %p78
      %p178 = pneg %p75
      %p179 = pneg %p99
      %p180 = pneg %p96
      %p181 = pneg %p125
      %p182 = pneg %p122
      %p183 = scmp.lt.s32.totalorder %s15, 1
      %s184 = scalar_select %p183, %s15, 1
      %s185 = smul.addr %s184, 8
      %s186 = smul.addr %s185, 8
      %s187 = scalar_lea.vmem %s4, %s186
      %p188 = scmp.lt.s32.totalorder %s15, 1
      %s189 = scalar_select %p188, %s15, 1
      %s190 = smul.addr %s189, 20
      %s191 = smul.addr %s190, 4
      %s192 = scalar_lea.vmem %s0, %s191
      %p193 = scmp.lt.s32.totalorder %s15, 1
      %s194 = scalar_select %p193, %s15, 1
      %s195 = smul.addr %s194, 8
      %s196 = smul.addr %s195, 8
      %s197 = scalar_lea.vmem %s4, %s196
      %v199 = vld [vmem:[%s192] sm:$0xf]
      %v200 = vld [vmem:[%s192 + $0x4] sm:$0x1]
      %v201 = vld [vmem:[%s192 + $0x8] sm:$0xf]
      %v202 = vld [vmem:[%s192 + $0xc] sm:$0x1]
      %v203 = vld [vmem:[%s192 + $0x10] sm:$0xf]
      %v204 = vld [vmem:[%s192 + $0x14] sm:$0x1]
      %v205 = vld [vmem:[%s192 + $0x18] sm:$0xf]
      %v206 = vld [vmem:[%s192 + $0x1c] sm:$0x1]
      %v207 = vld [vmem:[%s192 + $0x20] sm:$0xf]
      %v208 = vld [vmem:[%s192 + $0x24] sm:$0x1]
      %v209 = vld [vmem:[%s192 + $0x28] sm:$0xf]
      %v210 = vld [vmem:[%s192 + $0x2c] sm:$0x1]
      %v211 = vld [vmem:[%s192 + $0x30] sm:$0xf]
      %v212 = vld [vmem:[%s192 + $0x34] sm:$0x1]
      %v213 = vld [vmem:[%s192 + $0x38] sm:$0xf]
      %v214 = vld [vmem:[%s192 + $0x3c] sm:$0x1]
      %v215 = vld [vmem:[%s192 + $0x40] sm:$0xf]
      %v216 = vld [vmem:[%s192 + $0x44] sm:$0x1]
      %v217 = vld [vmem:[%s192 + $0x48] sm:$0xf]
      %v218 = vld [vmem:[%s192 + $0x4c] sm:$0x1]
      %v235 = vunpack.c.l.b16 %v199
      %v236 = vunpack.c.l.b16 %v200
      %v237 = vunpack.c.l.b16 %v201
      %v238 = vunpack.c.l.b16 %v202
      %v239 = vunpack.c.l.b16 %v203
      %v240 = vunpack.c.l.b16 %v204
      %v241 = vunpack.c.l.b16 %v205
      %v242 = vunpack.c.l.b16 %v206
      %v243 = vunpack.c.l.b16 %v207
      %v244 = vunpack.c.l.b16 %v208
      %v245 = vunpack.c.l.b16 %v209
      %v246 = vunpack.c.l.b16 %v210
      %v247 = vunpack.c.l.b16 %v211
      %v248 = vunpack.c.l.b16 %v212
      %v249 = vunpack.c.l.b16 %v213
      %v250 = vunpack.c.l.b16 %v214
      %v251 = vpack.c.b16 %v236, %v235
      %v252 = vpack.c.b16 %v238, %v237
      %v253 = vpack.c.b16 %v240, %v239
      %v254 = vpack.c.b16 %v242, %v241
      %v255 = vpack.c.b16 %v244, %v243
      %v256 = vpack.c.b16 %v246, %v245
      %v257 = vpack.c.b16 %v248, %v247
      %v258 = vpack.c.b16 %v250, %v249
      %v260 = vshrl.u32 %v251, 16
      %v262 = vshll.u32 %v251, 16
      %v264 = vrot.slane %v262, 1
      %v265 = vor.u32 %v260, %v264
      %v267 = vshrl.u32 %v252, 16
      %v269 = vshll.u32 %v252, 16
      %v271 = vrot.slane %v269, 1
      %v272 = vor.u32 %v267, %v271
      %v274 = vshrl.u32 %v253, 16
      %v276 = vshll.u32 %v253, 16
      %v278 = vrot.slane %v276, 1
      %v279 = vor.u32 %v274, %v278
      %v281 = vshrl.u32 %v254, 16
      %v283 = vshll.u32 %v254, 16
      %v285 = vrot.slane %v283, 1
      %v286 = vor.u32 %v281, %v285
      %v288 = vshrl.u32 %v255, 16
      %v290 = vshll.u32 %v255, 16
      %v292 = vrot.slane %v290, 1
      %v293 = vor.u32 %v288, %v292
      %v295 = vshrl.u32 %v256, 16
      %v297 = vshll.u32 %v256, 16
      %v299 = vrot.slane %v297, 1
      %v300 = vor.u32 %v295, %v299
      %v302 = vshrl.u32 %v257, 16
      %v304 = vshll.u32 %v257, 16
      %v306 = vrot.slane %v304, 1
      %v307 = vor.u32 %v302, %v306
      %v309 = vshrl.u32 %v258, 16
      %v311 = vshll.u32 %v258, 16
      %v313 = vrot.slane %v311, 1
      %v314 = vor.u32 %v309, %v313
      %315 = vrot.lane.b32.xlu0 %v265, 32
      %v316 = vpop.permute.xlu0 %315
      %317 = vrot.lane.b32.xlu0 %v272, 32
      %v318 = vpop.permute.xlu0 %317
      %319 = vrot.lane.b32.xlu0 %v279, 32
      %v320 = vpop.permute.xlu0 %319
      %321 = vrot.lane.b32.xlu0 %v286, 32
      %v322 = vpop.permute.xlu0 %321
      %323 = vrot.lane.b32.xlu0 %v293, 32
      %v324 = vpop.permute.xlu0 %323
      %325 = vrot.lane.b32.xlu0 %v300, 32
      %v326 = vpop.permute.xlu0 %325
      %327 = vrot.lane.b32.xlu0 %v307, 32
      %v328 = vpop.permute.xlu0 %327
      %329 = vrot.lane.b32.xlu0 %v314, 32
      %v330 = vpop.permute.xlu0 %329
      %v331 = vrot.slane %v251, 1
      %v332 = vrot.slane %v252, 1
      %v333 = vrot.slane %v253, 1
      %v334 = vrot.slane %v254, 1
      %v335 = vrot.slane %v255, 1
      %v336 = vrot.slane %v256, 1
      %v337 = vrot.slane %v257, 1
      %v338 = vrot.slane %v258, 1
      %339 = vrot.lane.b32.xlu0 %v331, 64
      %v340 = vpop.permute.xlu0 %339
      %341 = vrot.lane.b32.xlu0 %v332, 64
      %v342 = vpop.permute.xlu0 %341
      %343 = vrot.lane.b32.xlu0 %v333, 64
      %v344 = vpop.permute.xlu0 %343
      %345 = vrot.lane.b32.xlu0 %v334, 64
      %v346 = vpop.permute.xlu0 %345
      %347 = vrot.lane.b32.xlu0 %v335, 64
      %v348 = vpop.permute.xlu0 %347
      %349 = vrot.lane.b32.xlu0 %v336, 64
      %v350 = vpop.permute.xlu0 %349
      %351 = vrot.lane.b32.xlu0 %v337, 64
      %v352 = vpop.permute.xlu0 %351
      %353 = vrot.lane.b32.xlu0 %v338, 64
      %v354 = vpop.permute.xlu0 %353
      %v356 = vunpack.c.l.b16 %v215
      %v357 = vpack.c.b16 %v237, %v237
      %v358 = vpack.c.b16 %v239, %v239
      %v359 = vpack.c.b16 %v241, %v241
      %v360 = vpack.c.b16 %v243, %v243
      %v361 = vpack.c.b16 %v245, %v245
      %v362 = vpack.c.b16 %v247, %v247
      %v363 = vpack.c.b16 %v249, %v249
      %v364 = vpack.c.b16 %v356, %v356
      %365 = vrot.lane.b32.xlu0 %v357, 96
      %v366 = vpop.permute.xlu0 %365
      %367 = vrot.lane.b32.xlu0 %v358, 96
      %v368 = vpop.permute.xlu0 %367
      %369 = vrot.lane.b32.xlu0 %v359, 96
      %v370 = vpop.permute.xlu0 %369
      %371 = vrot.lane.b32.xlu0 %v360, 96
      %v372 = vpop.permute.xlu0 %371
      %373 = vrot.lane.b32.xlu0 %v361, 96
      %v374 = vpop.permute.xlu0 %373
      %375 = vrot.lane.b32.xlu0 %v362, 96
      %v376 = vpop.permute.xlu0 %375
      %377 = vrot.lane.b32.xlu0 %v363, 96
      %v378 = vpop.permute.xlu0 %377
      %379 = vrot.lane.b32.xlu0 %v364, 96
      %v380 = vpop.permute.xlu0 %379
      %v382 = vunpack.c.l.b16 %v216
      %v383 = vpack.c.b16 %v382, %v356
      %v385 = vshrl.u32 %v383, 16
      %v387 = vshll.u32 %v383, 16
      %v389 = vrot.slane %v387, 1
      %v390 = vor.u32 %v385, %v389
      %v391 = vrot.slane %v383, 1
      %392 = vrot.lane.b32.xlu0 %v332, 32
      %v393 = vpop.permute.xlu0 %392
      %394 = vrot.lane.b32.xlu0 %v333, 32
      %v395 = vpop.permute.xlu0 %394
      %396 = vrot.lane.b32.xlu0 %v334, 32
      %v397 = vpop.permute.xlu0 %396
      %398 = vrot.lane.b32.xlu0 %v335, 32
      %v399 = vpop.permute.xlu0 %398
      %400 = vrot.lane.b32.xlu0 %v336, 32
      %v401 = vpop.permute.xlu0 %400
      %402 = vrot.lane.b32.xlu0 %v337, 32
      %v403 = vpop.permute.xlu0 %402
      %404 = vrot.lane.b32.xlu0 %v338, 32
      %v405 = vpop.permute.xlu0 %404
      %406 = vrot.lane.b32.xlu0 %v391, 32
      %v407 = vpop.permute.xlu0 %406
      %v409 = vunpack.c.l.b16 %v217
      %v410 = vpack.c.b16 %v409, %v409
      %411 = vrot.lane.b32.xlu0 %v358, 64
      %v412 = vpop.permute.xlu0 %411
      %413 = vrot.lane.b32.xlu0 %v359, 64
      %v414 = vpop.permute.xlu0 %413
      %415 = vrot.lane.b32.xlu0 %v360, 64
      %v416 = vpop.permute.xlu0 %415
      %417 = vrot.lane.b32.xlu0 %v361, 64
      %v418 = vpop.permute.xlu0 %417
      %419 = vrot.lane.b32.xlu0 %v362, 64
      %v420 = vpop.permute.xlu0 %419
      %421 = vrot.lane.b32.xlu0 %v363, 64
      %v422 = vpop.permute.xlu0 %421
      %423 = vrot.lane.b32.xlu0 %v364, 64
      %v424 = vpop.permute.xlu0 %423
      %425 = vrot.lane.b32.xlu0 %v410, 64
      %v426 = vpop.permute.xlu0 %425
      %v428 = vunpack.c.l.b16 %v218
      %v429 = vpack.c.b16 %v428, %v409
      %v431 = vshrl.u32 %v429, 16
      %v433 = vshll.u32 %v429, 16
      %v435 = vrot.slane %v433, 1
      %v436 = vor.u32 %v431, %v435
      %437 = vrot.lane.b32.xlu0 %v279, 96
      %v438 = vpop.permute.xlu0 %437
      %439 = vrot.lane.b32.xlu0 %v286, 96
      %v440 = vpop.permute.xlu0 %439
      %441 = vrot.lane.b32.xlu0 %v293, 96
      %v442 = vpop.permute.xlu0 %441
      %443 = vrot.lane.b32.xlu0 %v300, 96
      %v444 = vpop.permute.xlu0 %443
      %445 = vrot.lane.b32.xlu0 %v307, 96
      %v446 = vpop.permute.xlu0 %445
      %447 = vrot.lane.b32.xlu0 %v314, 96
      %v448 = vpop.permute.xlu0 %447
      %449 = vrot.lane.b32.xlu0 %v390, 96
      %v450 = vpop.permute.xlu0 %449
      %451 = vrot.lane.b32.xlu0 %v436, 96
      %v452 = vpop.permute.xlu0 %451
      %v453 = vrot.slane %v429, 1
      %vm454 = vcmask 261120
      %v457 = vsel %vm454, %v199, %v316
      %v460 = vsel %vm454, %v201, %v318
      %v463 = vsel %vm454, %v203, %v320
      %v466 = vsel %vm454, %v205, %v322
      %v469 = vsel %vm454, %v207, %v324
      %v472 = vsel %vm454, %v209, %v326
      %v475 = vsel %vm454, %v211, %v328
      %v478 = vsel %vm454, %v213, %v330
      %vm479 = vcmask 523264
      %v481 = vsel %vm479, %v457, %v340
      %v483 = vsel %vm479, %v460, %v342
      %v485 = vsel %vm479, %v463, %v344
      %v487 = vsel %vm479, %v466, %v346
      %v489 = vsel %vm479, %v469, %v348
      %v491 = vsel %vm479, %v472, %v350
      %v493 = vsel %vm479, %v475, %v352
      %v495 = vsel %vm479, %v478, %v354
      %vm496 = vcmask 785408
      %v498 = vsel %vm496, %v481, %v366
      %v500 = vsel %vm496, %v483, %v368
      %v502 = vsel %vm496, %v485, %v370
      %v504 = vsel %vm496, %v487, %v372
      %v506 = vsel %vm496, %v489, %v374
      %v508 = vsel %vm496, %v491, %v376
      %v510 = vsel %vm496, %v493, %v378
      %v512 = vsel %vm496, %v495, %v380
      %v515 = vsel %vm454, %v272, %v393
      %v518 = vsel %vm454, %v279, %v395
      %v521 = vsel %vm454, %v286, %v397
      %v524 = vsel %vm454, %v293, %v399
      %v527 = vsel %vm454, %v300, %v401
      %v530 = vsel %vm454, %v307, %v403
      %v533 = vsel %vm454, %v314, %v405
      %v536 = vsel %vm454, %v390, %v407
      %v538 = vsel %vm479, %v515, %v412
      %v540 = vsel %vm479, %v518, %v414
      %v542 = vsel %vm479, %v521, %v416
      %v544 = vsel %vm479, %v524, %v418
      %v546 = vsel %vm479, %v527, %v420
      %v548 = vsel %vm479, %v530, %v422
      %v550 = vsel %vm479, %v533, %v424
      %v552 = vsel %vm479, %v536, %v426
      %v554 = vsel %vm496, %v538, %v438
      %v556 = vsel %vm496, %v540, %v440
      %v558 = vsel %vm496, %v542, %v442
      %v560 = vsel %vm496, %v544, %v444
      %v562 = vsel %vm496, %v546, %v446
      %v564 = vsel %vm496, %v548, %v448
      %v566 = vsel %vm496, %v550, %v450
      %v568 = vsel %vm496, %v552, %v452
      %v585 = vunpack.c.l.b16 %v498
      %v586 = vunpack.c.l.b16 %v554
      %v587 = vunpack.c.l.b16 %v333
      %v588 = vunpack.c.l.b16 %v500
      %v589 = vunpack.c.l.b16 %v556
      %v590 = vunpack.c.l.b16 %v334
      %v591 = vunpack.c.l.b16 %v502
      %v592 = vunpack.c.l.b16 %v558
      %v593 = vunpack.c.l.b16 %v335
      %v594 = vunpack.c.l.b16 %v504
      %v595 = vunpack.c.l.b16 %v560
      %v596 = vunpack.c.l.b16 %v336
      %v597 = vunpack.c.l.b16 %v506
      %v598 = vunpack.c.l.b16 %v562
      %v599 = vunpack.c.l.b16 %v337
      %v600 = vunpack.c.l.b16 %v508
      %v601 = vunpack.c.l.b16 %v564
      %v602 = vunpack.c.l.b16 %v338
      %v603 = vunpack.c.l.b16 %v510
      %v604 = vunpack.c.l.b16 %v566
      %v605 = vunpack.c.l.b16 %v391
      %v606 = vunpack.c.l.b16 %v512
      %v607 = vunpack.c.l.b16 %v568
      %v608 = vunpack.c.l.b16 %v453
      %v609 = vld [vmem:[%s1] sm:$0xf]
      %v610 = vld [vmem:[%s1 + $0x4] sm:$0xf]
      %v611 = vld [vmem:[%s1 + $0x8] sm:$0xf]
      %v612 = vld [vmem:[%s1 + $0xc] sm:$0xf]
      %v613 = vld [vmem:[%s1 + $0x10] sm:$0xf]
      %v614 = vld [vmem:[%s1 + $0x14] sm:$0xf]
      %v615 = vld [vmem:[%s1 + $0x18] sm:$0xf]
      %v616 = vld [vmem:[%s1 + $0x1c] sm:$0xf]
      %v617 = vld [vmem:[%s1 + $0x20] sm:$0xf]
      %v618 = vld [vmem:[%s1 + $0x24] sm:$0xf]
      %v619 = vld [vmem:[%s1 + $0x28] sm:$0xf]
      %v620 = vld [vmem:[%s1 + $0x2c] sm:$0xf]
      %v621 = vld [vmem:[%s1 + $0x30] sm:$0xf]
      %v622 = vld [vmem:[%s1 + $0x34] sm:$0xf]
      %v623 = vld [vmem:[%s1 + $0x38] sm:$0xf]
      %v624 = vld [vmem:[%s1 + $0x3c] sm:$0xf]
      %v625 = vld [vmem:[%s1 + $0x40] sm:$0xf]
      %v626 = vld [vmem:[%s1 + $0x44] sm:$0xf]
      %v627 = vld [vmem:[%s1 + $0x48] sm:$0xf]
      %v628 = vld [vmem:[%s1 + $0x4c] sm:$0xf]
      %v629 = vld [vmem:[%s1 + $0x50] sm:$0xf]
      %v630 = vld [vmem:[%s1 + $0x54] sm:$0xf]
      %v631 = vld [vmem:[%s1 + $0x58] sm:$0xf]
      %v632 = vld [vmem:[%s1 + $0x5c] sm:$0xf]
      %v633 = vld [vmem:[%s1 + $0x60] sm:$0xf]
      %v634 = vld [vmem:[%s1 + $0x64] sm:$0xf]
      %v635 = vld [vmem:[%s1 + $0x68] sm:$0xf]
      %v636 = vld [vmem:[%s1 + $0x6c] sm:$0xf]
      %v637 = vld [vmem:[%s1 + $0x70] sm:$0xf]
      %v638 = vld [vmem:[%s1 + $0x74] sm:$0xf]
      %v639 = vld [vmem:[%s1 + $0x78] sm:$0xf]
      %v640 = vld [vmem:[%s1 + $0x7c] sm:$0xf]
      %v641 = vld [vmem:[%s1 + $0x80] sm:$0xf]
      %v642 = vld [vmem:[%s1 + $0x84] sm:$0xf]
      %v643 = vld [vmem:[%s1 + $0x88] sm:$0xf]
      %v644 = vld [vmem:[%s1 + $0x8c] sm:$0xf]
      %v645 = vpack.c.b16 %v588, %v585
      %v646 = vpack.c.b16 %v589, %v586
      %v647 = vpack.c.b16 %v590, %v587
      %v648 = vpack.c.b16 %v594, %v591
      %v649 = vpack.c.b16 %v595, %v592
      %v650 = vpack.c.b16 %v596, %v593
      %v651 = vpack.c.b16 %v600, %v597
      %v652 = vpack.c.b16 %v601, %v598
      %v653 = vpack.c.b16 %v602, %v599
      %v654 = vpack.c.b16 %v606, %v603
      %v655 = vpack.c.b16 %v607, %v604
      %v656 = vpack.c.b16 %v608, %v605
      %v701 = vunpack.c.l.b16 %v609
      %v702 = vunpack.c.l.b16 %v610
      %v703 = vunpack.c.l.b16 %v611
      %v704 = vunpack.c.l.b16 %v612
      %v705 = vunpack.c.l.b16 %v613
      %v706 = vunpack.c.l.b16 %v614
      %v707 = vunpack.c.l.b16 %v615
      %v708 = vunpack.c.l.b16 %v616
      %v709 = vunpack.c.l.b16 %v617
      %v710 = vunpack.c.l.b16 %v618
      %v711 = vunpack.c.l.b16 %v619
      %v712 = vunpack.c.l.b16 %v620
      %v713 = vunpack.c.l.b16 %v621
      %v714 = vunpack.c.l.b16 %v622
      %v715 = vunpack.c.l.b16 %v623
      %v716 = vunpack.c.l.b16 %v624
      %v717 = vunpack.c.l.b16 %v625
      %v718 = vunpack.c.l.b16 %v626
      %v719 = vunpack.c.l.b16 %v627
      %v720 = vunpack.c.l.b16 %v628
      %v721 = vunpack.c.l.b16 %v629
      %v722 = vunpack.c.l.b16 %v630
      %v723 = vunpack.c.l.b16 %v631
      %v724 = vunpack.c.l.b16 %v632
      %v725 = vunpack.c.l.b16 %v633
      %v726 = vunpack.c.l.b16 %v634
      %v727 = vunpack.c.l.b16 %v635
      %v728 = vunpack.c.l.b16 %v636
      %v729 = vunpack.c.l.b16 %v637
      %v730 = vunpack.c.l.b16 %v638
      %v731 = vunpack.c.l.b16 %v639
      %v732 = vunpack.c.l.b16 %v640
      %v733 = vunpack.c.l.b16 %v641
      %v734 = vunpack.c.l.b16 %v642
      %v735 = vunpack.c.l.b16 %v643
      %v736 = vunpack.c.l.b16 %v644
      %v737 = vpack.c.b16 %v702, %v701
      %v738 = vpack.c.b16 %v704, %v703
      %v739 = vpack.c.b16 %v706, %v705
      %v740 = vpack.c.b16 %v708, %v707
      %v741 = vpack.c.b16 %v710, %v709
      %v742 = vpack.c.b16 %v712, %v711
      %v743 = vpack.c.b16 %v714, %v713
      %v744 = vpack.c.b16 %v716, %v715
      %v745 = vpack.c.b16 %v718, %v717
      %v746 = vpack.c.b16 %v720, %v719
      %v747 = vpack.c.b16 %v722, %v721
      %v748 = vpack.c.b16 %v724, %v723
      %v749 = vpack.c.b16 %v726, %v725
      %v750 = vpack.c.b16 %v728, %v727
      %v751 = vpack.c.b16 %v730, %v729
      %v752 = vpack.c.b16 %v732, %v731
      %v753 = vpack.c.b16 %v734, %v733
      %v754 = vpack.c.b16 %v736, %v735
      %v774 = vsel %vm454, %v647, 0
      %v777 = vsel %vm454, %v650, 0
      %v780 = vsel %vm454, %v653, 0
      %v783 = vsel %vm454, %v656, 0
      %785 = vmatprep.subr.bf16.mxu0 0
      %786 = vmatpush1.bf16.msra.mxu0 %v744
      %787 = vmatprep.subr.bf16.mxu0 0
      %788 = vmatpush1.bf16.msra.mxu0 %v743
      %789 = vmatprep.subr.bf16.mxu0 0
      %790 = vmatpush1.bf16.msra.mxu0 %v742
      %791 = vmatprep.subr.bf16.mxu0 0
      %792 = vmatpush1.bf16.msra.mxu0 %v741
      %793 = vmatprep.subr.bf16.mxu0 0
      %794 = vmatpush1.bf16.msra.mxu0 %v740
      %795 = vmatprep.subr.bf16.mxu0 0
      %796 = vmatpush1.bf16.msra.mxu0 %v739
      %797 = vmatprep.subr.bf16.mxu0 0
      %798 = vmatpush1.bf16.msra.mxu0 %v738
      %799 = vmatprep.subr.bf16.mxu0 0
      %800 = vmatpush1.bf16.msra.mxu0 %v737
      %801 = vmatprep.subr.bf16.mxu0 0
      %802 = vmatpush2.bf16.msra.mxu0 %v752
      %803 = vmatprep.subr.bf16.mxu0 0
      %804 = vmatpush2.bf16.msra.mxu0 %v751
      %805 = vmatprep.subr.bf16.mxu0 0
      %806 = vmatpush2.bf16.msra.mxu0 %v750
      %807 = vmatprep.subr.bf16.mxu0 0
      %808 = vmatpush2.bf16.msra.mxu0 %v749
      %809 = vmatprep.subr.bf16.mxu0 0
      %810 = vmatpush2.bf16.msra.mxu0 %v748
      %811 = vmatprep.subr.bf16.mxu0 0
      %812 = vmatpush2.bf16.msra.mxu0 %v747
      %813 = vmatprep.subr.bf16.mxu0 0
      %814 = vmatpush2.bf16.msra.mxu0 %v746
      %815 = vmatprep.subr.bf16.mxu0 0
      %816 = vmatpush2.bf16.msra.mxu0 %v745
      %817 = vmatprep.mubr.bf16.mxu0 %v646
      %818 = vmatmul.mubr.bf16.gmra.mxu0 %v645
      %v819 = vpop.f32.mrf.mxu0
      %v820 = vadd.f32 0.0, %v819
      %v821 = vpop.f32.mrf.mxu0
      %v822 = vpop.f32.mrf.mxu0
      %v823 = vadd.f32 0.0, %v822
      %v824 = vpop.f32.mrf.mxu0
      %825 = vmatprep.mubr.bf16.mxu0 %v649
      %826 = vmatmul.mubr.bf16.gmra.mxu0 %v648
      %v827 = vpop.f32.mrf.mxu0
      %v828 = vadd.f32 0.0, %v827
      %v829 = vpop.f32.mrf.mxu0
      %v830 = vpop.f32.mrf.mxu0
      %v831 = vadd.f32 0.0, %v830
      %v832 = vpop.f32.mrf.mxu0
      %833 = vmatprep.mubr.bf16.mxu0 %v652
      %834 = vmatmul.mubr.bf16.gmra.mxu0 %v651
      %v835 = vpop.f32.mrf.mxu0
      %v836 = vadd.f32 0.0, %v835
      %v837 = vpop.f32.mrf.mxu0
      %v838 = vpop.f32.mrf.mxu0
      %v839 = vadd.f32 0.0, %v838
      %v840 = vpop.f32.mrf.mxu0
      %841 = vmatprep.mubr.bf16.mxu0 %v655
      %842 = vmatmul.mubr.bf16.gmra.mxu0 %v654
      %v843 = vpop.f32.mrf.mxu0
      %v844 = vadd.f32 0.0, %v843
      %v845 = vpop.f32.mrf.mxu0
      %v846 = vpop.f32.mrf.mxu0
      %v847 = vadd.f32 0.0, %v846
      %v848 = vpop.f32.mrf.mxu0
      %849 = vdwg.mxu0
      %850 = vmatprep.subr.bf16.mxu0 0
      %851 = vmatpush1.bf16.msra.mxu0 0
      %852 = vmatprep.subr.bf16.mxu0 0
      %853 = vmatpush1.bf16.msra.mxu0 0
      %854 = vmatprep.subr.bf16.mxu0 0
      %855 = vmatpush1.bf16.msra.mxu0 0
      %856 = vmatprep.subr.bf16.mxu0 0
      %857 = vmatpush1.bf16.msra.mxu0 0
      %858 = vmatprep.subr.bf16.mxu0 0
      %859 = vmatpush1.bf16.msra.mxu0 0
      %860 = vmatprep.subr.bf16.mxu0 0
      %861 = vmatpush1.bf16.msra.mxu0 0
      %862 = vmatprep.subr.bf16.mxu0 0
      %863 = vmatpush1.bf16.msra.mxu0 %v754
      %864 = vmatprep.subr.bf16.mxu0 0
      %865 = vmatpush1.bf16.msra.mxu0 %v753
      %866 = vmatprep.subr.bf16.mxu0 0
      %867 = vmatpush2.bf16.msra.mxu0 0
      %868 = vmatprep.subr.bf16.mxu0 0
      %869 = vmatpush2.bf16.msra.mxu0 0
      %870 = vmatprep.subr.bf16.mxu0 0
      %871 = vmatpush2.bf16.msra.mxu0 0
      %872 = vmatprep.subr.bf16.mxu0 0
      %873 = vmatpush2.bf16.msra.mxu0 0
      %874 = vmatprep.subr.bf16.mxu0 0
      %875 = vmatpush2.bf16.msra.mxu0 0
      %876 = vmatprep.subr.bf16.mxu0 0
      %877 = vmatpush2.bf16.msra.mxu0 0
      %878 = vmatprep.subr.bf16.mxu0 0
      %879 = vmatpush2.bf16.msra.mxu0 0
      %880 = vmatprep.subr.bf16.mxu0 0
      %881 = vmatpush2.bf16.msra.mxu0 0
      %882 = vmatprep.mubr.bf16.mxu0 0
      %883 = vmatmul.mubr.bf16.gmra.mxu0 %v774
      %v884 = vpop.f32.mrf.mxu0
      %v885 = vadd.f32 %v820, %v884
      %v886 = vpop.f32.mrf.mxu0
      %v887 = vpop.f32.mrf.mxu0
      %v888 = vadd.f32 %v823, %v887
      %v889 = vpop.f32.mrf.mxu0
      %890 = vmatprep.mubr.bf16.mxu0 0
      %891 = vmatmul.mubr.bf16.gmra.mxu0 %v777
      %v892 = vpop.f32.mrf.mxu0
      %v893 = vadd.f32 %v828, %v892
      %v894 = vpop.f32.mrf.mxu0
      %v895 = vpop.f32.mrf.mxu0
      %v896 = vadd.f32 %v831, %v895
      %v897 = vpop.f32.mrf.mxu0
      %898 = vmatprep.mubr.bf16.mxu0 0
      %899 = vmatmul.mubr.bf16.gmra.mxu0 %v780
      %v900 = vpop.f32.mrf.mxu0
      %v901 = vadd.f32 %v836, %v900
      %v902 = vpop.f32.mrf.mxu0
      %v903 = vpop.f32.mrf.mxu0
      %v904 = vadd.f32 %v839, %v903
      %v905 = vpop.f32.mrf.mxu0
      %906 = vmatprep.mubr.bf16.mxu0 0
      %907 = vmatmul.mubr.bf16.gmra.mxu0 %v783
      %v908 = vpop.f32.mrf.mxu0
      %v909 = vadd.f32 %v844, %v908
      %v910 = vpop.f32.mrf.mxu0
      %v911 = vpop.f32.mrf.mxu0
      %v912 = vadd.f32 %v847, %v911
      %v913 = vpop.f32.mrf.mxu0
      %914 = vdwg.mxu0
      %v915 = vld [vmem:[%s2] sm:$0x1]
      %v917 = vlaneseq
      %v918 = vshrl.u32 %v917, 7
      %v919 = vsub.s32 0, %v918
      %v920 = vrot.slane %v915, %v919
      %v922 = vmul.f32 %v885, %v920
      %v923 = vmul.f32 %v888, %v920
      %v924 = vmul.f32 %v893, %v920
      %v925 = vmul.f32 %v896, %v920
      %v926 = vmul.f32 %v901, %v920
      %v927 = vmul.f32 %v904, %v920
      %v928 = vmul.f32 %v909, %v920
      %v929 = vmul.f32 %v912, %v920
      %v930 = vld [vmem:[%s3] sm:$0x1]
      %v932 = vlaneseq
      %v933 = vshrl.u32 %v932, 7
      %v934 = vsub.s32 0, %v933
      %v935 = vrot.slane %v930, %v934
      %v937 = vadd.f32 %v922, %v935
      %v938 = vadd.f32 %v923, %v935
      %v939 = vadd.f32 %v924, %v935
      %v940 = vadd.f32 %v925, %v935
      %v941 = vadd.f32 %v926, %v935
      %v942 = vadd.f32 %v927, %v935
      %v943 = vadd.f32 %v928, %v935
      %v944 = vadd.f32 %v929, %v935
      %vm945 = vcmask 130048
      %946 = vst.msk [vmem:[%s197] sm:$0xff] %vm945, %v937
      %947 = vst.msk [vmem:[%s197 + $0x8] sm:$0xff] %vm945, %v938
      %948 = vst.msk [vmem:[%s197 + $0x10] sm:$0xff] %vm945, %v939
      %949 = vst.msk [vmem:[%s197 + $0x18] sm:$0xff] %vm945, %v940
      %950 = vst.msk [vmem:[%s197 + $0x20] sm:$0xff] %vm945, %v941
      %951 = vst.msk [vmem:[%s197 + $0x28] sm:$0xff] %vm945, %v942
      %952 = vst.msk [vmem:[%s197 + $0x30] sm:$0xff] %vm945, %v943
      %953 = vst.msk [vmem:[%s197 + $0x38] sm:$0xff] %vm945, %v944
      %p954 = scmp.lt.s32.totalorder %s15, 1
      %s955 = scalar_select %p954, %s15, 1
      %s956 = smul.addr %s955, 8
      %s957 = smul.addr %s956, 8
      %s958 = scalar_lea.vmem %s4, %s957
      // Predicated region
      $region37: #{_lambda_.13} parent=35 // pred_check
        %p959 = pneg %p122
      $region38: #{_lambda_.13} parent=35 // pred_check_branch
        %961 = sbr.rel (%p959) target = $region40
      $region39: #{_lambda_.13} parent=35 // pred_region
        _
      $region40: #{_lambda_.13} parent=35 // pred_fallthru
        _
    $region36: #{_lambda_.13} parent=5 // pred_fallthru
      _
    %p962 = scmp.le.s32.totalorder 2, %s10
    // Predicated region
    $region41: #{_lambda_.13} parent=5 // pred_check
      %p963 = pneg %p962
    $region42: #{_lambda_.13} parent=5 // pred_check_branch
      %965 = sbr.rel (%p963) target = $region44
    $region43: #{_lambda_.13} parent=5 // pred_region
      %s966 = ssub.s32 %s10, 2
      // Predicated region
      $region45: #{_lambda_.13} parent=43 // pred_check
        %p967 = pneg %p128
      $region46: #{_lambda_.13} parent=43 // pred_check_branch
        %969 = sbr.rel (%p967) target = $region48
      $region47: #{_lambda_.13} parent=43 // pred_region
        %p970 = scmp.lt.s32.totalorder %s16, 1
        %s971 = scalar_select %p970, %s16, 1
        %s972 = smul.addr %s971, 8
        %s973 = smul.addr %s972, 8
        %s974 = scalar_lea.vmem %s4, %s973
      $region48: #{_lambda_.13} parent=43 // pred_fallthru
        _
    $region44: #{_lambda_.13} parent=5 // pred_fallthru
      _
  $region6: #{_lambda_.13} parent=0 // loop_footer
    %s14 = sadd.s32 1, %s10
  $region7: #{_lambda_.13} parent=0 // loop_footer_branch
    %9 = sbr.rel target = $region3
  $region8: #{_lambda_.13} parent=0 // loop_exit
    _

// kernel: _lambda_.15
$region0: #{_lambda_.15}
  #allocation0 [shape = 'u32[]', space=smem, size = 0x4, offset = 0x4, fixed_abs, tag = 'smem constant byte address 0x4 - core index']
  #allocation1 [shape = 'u32[144,128]{1,0:T(1,128)}', space=vmem, size = 0x12000, scoped, tag = 'internal scratch']
  %s0 = inlined_call_operand.vmem [shape: bf16[2,5,5,128], index: 0, kind: input, shape index: {}]
  %s1 = inlined_call_operand.vmem [shape: bf16[512,32], index: 1, kind: input, shape index: {}]
  %s2 = inlined_call_operand.vmem [shape: f32[1,32], index: 2, kind: input, shape index: {}]
  %s3 = inlined_call_operand.vmem [shape: f32[1,32], index: 3, kind: input, shape index: {}]
  %s4 = inlined_call_operand.vmem [shape: f32[2,16,32], index: 4, kind: output, shape index: {}]
  %s5 = sld [smem:[#allocation0]]
  $region49: #{_lambda_.15} parent=0
    _
  %s7 = ssub.s32 1, %s5
  %s8 = scalar_select 0, %s7, %s5
  loop: start=0, step=1, limit=4
  $region2: #{_lambda_.15} parent=0 // loop_pre_header
    _
  $region3: #{_lambda_.15} parent=0 // loop_header
    %s10 = sphi 0, %s14
    %p11 = scmp.ge.s32.totalorder %s10, 4
    %s20 = sphi 0, %s22
    %s23 = sphi 0, %s20
    %s24 = sphi 0, %s23
    %s40 = sphi 0, %s24
    %s44 = sphi 0, %s44
    %s46 = sphi 0, %s44
    %s47 = sphi 0, %s46
    %s61 = sphi 0, %s47
    %s65 = sphi 0, %s65
    %s67 = sphi 0, %s65
    %s68 = sphi 0, %s67
    %s82 = sphi 0, %s68
    %s86 = sphi 0, %s86
    %s88 = sphi 0, %s86
    %s89 = sphi 0, %s88
    %s103 = sphi 0, %s89
    %s109 = sphi 0, %s111
    %s112 = sphi 0, %s109
    %s113 = sphi 0, %s112
    %s129 = sphi 0, %s113
  $region4: #{_lambda_.15} parent=0 // loop_header_branch
    %13 = sbr.rel (%p11) target = $region8
  $region5: #{_lambda_.15} parent=0 // loop_body
    %s15 = ssub.s32 %s10, 1
    %s16 = ssub.s32 %s10, 2
    %s17 = sadd.s32 %s10, 1
    %s18 = ssub.s32 %s10, %s17
    %p19 = scmp.eq.s32.totalorder %s18, 0
    %s21 = sadd.s32 %s20, 1
    %s22 = scalar_select %p19, %s20, %s21
    %p25 = pneg %p19
    %p26 = scmp.eq.s32.totalorder %s10, 1
    %p27 = por %p25, %p26
    %p28 = scmp.ne.s32.totalorder %s20, %s23
    %p29 = scmp.eq.s32.totalorder %s10, 0
    %p30 = por %p28, %p29
    %p31 = scmp.ne.s32.totalorder %s20, %s23
    %p32 = scmp.eq.s32.totalorder %s15, 1
    %p33 = por %p31, %p32
    %p34 = scmp.ne.s32.totalorder %s23, %s24
    %p35 = scmp.eq.s32.totalorder %s15, 0
    %p36 = por %p34, %p35
    %p37 = scmp.ne.s32.totalorder %s23, %s24
    %p38 = scmp.eq.s32.totalorder %s16, 1
    %p39 = por %p37, %p38
    %p41 = scmp.ne.s32.totalorder %s24, %s40
    %p42 = scmp.eq.s32.totalorder %s16, 0
    %p43 = por %p41, %p42
    %s45 = sadd.s32 %s44, 1
    %p48 = scmp.eq.s32.totalorder %s10, 1
    %p49 = scmp.ne.s32.totalorder %s44, %s46
    %p50 = scmp.eq.s32.totalorder %s10, 0
    %p51 = por %p49, %p50
    %p52 = scmp.ne.s32.totalorder %s44, %s46
    %p53 = scmp.eq.s32.totalorder %s15, 1
    %p54 = por %p52, %p53
    %p55 = scmp.ne.s32.totalorder %s46, %s47
    %p56 = scmp.eq.s32.totalorder %s15, 0
    %p57 = por %p55, %p56
    %p58 = scmp.ne.s32.totalorder %s46, %s47
    %p59 = scmp.eq.s32.totalorder %s16, 1
    %p60 = por %p58, %p59
    %p62 = scmp.ne.s32.totalorder %s47, %s61
    %p63 = scmp.eq.s32.totalorder %s16, 0
    %p64 = por %p62, %p63
    %s66 = sadd.s32 %s65, 1
    %p69 = scmp.eq.s32.totalorder %s10, 1
    %p70 = scmp.ne.s32.totalorder %s65, %s67
    %p71 = scmp.eq.s32.totalorder %s10, 0
    %p72 = por %p70, %p71
    %p73 = scmp.ne.s32.totalorder %s65, %s67
    %p74 = scmp.eq.s32.totalorder %s15, 1
    %p75 = por %p73, %p74
    %p76 = scmp.ne.s32.totalorder %s67, %s68
    %p77 = scmp.eq.s32.totalorder %s15, 0
    %p78 = por %p76, %p77
    %p79 = scmp.ne.s32.totalorder %s67, %s68
    %p80 = scmp.eq.s32.totalorder %s16, 1
    %p81 = por %p79, %p80
    %p83 = scmp.ne.s32.totalorder %s68, %s82
    %p84 = scmp.eq.s32.totalorder %s16, 0
    %p85 = por %p83, %p84
    %s87 = sadd.s32 %s86, 1
    %p90 = scmp.eq.s32.totalorder %s10, 1
    %p91 = scmp.ne.s32.totalorder %s86, %s88
    %p92 = scmp.eq.s32.totalorder %s10, 0
    %p93 = por %p91, %p92
    %p94 = scmp.ne.s32.totalorder %s86, %s88
    %p95 = scmp.eq.s32.totalorder %s15, 1
    %p96 = por %p94, %p95
    %p97 = scmp.ne.s32.totalorder %s88, %s89
    %p98 = scmp.eq.s32.totalorder %s15, 0
    %p99 = por %p97, %p98
    %p100 = scmp.ne.s32.totalorder %s88, %s89
    %p101 = scmp.eq.s32.totalorder %s16, 1
    %p102 = por %p100, %p101
    %p104 = scmp.ne.s32.totalorder %s89, %s103
    %p105 = scmp.eq.s32.totalorder %s16, 0
    %p106 = por %p104, %p105
    %s107 = ssub.s32 %s10, %s17
    %p108 = scmp.eq.s32.totalorder %s107, 0
    %s110 = sadd.s32 %s109, 1
    %s111 = scalar_select %p108, %s109, %s110
    %p114 = pneg %p108
    %p115 = scmp.eq.s32.totalorder %s10, 1
    %p116 = por %p114, %p115
    %p117 = scmp.ne.s32.totalorder %s109, %s112
    %p118 = scmp.eq.s32.totalorder %s10, 0
    %p119 = por %p117, %p118
    %p120 = scmp.ne.s32.totalorder %s109, %s112
    %p121 = scmp.eq.s32.totalorder %s15, 1
    %p122 = por %p120, %p121
    %p123 = scmp.ne.s32.totalorder %s112, %s113
    %p124 = scmp.eq.s32.totalorder %s15, 0
    %p125 = por %p123, %p124
    %p126 = scmp.ne.s32.totalorder %s112, %s113
    %p127 = scmp.eq.s32.totalorder %s16, 1
    %p128 = por %p126, %p127
    %p130 = scmp.ne.s32.totalorder %s113, %s129
    %p131 = scmp.eq.s32.totalorder %s16, 0
    %p132 = por %p130, %p131
    %p133 = scmp.le.s32.totalorder 1, %s10
    %p134 = scmp.lt.s32.totalorder %s10, 3
    %p135 = pnand %p133, %p134
    %p136 = pneg %p135
    // Predicated region
    $region9: #{_lambda_.15} parent=5 // pred_check
      _
    $region10: #{_lambda_.15} parent=5 // pred_check_branch
      %138 = sbr.rel (%p135) target = $region12
    $region11: #{_lambda_.15} parent=5 // pred_region
      %s139 = ssub.s32 %s10, 1
      // Predicated region
      $region13: #{_lambda_.15} parent=11 // pred_check
        %p140 = pneg %p57
      $region14: #{_lambda_.15} parent=11 // pred_check_branch
        %142 = sbr.rel (%p140) target = $region16
      $region15: #{_lambda_.15} parent=11 // pred_region
        _
      $region16: #{_lambda_.15} parent=11 // pred_fallthru
        _
      // Predicated region
      $region17: #{_lambda_.15} parent=11 // pred_check
        %p143 = pneg %p78
      $region18: #{_lambda_.15} parent=11 // pred_check_branch
        %145 = sbr.rel (%p143) target = $region20
      $region19: #{_lambda_.15} parent=11 // pred_region
        _
      $region20: #{_lambda_.15} parent=11 // pred_fallthru
        _
      // Predicated region
      $region21: #{_lambda_.15} parent=11 // pred_check
        %p146 = pneg %p99
      $region22: #{_lambda_.15} parent=11 // pred_check_branch
        %148 = sbr.rel (%p146) target = $region24
      $region23: #{_lambda_.15} parent=11 // pred_region
        _
      $region24: #{_lambda_.15} parent=11 // pred_fallthru
        _
    $region12: #{_lambda_.15} parent=5 // pred_fallthru
      _
    %p149 = scmp.lt.s32.totalorder %s10, 2
    // Predicated region
    $region25: #{_lambda_.15} parent=5 // pred_check
      %p150 = pneg %p149
    $region26: #{_lambda_.15} parent=5 // pred_check_branch
      %152 = sbr.rel (%p150) target = $region28
    $region27: #{_lambda_.15} parent=5 // pred_region
      // Predicated region
      $region29: #{_lambda_.15} parent=27 // pred_check
        %p153 = pneg %p30
      $region30: #{_lambda_.15} parent=27 // pred_check_branch
        %155 = sbr.rel (%p153) target = $region32
      $region31: #{_lambda_.15} parent=27 // pred_region
        %p156 = scmp.lt.s32.totalorder %s10, 1
        %s157 = scalar_select %p156, %s10, 1
        %s158 = smul.addr %s157, 5
        %s159 = smul.addr %s158, 4
        %s160 = scalar_lea.vmem %s0, %s159
      $region32: #{_lambda_.15} parent=27 // pred_fallthru
        _
    $region28: #{_lambda_.15} parent=5 // pred_fallthru
      _
    %p161 = scmp.le.s32.totalorder 1, %s10
    %p162 = scmp.lt.s32.totalorder %s10, 3
    %p163 = pnand %p161, %p162
    %p164 = pneg %p163
    // Predicated region
    $region33: #{_lambda_.15} parent=5 // pred_check
      _
    $region34: #{_lambda_.15} parent=5 // pred_check_branch
      %166 = sbr.rel (%p163) target = $region36
    $region35: #{_lambda_.15} parent=5 // pred_region
      %s167 = ssub.s32 %s10, 1
      %p168 = scmp.lt.s32.totalorder %s15, 1
      %s169 = scalar_select %p168, %s15, 1
      %s170 = smul.addr %s169, 5
      %s171 = smul.addr %s170, 4
      %s172 = scalar_lea.vmem %s0, %s171
      %p173 = pneg %p36
      %p174 = pneg %p33
      %p175 = pneg %p57
      %p176 = pneg %p54
      %p177 = pneg %p78
      %p178 = pneg %p75
      %p179 = pneg %p99
      %p180 = pneg %p96
      %p181 = pneg %p125
      %p182 = pneg %p122
      %p183 = scmp.lt.s32.totalorder %s15, 1
      %s184 = scalar_select %p183, %s15, 1
      %s185 = smul.addr %s184, 2
      %s186 = smul.addr %s185, 8
      %s187 = scalar_lea.vmem %s4, %s186
      %p188 = scmp.lt.s32.totalorder %s15, 1
      %s189 = scalar_select %p188, %s15, 1
      %s190 = smul.addr %s189, 5
      %s191 = smul.addr %s190, 4
      %s192 = scalar_lea.vmem %s0, %s191
      %p193 = scmp.lt.s32.totalorder %s15, 1
      %s194 = scalar_select %p193, %s15, 1
      %s195 = smul.addr %s194, 2
      %s196 = smul.addr %s195, 8
      %s197 = scalar_lea.vmem %s4, %s196
      %v199 = vld [vmem:[%s192] sm:$0x7]
      %v200 = vld [vmem:[%s192 + $0x4] sm:$0x7]
      %v201 = vld [vmem:[%s192 + $0x8] sm:$0x7]
      %v202 = vld [vmem:[%s192 + $0xc] sm:$0x7]
      %v203 = vld [vmem:[%s192 + $0x10] sm:$0x7]
      %v208 = vunpack.c.l.b16 %v199
      %v209 = vunpack.c.l.b16 %v200
      %v210 = vunpack.c.l.b16 %v201
      %v211 = vunpack.c.l.b16 %v202
      %v212 = vpack.c.b16 %v208, %v208
      %v213 = vpack.c.b16 %v209, %v209
      %v214 = vpack.c.b16 %v210, %v210
      %v215 = vpack.c.b16 %v211, %v211
      %v217 = vshrl.u32 %v212, 16
      %v219 = vshll.u32 %v212, 16
      %v221 = vrot.slane %v219, 1
      %v222 = vor.u32 %v217, %v221
      %v224 = vshrl.u32 %v213, 16
      %v226 = vshll.u32 %v213, 16
      %v228 = vrot.slane %v226, 1
      %v229 = vor.u32 %v224, %v228
      %v231 = vshrl.u32 %v214, 16
      %v233 = vshll.u32 %v214, 16
      %v235 = vrot.slane %v233, 1
      %v236 = vor.u32 %v231, %v235
      %v238 = vshrl.u32 %v215, 16
      %v240 = vshll.u32 %v215, 16
      %v242 = vrot.slane %v240, 1
      %v243 = vor.u32 %v238, %v242
      %v245 = vunpack.c.l.b16 %v203
      %v246 = vpack.c.b16 %v245, %v245
      %v248 = vshrl.u32 %v246, 16
      %v250 = vshll.u32 %v246, 16
      %v252 = vrot.slane %v250, 1
      %v253 = vor.u32 %v248, %v252
      %v254 = vcombine.low %v199, %v222
      %v255 = vcombine.low %v200, %v229
      %v257 = vunpack.c.l.s4 1983009808
      %v258 = vunpack.c.0.s8 %v257
      %v259 = vlaneseq
      %v260 = vshrl.u32 %v259, 7
      %v261 = vsub.s32 %v258, %v260
      %v262 = vrot.slane %v254, %v261
      %v264 = vunpack.c.l.s4 1983009808
      %v265 = vunpack.c.0.s8 %v264
      %v266 = vlaneseq
      %v267 = vshrl.u32 %v266, 7
      %v268 = vsub.s32 %v265, %v267
      %v269 = vrot.slane %v255, %v268
      %v270 = vcombine.low %v262, %v269
      %v271 = vcombine.low %v201, %v236
      %v273 = vunpack.c.l.s4 1983009808
      %v274 = vunpack.c.0.s8 %v273
      %v275 = vlaneseq
      %v276 = vshrl.u32 %v275, 7
      %v277 = vsub.s32 %v274, %v276
      %v278 = vrot.slane %v271, %v277
      %v279 = vcombine.low %v269, %v278
      %v280 = vcombine.low %v202, %v243
      %v282 = vunpack.c.l.s4 1983009808
      %v283 = vunpack.c.0.s8 %v282
      %v284 = vlaneseq
      %v285 = vshrl.u32 %v284, 7
      %v286 = vsub.s32 %v283, %v285
      %v287 = vrot.slane %v280, %v286
      %v288 = vcombine.low %v278, %v287
      %v289 = vcombine.low %v203, %v253
      %v291 = vunpack.c.l.s4 1983009808
      %v292 = vunpack.c.0.s8 %v291
      %v293 = vlaneseq
      %v294 = vshrl.u32 %v293, 7
      %v295 = vsub.s32 %v292, %v294
      %v296 = vrot.slane %v289, %v295
      %v297 = vcombine.low %v287, %v296
      %v298 = vld [vmem:[%s1] sm:$0xf]
      %v299 = vld [vmem:[%s1 + $0x4] sm:$0xf]
      %v300 = vld [vmem:[%s1 + $0x8] sm:$0xf]
      %v301 = vld [vmem:[%s1 + $0xc] sm:$0xf]
      %v302 = vld [vmem:[%s1 + $0x10] sm:$0xf]
      %v303 = vld [vmem:[%s1 + $0x14] sm:$0xf]
      %v304 = vld [vmem:[%s1 + $0x18] sm:$0xf]
      %v305 = vld [vmem:[%s1 + $0x1c] sm:$0xf]
      %v306 = vld [vmem:[%s1 + $0x20] sm:$0xf]
      %v307 = vld [vmem:[%s1 + $0x24] sm:$0xf]
      %v308 = vld [vmem:[%s1 + $0x28] sm:$0xf]
      %v309 = vld [vmem:[%s1 + $0x2c] sm:$0xf]
      %v310 = vld [vmem:[%s1 + $0x30] sm:$0xf]
      %v311 = vld [vmem:[%s1 + $0x34] sm:$0xf]
      %v312 = vld [vmem:[%s1 + $0x38] sm:$0xf]
      %v313 = vld [vmem:[%s1 + $0x3c] sm:$0xf]
      %v314 = vld [vmem:[%s1 + $0x40] sm:$0xf]
      %v315 = vld [vmem:[%s1 + $0x44] sm:$0xf]
      %v316 = vld [vmem:[%s1 + $0x48] sm:$0xf]
      %v317 = vld [vmem:[%s1 + $0x4c] sm:$0xf]
      %v318 = vld [vmem:[%s1 + $0x50] sm:$0xf]
      %v319 = vld [vmem:[%s1 + $0x54] sm:$0xf]
      %v320 = vld [vmem:[%s1 + $0x58] sm:$0xf]
      %v321 = vld [vmem:[%s1 + $0x5c] sm:$0xf]
      %v322 = vld [vmem:[%s1 + $0x60] sm:$0xf]
      %v323 = vld [vmem:[%s1 + $0x64] sm:$0xf]
      %v324 = vld [vmem:[%s1 + $0x68] sm:$0xf]
      %v325 = vld [vmem:[%s1 + $0x6c] sm:$0xf]
      %v326 = vld [vmem:[%s1 + $0x70] sm:$0xf]
      %v327 = vld [vmem:[%s1 + $0x74] sm:$0xf]
      %v328 = vld [vmem:[%s1 + $0x78] sm:$0xf]
      %v329 = vld [vmem:[%s1 + $0x7c] sm:$0xf]
      %v330 = vld [vmem:[%s1 + $0x80] sm:$0xf]
      %v331 = vld [vmem:[%s1 + $0x84] sm:$0xf]
      %v332 = vld [vmem:[%s1 + $0x88] sm:$0xf]
      %v333 = vld [vmem:[%s1 + $0x8c] sm:$0xf]
      %v334 = vld [vmem:[%s1 + $0x90] sm:$0xf]
      %v335 = vld [vmem:[%s1 + $0x94] sm:$0xf]
      %v336 = vld [vmem:[%s1 + $0x98] sm:$0xf]
      %v337 = vld [vmem:[%s1 + $0x9c] sm:$0xf]
      %v338 = vld [vmem:[%s1 + $0xa0] sm:$0xf]
      %v339 = vld [vmem:[%s1 + $0xa4] sm:$0xf]
      %v340 = vld [vmem:[%s1 + $0xa8] sm:$0xf]
      %v341 = vld [vmem:[%s1 + $0xac] sm:$0xf]
      %v342 = vld [vmem:[%s1 + $0xb0] sm:$0xf]
      %v343 = vld [vmem:[%s1 + $0xb4] sm:$0xf]
      %v344 = vld [vmem:[%s1 + $0xb8] sm:$0xf]
      %v345 = vld [vmem:[%s1 + $0xbc] sm:$0xf]
      %v346 = vld [vmem:[%s1 + $0xc0] sm:$0xf]
      %v347 = vld [vmem:[%s1 + $0xc4] sm:$0xf]
      %v348 = vld [vmem:[%s1 + $0xc8] sm:$0xf]
      %v349 = vld [vmem:[%s1 + $0xcc] sm:$0xf]
      %v350 = vld [vmem:[%s1 + $0xd0] sm:$0xf]
      %v351 = vld [vmem:[%s1 + $0xd4] sm:$0xf]
      %v352 = vld [vmem:[%s1 + $0xd8] sm:$0xf]
      %v353 = vld [vmem:[%s1 + $0xdc] sm:$0xf]
      %v354 = vld [vmem:[%s1 + $0xe0] sm:$0xf]
      %v355 = vld [vmem:[%s1 + $0xe4] sm:$0xf]
      %v356 = vld [vmem:[%s1 + $0xe8] sm:$0xf]
      %v357 = vld [vmem:[%s1 + $0xec] sm:$0xf]
      %v358 = vld [vmem:[%s1 + $0xf0] sm:$0xf]
      %v359 = vld [vmem:[%s1 + $0xf4] sm:$0xf]
      %v360 = vld [vmem:[%s1 + $0xf8] sm:$0xf]
      %v361 = vld [vmem:[%s1 + $0xfc] sm:$0xf]
      %v362 = vcombine.low %v270, %v279
      %v363 = vcombine.high %v270, %v279
      %v364 = vcombine.low %v288, %v297
      %v365 = vcombine.high %v288, %v297
      %v367 = vunpack.c.l.s4 1983009808
      %v368 = vunpack.c.0.s8 %v367
      %v369 = vlaneseq
      %v370 = vshrl.u32 %v369, 7
      %v371 = vsub.s32 %v368, %v370
      %v372 = vrot.slane %v362, %v371
      %v374 = vunpack.c.l.s4 1983009808
      %v375 = vunpack.c.0.s8 %v374
      %v376 = vlaneseq
      %v377 = vshrl.u32 %v376, 7
      %v378 = vsub.s32 %v375, %v377
      %v379 = vrot.slane %v363, %v378
      %v381 = vunpack.c.l.s4 1983009808
      %v382 = vunpack.c.0.s8 %v381
      %v383 = vlaneseq
      %v384 = vshrl.u32 %v383, 7
      %v385 = vsub.s32 %v382, %v384
      %v386 = vrot.slane %v364, %v385
      %v388 = vunpack.c.l.s4 1983009808
      %v389 = vunpack.c.0.s8 %v388
      %v390 = vlaneseq
      %v391 = vshrl.u32 %v390, 7
      %v392 = vsub.s32 %v389, %v391
      %v393 = vrot.slane %v365, %v392
      %v394 = vcombine.low %v372, %v386
      %v395 = vcombine.high %v372, %v386
      %v396 = vcombine.low %v379, %v393
      %v397 = vcombine.high %v379, %v393
      %v466 = vunpack.c.l.b16 %v298
      %v467 = vunpack.c.l.b16 %v299
      %v468 = vunpack.c.l.b16 %v300
      %v469 = vunpack.c.l.b16 %v301
      %v470 = vunpack.c.l.b16 %v302
      %v471 = vunpack.c.l.b16 %v303
      %v472 = vunpack.c.l.b16 %v304
      %v473 = vunpack.c.l.b16 %v305
      %v474 = vunpack.c.l.b16 %v306
      %v475 = vunpack.c.l.b16 %v307
      %v476 = vunpack.c.l.b16 %v308
      %v477 = vunpack.c.l.b16 %v309
      %v478 = vunpack.c.l.b16 %v310
      %v479 = vunpack.c.l.b16 %v311
      %v480 = vunpack.c.l.b16 %v312
      %v481 = vunpack.c.l.b16 %v313
      %v482 = vunpack.c.l.b16 %v314
      %v483 = vunpack.c.l.b16 %v315
      %v484 = vunpack.c.l.b16 %v316
      %v485 = vunpack.c.l.b16 %v317
      %v486 = vunpack.c.l.b16 %v318
      %v487 = vunpack.c.l.b16 %v319
      %v488 = vunpack.c.l.b16 %v320
      %v489 = vunpack.c.l.b16 %v321
      %v490 = vunpack.c.l.b16 %v322
      %v491 = vunpack.c.l.b16 %v323
      %v492 = vunpack.c.l.b16 %v324
      %v493 = vunpack.c.l.b16 %v325
      %v494 = vunpack.c.l.b16 %v326
      %v495 = vunpack.c.l.b16 %v327
      %v496 = vunpack.c.l.b16 %v328
      %v497 = vunpack.c.l.b16 %v329
      %v498 = vunpack.c.l.b16 %v330
      %v499 = vunpack.c.l.b16 %v331
      %v500 = vunpack.c.l.b16 %v332
      %v501 = vunpack.c.l.b16 %v333
      %v502 = vunpack.c.l.b16 %v334
      %v503 = vunpack.c.l.b16 %v335
      %v504 = vunpack.c.l.b16 %v336
      %v505 = vunpack.c.l.b16 %v337
      %v506 = vunpack.c.l.b16 %v338
      %v507 = vunpack.c.l.b16 %v339
      %v508 = vunpack.c.l.b16 %v340
      %v509 = vunpack.c.l.b16 %v341
      %v510 = vunpack.c.l.b16 %v342
      %v511 = vunpack.c.l.b16 %v343
      %v512 = vunpack.c.l.b16 %v344
      %v513 = vunpack.c.l.b16 %v345
      %v514 = vunpack.c.l.b16 %v346
      %v515 = vunpack.c.l.b16 %v347
      %v516 = vunpack.c.l.b16 %v348
      %v517 = vunpack.c.l.b16 %v349
      %v518 = vunpack.c.l.b16 %v350
      %v519 = vunpack.c.l.b16 %v351
      %v520 = vunpack.c.l.b16 %v352
      %v521 = vunpack.c.l.b16 %v353
      %v522 = vunpack.c.l.b16 %v354
      %v523 = vunpack.c.l.b16 %v355
      %v524 = vunpack.c.l.b16 %v356
      %v525 = vunpack.c.l.b16 %v357
      %v526 = vunpack.c.l.b16 %v358
      %v527 = vunpack.c.l.b16 %v359
      %v528 = vunpack.c.l.b16 %v360
      %v529 = vunpack.c.l.b16 %v361
      %v530 = vpack.c.b16 %v467, %v466
      %v531 = vpack.c.b16 %v469, %v468
      %v532 = vpack.c.b16 %v471, %v470
      %v533 = vpack.c.b16 %v473, %v472
      %v534 = vpack.c.b16 %v475, %v474
      %v535 = vpack.c.b16 %v477, %v476
      %v536 = vpack.c.b16 %v479, %v478
      %v537 = vpack.c.b16 %v481, %v480
      %v538 = vpack.c.b16 %v483, %v482
      %v539 = vpack.c.b16 %v485, %v484
      %v540 = vpack.c.b16 %v487, %v486
      %v541 = vpack.c.b16 %v489, %v488
      %v542 = vpack.c.b16 %v491, %v490
      %v543 = vpack.c.b16 %v493, %v492
      %v544 = vpack.c.b16 %v495, %v494
      %v545 = vpack.c.b16 %v497, %v496
      %v546 = vpack.c.b16 %v499, %v498
      %v547 = vpack.c.b16 %v501, %v500
      %v548 = vpack.c.b16 %v503, %v502
      %v549 = vpack.c.b16 %v505, %v504
      %v550 = vpack.c.b16 %v507, %v506
      %v551 = vpack.c.b16 %v509, %v508
      %v552 = vpack.c.b16 %v511, %v510
      %v553 = vpack.c.b16 %v513, %v512
      %v554 = vpack.c.b16 %v515, %v514
      %v555 = vpack.c.b16 %v517, %v516
      %v556 = vpack.c.b16 %v519, %v518
      %v557 = vpack.c.b16 %v521, %v520
      %v558 = vpack.c.b16 %v523, %v522
      %v559 = vpack.c.b16 %v525, %v524
      %v560 = vpack.c.b16 %v527, %v526
      %v561 = vpack.c.b16 %v529, %v528
      %594 = vmatprep.subr.bf16.mxu0 0
      %595 = vmatpush1.bf16.msra.mxu0 %v537
      %596 = vmatprep.subr.bf16.mxu0 0
      %597 = vmatpush1.bf16.msra.mxu0 %v536
      %598 = vmatprep.subr.bf16.mxu0 0
      %599 = vmatpush1.bf16.msra.mxu0 %v535
      %600 = vmatprep.subr.bf16.mxu0 0
      %601 = vmatpush1.bf16.msra.mxu0 %v534
      %602 = vmatprep.subr.bf16.mxu0 0
      %603 = vmatpush1.bf16.msra.mxu0 %v533
      %604 = vmatprep.subr.bf16.mxu0 0
      %605 = vmatpush1.bf16.msra.mxu0 %v532
      %606 = vmatprep.subr.bf16.mxu0 0
      %607 = vmatpush1.bf16.msra.mxu0 %v531
      %608 = vmatprep.subr.bf16.mxu0 0
      %609 = vmatpush1.bf16.msra.mxu0 %v530
      %610 = vmatprep.subr.bf16.mxu0 0
      %611 = vmatpush2.bf16.msra.mxu0 %v545
      %612 = vmatprep.subr.bf16.mxu0 0
      %613 = vmatpush2.bf16.msra.mxu0 %v544
      %614 = vmatprep.subr.bf16.mxu0 0
      %615 = vmatpush2.bf16.msra.mxu0 %v543
      %616 = vmatprep.subr.bf16.mxu0 0
      %617 = vmatpush2.bf16.msra.mxu0 %v542
      %618 = vmatprep.subr.bf16.mxu0 0
      %619 = vmatpush2.bf16.msra.mxu0 %v541
      %620 = vmatprep.subr.bf16.mxu0 0
      %621 = vmatpush2.bf16.msra.mxu0 %v540
      %622 = vmatprep.subr.bf16.mxu0 0
      %623 = vmatpush2.bf16.msra.mxu0 %v539
      %624 = vmatprep.subr.bf16.mxu0 0
      %625 = vmatpush2.bf16.msra.mxu0 %v538
      %626 = vmatprep.mubr.bf16.mxu0 %v395
      %627 = vmatmul.mubr.bf16.gmra.mxu0 %v394
      %v628 = vpop.f32.mrf.mxu0
      %v629 = vadd.f32 0.0, %v628
      %v630 = vpop.f32.mrf.mxu0
      %v631 = vpop.f32.mrf.mxu0
      %v632 = vadd.f32 0.0, %v631
      %v633 = vpop.f32.mrf.mxu0
      %634 = vdwg.mxu0
      %635 = vmatprep.subr.bf16.mxu0 0
      %636 = vmatpush1.bf16.msra.mxu0 %v553
      %637 = vmatprep.subr.bf16.mxu0 0
      %638 = vmatpush1.bf16.msra.mxu0 %v552
      %639 = vmatprep.subr.bf16.mxu0 0
      %640 = vmatpush1.bf16.msra.mxu0 %v551
      %641 = vmatprep.subr.bf16.mxu0 0
      %642 = vmatpush1.bf16.msra.mxu0 %v550
      %643 = vmatprep.subr.bf16.mxu0 0
      %644 = vmatpush1.bf16.msra.mxu0 %v549
      %645 = vmatprep.subr.bf16.mxu0 0
      %646 = vmatpush1.bf16.msra.mxu0 %v548
      %647 = vmatprep.subr.bf16.mxu0 0
      %648 = vmatpush1.bf16.msra.mxu0 %v547
      %649 = vmatprep.subr.bf16.mxu0 0
      %650 = vmatpush1.bf16.msra.mxu0 %v546
      %651 = vmatprep.subr.bf16.mxu0 0
      %652 = vmatpush2.bf16.msra.mxu0 %v561
      %653 = vmatprep.subr.bf16.mxu0 0
      %654 = vmatpush2.bf16.msra.mxu0 %v560
      %655 = vmatprep.subr.bf16.mxu0 0
      %656 = vmatpush2.bf16.msra.mxu0 %v559
      %657 = vmatprep.subr.bf16.mxu0 0
      %658 = vmatpush2.bf16.msra.mxu0 %v558
      %659 = vmatprep.subr.bf16.mxu0 0
      %660 = vmatpush2.bf16.msra.mxu0 %v557
      %661 = vmatprep.subr.bf16.mxu0 0
      %662 = vmatpush2.bf16.msra.mxu0 %v556
      %663 = vmatprep.subr.bf16.mxu0 0
      %664 = vmatpush2.bf16.msra.mxu0 %v555
      %665 = vmatprep.subr.bf16.mxu0 0
      %666 = vmatpush2.bf16.msra.mxu0 %v554
      %667 = vmatprep.mubr.bf16.mxu0 %v397
      %668 = vmatmul.mubr.bf16.gmra.mxu0 %v396
      %v669 = vpop.f32.mrf.mxu0
      %v670 = vadd.f32 %v629, %v669
      %v671 = vpop.f32.mrf.mxu0
      %v672 = vpop.f32.mrf.mxu0
      %v673 = vadd.f32 %v632, %v672
      %v674 = vpop.f32.mrf.mxu0
      %675 = vdwg.mxu0
      %v676 = vld [vmem:[%s2] sm:$0x1]
      %v678 = vlaneseq
      %v679 = vshrl.u32 %v678, 7
      %v680 = vsub.s32 0, %v679
      %v681 = vrot.slane %v676, %v680
      %v683 = vmul.f32 %v670, %v681
      %v684 = vmul.f32 %v673, %v681
      %v685 = vld [vmem:[%s3] sm:$0x1]
      %v687 = vlaneseq
      %v688 = vshrl.u32 %v687, 7
      %v689 = vsub.s32 0, %v688
      %v690 = vrot.slane %v685, %v689
      %v692 = vadd.f32 %v683, %v690
      %v693 = vadd.f32 %v684, %v690
      %vm694 = vcmask 261120
      %695 = vst.msk [vmem:[%s197] sm:$0xff] %vm694, %v692
      %696 = vst.msk [vmem:[%s197 + $0x8] sm:$0xff] %vm694, %v693
      %p697 = scmp.lt.s32.totalorder %s15, 1
      %s698 = scalar_select %p697, %s15, 1
      %s699 = smul.addr %s698, 2
      %s700 = smul.addr %s699, 8
      %s701 = scalar_lea.vmem %s4, %s700
      // Predicated region
      $region37: #{_lambda_.15} parent=35 // pred_check
        %p702 = pneg %p122
      $region38: #{_lambda_.15} parent=35 // pred_check_branch
        %704 = sbr.rel (%p702) target = $region40
      $region39: #{_lambda_.15} parent=35 // pred_region
        _
      $region40: #{_lambda_.15} parent=35 // pred_fallthru
        _
    $region36: #{_lambda_.15} parent=5 // pred_fallthru
      _
    %p705 = scmp.le.s32.totalorder 2, %s10
    // Predicated region
    $region41: #{_lambda_.15} parent=5 // pred_check
      %p706 = pneg %p705
    $region42: #{_lambda_.15} parent=5 // pred_check_branch
      %708 = sbr.rel (%p706) target = $region44
    $region43: #{_lambda_.15} parent=5 // pred_region
      %s709 = ssub.s32 %s10, 2
      // Predicated region
      $region45: #{_lambda_.15} parent=43 // pred_check
        %p710 = pneg %p128
      $region46: #{_lambda_.15} parent=43 // pred_check_branch
        %712 = sbr.rel (%p710) target = $region48
      $region47: #{_lambda_.15} parent=43 // pred_region
        %p713 = scmp.lt.s32.totalorder %s16, 1
        %s714 = scalar_select %p713, %s16, 1
        %s715 = smul.addr %s714, 2
        %s716 = smul.addr %s715, 8
        %s717 = scalar_lea.vmem %s4, %s716
      $region48: #{_lambda_.15} parent=43 // pred_fallthru
        _
    $region44: #{_lambda_.15} parent=5 // pred_fallthru
      _
  $region6: #{_lambda_.15} parent=0 // loop_footer
    %s14 = sadd.s32 1, %s10
  $region7: #{_lambda_.15} parent=0 // loop_footer_branch
    %9 = sbr.rel target = $region3
  $region8: #{_lambda_.15} parent=0 // loop_exit
    _

// kernel: _lambda_.18
$region0: #{_lambda_.18}
  #allocation0 [shape = 'u32[]', space=smem, size = 0x4, offset = 0x4, fixed_abs, tag = 'smem constant byte address 0x4 - core index']
  #allocation1 [shape = 'u32[144,128]{1,0:T(1,128)}', space=vmem, size = 0x12000, scoped, tag = 'internal scratch']
  %s0 = inlined_call_operand.vmem [shape: bf16[2,6,6,64], index: 0, kind: input, shape index: {}]
  %s1 = inlined_call_operand.vmem [shape: bf16[576,32], index: 1, kind: input, shape index: {}]
  %s2 = inlined_call_operand.vmem [shape: f32[1,32], index: 2, kind: input, shape index: {}]
  %s3 = inlined_call_operand.vmem [shape: f32[1,32], index: 3, kind: input, shape index: {}]
  %s4 = inlined_call_operand.vmem [shape: bf16[64,16], index: 4, kind: input, shape index: {}]
  %s5 = inlined_call_operand.vmem [shape: f32[1,16], index: 5, kind: input, shape index: {}]
  %s6 = inlined_call_operand.vmem [shape: f32[1,16], index: 6, kind: input, shape index: {}]
  %s7 = inlined_call_operand.vmem [shape: f32[2,16,32], index: 7, kind: output, shape index: {0}]
  %s8 = inlined_call_operand.vmem [shape: f32[2,16,16], index: 8, kind: output, shape index: {1}]
  %9 = xla_tuple %s7, %s8
  %s10 = sld [smem:[#allocation0]]
  $region69: #{_lambda_.18} parent=0
    _
  %s12 = ssub.s32 1, %s10
  %s13 = scalar_select 0, %s12, %s10
  loop: start=0, step=1, limit=4
  $region2: #{_lambda_.18} parent=0 // loop_pre_header
    _
  $region3: #{_lambda_.18} parent=0 // loop_header
    %s15 = sphi 0, %s19
    %p16 = scmp.ge.s32.totalorder %s15, 4
    %s25 = sphi 0, %s27
    %s28 = sphi 0, %s25
    %s29 = sphi 0, %s28
    %s45 = sphi 0, %s29
    %s49 = sphi 0, %s49
    %s51 = sphi 0, %s49
    %s52 = sphi 0, %s51
    %s66 = sphi 0, %s52
    %s70 = sphi 0, %s70
    %s72 = sphi 0, %s70
    %s73 = sphi 0, %s72
    %s87 = sphi 0, %s73
    %s91 = sphi 0, %s91
    %s93 = sphi 0, %s91
    %s94 = sphi 0, %s93
    %s108 = sphi 0, %s94
    %s112 = sphi 0, %s112
    %s114 = sphi 0, %s112
    %s115 = sphi 0, %s114
    %s129 = sphi 0, %s115
    %s133 = sphi 0, %s133
    %s135 = sphi 0, %s133
    %s136 = sphi 0, %s135
    %s150 = sphi 0, %s136
    %s154 = sphi 0, %s154
    %s156 = sphi 0, %s154
    %s157 = sphi 0, %s156
    %s171 = sphi 0, %s157
    %s177 = sphi 0, %s179
    %s180 = sphi 0, %s177
    %s181 = sphi 0, %s180
    %s197 = sphi 0, %s181
    %s203 = sphi 0, %s205
    %s206 = sphi 0, %s203
    %s207 = sphi 0, %s206
    %s223 = sphi 0, %s207
  $region4: #{_lambda_.18} parent=0 // loop_header_branch
    %18 = sbr.rel (%p16) target = $region8
  $region5: #{_lambda_.18} parent=0 // loop_body
    %s20 = ssub.s32 %s15, 1
    %s21 = ssub.s32 %s15, 2
    %s22 = sadd.s32 %s15, 1
    %s23 = ssub.s32 %s15, %s22
    %p24 = scmp.eq.s32.totalorder %s23, 0
    %s26 = sadd.s32 %s25, 1
    %s27 = scalar_select %p24, %s25, %s26
    %p30 = pneg %p24
    %p31 = scmp.eq.s32.totalorder %s15, 1
    %p32 = por %p30, %p31
    %p33 = scmp.ne.s32.totalorder %s25, %s28
    %p34 = scmp.eq.s32.totalorder %s15, 0
    %p35 = por %p33, %p34
    %p36 = scmp.ne.s32.totalorder %s25, %s28
    %p37 = scmp.eq.s32.totalorder %s20, 1
    %p38 = por %p36, %p37
    %p39 = scmp.ne.s32.totalorder %s28, %s29
    %p40 = scmp.eq.s32.totalorder %s20, 0
    %p41 = por %p39, %p40
    %p42 = scmp.ne.s32.totalorder %s28, %s29
    %p43 = scmp.eq.s32.totalorder %s21, 1
    %p44 = por %p42, %p43
    %p46 = scmp.ne.s32.totalorder %s29, %s45
    %p47 = scmp.eq.s32.totalorder %s21, 0
    %p48 = por %p46, %p47
    %s50 = sadd.s32 %s49, 1
    %p53 = scmp.eq.s32.totalorder %s15, 1
    %p54 = scmp.ne.s32.totalorder %s49, %s51
    %p55 = scmp.eq.s32.totalorder %s15, 0
    %p56 = por %p54, %p55
    %p57 = scmp.ne.s32.totalorder %s49, %s51
    %p58 = scmp.eq.s32.totalorder %s20, 1
    %p59 = por %p57, %p58
    %p60 = scmp.ne.s32.totalorder %s51, %s52
    %p61 = scmp.eq.s32.totalorder %s20, 0
    %p62 = por %p60, %p61
    %p63 = scmp.ne.s32.totalorder %s51, %s52
    %p64 = scmp.eq.s32.totalorder %s21, 1
    %p65 = por %p63, %p64
    %p67 = scmp.ne.s32.totalorder %s52, %s66
    %p68 = scmp.eq.s32.totalorder %s21, 0
    %p69 = por %p67, %p68
    %s71 = sadd.s32 %s70, 1
    %p74 = scmp.eq.s32.totalorder %s15, 1
    %p75 = scmp.ne.s32.totalorder %s70, %s72
    %p76 = scmp.eq.s32.totalorder %s15, 0
    %p77 = por %p75, %p76
    %p78 = scmp.ne.s32.totalorder %s70, %s72
    %p79 = scmp.eq.s32.totalorder %s20, 1
    %p80 = por %p78, %p79
    %p81 = scmp.ne.s32.totalorder %s72, %s73
    %p82 = scmp.eq.s32.totalorder %s20, 0
    %p83 = por %p81, %p82
    %p84 = scmp.ne.s32.totalorder %s72, %s73
    %p85 = scmp.eq.s32.totalorder %s21, 1
    %p86 = por %p84, %p85
    %p88 = scmp.ne.s32.totalorder %s73, %s87
    %p89 = scmp.eq.s32.totalorder %s21, 0
    %p90 = por %p88, %p89
    %s92 = sadd.s32 %s91, 1
    %p95 = scmp.eq.s32.totalorder %s15, 1
    %p96 = scmp.ne.s32.totalorder %s91, %s93
    %p97 = scmp.eq.s32.totalorder %s15, 0
    %p98 = por %p96, %p97
    %p99 = scmp.ne.s32.totalorder %s91, %s93
    %p100 = scmp.eq.s32.totalorder %s20, 1
    %p101 = por %p99, %p100
    %p102 = scmp.ne.s32.totalorder %s93, %s94
    %p103 = scmp.eq.s32.totalorder %s20, 0
    %p104 = por %p102, %p103
    %p105 = scmp.ne.s32.totalorder %s93, %s94
    %p106 = scmp.eq.s32.totalorder %s21, 1
    %p107 = por %p105, %p106
    %p109 = scmp.ne.s32.totalorder %s94, %s108
    %p110 = scmp.eq.s32.totalorder %s21, 0
    %p111 = por %p109, %p110
    %s113 = sadd.s32 %s112, 1
    %p116 = scmp.eq.s32.totalorder %s15, 1
    %p117 = scmp.ne.s32.totalorder %s112, %s114
    %p118 = scmp.eq.s32.totalorder %s15, 0
    %p119 = por %p117, %p118
    %p120 = scmp.ne.s32.totalorder %s112, %s114
    %p121 = scmp.eq.s32.totalorder %s20, 1
    %p122 = por %p120, %p121
    %p123 = scmp.ne.s32.totalorder %s114, %s115
    %p124 = scmp.eq.s32.totalorder %s20, 0
    %p125 = por %p123, %p124
    %p126 = scmp.ne.s32.totalorder %s114, %s115
    %p127 = scmp.eq.s32.totalorder %s21, 1
    %p128 = por %p126, %p127
    %p130 = scmp.ne.s32.totalorder %s115, %s129
    %p131 = scmp.eq.s32.totalorder %s21, 0
    %p132 = por %p130, %p131
    %s134 = sadd.s32 %s133, 1
    %p137 = scmp.eq.s32.totalorder %s15, 1
    %p138 = scmp.ne.s32.totalorder %s133, %s135
    %p139 = scmp.eq.s32.totalorder %s15, 0
    %p140 = por %p138, %p139
    %p141 = scmp.ne.s32.totalorder %s133, %s135
    %p142 = scmp.eq.s32.totalorder %s20, 1
    %p143 = por %p141, %p142
    %p144 = scmp.ne.s32.totalorder %s135, %s136
    %p145 = scmp.eq.s32.totalorder %s20, 0
    %p146 = por %p144, %p145
    %p147 = scmp.ne.s32.totalorder %s135, %s136
    %p148 = scmp.eq.s32.totalorder %s21, 1
    %p149 = por %p147, %p148
    %p151 = scmp.ne.s32.totalorder %s136, %s150
    %p152 = scmp.eq.s32.totalorder %s21, 0
    %p153 = por %p151, %p152
    %s155 = sadd.s32 %s154, 1
    %p158 = scmp.eq.s32.totalorder %s15, 1
    %p159 = scmp.ne.s32.totalorder %s154, %s156
    %p160 = scmp.eq.s32.totalorder %s15, 0
    %p161 = por %p159, %p160
    %p162 = scmp.ne.s32.totalorder %s154, %s156
    %p163 = scmp.eq.s32.totalorder %s20, 1
    %p164 = por %p162, %p163
    %p165 = scmp.ne.s32.totalorder %s156, %s157
    %p166 = scmp.eq.s32.totalorder %s20, 0
    %p167 = por %p165, %p166
    %p168 = scmp.ne.s32.totalorder %s156, %s157
    %p169 = scmp.eq.s32.totalorder %s21, 1
    %p170 = por %p168, %p169
    %p172 = scmp.ne.s32.totalorder %s157, %s171
    %p173 = scmp.eq.s32.totalorder %s21, 0
    %p174 = por %p172, %p173
    %s175 = ssub.s32 %s15, %s22
    %p176 = scmp.eq.s32.totalorder %s175, 0
    %s178 = sadd.s32 %s177, 1
    %s179 = scalar_select %p176, %s177, %s178
    %p182 = pneg %p176
    %p183 = scmp.eq.s32.totalorder %s15, 1
    %p184 = por %p182, %p183
    %p185 = scmp.ne.s32.totalorder %s177, %s180
    %p186 = scmp.eq.s32.totalorder %s15, 0
    %p187 = por %p185, %p186
    %p188 = scmp.ne.s32.totalorder %s177, %s180
    %p189 = scmp.eq.s32.totalorder %s20, 1
    %p190 = por %p188, %p189
    %p191 = scmp.ne.s32.totalorder %s180, %s181
    %p192 = scmp.eq.s32.totalorder %s20, 0
    %p193 = por %p191, %p192
    %p194 = scmp.ne.s32.totalorder %s180, %s181
    %p195 = scmp.eq.s32.totalorder %s21, 1
    %p196 = por %p194, %p195
    %p198 = scmp.ne.s32.totalorder %s181, %s197
    %p199 = scmp.eq.s32.totalorder %s21, 0
    %p200 = por %p198, %p199
    %s201 = ssub.s32 %s15, %s22
    %p202 = scmp.eq.s32.totalorder %s201, 0
    %s204 = sadd.s32 %s203, 1
    %s205 = scalar_select %p202, %s203, %s204
    %p208 = pneg %p202
    %p209 = scmp.eq.s32.totalorder %s15, 1
    %p210 = por %p208, %p209
    %p211 = scmp.ne.s32.totalorder %s203, %s206
    %p212 = scmp.eq.s32.totalorder %s15, 0
    %p213 = por %p211, %p212
    %p214 = scmp.ne.s32.totalorder %s203, %s206
    %p215 = scmp.eq.s32.totalorder %s20, 1
    %p216 = por %p214, %p215
    %p217 = scmp.ne.s32.totalorder %s206, %s207
    %p218 = scmp.eq.s32.totalorder %s20, 0
    %p219 = por %p217, %p218
    %p220 = scmp.ne.s32.totalorder %s206, %s207
    %p221 = scmp.eq.s32.totalorder %s21, 1
    %p222 = por %p220, %p221
    %p224 = scmp.ne.s32.totalorder %s207, %s223
    %p225 = scmp.eq.s32.totalorder %s21, 0
    %p226 = por %p224, %p225
    %p227 = scmp.le.s32.totalorder 1, %s15
    %p228 = scmp.lt.s32.totalorder %s15, 3
    %p229 = pnand %p227, %p228
    %p230 = pneg %p229
    // Predicated region
    $region9: #{_lambda_.18} parent=5 // pred_check
      _
    $region10: #{_lambda_.18} parent=5 // pred_check_branch
      %232 = sbr.rel (%p229) target = $region12
    $region11: #{_lambda_.18} parent=5 // pred_region
      %s233 = ssub.s32 %s15, 1
      // Predicated region
      $region13: #{_lambda_.18} parent=11 // pred_check
        %p234 = pneg %p62
      $region14: #{_lambda_.18} parent=11 // pred_check_branch
        %236 = sbr.rel (%p234) target = $region16
      $region15: #{_lambda_.18} parent=11 // pred_region
        _
      $region16: #{_lambda_.18} parent=11 // pred_fallthru
        _
      // Predicated region
      $region17: #{_lambda_.18} parent=11 // pred_check
        %p237 = pneg %p83
      $region18: #{_lambda_.18} parent=11 // pred_check_branch
        %239 = sbr.rel (%p237) target = $region20
      $region19: #{_lambda_.18} parent=11 // pred_region
        _
      $region20: #{_lambda_.18} parent=11 // pred_fallthru
        _
      // Predicated region
      $region21: #{_lambda_.18} parent=11 // pred_check
        %p240 = pneg %p104
      $region22: #{_lambda_.18} parent=11 // pred_check_branch
        %242 = sbr.rel (%p240) target = $region24
      $region23: #{_lambda_.18} parent=11 // pred_region
        _
      $region24: #{_lambda_.18} parent=11 // pred_fallthru
        _
      // Predicated region
      $region25: #{_lambda_.18} parent=11 // pred_check
        %p243 = pneg %p125
      $region26: #{_lambda_.18} parent=11 // pred_check_branch
        %245 = sbr.rel (%p243) target = $region28
      $region27: #{_lambda_.18} parent=11 // pred_region
        _
      $region28: #{_lambda_.18} parent=11 // pred_fallthru
        _
      // Predicated region
      $region29: #{_lambda_.18} parent=11 // pred_check
        %p246 = pneg %p146
      $region30: #{_lambda_.18} parent=11 // pred_check_branch
        %248 = sbr.rel (%p246) target = $region32
      $region31: #{_lambda_.18} parent=11 // pred_region
        _
      $region32: #{_lambda_.18} parent=11 // pred_fallthru
        _
      // Predicated region
      $region33: #{_lambda_.18} parent=11 // pred_check
        %p249 = pneg %p167
      $region34: #{_lambda_.18} parent=11 // pred_check_branch
        %251 = sbr.rel (%p249) target = $region36
      $region35: #{_lambda_.18} parent=11 // pred_region
        _
      $region36: #{_lambda_.18} parent=11 // pred_fallthru
        _
    $region12: #{_lambda_.18} parent=5 // pred_fallthru
      _
    %p252 = scmp.lt.s32.totalorder %s15, 2
    // Predicated region
    $region37: #{_lambda_.18} parent=5 // pred_check
      %p253 = pneg %p252
    $region38: #{_lambda_.18} parent=5 // pred_check_branch
      %255 = sbr.rel (%p253) target = $region40
    $region39: #{_lambda_.18} parent=5 // pred_region
      // Predicated region
      $region41: #{_lambda_.18} parent=39 // pred_check
        %p256 = pneg %p35
      $region42: #{_lambda_.18} parent=39 // pred_check_branch
        %258 = sbr.rel (%p256) target = $region44
      $region43: #{_lambda_.18} parent=39 // pred_region
        %p259 = scmp.lt.s32.totalorder %s15, 1
        %s260 = scalar_select %p259, %s15, 1
        %s261 = smul.addr %s260, 6
        %s262 = smul.addr %s261, 4
        %s263 = scalar_lea.vmem %s0, %s262
      $region44: #{_lambda_.18} parent=39 // pred_fallthru
        _
    $region40: #{_lambda_.18} parent=5 // pred_fallthru
      _
    %p264 = scmp.le.s32.totalorder 1, %s15
    %p265 = scmp.lt.s32.totalorder %s15, 3
    %p266 = pnand %p264, %p265
    %p267 = pneg %p266
    // Predicated region
    $region45: #{_lambda_.18} parent=5 // pred_check
      _
    $region46: #{_lambda_.18} parent=5 // pred_check_branch
      %269 = sbr.rel (%p266) target = $region48
    $region47: #{_lambda_.18} parent=5 // pred_region
      %s270 = ssub.s32 %s15, 1
      %p271 = scmp.lt.s32.totalorder %s20, 1
      %s272 = scalar_select %p271, %s20, 1
      %s273 = smul.addr %s272, 6
      %s274 = smul.addr %s273, 4
      %s275 = scalar_lea.vmem %s0, %s274
      %p276 = pneg %p41
      %p277 = pneg %p38
      %p278 = pneg %p62
      %p279 = pneg %p59
      %p280 = pneg %p83
      %p281 = pneg %p80
      %p282 = pneg %p104
      %p283 = pneg %p101
      %p284 = pneg %p125
      %p285 = pneg %p122
      %p286 = pneg %p146
      %p287 = pneg %p143
      %p288 = pneg %p167
      %p289 = pneg %p164
      %p290 = pneg %p193
      %p291 = pneg %p190
      %p292 = scmp.lt.s32.totalorder %s20, 1
      %s293 = scalar_select %p292, %s20, 1
      %s294 = smul.addr %s293, 2
      %s295 = smul.addr %s294, 8
      %s296 = scalar_lea.vmem %s7, %s295
      %p297 = pneg %p219
      %p298 = pneg %p216
      %p299 = scmp.lt.s32.totalorder %s20, 1
      %s300 = scalar_select %p299, %s20, 1
      %s301 = smul.addr %s300, 2
      %s302 = smul.addr %s301, 8
      %s303 = scalar_lea.vmem %s8, %s302
      %p304 = scmp.lt.s32.totalorder %s20, 1
      %s305 = scalar_select %p304, %s20, 1
      %s306 = smul.addr %s305, 6
      %s307 = smul.addr %s306, 4
      %s308 = scalar_lea.vmem %s0, %s307
      %p309 = scmp.lt.s32.totalorder %s20, 1
      %s310 = scalar_select %p309, %s20, 1
      %s311 = smul.addr %s310, 2
      %s312 = smul.addr %s311, 8
      %s313 = scalar_lea.vmem %s7, %s312
      %p314 = scmp.lt.s32.totalorder %s20, 1
      %s315 = scalar_select %p314, %s20, 1
      %s316 = smul.addr %s315, 2
      %s317 = smul.addr %s316, 8
      %s318 = scalar_lea.vmem %s8, %s317
      %v320 = vld [vmem:[%s308] sm:$0x7]
      %v321 = vld [vmem:[%s308 + $0x4] sm:$0x7]
      %v322 = vld [vmem:[%s308 + $0x8] sm:$0x7]
      %v323 = vld [vmem:[%s308 + $0xc] sm:$0x7]
      %v324 = vld [vmem:[%s308 + $0x10] sm:$0x7]
      %v325 = vld [vmem:[%s308 + $0x14] sm:$0x7]
      %v330 = vunpack.c.l.b16 %v320
      %v331 = vunpack.c.l.b16 %v321
      %v332 = vunpack.c.l.b16 %v322
      %v333 = vunpack.c.l.b16 %v323
      %v334 = vpack.c.b16 %v330, %v330
      %v335 = vpack.c.b16 %v331, %v331
      %v336 = vpack.c.b16 %v332, %v332
      %v337 = vpack.c.b16 %v333, %v333
      %v339 = vshrl.u32 %v334, 16
      %v341 = vshll.u32 %v334, 16
      %v343 = vrot.slane %v341, 1
      %v344 = vor.u32 %v339, %v343
      %v346 = vshrl.u32 %v335, 16
      %v348 = vshll.u32 %v335, 16
      %v350 = vrot.slane %v348, 1
      %v351 = vor.u32 %v346, %v350
      %v353 = vshrl.u32 %v336, 16
      %v355 = vshll.u32 %v336, 16
      %v357 = vrot.slane %v355, 1
      %v358 = vor.u32 %v353, %v357
      %v360 = vshrl.u32 %v337, 16
      %v362 = vshll.u32 %v337, 16
      %v364 = vrot.slane %v362, 1
      %v365 = vor.u32 %v360, %v364
      %366 = vrot.lane.b32.xlu0 %v344, 64
      %v367 = vpop.permute.xlu0 %366
      %368 = vrot.lane.b32.xlu0 %v351, 64
      %v369 = vpop.permute.xlu0 %368
      %370 = vrot.lane.b32.xlu0 %v358, 64
      %v371 = vpop.permute.xlu0 %370
      %372 = vrot.lane.b32.xlu0 %v365, 64
      %v373 = vpop.permute.xlu0 %372
      %v374 = vrot.slane %v334, 1
      %v375 = vrot.slane %v335, 1
      %v376 = vrot.slane %v336, 1
      %v377 = vrot.slane %v337, 1
      %v379 = vunpack.c.l.b16 %v324
      %v380 = vpack.c.b16 %v379, %v379
      %381 = vrot.lane.b32.xlu0 %v335, 64
      %v382 = vpop.permute.xlu0 %381
      %383 = vrot.lane.b32.xlu0 %v336, 64
      %v384 = vpop.permute.xlu0 %383
      %385 = vrot.lane.b32.xlu0 %v337, 64
      %v386 = vpop.permute.xlu0 %385
      %387 = vrot.lane.b32.xlu0 %v380, 64
      %v388 = vpop.permute.xlu0 %387
      %v390 = vshrl.u32 %v380, 16
      %v392 = vshll.u32 %v380, 16
      %v394 = vrot.slane %v392, 1
      %v395 = vor.u32 %v390, %v394
      %v396 = vrot.slane %v380, 1
      %397 = vrot.lane.b32.xlu0 %v375, 64
      %v398 = vpop.permute.xlu0 %397
      %399 = vrot.lane.b32.xlu0 %v376, 64
      %v400 = vpop.permute.xlu0 %399
      %401 = vrot.lane.b32.xlu0 %v377, 64
      %v402 = vpop.permute.xlu0 %401
      %403 = vrot.lane.b32.xlu0 %v396, 64
      %v404 = vpop.permute.xlu0 %403
      %v406 = vunpack.c.l.b16 %v325
      %v407 = vpack.c.b16 %v406, %v406
      %v409 = vshrl.u32 %v407, 16
      %v411 = vshll.u32 %v407, 16
      %v413 = vrot.slane %v411, 1
      %v414 = vor.u32 %v409, %v413
      %415 = vrot.lane.b32.xlu0 %v395, 64
      %v416 = vpop.permute.xlu0 %415
      %417 = vrot.lane.b32.xlu0 %v414, 64
      %v418 = vpop.permute.xlu0 %417
      %v419 = vrot.slane %v407, 1
      %vm420 = vcmask 523264
      %v423 = vsel %vm420, %v320, %v367
      %v426 = vsel %vm420, %v321, %v369
      %v429 = vsel %vm420, %v322, %v371
      %v432 = vsel %vm420, %v323, %v373
      %v435 = vsel %vm420, %v374, %v382
      %v438 = vsel %vm420, %v375, %v384
      %v441 = vsel %vm420, %v376, %v386
      %v444 = vsel %vm420, %v377, %v388
      %v447 = vsel %vm420, %v351, %v398
      %v450 = vsel %vm420, %v358, %v400
      %v453 = vsel %vm420, %v365, %v402
      %v456 = vsel %vm420, %v395, %v404
      %v459 = vsel %vm420, %v324, %v416
      %v462 = vsel %vm420, %v325, %v418
      %v477 = vcombine.low %v423, %v435
      %v478 = vcombine.low %v447, %v429
      %v480 = vunpack.c.l.s4 1983009808
      %v481 = vunpack.c.0.s8 %v480
      %v482 = vlaneseq
      %v483 = vshrl.u32 %v482, 7
      %v484 = vsub.s32 %v481, %v483
      %v485 = vrot.slane %v477, %v484
      %v487 = vunpack.c.l.s4 1983009808
      %v488 = vunpack.c.0.s8 %v487
      %v489 = vlaneseq
      %v490 = vshrl.u32 %v489, 7
      %v491 = vsub.s32 %v488, %v490
      %v492 = vrot.slane %v478, %v491
      %v493 = vcombine.low %v485, %v492
      %v495 = vunpack.c.l.s4 1983009808
      %v496 = vunpack.c.0.s8 %v495
      %v497 = vlaneseq
      %v498 = vshrl.u32 %v497, 7
      %v499 = vsub.s32 %v496, %v498
      %v500 = vrot.slane %v376, %v499
      %v501 = vcombine.low %v426, %v438
      %v502 = vcombine.low %v450, %v432
      %v504 = vunpack.c.l.s4 1983009808
      %v505 = vunpack.c.0.s8 %v504
      %v506 = vlaneseq
      %v507 = vshrl.u32 %v506, 7
      %v508 = vsub.s32 %v505, %v507
      %v509 = vrot.slane %v501, %v508
      %v511 = vunpack.c.l.s4 1983009808
      %v512 = vunpack.c.0.s8 %v511
      %v513 = vlaneseq
      %v514 = vshrl.u32 %v513, 7
      %v515 = vsub.s32 %v512, %v514
      %v516 = vrot.slane %v502, %v515
      %v517 = vcombine.low %v509, %v516
      %v519 = vunpack.c.l.s4 1983009808
      %v520 = vunpack.c.0.s8 %v519
      %v521 = vlaneseq
      %v522 = vshrl.u32 %v521, 7
      %v523 = vsub.s32 %v520, %v522
      %v524 = vrot.slane %v377, %v523
      %v525 = vcombine.low %v429, %v441
      %v526 = vcombine.low %v453, %v459
      %v528 = vunpack.c.l.s4 1983009808
      %v529 = vunpack.c.0.s8 %v528
      %v530 = vlaneseq
      %v531 = vshrl.u32 %v530, 7
      %v532 = vsub.s32 %v529, %v531
      %v533 = vrot.slane %v525, %v532
      %v535 = vunpack.c.l.s4 1983009808
      %v536 = vunpack.c.0.s8 %v535
      %v537 = vlaneseq
      %v538 = vshrl.u32 %v537, 7
      %v539 = vsub.s32 %v536, %v538
      %v540 = vrot.slane %v526, %v539
      %v541 = vcombine.low %v533, %v540
      %v543 = vunpack.c.l.s4 1983009808
      %v544 = vunpack.c.0.s8 %v543
      %v545 = vlaneseq
      %v546 = vshrl.u32 %v545, 7
      %v547 = vsub.s32 %v544, %v546
      %v548 = vrot.slane %v396, %v547
      %v549 = vcombine.low %v432, %v444
      %v550 = vcombine.low %v456, %v462
      %v552 = vunpack.c.l.s4 1983009808
      %v553 = vunpack.c.0.s8 %v552
      %v554 = vlaneseq
      %v555 = vshrl.u32 %v554, 7
      %v556 = vsub.s32 %v553, %v555
      %v557 = vrot.slane %v549, %v556
      %v559 = vunpack.c.l.s4 1983009808
      %v560 = vunpack.c.0.s8 %v559
      %v561 = vlaneseq
      %v562 = vshrl.u32 %v561, 7
      %v563 = vsub.s32 %v560, %v562
      %v564 = vrot.slane %v550, %v563
      %v565 = vcombine.low %v557, %v564
      %v567 = vunpack.c.l.s4 1983009808
      %v568 = vunpack.c.0.s8 %v567
      %v569 = vlaneseq
      %v570 = vshrl.u32 %v569, 7
      %v571 = vsub.s32 %v568, %v570
      %v572 = vrot.slane %v419, %v571
      %v573 = vld [vmem:[%s1] sm:$0xf]
      %v574 = vld [vmem:[%s1 + $0x4] sm:$0xf]
      %v575 = vld [vmem:[%s1 + $0x8] sm:$0xf]
      %v576 = vld [vmem:[%s1 + $0xc] sm:$0xf]
      %v577 = vld [vmem:[%s1 + $0x10] sm:$0xf]
      %v578 = vld [vmem:[%s1 + $0x14] sm:$0xf]
      %v579 = vld [vmem:[%s1 + $0x18] sm:$0xf]
      %v580 = vld [vmem:[%s1 + $0x1c] sm:$0xf]
      %v581 = vld [vmem:[%s1 + $0x20] sm:$0xf]
      %v582 = vld [vmem:[%s1 + $0x24] sm:$0xf]
      %v583 = vld [vmem:[%s1 + $0x28] sm:$0xf]
      %v584 = vld [vmem:[%s1 + $0x2c] sm:$0xf]
      %v585 = vld [vmem:[%s1 + $0x30] sm:$0xf]
      %v586 = vld [vmem:[%s1 + $0x34] sm:$0xf]
      %v587 = vld [vmem:[%s1 + $0x38] sm:$0xf]
      %v588 = vld [vmem:[%s1 + $0x3c] sm:$0xf]
      %v589 = vld [vmem:[%s1 + $0x40] sm:$0xf]
      %v590 = vld [vmem:[%s1 + $0x44] sm:$0xf]
      %v591 = vld [vmem:[%s1 + $0x48] sm:$0xf]
      %v592 = vld [vmem:[%s1 + $0x4c] sm:$0xf]
      %v593 = vld [vmem:[%s1 + $0x50] sm:$0xf]
      %v594 = vld [vmem:[%s1 + $0x54] sm:$0xf]
      %v595 = vld [vmem:[%s1 + $0x58] sm:$0xf]
      %v596 = vld [vmem:[%s1 + $0x5c] sm:$0xf]
      %v597 = vld [vmem:[%s1 + $0x60] sm:$0xf]
      %v598 = vld [vmem:[%s1 + $0x64] sm:$0xf]
      %v599 = vld [vmem:[%s1 + $0x68] sm:$0xf]
      %v600 = vld [vmem:[%s1 + $0x6c] sm:$0xf]
      %v601 = vld [vmem:[%s1 + $0x70] sm:$0xf]
      %v602 = vld [vmem:[%s1 + $0x74] sm:$0xf]
      %v603 = vld [vmem:[%s1 + $0x78] sm:$0xf]
      %v604 = vld [vmem:[%s1 + $0x7c] sm:$0xf]
      %v605 = vld [vmem:[%s1 + $0x80] sm:$0xf]
      %v606 = vld [vmem:[%s1 + $0x84] sm:$0xf]
      %v607 = vld [vmem:[%s1 + $0x88] sm:$0xf]
      %v608 = vld [vmem:[%s1 + $0x8c] sm:$0xf]
      %v609 = vld [vmem:[%s1 + $0x90] sm:$0xf]
      %v610 = vld [vmem:[%s1 + $0x94] sm:$0xf]
      %v611 = vld [vmem:[%s1 + $0x98] sm:$0xf]
      %v612 = vld [vmem:[%s1 + $0x9c] sm:$0xf]
      %v613 = vld [vmem:[%s1 + $0xa0] sm:$0xf]
      %v614 = vld [vmem:[%s1 + $0xa4] sm:$0xf]
      %v615 = vld [vmem:[%s1 + $0xa8] sm:$0xf]
      %v616 = vld [vmem:[%s1 + $0xac] sm:$0xf]
      %v617 = vld [vmem:[%s1 + $0xb0] sm:$0xf]
      %v618 = vld [vmem:[%s1 + $0xb4] sm:$0xf]
      %v619 = vld [vmem:[%s1 + $0xb8] sm:$0xf]
      %v620 = vld [vmem:[%s1 + $0xbc] sm:$0xf]
      %v621 = vld [vmem:[%s1 + $0xc0] sm:$0xf]
      %v622 = vld [vmem:[%s1 + $0xc4] sm:$0xf]
      %v623 = vld [vmem:[%s1 + $0xc8] sm:$0xf]
      %v624 = vld [vmem:[%s1 + $0xcc] sm:$0xf]
      %v625 = vld [vmem:[%s1 + $0xd0] sm:$0xf]
      %v626 = vld [vmem:[%s1 + $0xd4] sm:$0xf]
      %v627 = vld [vmem:[%s1 + $0xd8] sm:$0xf]
      %v628 = vld [vmem:[%s1 + $0xdc] sm:$0xf]
      %v629 = vld [vmem:[%s1 + $0xe0] sm:$0xf]
      %v630 = vld [vmem:[%s1 + $0xe4] sm:$0xf]
      %v631 = vld [vmem:[%s1 + $0xe8] sm:$0xf]
      %v632 = vld [vmem:[%s1 + $0xec] sm:$0xf]
      %v633 = vld [vmem:[%s1 + $0xf0] sm:$0xf]
      %v634 = vld [vmem:[%s1 + $0xf4] sm:$0xf]
      %v635 = vld [vmem:[%s1 + $0xf8] sm:$0xf]
      %v636 = vld [vmem:[%s1 + $0xfc] sm:$0xf]
      %v637 = vld [vmem:[%s1 + $0x100] sm:$0xf]
      %v638 = vld [vmem:[%s1 + $0x104] sm:$0xf]
      %v639 = vld [vmem:[%s1 + $0x108] sm:$0xf]
      %v640 = vld [vmem:[%s1 + $0x10c] sm:$0xf]
      %v641 = vld [vmem:[%s1 + $0x110] sm:$0xf]
      %v642 = vld [vmem:[%s1 + $0x114] sm:$0xf]
      %v643 = vld [vmem:[%s1 + $0x118] sm:$0xf]
      %v644 = vld [vmem:[%s1 + $0x11c] sm:$0xf]
      %v645 = vcombine.low %v493, %v517
      %v646 = vcombine.high %v493, %v517
      %v647 = vcombine.low %v541, %v565
      %v648 = vcombine.high %v541, %v565
      %v650 = vunpack.c.l.s4 1983009808
      %v651 = vunpack.c.0.s8 %v650
      %v652 = vlaneseq
      %v653 = vshrl.u32 %v652, 7
      %v654 = vsub.s32 %v651, %v653
      %v655 = vrot.slane %v645, %v654
      %v657 = vunpack.c.l.s4 1983009808
      %v658 = vunpack.c.0.s8 %v657
      %v659 = vlaneseq
      %v660 = vshrl.u32 %v659, 7
      %v661 = vsub.s32 %v658, %v660
      %v662 = vrot.slane %v646, %v661
      %v664 = vunpack.c.l.s4 1983009808
      %v665 = vunpack.c.0.s8 %v664
      %v666 = vlaneseq
      %v667 = vshrl.u32 %v666, 7
      %v668 = vsub.s32 %v665, %v667
      %v669 = vrot.slane %v647, %v668
      %v671 = vunpack.c.l.s4 1983009808
      %v672 = vunpack.c.0.s8 %v671
      %v673 = vlaneseq
      %v674 = vshrl.u32 %v673, 7
      %v675 = vsub.s32 %v672, %v674
      %v676 = vrot.slane %v648, %v675
      %v677 = vcombine.low %v655, %v669
      %v678 = vcombine.high %v655, %v669
      %v679 = vcombine.low %v662, %v676
      %v680 = vcombine.high %v662, %v676
      %v681 = vcombine.low %v500, %v524
      %v682 = vcombine.low %v548, %v572
      %v684 = vunpack.c.l.s4 1983009808
      %v685 = vunpack.c.0.s8 %v684
      %v686 = vlaneseq
      %v687 = vshrl.u32 %v686, 7
      %v688 = vsub.s32 %v685, %v687
      %v689 = vrot.slane %v681, %v688
      %v691 = vunpack.c.l.s4 1983009808
      %v692 = vunpack.c.0.s8 %v691
      %v693 = vlaneseq
      %v694 = vshrl.u32 %v693, 7
      %v695 = vsub.s32 %v692, %v694
      %v696 = vrot.slane %v682, %v695
      %v697 = vcombine.low %v689, %v696
      %v774 = vunpack.c.l.b16 %v573
      %v775 = vunpack.c.l.b16 %v574
      %v776 = vunpack.c.l.b16 %v575
      %v777 = vunpack.c.l.b16 %v576
      %v778 = vunpack.c.l.b16 %v577
      %v779 = vunpack.c.l.b16 %v578
      %v780 = vunpack.c.l.b16 %v579
      %v781 = vunpack.c.l.b16 %v580
      %v782 = vunpack.c.l.b16 %v581
      %v783 = vunpack.c.l.b16 %v582
      %v784 = vunpack.c.l.b16 %v583
      %v785 = vunpack.c.l.b16 %v584
      %v786 = vunpack.c.l.b16 %v585
      %v787 = vunpack.c.l.b16 %v586
      %v788 = vunpack.c.l.b16 %v587
      %v789 = vunpack.c.l.b16 %v588
      %v790 = vunpack.c.l.b16 %v589
      %v791 = vunpack.c.l.b16 %v590
      %v792 = vunpack.c.l.b16 %v591
      %v793 = vunpack.c.l.b16 %v592
      %v794 = vunpack.c.l.b16 %v593
      %v795 = vunpack.c.l.b16 %v594
      %v796 = vunpack.c.l.b16 %v595
      %v797 = vunpack.c.l.b16 %v596
      %v798 = vunpack.c.l.b16 %v597
      %v799 = vunpack.c.l.b16 %v598
      %v800 = vunpack.c.l.b16 %v599
      %v801 = vunpack.c.l.b16 %v600
      %v802 = vunpack.c.l.b16 %v601
      %v803 = vunpack.c.l.b16 %v602
      %v804 = vunpack.c.l.b16 %v603
      %v805 = vunpack.c.l.b16 %v604
      %v806 = vunpack.c.l.b16 %v605
      %v807 = vunpack.c.l.b16 %v606
      %v808 = vunpack.c.l.b16 %v607
      %v809 = vunpack.c.l.b16 %v608
      %v810 = vunpack.c.l.b16 %v609
      %v811 = vunpack.c.l.b16 %v610
      %v812 = vunpack.c.l.b16 %v611
      %v813 = vunpack.c.l.b16 %v612
      %v814 = vunpack.c.l.b16 %v613
      %v815 = vunpack.c.l.b16 %v614
      %v816 = vunpack.c.l.b16 %v615
      %v817 = vunpack.c.l.b16 %v616
      %v818 = vunpack.c.l.b16 %v617
      %v819 = vunpack.c.l.b16 %v618
      %v820 = vunpack.c.l.b16 %v619
      %v821 = vunpack.c.l.b16 %v620
      %v822 = vunpack.c.l.b16 %v621
      %v823 = vunpack.c.l.b16 %v622
      %v824 = vunpack.c.l.b16 %v623
      %v825 = vunpack.c.l.b16 %v624
      %v826 = vunpack.c.l.b16 %v625
      %v827 = vunpack.c.l.b16 %v626
      %v828 = vunpack.c.l.b16 %v627
      %v829 = vunpack.c.l.b16 %v628
      %v830 = vunpack.c.l.b16 %v629
      %v831 = vunpack.c.l.b16 %v630
      %v832 = vunpack.c.l.b16 %v631
      %v833 = vunpack.c.l.b16 %v632
      %v834 = vunpack.c.l.b16 %v633
      %v835 = vunpack.c.l.b16 %v634
      %v836 = vunpack.c.l.b16 %v635
      %v837 = vunpack.c.l.b16 %v636
      %v838 = vunpack.c.l.b16 %v637
      %v839 = vunpack.c.l.b16 %v638
      %v840 = vunpack.c.l.b16 %v639
      %v841 = vunpack.c.l.b16 %v640
      %v842 = vunpack.c.l.b16 %v641
      %v843 = vunpack.c.l.b16 %v642
      %v844 = vunpack.c.l.b16 %v643
      %v845 = vunpack.c.l.b16 %v644
      %v846 = vpack.c.b16 %v775, %v774
      %v847 = vpack.c.b16 %v777, %v776
      %v848 = vpack.c.b16 %v779, %v778
      %v849 = vpack.c.b16 %v781, %v780
      %v850 = vpack.c.b16 %v783, %v782
      %v851 = vpack.c.b16 %v785, %v784
      %v852 = vpack.c.b16 %v787, %v786
      %v853 = vpack.c.b16 %v789, %v788
      %v854 = vpack.c.b16 %v791, %v790
      %v855 = vpack.c.b16 %v793, %v792
      %v856 = vpack.c.b16 %v795, %v794
      %v857 = vpack.c.b16 %v797, %v796
      %v858 = vpack.c.b16 %v799, %v798
      %v859 = vpack.c.b16 %v801, %v800
      %v860 = vpack.c.b16 %v803, %v802
      %v861 = vpack.c.b16 %v805, %v804
      %v862 = vpack.c.b16 %v807, %v806
      %v863 = vpack.c.b16 %v809, %v808
      %v864 = vpack.c.b16 %v811, %v810
      %v865 = vpack.c.b16 %v813, %v812
      %v866 = vpack.c.b16 %v815, %v814
      %v867 = vpack.c.b16 %v817, %v816
      %v868 = vpack.c.b16 %v819, %v818
      %v869 = vpack.c.b16 %v821, %v820
      %v870 = vpack.c.b16 %v823, %v822
      %v871 = vpack.c.b16 %v825, %v824
      %v872 = vpack.c.b16 %v827, %v826
      %v873 = vpack.c.b16 %v829, %v828
      %v874 = vpack.c.b16 %v831, %v830
      %v875 = vpack.c.b16 %v833, %v832
      %v876 = vpack.c.b16 %v835, %v834
      %v877 = vpack.c.b16 %v837, %v836
      %v878 = vpack.c.b16 %v839, %v838
      %v879 = vpack.c.b16 %v841, %v840
      %v880 = vpack.c.b16 %v843, %v842
      %v881 = vpack.c.b16 %v845, %v844
      %v919 = vsel %vm420, %v697, 0
      %921 = vmatprep.subr.bf16.mxu0 0
      %922 = vmatpush1.bf16.msra.mxu0 %v853
      %923 = vmatprep.subr.bf16.mxu0 0
      %924 = vmatpush1.bf16.msra.mxu0 %v852
      %925 = vmatprep.subr.bf16.mxu0 0
      %926 = vmatpush1.bf16.msra.mxu0 %v851
      %927 = vmatprep.subr.bf16.mxu0 0
      %928 = vmatpush1.bf16.msra.mxu0 %v850
      %929 = vmatprep.subr.bf16.mxu0 0
      %930 = vmatpush1.bf16.msra.mxu0 %v849
      %931 = vmatprep.subr.bf16.mxu0 0
      %932 = vmatpush1.bf16.msra.mxu0 %v848
      %933 = vmatprep.subr.bf16.mxu0 0
      %934 = vmatpush1.bf16.msra.mxu0 %v847
      %935 = vmatprep.subr.bf16.mxu0 0
      %936 = vmatpush1.bf16.msra.mxu0 %v846
      %937 = vmatprep.subr.bf16.mxu0 0
      %938 = vmatpush2.bf16.msra.mxu0 %v861
      %939 = vmatprep.subr.bf16.mxu0 0
      %940 = vmatpush2.bf16.msra.mxu0 %v860
      %941 = vmatprep.subr.bf16.mxu0 0
      %942 = vmatpush2.bf16.msra.mxu0 %v859
      %943 = vmatprep.subr.bf16.mxu0 0
      %944 = vmatpush2.bf16.msra.mxu0 %v858
      %945 = vmatprep.subr.bf16.mxu0 0
      %946 = vmatpush2.bf16.msra.mxu0 %v857
      %947 = vmatprep.subr.bf16.mxu0 0
      %948 = vmatpush2.bf16.msra.mxu0 %v856
      %949 = vmatprep.subr.bf16.mxu0 0
      %950 = vmatpush2.bf16.msra.mxu0 %v855
      %951 = vmatprep.subr.bf16.mxu0 0
      %952 = vmatpush2.bf16.msra.mxu0 %v854
      %953 = vmatprep.mubr.bf16.mxu0 %v678
      %954 = vmatmul.mubr.bf16.gmra.mxu0 %v677
      %v955 = vpop.f32.mrf.mxu0
      %v956 = vadd.f32 0.0, %v955
      %v957 = vpop.f32.mrf.mxu0
      %v958 = vpop.f32.mrf.mxu0
      %v959 = vadd.f32 0.0, %v958
      %v960 = vpop.f32.mrf.mxu0
      %961 = vdwg.mxu0
      %962 = vmatprep.subr.bf16.mxu0 0
      %963 = vmatpush1.bf16.msra.mxu0 %v869
      %964 = vmatprep.subr.bf16.mxu0 0
      %965 = vmatpush1.bf16.msra.mxu0 %v868
      %966 = vmatprep.subr.bf16.mxu0 0
      %967 = vmatpush1.bf16.msra.mxu0 %v867
      %968 = vmatprep.subr.bf16.mxu0 0
      %969 = vmatpush1.bf16.msra.mxu0 %v866
      %970 = vmatprep.subr.bf16.mxu0 0
      %971 = vmatpush1.bf16.msra.mxu0 %v865
      %972 = vmatprep.subr.bf16.mxu0 0
      %973 = vmatpush1.bf16.msra.mxu0 %v864
      %974 = vmatprep.subr.bf16.mxu0 0
      %975 = vmatpush1.bf16.msra.mxu0 %v863
      %976 = vmatprep.subr.bf16.mxu0 0
      %977 = vmatpush1.bf16.msra.mxu0 %v862
      %978 = vmatprep.subr.bf16.mxu0 0
      %979 = vmatpush2.bf16.msra.mxu0 %v877
      %980 = vmatprep.subr.bf16.mxu0 0
      %981 = vmatpush2.bf16.msra.mxu0 %v876
      %982 = vmatprep.subr.bf16.mxu0 0
      %983 = vmatpush2.bf16.msra.mxu0 %v875
      %984 = vmatprep.subr.bf16.mxu0 0
      %985 = vmatpush2.bf16.msra.mxu0 %v874
      %986 = vmatprep.subr.bf16.mxu0 0
      %987 = vmatpush2.bf16.msra.mxu0 %v873
      %988 = vmatprep.subr.bf16.mxu0 0
      %989 = vmatpush2.bf16.msra.mxu0 %v872
      %990 = vmatprep.subr.bf16.mxu0 0
      %991 = vmatpush2.bf16.msra.mxu0 %v871
      %992 = vmatprep.subr.bf16.mxu0 0
      %993 = vmatpush2.bf16.msra.mxu0 %v870
      %994 = vmatprep.mubr.bf16.mxu0 %v680
      %995 = vmatmul.mubr.bf16.gmra.mxu0 %v679
      %v996 = vpop.f32.mrf.mxu0
      %v997 = vadd.f32 %v956, %v996
      %v998 = vpop.f32.mrf.mxu0
      %v999 = vpop.f32.mrf.mxu0
      %v1000 = vadd.f32 %v959, %v999
      %v1001 = vpop.f32.mrf.mxu0
      %1002 = vdwg.mxu0
      %1003 = vmatprep.subr.bf16.mxu0 0
      %1004 = vmatpush1.bf16.msra.mxu0 0
      %1005 = vmatprep.subr.bf16.mxu0 0
      %1006 = vmatpush1.bf16.msra.mxu0 0
      %1007 = vmatprep.subr.bf16.mxu0 0
      %1008 = vmatpush1.bf16.msra.mxu0 0
      %1009 = vmatprep.subr.bf16.mxu0 0
      %1010 = vmatpush1.bf16.msra.mxu0 0
      %1011 = vmatprep.subr.bf16.mxu0 0
      %1012 = vmatpush1.bf16.msra.mxu0 %v881
      %1013 = vmatprep.subr.bf16.mxu0 0
      %1014 = vmatpush1.bf16.msra.mxu0 %v880
      %1015 = vmatprep.subr.bf16.mxu0 0
      %1016 = vmatpush1.bf16.msra.mxu0 %v879
      %1017 = vmatprep.subr.bf16.mxu0 0
      %1018 = vmatpush1.bf16.msra.mxu0 %v878
      %1019 = vmatprep.subr.bf16.mxu0 0
      %1020 = vmatpush2.bf16.msra.mxu0 0
      %1021 = vmatprep.subr.bf16.mxu0 0
      %1022 = vmatpush2.bf16.msra.mxu0 0
      %1023 = vmatprep.subr.bf16.mxu0 0
      %1024 = vmatpush2.bf16.msra.mxu0 0
      %1025 = vmatprep.subr.bf16.mxu0 0
      %1026 = vmatpush2.bf16.msra.mxu0 0
      %1027 = vmatprep.subr.bf16.mxu0 0
      %1028 = vmatpush2.bf16.msra.mxu0 0
      %1029 = vmatprep.subr.bf16.mxu0 0
      %1030 = vmatpush2.bf16.msra.mxu0 0
      %1031 = vmatprep.subr.bf16.mxu0 0
      %1032 = vmatpush2.bf16.msra.mxu0 0
      %1033 = vmatprep.subr.bf16.mxu0 0
      %1034 = vmatpush2.bf16.msra.mxu0 0
      %1035 = vmatprep.mubr.bf16.mxu0 0
      %1036 = vmatmul.mubr.bf16.gmra.mxu0 %v919
      %v1037 = vpop.f32.mrf.mxu0
      %v1038 = vadd.f32 %v997, %v1037
      %v1039 = vpop.f32.mrf.mxu0
      %v1040 = vpop.f32.mrf.mxu0
      %v1041 = vadd.f32 %v1000, %v1040
      %v1042 = vpop.f32.mrf.mxu0
      %1043 = vdwg.mxu0
      %v1044 = vld [vmem:[%s2] sm:$0x1]
      %v1046 = vlaneseq
      %v1047 = vshrl.u32 %v1046, 7
      %v1048 = vsub.s32 0, %v1047
      %v1049 = vrot.slane %v1044, %v1048
      %v1051 = vmul.f32 %v1038, %v1049
      %v1052 = vmul.f32 %v1041, %v1049
      %v1053 = vld [vmem:[%s3] sm:$0x1]
      %v1055 = vlaneseq
      %v1056 = vshrl.u32 %v1055, 7
      %v1057 = vsub.s32 0, %v1056
      %v1058 = vrot.slane %v1053, %v1057
      %v1060 = vadd.f32 %v1051, %v1058
      %v1061 = vadd.f32 %v1052, %v1058
      %vm1062 = vcmask 261120
      %1063 = vst.msk [vmem:[%s313] sm:$0xff] %vm1062, %v1060
      %1064 = vst.msk [vmem:[%s313 + $0x8] sm:$0xff] %vm1062, %v1061
      %v1066 = vunpack.c.l.s4 1983009808
      %v1067 = vunpack.c.0.s8 %v1066
      %v1068 = vlaneseq
      %v1069 = vshrl.u32 %v1068, 7
      %v1070 = vsub.s32 %v1067, %v1069
      %v1071 = vrot.slane %v321, %v1070
      %v1072 = vcombine.high %v1071, %v1071
      %v1074 = vunpack.c.l.s4 1983009808
      %v1075 = vunpack.c.0.s8 %v1074
      %v1076 = vlaneseq
      %v1077 = vshrl.u32 %v1076, 7
      %v1078 = vsub.s32 %v1075, %v1077
      %v1079 = vrot.slane %v322, %v1078
      %v1080 = vcombine.high %v1079, %v1079
      %v1082 = vunpack.c.l.s4 1983009808
      %v1083 = vunpack.c.0.s8 %v1082
      %v1084 = vlaneseq
      %v1085 = vshrl.u32 %v1084, 7
      %v1086 = vsub.s32 %v1083, %v1085
      %v1087 = vrot.slane %v323, %v1086
      %v1088 = vcombine.high %v1087, %v1087
      %v1090 = vunpack.c.l.s4 1983009808
      %v1091 = vunpack.c.0.s8 %v1090
      %v1092 = vlaneseq
      %v1093 = vshrl.u32 %v1092, 7
      %v1094 = vsub.s32 %v1091, %v1093
      %v1095 = vrot.slane %v324, %v1094
      %v1096 = vcombine.high %v1095, %v1095
      %vm1097 = vsmask.f32 1280
      %vm1098 = vsmask.f32 3336
      %vm1099 = vmor %vm1097, %vm1098
      %vm1100 = vsmask.f32 5392
      %vm1101 = vmor %vm1099, %vm1100
      %vm1102 = vsmask.f32 7448
      %vm1103 = vmor %vm1101, %vm1102
      %v1105 = vshrl.u32 %v1071, 16
      %v1107 = vrot.slane %v1105, 6
      %v1108 = vshll.u32 %v1071, 16
      %v1110 = vrot.slane %v1108, 7
      %v1111 = vor.u32 %v1107, %v1110
      %v1112 = vrot.slane %v1111, 2
      %v1114 = vshll.u32 %v1072, 16
      %v1116 = vrot.slane %v1114, 7
      %v1117 = vsel %vm1103, %v1112, %v1116
      %v1119 = vshrl.u32 %v1079, 16
      %v1121 = vrot.slane %v1119, 6
      %v1122 = vshll.u32 %v1079, 16
      %v1124 = vrot.slane %v1122, 7
      %v1125 = vor.u32 %v1121, %v1124
      %v1126 = vrot.slane %v1125, 2
      %v1128 = vshll.u32 %v1080, 16
      %v1130 = vrot.slane %v1128, 7
      %v1131 = vsel %vm1103, %v1126, %v1130
      %v1133 = vshrl.u32 %v1087, 16
      %v1135 = vrot.slane %v1133, 6
      %v1136 = vshll.u32 %v1087, 16
      %v1138 = vrot.slane %v1136, 7
      %v1139 = vor.u32 %v1135, %v1138
      %v1140 = vrot.slane %v1139, 2
      %v1142 = vshll.u32 %v1088, 16
      %v1144 = vrot.slane %v1142, 7
      %v1145 = vsel %vm1103, %v1140, %v1144
      %v1147 = vshrl.u32 %v1095, 16
      %v1149 = vrot.slane %v1147, 6
      %v1150 = vshll.u32 %v1095, 16
      %v1152 = vrot.slane %v1150, 7
      %v1153 = vor.u32 %v1149, %v1152
      %v1154 = vrot.slane %v1153, 2
      %v1156 = vshll.u32 %v1096, 16
      %v1158 = vrot.slane %v1156, 7
      %v1159 = vsel %vm1103, %v1154, %v1158
      %v1160 = vld [vmem:[%s4] sm:$0xf]
      %v1161 = vld [vmem:[%s4 + $0x4] sm:$0xf]
      %v1162 = vld [vmem:[%s4 + $0x8] sm:$0xf]
      %v1163 = vld [vmem:[%s4 + $0xc] sm:$0xf]
      %v1164 = vld [vmem:[%s4 + $0x10] sm:$0xf]
      %v1165 = vld [vmem:[%s4 + $0x14] sm:$0xf]
      %v1166 = vld [vmem:[%s4 + $0x18] sm:$0xf]
      %v1167 = vld [vmem:[%s4 + $0x1c] sm:$0xf]
      %v1168 = vcombine.low %v1117, %v1131
      %v1169 = vcombine.low %v1145, %v1159
      %v1171 = vunpack.c.l.s4 1983009808
      %v1172 = vunpack.c.0.s8 %v1171
      %v1173 = vlaneseq
      %v1174 = vshrl.u32 %v1173, 7
      %v1175 = vsub.s32 %v1172, %v1174
      %v1176 = vrot.slane %v1168, %v1175
      %v1178 = vunpack.c.l.s4 1983009808
      %v1179 = vunpack.c.0.s8 %v1178
      %v1180 = vlaneseq
      %v1181 = vshrl.u32 %v1180, 7
      %v1182 = vsub.s32 %v1179, %v1181
      %v1183 = vrot.slane %v1169, %v1182
      %v1184 = vcombine.low %v1176, %v1183
      %v1193 = vunpack.c.l.b16 %v1160
      %v1194 = vunpack.c.l.b16 %v1161
      %v1195 = vunpack.c.l.b16 %v1162
      %v1196 = vunpack.c.l.b16 %v1163
      %v1197 = vunpack.c.l.b16 %v1164
      %v1198 = vunpack.c.l.b16 %v1165
      %v1199 = vunpack.c.l.b16 %v1166
      %v1200 = vunpack.c.l.b16 %v1167
      %v1201 = vpack.c.b16 %v1194, %v1193
      %v1202 = vpack.c.b16 %v1196, %v1195
      %v1203 = vpack.c.b16 %v1198, %v1197
      %v1204 = vpack.c.b16 %v1200, %v1199
      %v1210 = vsel %vm420, %v1184, 0
      %1212 = vmatprep.subr.bf16.mxu0 0
      %1213 = vmatpush1.bf16.msra.mxu0 0
      %1214 = vmatprep.subr.bf16.mxu0 0
      %1215 = vmatpush1.bf16.msra.mxu0 0
      %1216 = vmatprep.subr.bf16.mxu0 0
      %1217 = vmatpush1.bf16.msra.mxu0 0
      %1218 = vmatprep.subr.bf16.mxu0 0
      %1219 = vmatpush1.bf16.msra.mxu0 0
      %1220 = vmatprep.subr.bf16.mxu0 0
      %1221 = vmatpush1.bf16.msra.mxu0 %v1204
      %1222 = vmatprep.subr.bf16.mxu0 0
      %1223 = vmatpush1.bf16.msra.mxu0 %v1203
      %1224 = vmatprep.subr.bf16.mxu0 0
      %1225 = vmatpush1.bf16.msra.mxu0 %v1202
      %1226 = vmatprep.subr.bf16.mxu0 0
      %1227 = vmatpush1.bf16.msra.mxu0 %v1201
      %1228 = vmatprep.subr.bf16.mxu0 0
      %1229 = vmatpush2.bf16.msra.mxu0 0
      %1230 = vmatprep.subr.bf16.mxu0 0
      %1231 = vmatpush2.bf16.msra.mxu0 0
      %1232 = vmatprep.subr.bf16.mxu0 0
      %1233 = vmatpush2.bf16.msra.mxu0 0
      %1234 = vmatprep.subr.bf16.mxu0 0
      %1235 = vmatpush2.bf16.msra.mxu0 0
      %1236 = vmatprep.subr.bf16.mxu0 0
      %1237 = vmatpush2.bf16.msra.mxu0 0
      %1238 = vmatprep.subr.bf16.mxu0 0
      %1239 = vmatpush2.bf16.msra.mxu0 0
      %1240 = vmatprep.subr.bf16.mxu0 0
      %1241 = vmatpush2.bf16.msra.mxu0 0
      %1242 = vmatprep.subr.bf16.mxu0 0
      %1243 = vmatpush2.bf16.msra.mxu0 0
      %1244 = vmatprep.mubr.bf16.mxu0 0
      %1245 = vmatmul.mubr.bf16.gmra.mxu0 %v1210
      %v1246 = vpop.f32.mrf.mxu0
      %v1247 = vadd.f32 0.0, %v1246
      %v1248 = vpop.f32.mrf.mxu0
      %v1249 = vpop.f32.mrf.mxu0
      %v1250 = vadd.f32 0.0, %v1249
      %v1251 = vpop.f32.mrf.mxu0
      %1252 = vdwg.mxu0
      %v1253 = vld [vmem:[%s5] sm:$0x1]
      %v1255 = vlaneseq
      %v1256 = vshrl.u32 %v1255, 7
      %v1257 = vsub.s32 0, %v1256
      %v1258 = vrot.slane %v1253, %v1257
      %v1260 = vmul.f32 %v1247, %v1258
      %v1261 = vmul.f32 %v1250, %v1258
      %v1262 = vld [vmem:[%s6] sm:$0x1]
      %v1264 = vlaneseq
      %v1265 = vshrl.u32 %v1264, 7
      %v1266 = vsub.s32 0, %v1265
      %v1267 = vrot.slane %v1262, %v1266
      %v1269 = vadd.f32 %v1260, %v1267
      %v1270 = vadd.f32 %v1261, %v1267
      %vm1271 = vcmask 130048
      %1272 = vst.msk [vmem:[%s318] sm:$0xff] %vm1271, %v1269
      %1273 = vst.msk [vmem:[%s318 + $0x8] sm:$0xff] %vm1271, %v1270
      %p1274 = scmp.lt.s32.totalorder %s20, 1
      %s1275 = scalar_select %p1274, %s20, 1
      %s1276 = smul.addr %s1275, 2
      %s1277 = smul.addr %s1276, 8
      %s1278 = scalar_lea.vmem %s7, %s1277
      %p1279 = scmp.lt.s32.totalorder %s20, 1
      %s1280 = scalar_select %p1279, %s20, 1
      %s1281 = smul.addr %s1280, 2
      %s1282 = smul.addr %s1281, 8
      %s1283 = scalar_lea.vmem %s8, %s1282
      // Predicated region
      $region49: #{_lambda_.18} parent=47 // pred_check
        %p1284 = pneg %p190
      $region50: #{_lambda_.18} parent=47 // pred_check_branch
        %1286 = sbr.rel (%p1284) target = $region52
      $region51: #{_lambda_.18} parent=47 // pred_region
        _
      $region52: #{_lambda_.18} parent=47 // pred_fallthru
        _
      // Predicated region
      $region53: #{_lambda_.18} parent=47 // pred_check
        %p1287 = pneg %p216
      $region54: #{_lambda_.18} parent=47 // pred_check_branch
        %1289 = sbr.rel (%p1287) target = $region56
      $region55: #{_lambda_.18} parent=47 // pred_region
        _
      $region56: #{_lambda_.18} parent=47 // pred_fallthru
        _
    $region48: #{_lambda_.18} parent=5 // pred_fallthru
      _
    %p1290 = scmp.le.s32.totalorder 2, %s15
    // Predicated region
    $region57: #{_lambda_.18} parent=5 // pred_check
      %p1291 = pneg %p1290
    $region58: #{_lambda_.18} parent=5 // pred_check_branch
      %1293 = sbr.rel (%p1291) target = $region60
    $region59: #{_lambda_.18} parent=5 // pred_region
      %s1294 = ssub.s32 %s15, 2
      // Predicated region
      $region61: #{_lambda_.18} parent=59 // pred_check
        %p1295 = pneg %p196
      $region62: #{_lambda_.18} parent=59 // pred_check_branch
        %1297 = sbr.rel (%p1295) target = $region64
      $region63: #{_lambda_.18} parent=59 // pred_region
        %p1298 = scmp.lt.s32.totalorder %s21, 1
        %s1299 = scalar_select %p1298, %s21, 1
        %s1300 = smul.addr %s1299, 2
        %s1301 = smul.addr %s1300, 8
        %s1302 = scalar_lea.vmem %s7, %s1301
      $region64: #{_lambda_.18} parent=59 // pred_fallthru
        _
      // Predicated region
      $region65: #{_lambda_.18} parent=59 // pred_check
        %p1303 = pneg %p222
      $region66: #{_lambda_.18} parent=59 // pred_check_branch
        %1305 = sbr.rel (%p1303) target = $region68
      $region67: #{_lambda_.18} parent=59 // pred_region
        %p1306 = scmp.lt.s32.totalorder %s21, 1
        %s1307 = scalar_select %p1306, %s21, 1
        %s1308 = smul.addr %s1307, 2
        %s1309 = smul.addr %s1308, 8
        %s1310 = scalar_lea.vmem %s8, %s1309
      $region68: #{_lambda_.18} parent=59 // pred_fallthru
        _
    $region60: #{_lambda_.18} parent=5 // pred_fallthru
      _
  $region6: #{_lambda_.18} parent=0 // loop_footer
    %s19 = sadd.s32 1, %s15
  $region7: #{_lambda_.18} parent=0 // loop_footer_branch
    %14 = sbr.rel target = $region3
  $region8: #{_lambda_.18} parent=0 // loop_exit
    _

// kernel: _lambda_.19
$region0: #{_lambda_.19}
  #allocation0 [shape = 'u32[]', space=smem, size = 0x4, offset = 0x4, fixed_abs, tag = 'smem constant byte address 0x4 - core index']
  #allocation1 [shape = 'u32[144,128]{1,0:T(1,128)}', space=vmem, size = 0x12000, scoped, tag = 'internal scratch']
  %s0 = inlined_call_operand.vmem [shape: bf16[2,3,3,256], index: 0, kind: input, shape index: {}]
  %s1 = inlined_call_operand.vmem [shape: bf16[1024,64], index: 1, kind: input, shape index: {}]
  %s2 = inlined_call_operand.vmem [shape: f32[1,64], index: 2, kind: input, shape index: {}]
  %s3 = inlined_call_operand.vmem [shape: f32[1,64], index: 3, kind: input, shape index: {}]
  %s4 = inlined_call_operand.vmem [shape: f32[2,4,64], index: 4, kind: output, shape index: {}]
  %s5 = sld [smem:[#allocation0]]
  $region49: #{_lambda_.19} parent=0
    _
  %s7 = ssub.s32 1, %s5
  %s8 = scalar_select 0, %s7, %s5
  loop: start=0, step=1, limit=4
  $region2: #{_lambda_.19} parent=0 // loop_pre_header
    _
  $region3: #{_lambda_.19} parent=0 // loop_header
    %s10 = sphi 0, %s14
    %p11 = scmp.ge.s32.totalorder %s10, 4
    %s20 = sphi 0, %s22
    %s23 = sphi 0, %s20
    %s24 = sphi 0, %s23
    %s40 = sphi 0, %s24
    %s44 = sphi 0, %s44
    %s46 = sphi 0, %s44
    %s47 = sphi 0, %s46
    %s61 = sphi 0, %s47
    %s65 = sphi 0, %s65
    %s67 = sphi 0, %s65
    %s68 = sphi 0, %s67
    %s82 = sphi 0, %s68
    %s86 = sphi 0, %s86
    %s88 = sphi 0, %s86
    %s89 = sphi 0, %s88
    %s103 = sphi 0, %s89
    %s109 = sphi 0, %s111
    %s112 = sphi 0, %s109
    %s113 = sphi 0, %s112
    %s129 = sphi 0, %s113
  $region4: #{_lambda_.19} parent=0 // loop_header_branch
    %13 = sbr.rel (%p11) target = $region8
  $region5: #{_lambda_.19} parent=0 // loop_body
    %s15 = ssub.s32 %s10, 1
    %s16 = ssub.s32 %s10, 2
    %s17 = sadd.s32 %s10, 1
    %s18 = ssub.s32 %s10, %s17
    %p19 = scmp.eq.s32.totalorder %s18, 0
    %s21 = sadd.s32 %s20, 1
    %s22 = scalar_select %p19, %s20, %s21
    %p25 = pneg %p19
    %p26 = scmp.eq.s32.totalorder %s10, 1
    %p27 = por %p25, %p26
    %p28 = scmp.ne.s32.totalorder %s20, %s23
    %p29 = scmp.eq.s32.totalorder %s10, 0
    %p30 = por %p28, %p29
    %p31 = scmp.ne.s32.totalorder %s20, %s23
    %p32 = scmp.eq.s32.totalorder %s15, 1
    %p33 = por %p31, %p32
    %p34 = scmp.ne.s32.totalorder %s23, %s24
    %p35 = scmp.eq.s32.totalorder %s15, 0
    %p36 = por %p34, %p35
    %p37 = scmp.ne.s32.totalorder %s23, %s24
    %p38 = scmp.eq.s32.totalorder %s16, 1
    %p39 = por %p37, %p38
    %p41 = scmp.ne.s32.totalorder %s24, %s40
    %p42 = scmp.eq.s32.totalorder %s16, 0
    %p43 = por %p41, %p42
    %s45 = sadd.s32 %s44, 1
    %p48 = scmp.eq.s32.totalorder %s10, 1
    %p49 = scmp.ne.s32.totalorder %s44, %s46
    %p50 = scmp.eq.s32.totalorder %s10, 0
    %p51 = por %p49, %p50
    %p52 = scmp.ne.s32.totalorder %s44, %s46
    %p53 = scmp.eq.s32.totalorder %s15, 1
    %p54 = por %p52, %p53
    %p55 = scmp.ne.s32.totalorder %s46, %s47
    %p56 = scmp.eq.s32.totalorder %s15, 0
    %p57 = por %p55, %p56
    %p58 = scmp.ne.s32.totalorder %s46, %s47
    %p59 = scmp.eq.s32.totalorder %s16, 1
    %p60 = por %p58, %p59
    %p62 = scmp.ne.s32.totalorder %s47, %s61
    %p63 = scmp.eq.s32.totalorder %s16, 0
    %p64 = por %p62, %p63
    %s66 = sadd.s32 %s65, 1
    %p69 = scmp.eq.s32.totalorder %s10, 1
    %p70 = scmp.ne.s32.totalorder %s65, %s67
    %p71 = scmp.eq.s32.totalorder %s10, 0
    %p72 = por %p70, %p71
    %p73 = scmp.ne.s32.totalorder %s65, %s67
    %p74 = scmp.eq.s32.totalorder %s15, 1
    %p75 = por %p73, %p74
    %p76 = scmp.ne.s32.totalorder %s67, %s68
    %p77 = scmp.eq.s32.totalorder %s15, 0
    %p78 = por %p76, %p77
    %p79 = scmp.ne.s32.totalorder %s67, %s68
    %p80 = scmp.eq.s32.totalorder %s16, 1
    %p81 = por %p79, %p80
    %p83 = scmp.ne.s32.totalorder %s68, %s82
    %p84 = scmp.eq.s32.totalorder %s16, 0
    %p85 = por %p83, %p84
    %s87 = sadd.s32 %s86, 1
    %p90 = scmp.eq.s32.totalorder %s10, 1
    %p91 = scmp.ne.s32.totalorder %s86, %s88
    %p92 = scmp.eq.s32.totalorder %s10, 0
    %p93 = por %p91, %p92
    %p94 = scmp.ne.s32.totalorder %s86, %s88
    %p95 = scmp.eq.s32.totalorder %s15, 1
    %p96 = por %p94, %p95
    %p97 = scmp.ne.s32.totalorder %s88, %s89
    %p98 = scmp.eq.s32.totalorder %s15, 0
    %p99 = por %p97, %p98
    %p100 = scmp.ne.s32.totalorder %s88, %s89
    %p101 = scmp.eq.s32.totalorder %s16, 1
    %p102 = por %p100, %p101
    %p104 = scmp.ne.s32.totalorder %s89, %s103
    %p105 = scmp.eq.s32.totalorder %s16, 0
    %p106 = por %p104, %p105
    %s107 = ssub.s32 %s10, %s17
    %p108 = scmp.eq.s32.totalorder %s107, 0
    %s110 = sadd.s32 %s109, 1
    %s111 = scalar_select %p108, %s109, %s110
    %p114 = pneg %p108
    %p115 = scmp.eq.s32.totalorder %s10, 1
    %p116 = por %p114, %p115
    %p117 = scmp.ne.s32.totalorder %s109, %s112
    %p118 = scmp.eq.s32.totalorder %s10, 0
    %p119 = por %p117, %p118
    %p120 = scmp.ne.s32.totalorder %s109, %s112
    %p121 = scmp.eq.s32.totalorder %s15, 1
    %p122 = por %p120, %p121
    %p123 = scmp.ne.s32.totalorder %s112, %s113
    %p124 = scmp.eq.s32.totalorder %s15, 0
    %p125 = por %p123, %p124
    %p126 = scmp.ne.s32.totalorder %s112, %s113
    %p127 = scmp.eq.s32.totalorder %s16, 1
    %p128 = por %p126, %p127
    %p130 = scmp.ne.s32.totalorder %s113, %s129
    %p131 = scmp.eq.s32.totalorder %s16, 0
    %p132 = por %p130, %p131
    %p133 = scmp.le.s32.totalorder 1, %s10
    %p134 = scmp.lt.s32.totalorder %s10, 3
    %p135 = pnand %p133, %p134
    %p136 = pneg %p135
    // Predicated region
    $region9: #{_lambda_.19} parent=5 // pred_check
      _
    $region10: #{_lambda_.19} parent=5 // pred_check_branch
      %138 = sbr.rel (%p135) target = $region12
    $region11: #{_lambda_.19} parent=5 // pred_region
      %s139 = ssub.s32 %s10, 1
      // Predicated region
      $region13: #{_lambda_.19} parent=11 // pred_check
        %p140 = pneg %p57
      $region14: #{_lambda_.19} parent=11 // pred_check_branch
        %142 = sbr.rel (%p140) target = $region16
      $region15: #{_lambda_.19} parent=11 // pred_region
        _
      $region16: #{_lambda_.19} parent=11 // pred_fallthru
        _
      // Predicated region
      $region17: #{_lambda_.19} parent=11 // pred_check
        %p143 = pneg %p78
      $region18: #{_lambda_.19} parent=11 // pred_check_branch
        %145 = sbr.rel (%p143) target = $region20
      $region19: #{_lambda_.19} parent=11 // pred_region
        _
      $region20: #{_lambda_.19} parent=11 // pred_fallthru
        _
      // Predicated region
      $region21: #{_lambda_.19} parent=11 // pred_check
        %p146 = pneg %p99
      $region22: #{_lambda_.19} parent=11 // pred_check_branch
        %148 = sbr.rel (%p146) target = $region24
      $region23: #{_lambda_.19} parent=11 // pred_region
        _
      $region24: #{_lambda_.19} parent=11 // pred_fallthru
        _
    $region12: #{_lambda_.19} parent=5 // pred_fallthru
      _
    %p149 = scmp.lt.s32.totalorder %s10, 2
    // Predicated region
    $region25: #{_lambda_.19} parent=5 // pred_check
      %p150 = pneg %p149
    $region26: #{_lambda_.19} parent=5 // pred_check_branch
      %152 = sbr.rel (%p150) target = $region28
    $region27: #{_lambda_.19} parent=5 // pred_region
      // Predicated region
      $region29: #{_lambda_.19} parent=27 // pred_check
        %p153 = pneg %p30
      $region30: #{_lambda_.19} parent=27 // pred_check_branch
        %155 = sbr.rel (%p153) target = $region32
      $region31: #{_lambda_.19} parent=27 // pred_region
        %p156 = scmp.lt.s32.totalorder %s10, 1
        %s157 = scalar_select %p156, %s10, 1
        %s158 = smul.addr %s157, 6
        %s159 = smul.addr %s158, 2
        %s160 = scalar_lea.vmem %s0, %s159
      $region32: #{_lambda_.19} parent=27 // pred_fallthru
        _
    $region28: #{_lambda_.19} parent=5 // pred_fallthru
      _
    %p161 = scmp.le.s32.totalorder 1, %s10
    %p162 = scmp.lt.s32.totalorder %s10, 3
    %p163 = pnand %p161, %p162
    %p164 = pneg %p163
    // Predicated region
    $region33: #{_lambda_.19} parent=5 // pred_check
      _
    $region34: #{_lambda_.19} parent=5 // pred_check_branch
      %166 = sbr.rel (%p163) target = $region36
    $region35: #{_lambda_.19} parent=5 // pred_region
      %s167 = ssub.s32 %s10, 1
      %p168 = scmp.lt.s32.totalorder %s15, 1
      %s169 = scalar_select %p168, %s15, 1
      %s170 = smul.addr %s169, 6
      %s171 = smul.addr %s170, 2
      %s172 = scalar_lea.vmem %s0, %s171
      %p173 = pneg %p36
      %p174 = pneg %p33
      %p175 = pneg %p57
      %p176 = pneg %p54
      %p177 = pneg %p78
      %p178 = pneg %p75
      %p179 = pneg %p99
      %p180 = pneg %p96
      %p181 = pneg %p125
      %p182 = pneg %p122
      %p183 = scmp.lt.s32.totalorder %s15, 1
      %s184 = scalar_select %p183, %s15, 1
      %s185 = smul.addr %s184, 4
      %s186 = scalar_lea.vmem %s4, %s185
      %p187 = scmp.lt.s32.totalorder %s15, 1
      %s188 = scalar_select %p187, %s15, 1
      %s189 = smul.addr %s188, 6
      %s190 = smul.addr %s189, 2
      %s191 = scalar_lea.vmem %s0, %s190
      %p192 = scmp.lt.s32.totalorder %s15, 1
      %s193 = scalar_select %p192, %s15, 1
      %s194 = smul.addr %s193, 4
      %s195 = scalar_lea.vmem %s4, %s194
      %v197 = vld [vmem:[%s191] sm:$0xf]
      %v198 = vld [vmem:[%s191 + $0x4] sm:$0xf]
      %v199 = vld [vmem:[%s191 + $0x8] sm:$0xf]
      %v203 = vunpack.c.l.s4 1983009808
      %v204 = vunpack.c.0.s8 %v203
      %v205 = vlaneseq
      %v206 = vshrl.u32 %v205, 7
      %v207 = vsub.s32 %v204, %v206
      %v208 = vrot.slane %v197, %v207
      %v209 = vcombine.high %v208, %v208
      %v211 = vunpack.c.l.s4 1983009808
      %v212 = vunpack.c.0.s8 %v211
      %v213 = vlaneseq
      %v214 = vshrl.u32 %v213, 7
      %v215 = vsub.s32 %v212, %v214
      %v216 = vrot.slane %v198, %v215
      %v217 = vcombine.high %v216, %v216
      %v219 = vshrl.u32 %v208, 16
      %v221 = vshll.u32 %v208, 16
      %v223 = vrot.slane %v221, 1
      %v224 = vor.u32 %v219, %v223
      %v226 = vshrl.u32 %v209, 16
      %v228 = vshll.u32 %v209, 16
      %v230 = vrot.slane %v228, 1
      %v231 = vor.u32 %v226, %v230
      %v233 = vshrl.u32 %v216, 16
      %v235 = vshll.u32 %v216, 16
      %v237 = vrot.slane %v235, 1
      %v238 = vor.u32 %v233, %v237
      %v240 = vshrl.u32 %v217, 16
      %v242 = vshll.u32 %v217, 16
      %v244 = vrot.slane %v242, 1
      %v245 = vor.u32 %v240, %v244
      %v248 = vunpack.c.l.s4 1983009808
      %v249 = vunpack.c.0.s8 %v248
      %v250 = vlaneseq
      %v251 = vshrl.u32 %v250, 7
      %v252 = vsub.s32 %v249, %v251
      %v253 = vrot.slane %v199, %v252
      %v254 = vcombine.high %v253, %v253
      %v256 = vshrl.u32 %v253, 16
      %v258 = vshll.u32 %v253, 16
      %v260 = vrot.slane %v258, 1
      %v261 = vor.u32 %v256, %v260
      %v263 = vshrl.u32 %v254, 16
      %v265 = vshll.u32 %v254, 16
      %v267 = vrot.slane %v265, 1
      %v268 = vor.u32 %v263, %v267
      %v269 = vcombine.low %v208, %v209
      %v270 = vcombine.low %v224, %v231
      %v271 = vcombine.low %v216, %v217
      %v272 = vcombine.low %v238, %v245
      %v274 = vunpack.c.l.s4 1966171168
      %v275 = vunpack.c.0.s8 %v274
      %v276 = vlaneseq
      %v277 = vshrl.u32 %v276, 7
      %v278 = vsub.s32 %v275, %v277
      %v279 = vrot.slane %v269, %v278
      %v281 = vunpack.c.l.s4 1966171168
      %v282 = vunpack.c.0.s8 %v281
      %v283 = vlaneseq
      %v284 = vshrl.u32 %v283, 7
      %v285 = vsub.s32 %v282, %v284
      %v286 = vrot.slane %v270, %v285
      %v288 = vunpack.c.l.s4 1966171168
      %v289 = vunpack.c.0.s8 %v288
      %v290 = vlaneseq
      %v291 = vshrl.u32 %v290, 7
      %v292 = vsub.s32 %v289, %v291
      %v293 = vrot.slane %v271, %v292
      %v295 = vunpack.c.l.s4 1966171168
      %v296 = vunpack.c.0.s8 %v295
      %v297 = vlaneseq
      %v298 = vshrl.u32 %v297, 7
      %v299 = vsub.s32 %v296, %v298
      %v300 = vrot.slane %v272, %v299
      %v301 = vcombine.low %v279, %v286
      %v302 = vcombine.low %v293, %v300
      %v304 = vunpack.c.l.s4 1966171168
      %v305 = vunpack.c.0.s8 %v304
      %v306 = vlaneseq
      %v307 = vshrl.u32 %v306, 7
      %v308 = vsub.s32 %v305, %v307
      %v309 = vrot.slane %v301, %v308
      %v311 = vunpack.c.l.s4 1966171168
      %v312 = vunpack.c.0.s8 %v311
      %v313 = vlaneseq
      %v314 = vshrl.u32 %v313, 7
      %v315 = vsub.s32 %v312, %v314
      %v316 = vrot.slane %v302, %v315
      %v317 = vcombine.low %v309, %v316
      %v318 = vcombine.low %v253, %v254
      %v319 = vcombine.low %v261, %v268
      %v321 = vunpack.c.l.s4 1966171168
      %v322 = vunpack.c.0.s8 %v321
      %v323 = vlaneseq
      %v324 = vshrl.u32 %v323, 7
      %v325 = vsub.s32 %v322, %v324
      %v326 = vrot.slane %v318, %v325
      %v328 = vunpack.c.l.s4 1966171168
      %v329 = vunpack.c.0.s8 %v328
      %v330 = vlaneseq
      %v331 = vshrl.u32 %v330, 7
      %v332 = vsub.s32 %v329, %v331
      %v333 = vrot.slane %v319, %v332
      %v334 = vcombine.low %v326, %v333
      %v336 = vunpack.c.l.s4 1966171168
      %v337 = vunpack.c.0.s8 %v336
      %v338 = vlaneseq
      %v339 = vshrl.u32 %v338, 7
      %v340 = vsub.s32 %v337, %v339
      %v341 = vrot.slane %v334, %v340
      %v342 = vcombine.low %v316, %v341
      %v343 = vld [vmem:[%s1] sm:$0xf]
      %v344 = vld [vmem:[%s1 + $0x4] sm:$0xf]
      %v345 = vld [vmem:[%s1 + $0x8] sm:$0xf]
      %v346 = vld [vmem:[%s1 + $0xc] sm:$0xf]
      %v347 = vld [vmem:[%s1 + $0x10] sm:$0xf]
      %v348 = vld [vmem:[%s1 + $0x14] sm:$0xf]
      %v349 = vld [vmem:[%s1 + $0x18] sm:$0xf]
      %v350 = vld [vmem:[%s1 + $0x1c] sm:$0xf]
      %v351 = vld [vmem:[%s1 + $0x20] sm:$0xf]
      %v352 = vld [vmem:[%s1 + $0x24] sm:$0xf]
      %v353 = vld [vmem:[%s1 + $0x28] sm:$0xf]
      %v354 = vld [vmem:[%s1 + $0x2c] sm:$0xf]
      %v355 = vld [vmem:[%s1 + $0x30] sm:$0xf]
      %v356 = vld [vmem:[%s1 + $0x34] sm:$0xf]
      %v357 = vld [vmem:[%s1 + $0x38] sm:$0xf]
      %v358 = vld [vmem:[%s1 + $0x3c] sm:$0xf]
      %v359 = vld [vmem:[%s1 + $0x40] sm:$0xf]
      %v360 = vld [vmem:[%s1 + $0x44] sm:$0xf]
      %v361 = vld [vmem:[%s1 + $0x48] sm:$0xf]
      %v362 = vld [vmem:[%s1 + $0x4c] sm:$0xf]
      %v363 = vld [vmem:[%s1 + $0x50] sm:$0xf]
      %v364 = vld [vmem:[%s1 + $0x54] sm:$0xf]
      %v365 = vld [vmem:[%s1 + $0x58] sm:$0xf]
      %v366 = vld [vmem:[%s1 + $0x5c] sm:$0xf]
      %v367 = vld [vmem:[%s1 + $0x60] sm:$0xf]
      %v368 = vld [vmem:[%s1 + $0x64] sm:$0xf]
      %v369 = vld [vmem:[%s1 + $0x68] sm:$0xf]
      %v370 = vld [vmem:[%s1 + $0x6c] sm:$0xf]
      %v371 = vld [vmem:[%s1 + $0x70] sm:$0xf]
      %v372 = vld [vmem:[%s1 + $0x74] sm:$0xf]
      %v373 = vld [vmem:[%s1 + $0x78] sm:$0xf]
      %v374 = vld [vmem:[%s1 + $0x7c] sm:$0xf]
      %v375 = vld [vmem:[%s1 + $0x80] sm:$0xf]
      %v376 = vld [vmem:[%s1 + $0x84] sm:$0xf]
      %v377 = vld [vmem:[%s1 + $0x88] sm:$0xf]
      %v378 = vld [vmem:[%s1 + $0x8c] sm:$0xf]
      %v379 = vld [vmem:[%s1 + $0x90] sm:$0xf]
      %v380 = vld [vmem:[%s1 + $0x94] sm:$0xf]
      %v381 = vld [vmem:[%s1 + $0x98] sm:$0xf]
      %v382 = vld [vmem:[%s1 + $0x9c] sm:$0xf]
      %v383 = vld [vmem:[%s1 + $0xa0] sm:$0xf]
      %v384 = vld [vmem:[%s1 + $0xa4] sm:$0xf]
      %v385 = vld [vmem:[%s1 + $0xa8] sm:$0xf]
      %v386 = vld [vmem:[%s1 + $0xac] sm:$0xf]
      %v387 = vld [vmem:[%s1 + $0xb0] sm:$0xf]
      %v388 = vld [vmem:[%s1 + $0xb4] sm:$0xf]
      %v389 = vld [vmem:[%s1 + $0xb8] sm:$0xf]
      %v390 = vld [vmem:[%s1 + $0xbc] sm:$0xf]
      %v391 = vld [vmem:[%s1 + $0xc0] sm:$0xf]
      %v392 = vld [vmem:[%s1 + $0xc4] sm:$0xf]
      %v393 = vld [vmem:[%s1 + $0xc8] sm:$0xf]
      %v394 = vld [vmem:[%s1 + $0xcc] sm:$0xf]
      %v395 = vld [vmem:[%s1 + $0xd0] sm:$0xf]
      %v396 = vld [vmem:[%s1 + $0xd4] sm:$0xf]
      %v397 = vld [vmem:[%s1 + $0xd8] sm:$0xf]
      %v398 = vld [vmem:[%s1 + $0xdc] sm:$0xf]
      %v399 = vld [vmem:[%s1 + $0xe0] sm:$0xf]
      %v400 = vld [vmem:[%s1 + $0xe4] sm:$0xf]
      %v401 = vld [vmem:[%s1 + $0xe8] sm:$0xf]
      %v402 = vld [vmem:[%s1 + $0xec] sm:$0xf]
      %v403 = vld [vmem:[%s1 + $0xf0] sm:$0xf]
      %v404 = vld [vmem:[%s1 + $0xf4] sm:$0xf]
      %v405 = vld [vmem:[%s1 + $0xf8] sm:$0xf]
      %v406 = vld [vmem:[%s1 + $0xfc] sm:$0xf]
      %v407 = vld [vmem:[%s1 + $0x100] sm:$0xf]
      %v408 = vld [vmem:[%s1 + $0x104] sm:$0xf]
      %v409 = vld [vmem:[%s1 + $0x108] sm:$0xf]
      %v410 = vld [vmem:[%s1 + $0x10c] sm:$0xf]
      %v411 = vld [vmem:[%s1 + $0x110] sm:$0xf]
      %v412 = vld [vmem:[%s1 + $0x114] sm:$0xf]
      %v413 = vld [vmem:[%s1 + $0x118] sm:$0xf]
      %v414 = vld [vmem:[%s1 + $0x11c] sm:$0xf]
      %v415 = vld [vmem:[%s1 + $0x120] sm:$0xf]
      %v416 = vld [vmem:[%s1 + $0x124] sm:$0xf]
      %v417 = vld [vmem:[%s1 + $0x128] sm:$0xf]
      %v418 = vld [vmem:[%s1 + $0x12c] sm:$0xf]
      %v419 = vld [vmem:[%s1 + $0x130] sm:$0xf]
      %v420 = vld [vmem:[%s1 + $0x134] sm:$0xf]
      %v421 = vld [vmem:[%s1 + $0x138] sm:$0xf]
      %v422 = vld [vmem:[%s1 + $0x13c] sm:$0xf]
      %v423 = vld [vmem:[%s1 + $0x140] sm:$0xf]
      %v424 = vld [vmem:[%s1 + $0x144] sm:$0xf]
      %v425 = vld [vmem:[%s1 + $0x148] sm:$0xf]
      %v426 = vld [vmem:[%s1 + $0x14c] sm:$0xf]
      %v427 = vld [vmem:[%s1 + $0x150] sm:$0xf]
      %v428 = vld [vmem:[%s1 + $0x154] sm:$0xf]
      %v429 = vld [vmem:[%s1 + $0x158] sm:$0xf]
      %v430 = vld [vmem:[%s1 + $0x15c] sm:$0xf]
      %v431 = vld [vmem:[%s1 + $0x160] sm:$0xf]
      %v432 = vld [vmem:[%s1 + $0x164] sm:$0xf]
      %v433 = vld [vmem:[%s1 + $0x168] sm:$0xf]
      %v434 = vld [vmem:[%s1 + $0x16c] sm:$0xf]
      %v435 = vld [vmem:[%s1 + $0x170] sm:$0xf]
      %v436 = vld [vmem:[%s1 + $0x174] sm:$0xf]
      %v437 = vld [vmem:[%s1 + $0x178] sm:$0xf]
      %v438 = vld [vmem:[%s1 + $0x17c] sm:$0xf]
      %v439 = vld [vmem:[%s1 + $0x180] sm:$0xf]
      %v440 = vld [vmem:[%s1 + $0x184] sm:$0xf]
      %v441 = vld [vmem:[%s1 + $0x188] sm:$0xf]
      %v442 = vld [vmem:[%s1 + $0x18c] sm:$0xf]
      %v443 = vld [vmem:[%s1 + $0x190] sm:$0xf]
      %v444 = vld [vmem:[%s1 + $0x194] sm:$0xf]
      %v445 = vld [vmem:[%s1 + $0x198] sm:$0xf]
      %v446 = vld [vmem:[%s1 + $0x19c] sm:$0xf]
      %v447 = vld [vmem:[%s1 + $0x1a0] sm:$0xf]
      %v448 = vld [vmem:[%s1 + $0x1a4] sm:$0xf]
      %v449 = vld [vmem:[%s1 + $0x1a8] sm:$0xf]
      %v450 = vld [vmem:[%s1 + $0x1ac] sm:$0xf]
      %v451 = vld [vmem:[%s1 + $0x1b0] sm:$0xf]
      %v452 = vld [vmem:[%s1 + $0x1b4] sm:$0xf]
      %v453 = vld [vmem:[%s1 + $0x1b8] sm:$0xf]
      %v454 = vld [vmem:[%s1 + $0x1bc] sm:$0xf]
      %v455 = vld [vmem:[%s1 + $0x1c0] sm:$0xf]
      %v456 = vld [vmem:[%s1 + $0x1c4] sm:$0xf]
      %v457 = vld [vmem:[%s1 + $0x1c8] sm:$0xf]
      %v458 = vld [vmem:[%s1 + $0x1cc] sm:$0xf]
      %v459 = vld [vmem:[%s1 + $0x1d0] sm:$0xf]
      %v460 = vld [vmem:[%s1 + $0x1d4] sm:$0xf]
      %v461 = vld [vmem:[%s1 + $0x1d8] sm:$0xf]
      %v462 = vld [vmem:[%s1 + $0x1dc] sm:$0xf]
      %v463 = vld [vmem:[%s1 + $0x1e0] sm:$0xf]
      %v464 = vld [vmem:[%s1 + $0x1e4] sm:$0xf]
      %v465 = vld [vmem:[%s1 + $0x1e8] sm:$0xf]
      %v466 = vld [vmem:[%s1 + $0x1ec] sm:$0xf]
      %v467 = vld [vmem:[%s1 + $0x1f0] sm:$0xf]
      %v468 = vld [vmem:[%s1 + $0x1f4] sm:$0xf]
      %v469 = vld [vmem:[%s1 + $0x1f8] sm:$0xf]
      %v470 = vld [vmem:[%s1 + $0x1fc] sm:$0xf]
      %v471 = vcombine.low %v317, %v342
      %v472 = vcombine.high %v317, %v342
      %v474 = vunpack.c.l.s4 1966171168
      %v475 = vunpack.c.0.s8 %v474
      %v476 = vlaneseq
      %v477 = vshrl.u32 %v476, 7
      %v478 = vsub.s32 %v475, %v477
      %v479 = vrot.slane %v471, %v478
      %v481 = vunpack.c.l.s4 1966171168
      %v482 = vunpack.c.0.s8 %v481
      %v483 = vlaneseq
      %v484 = vshrl.u32 %v483, 7
      %v485 = vsub.s32 %v482, %v484
      %v486 = vrot.slane %v472, %v485
      %v487 = vcombine.high %v479, %v479
      %v488 = vcombine.high %v486, %v486
      %v490 = vunpack.c.l.s4 1966171168
      %v491 = vunpack.c.0.s8 %v490
      %v492 = vlaneseq
      %v493 = vshrl.u32 %v492, 7
      %v494 = vsub.s32 %v491, %v493
      %v495 = vrot.slane %v479, %v494
      %v497 = vunpack.c.l.s4 1966171168
      %v498 = vunpack.c.0.s8 %v497
      %v499 = vlaneseq
      %v500 = vshrl.u32 %v499, 7
      %v501 = vsub.s32 %v498, %v500
      %v502 = vrot.slane %v486, %v501
      %v504 = vunpack.c.l.s4 1966171168
      %v505 = vunpack.c.0.s8 %v504
      %v506 = vlaneseq
      %v507 = vshrl.u32 %v506, 7
      %v508 = vsub.s32 %v505, %v507
      %v509 = vrot.slane %v487, %v508
      %v511 = vunpack.c.l.s4 1966171168
      %v512 = vunpack.c.0.s8 %v511
      %v513 = vlaneseq
      %v514 = vshrl.u32 %v513, 7
      %v515 = vsub.s32 %v512, %v514
      %v516 = vrot.slane %v488, %v515
      %v517 = vcombine.high %v495, %v495
      %v518 = vcombine.high %v502, %v502
      %v519 = vcombine.high %v509, %v509
      %v520 = vcombine.high %v516, %v516
      %v657 = vunpack.c.l.b16 %v343
      %v658 = vunpack.c.l.b16 %v344
      %v659 = vunpack.c.l.b16 %v345
      %v660 = vunpack.c.l.b16 %v346
      %v661 = vunpack.c.l.b16 %v347
      %v662 = vunpack.c.l.b16 %v348
      %v663 = vunpack.c.l.b16 %v349
      %v664 = vunpack.c.l.b16 %v350
      %v665 = vunpack.c.l.b16 %v351
      %v666 = vunpack.c.l.b16 %v352
      %v667 = vunpack.c.l.b16 %v353
      %v668 = vunpack.c.l.b16 %v354
      %v669 = vunpack.c.l.b16 %v355
      %v670 = vunpack.c.l.b16 %v356
      %v671 = vunpack.c.l.b16 %v357
      %v672 = vunpack.c.l.b16 %v358
      %v673 = vunpack.c.l.b16 %v359
      %v674 = vunpack.c.l.b16 %v360
      %v675 = vunpack.c.l.b16 %v361
      %v676 = vunpack.c.l.b16 %v362
      %v677 = vunpack.c.l.b16 %v363
      %v678 = vunpack.c.l.b16 %v364
      %v679 = vunpack.c.l.b16 %v365
      %v680 = vunpack.c.l.b16 %v366
      %v681 = vunpack.c.l.b16 %v367
      %v682 = vunpack.c.l.b16 %v368
      %v683 = vunpack.c.l.b16 %v369
      %v684 = vunpack.c.l.b16 %v370
      %v685 = vunpack.c.l.b16 %v371
      %v686 = vunpack.c.l.b16 %v372
      %v687 = vunpack.c.l.b16 %v373
      %v688 = vunpack.c.l.b16 %v374
      %v689 = vunpack.c.l.b16 %v375
      %v690 = vunpack.c.l.b16 %v376
      %v691 = vunpack.c.l.b16 %v377
      %v692 = vunpack.c.l.b16 %v378
      %v693 = vunpack.c.l.b16 %v379
      %v694 = vunpack.c.l.b16 %v380
      %v695 = vunpack.c.l.b16 %v381
      %v696 = vunpack.c.l.b16 %v382
      %v697 = vunpack.c.l.b16 %v383
      %v698 = vunpack.c.l.b16 %v384
      %v699 = vunpack.c.l.b16 %v385
      %v700 = vunpack.c.l.b16 %v386
      %v701 = vunpack.c.l.b16 %v387
      %v702 = vunpack.c.l.b16 %v388
      %v703 = vunpack.c.l.b16 %v389
      %v704 = vunpack.c.l.b16 %v390
      %v705 = vunpack.c.l.b16 %v391
      %v706 = vunpack.c.l.b16 %v392
      %v707 = vunpack.c.l.b16 %v393
      %v708 = vunpack.c.l.b16 %v394
      %v709 = vunpack.c.l.b16 %v395
      %v710 = vunpack.c.l.b16 %v396
      %v711 = vunpack.c.l.b16 %v397
      %v712 = vunpack.c.l.b16 %v398
      %v713 = vunpack.c.l.b16 %v399
      %v714 = vunpack.c.l.b16 %v400
      %v715 = vunpack.c.l.b16 %v401
      %v716 = vunpack.c.l.b16 %v402
      %v717 = vunpack.c.l.b16 %v403
      %v718 = vunpack.c.l.b16 %v404
      %v719 = vunpack.c.l.b16 %v405
      %v720 = vunpack.c.l.b16 %v406
      %v721 = vunpack.c.l.b16 %v407
      %v722 = vunpack.c.l.b16 %v408
      %v723 = vunpack.c.l.b16 %v409
      %v724 = vunpack.c.l.b16 %v410
      %v725 = vunpack.c.l.b16 %v411
      %v726 = vunpack.c.l.b16 %v412
      %v727 = vunpack.c.l.b16 %v413
      %v728 = vunpack.c.l.b16 %v414
      %v729 = vunpack.c.l.b16 %v415
      %v730 = vunpack.c.l.b16 %v416
      %v731 = vunpack.c.l.b16 %v417
      %v732 = vunpack.c.l.b16 %v418
      %v733 = vunpack.c.l.b16 %v419
      %v734 = vunpack.c.l.b16 %v420
      %v735 = vunpack.c.l.b16 %v421
      %v736 = vunpack.c.l.b16 %v422
      %v737 = vunpack.c.l.b16 %v423
      %v738 = vunpack.c.l.b16 %v424
      %v739 = vunpack.c.l.b16 %v425
      %v740 = vunpack.c.l.b16 %v426
      %v741 = vunpack.c.l.b16 %v427
      %v742 = vunpack.c.l.b16 %v428
      %v743 = vunpack.c.l.b16 %v429
      %v744 = vunpack.c.l.b16 %v430
      %v745 = vunpack.c.l.b16 %v431
      %v746 = vunpack.c.l.b16 %v432
      %v747 = vunpack.c.l.b16 %v433
      %v748 = vunpack.c.l.b16 %v434
      %v749 = vunpack.c.l.b16 %v435
      %v750 = vunpack.c.l.b16 %v436
      %v751 = vunpack.c.l.b16 %v437
      %v752 = vunpack.c.l.b16 %v438
      %v753 = vunpack.c.l.b16 %v439
      %v754 = vunpack.c.l.b16 %v440
      %v755 = vunpack.c.l.b16 %v441
      %v756 = vunpack.c.l.b16 %v442
      %v757 = vunpack.c.l.b16 %v443
      %v758 = vunpack.c.l.b16 %v444
      %v759 = vunpack.c.l.b16 %v445
      %v760 = vunpack.c.l.b16 %v446
      %v761 = vunpack.c.l.b16 %v447
      %v762 = vunpack.c.l.b16 %v448
      %v763 = vunpack.c.l.b16 %v449
      %v764 = vunpack.c.l.b16 %v450
      %v765 = vunpack.c.l.b16 %v451
      %v766 = vunpack.c.l.b16 %v452
      %v767 = vunpack.c.l.b16 %v453
      %v768 = vunpack.c.l.b16 %v454
      %v769 = vunpack.c.l.b16 %v455
      %v770 = vunpack.c.l.b16 %v456
      %v771 = vunpack.c.l.b16 %v457
      %v772 = vunpack.c.l.b16 %v458
      %v773 = vunpack.c.l.b16 %v459
      %v774 = vunpack.c.l.b16 %v460
      %v775 = vunpack.c.l.b16 %v461
      %v776 = vunpack.c.l.b16 %v462
      %v777 = vunpack.c.l.b16 %v463
      %v778 = vunpack.c.l.b16 %v464
      %v779 = vunpack.c.l.b16 %v465
      %v780 = vunpack.c.l.b16 %v466
      %v781 = vunpack.c.l.b16 %v467
      %v782 = vunpack.c.l.b16 %v468
      %v783 = vunpack.c.l.b16 %v469
      %v784 = vunpack.c.l.b16 %v470
      %v785 = vpack.c.b16 %v658, %v657
      %v786 = vpack.c.b16 %v660, %v659
      %v787 = vpack.c.b16 %v662, %v661
      %v788 = vpack.c.b16 %v664, %v663
      %v789 = vpack.c.b16 %v666, %v665
      %v790 = vpack.c.b16 %v668, %v667
      %v791 = vpack.c.b16 %v670, %v669
      %v792 = vpack.c.b16 %v672, %v671
      %v793 = vpack.c.b16 %v674, %v673
      %v794 = vpack.c.b16 %v676, %v675
      %v795 = vpack.c.b16 %v678, %v677
      %v796 = vpack.c.b16 %v680, %v679
      %v797 = vpack.c.b16 %v682, %v681
      %v798 = vpack.c.b16 %v684, %v683
      %v799 = vpack.c.b16 %v686, %v685
      %v800 = vpack.c.b16 %v688, %v687
      %v801 = vpack.c.b16 %v690, %v689
      %v802 = vpack.c.b16 %v692, %v691
      %v803 = vpack.c.b16 %v694, %v693
      %v804 = vpack.c.b16 %v696, %v695
      %v805 = vpack.c.b16 %v698, %v697
      %v806 = vpack.c.b16 %v700, %v699
      %v807 = vpack.c.b16 %v702, %v701
      %v808 = vpack.c.b16 %v704, %v703
      %v809 = vpack.c.b16 %v706, %v705
      %v810 = vpack.c.b16 %v708, %v707
      %v811 = vpack.c.b16 %v710, %v709
      %v812 = vpack.c.b16 %v712, %v711
      %v813 = vpack.c.b16 %v714, %v713
      %v814 = vpack.c.b16 %v716, %v715
      %v815 = vpack.c.b16 %v718, %v717
      %v816 = vpack.c.b16 %v720, %v719
      %v817 = vpack.c.b16 %v722, %v721
      %v818 = vpack.c.b16 %v724, %v723
      %v819 = vpack.c.b16 %v726, %v725
      %v820 = vpack.c.b16 %v728, %v727
      %v821 = vpack.c.b16 %v730, %v729
      %v822 = vpack.c.b16 %v732, %v731
      %v823 = vpack.c.b16 %v734, %v733
      %v824 = vpack.c.b16 %v736, %v735
      %v825 = vpack.c.b16 %v738, %v737
      %v826 = vpack.c.b16 %v740, %v739
      %v827 = vpack.c.b16 %v742, %v741
      %v828 = vpack.c.b16 %v744, %v743
      %v829 = vpack.c.b16 %v746, %v745
      %v830 = vpack.c.b16 %v748, %v747
      %v831 = vpack.c.b16 %v750, %v749
      %v832 = vpack.c.b16 %v752, %v751
      %v833 = vpack.c.b16 %v754, %v753
      %v834 = vpack.c.b16 %v756, %v755
      %v835 = vpack.c.b16 %v758, %v757
      %v836 = vpack.c.b16 %v760, %v759
      %v837 = vpack.c.b16 %v762, %v761
      %v838 = vpack.c.b16 %v764, %v763
      %v839 = vpack.c.b16 %v766, %v765
      %v840 = vpack.c.b16 %v768, %v767
      %v841 = vpack.c.b16 %v770, %v769
      %v842 = vpack.c.b16 %v772, %v771
      %v843 = vpack.c.b16 %v774, %v773
      %v844 = vpack.c.b16 %v776, %v775
      %v845 = vpack.c.b16 %v778, %v777
      %v846 = vpack.c.b16 %v780, %v779
      %v847 = vpack.c.b16 %v782, %v781
      %v848 = vpack.c.b16 %v784, %v783
      %913 = vmatprep.subr.bf16.mxu0 0
      %914 = vmatpush1.bf16.msra.mxu0 %v792
      %915 = vmatprep.subr.bf16.mxu0 0
      %916 = vmatpush1.bf16.msra.mxu0 %v791
      %917 = vmatprep.subr.bf16.mxu0 0
      %918 = vmatpush1.bf16.msra.mxu0 %v790
      %919 = vmatprep.subr.bf16.mxu0 0
      %920 = vmatpush1.bf16.msra.mxu0 %v789
      %921 = vmatprep.subr.bf16.mxu0 0
      %922 = vmatpush1.bf16.msra.mxu0 %v788
      %923 = vmatprep.subr.bf16.mxu0 0
      %924 = vmatpush1.bf16.msra.mxu0 %v787
      %925 = vmatprep.subr.bf16.mxu0 0
      %926 = vmatpush1.bf16.msra.mxu0 %v786
      %927 = vmatprep.subr.bf16.mxu0 0
      %928 = vmatpush1.bf16.msra.mxu0 %v785
      %929 = vmatprep.subr.bf16.mxu0 0
      %930 = vmatpush2.bf16.msra.mxu0 %v800
      %931 = vmatprep.subr.bf16.mxu0 0
      %932 = vmatpush2.bf16.msra.mxu0 %v799
      %933 = vmatprep.subr.bf16.mxu0 0
      %934 = vmatpush2.bf16.msra.mxu0 %v798
      %935 = vmatprep.subr.bf16.mxu0 0
      %936 = vmatpush2.bf16.msra.mxu0 %v797
      %937 = vmatprep.subr.bf16.mxu0 0
      %938 = vmatpush2.bf16.msra.mxu0 %v796
      %939 = vmatprep.subr.bf16.mxu0 0
      %940 = vmatpush2.bf16.msra.mxu0 %v795
      %941 = vmatprep.subr.bf16.mxu0 0
      %942 = vmatpush2.bf16.msra.mxu0 %v794
      %943 = vmatprep.subr.bf16.mxu0 0
      %944 = vmatpush2.bf16.msra.mxu0 %v793
      %945 = vmatprep.mubr.bf16.mxu0 %v509
      %946 = vmatmul.mubr.bf16.gmra.mxu0 %v495
      %v947 = vpop.f32.mrf.mxu0
      %v948 = vadd.f32 0.0, %v947
      %v949 = vpop.f32.mrf.mxu0
      %v950 = vpop.f32.mrf.mxu0
      %v951 = vpop.f32.mrf.mxu0
      %952 = vdwg.mxu0
      %953 = vmatprep.subr.bf16.mxu0 0
      %954 = vmatpush1.bf16.msra.mxu0 %v808
      %955 = vmatprep.subr.bf16.mxu0 0
      %956 = vmatpush1.bf16.msra.mxu0 %v807
      %957 = vmatprep.subr.bf16.mxu0 0
      %958 = vmatpush1.bf16.msra.mxu0 %v806
      %959 = vmatprep.subr.bf16.mxu0 0
      %960 = vmatpush1.bf16.msra.mxu0 %v805
      %961 = vmatprep.subr.bf16.mxu0 0
      %962 = vmatpush1.bf16.msra.mxu0 %v804
      %963 = vmatprep.subr.bf16.mxu0 0
      %964 = vmatpush1.bf16.msra.mxu0 %v803
      %965 = vmatprep.subr.bf16.mxu0 0
      %966 = vmatpush1.bf16.msra.mxu0 %v802
      %967 = vmatprep.subr.bf16.mxu0 0
      %968 = vmatpush1.bf16.msra.mxu0 %v801
      %969 = vmatprep.subr.bf16.mxu0 0
      %970 = vmatpush2.bf16.msra.mxu0 %v816
      %971 = vmatprep.subr.bf16.mxu0 0
      %972 = vmatpush2.bf16.msra.mxu0 %v815
      %973 = vmatprep.subr.bf16.mxu0 0
      %974 = vmatpush2.bf16.msra.mxu0 %v814
      %975 = vmatprep.subr.bf16.mxu0 0
      %976 = vmatpush2.bf16.msra.mxu0 %v813
      %977 = vmatprep.subr.bf16.mxu0 0
      %978 = vmatpush2.bf16.msra.mxu0 %v812
      %979 = vmatprep.subr.bf16.mxu0 0
      %980 = vmatpush2.bf16.msra.mxu0 %v811
      %981 = vmatprep.subr.bf16.mxu0 0
      %982 = vmatpush2.bf16.msra.mxu0 %v810
      %983 = vmatprep.subr.bf16.mxu0 0
      %984 = vmatpush2.bf16.msra.mxu0 %v809
      %985 = vmatprep.mubr.bf16.mxu0 %v519
      %986 = vmatmul.mubr.bf16.gmra.mxu0 %v517
      %v987 = vpop.f32.mrf.mxu0
      %v988 = vadd.f32 %v948, %v987
      %v989 = vpop.f32.mrf.mxu0
      %v990 = vpop.f32.mrf.mxu0
      %v991 = vpop.f32.mrf.mxu0
      %992 = vdwg.mxu0
      %993 = vmatprep.subr.bf16.mxu0 0
      %994 = vmatpush1.bf16.msra.mxu0 %v824
      %995 = vmatprep.subr.bf16.mxu0 0
      %996 = vmatpush1.bf16.msra.mxu0 %v823
      %997 = vmatprep.subr.bf16.mxu0 0
      %998 = vmatpush1.bf16.msra.mxu0 %v822
      %999 = vmatprep.subr.bf16.mxu0 0
      %1000 = vmatpush1.bf16.msra.mxu0 %v821
      %1001 = vmatprep.subr.bf16.mxu0 0
      %1002 = vmatpush1.bf16.msra.mxu0 %v820
      %1003 = vmatprep.subr.bf16.mxu0 0
      %1004 = vmatpush1.bf16.msra.mxu0 %v819
      %1005 = vmatprep.subr.bf16.mxu0 0
      %1006 = vmatpush1.bf16.msra.mxu0 %v818
      %1007 = vmatprep.subr.bf16.mxu0 0
      %1008 = vmatpush1.bf16.msra.mxu0 %v817
      %1009 = vmatprep.subr.bf16.mxu0 0
      %1010 = vmatpush2.bf16.msra.mxu0 %v832
      %1011 = vmatprep.subr.bf16.mxu0 0
      %1012 = vmatpush2.bf16.msra.mxu0 %v831
      %1013 = vmatprep.subr.bf16.mxu0 0
      %1014 = vmatpush2.bf16.msra.mxu0 %v830
      %1015 = vmatprep.subr.bf16.mxu0 0
      %1016 = vmatpush2.bf16.msra.mxu0 %v829
      %1017 = vmatprep.subr.bf16.mxu0 0
      %1018 = vmatpush2.bf16.msra.mxu0 %v828
      %1019 = vmatprep.subr.bf16.mxu0 0
      %1020 = vmatpush2.bf16.msra.mxu0 %v827
      %1021 = vmatprep.subr.bf16.mxu0 0
      %1022 = vmatpush2.bf16.msra.mxu0 %v826
      %1023 = vmatprep.subr.bf16.mxu0 0
      %1024 = vmatpush2.bf16.msra.mxu0 %v825
      %1025 = vmatprep.mubr.bf16.mxu0 %v516
      %1026 = vmatmul.mubr.bf16.gmra.mxu0 %v502
      %v1027 = vpop.f32.mrf.mxu0
      %v1028 = vadd.f32 %v988, %v1027
      %v1029 = vpop.f32.mrf.mxu0
      %v1030 = vpop.f32.mrf.mxu0
      %v1031 = vpop.f32.mrf.mxu0
      %1032 = vdwg.mxu0
      %1033 = vmatprep.subr.bf16.mxu0 0
      %1034 = vmatpush1.bf16.msra.mxu0 %v840
      %1035 = vmatprep.subr.bf16.mxu0 0
      %1036 = vmatpush1.bf16.msra.mxu0 %v839
      %1037 = vmatprep.subr.bf16.mxu0 0
      %1038 = vmatpush1.bf16.msra.mxu0 %v838
      %1039 = vmatprep.subr.bf16.mxu0 0
      %1040 = vmatpush1.bf16.msra.mxu0 %v837
      %1041 = vmatprep.subr.bf16.mxu0 0
      %1042 = vmatpush1.bf16.msra.mxu0 %v836
      %1043 = vmatprep.subr.bf16.mxu0 0
      %1044 = vmatpush1.bf16.msra.mxu0 %v835
      %1045 = vmatprep.subr.bf16.mxu0 0
      %1046 = vmatpush1.bf16.msra.mxu0 %v834
      %1047 = vmatprep.subr.bf16.mxu0 0
      %1048 = vmatpush1.bf16.msra.mxu0 %v833
      %1049 = vmatprep.subr.bf16.mxu0 0
      %1050 = vmatpush2.bf16.msra.mxu0 %v848
      %1051 = vmatprep.subr.bf16.mxu0 0
      %1052 = vmatpush2.bf16.msra.mxu0 %v847
      %1053 = vmatprep.subr.bf16.mxu0 0
      %1054 = vmatpush2.bf16.msra.mxu0 %v846
      %1055 = vmatprep.subr.bf16.mxu0 0
      %1056 = vmatpush2.bf16.msra.mxu0 %v845
      %1057 = vmatprep.subr.bf16.mxu0 0
      %1058 = vmatpush2.bf16.msra.mxu0 %v844
      %1059 = vmatprep.subr.bf16.mxu0 0
      %1060 = vmatpush2.bf16.msra.mxu0 %v843
      %1061 = vmatprep.subr.bf16.mxu0 0
      %1062 = vmatpush2.bf16.msra.mxu0 %v842
      %1063 = vmatprep.subr.bf16.mxu0 0
      %1064 = vmatpush2.bf16.msra.mxu0 %v841
      %1065 = vmatprep.mubr.bf16.mxu0 %v520
      %1066 = vmatmul.mubr.bf16.gmra.mxu0 %v518
      %v1067 = vpop.f32.mrf.mxu0
      %v1068 = vadd.f32 %v1028, %v1067
      %v1069 = vpop.f32.mrf.mxu0
      %v1070 = vpop.f32.mrf.mxu0
      %v1071 = vpop.f32.mrf.mxu0
      %1072 = vdwg.mxu0
      %v1073 = vld [vmem:[%s2] sm:$0x1]
      %v1075 = vlaneseq
      %v1076 = vshrl.u32 %v1075, 7
      %v1077 = vsub.s32 0, %v1076
      %v1078 = vrot.slane %v1073, %v1077
      %v1080 = vmul.f32 %v1068, %v1078
      %v1081 = vld [vmem:[%s3] sm:$0x1]
      %v1083 = vlaneseq
      %v1084 = vshrl.u32 %v1083, 7
      %v1085 = vsub.s32 0, %v1084
      %v1086 = vrot.slane %v1081, %v1085
      %v1088 = vadd.f32 %v1080, %v1086
      %vm1089 = vcmask 519168
      %1090 = vst.msk [vmem:[%s195] sm:$0xf] %vm1089, %v1088
      %p1091 = scmp.lt.s32.totalorder %s15, 1
      %s1092 = scalar_select %p1091, %s15, 1
      %s1093 = smul.addr %s1092, 4
      %s1094 = scalar_lea.vmem %s4, %s1093
      // Predicated region
      $region37: #{_lambda_.19} parent=35 // pred_check
        %p1095 = pneg %p122
      $region38: #{_lambda_.19} parent=35 // pred_check_branch
        %1097 = sbr.rel (%p1095) target = $region40
      $region39: #{_lambda_.19} parent=35 // pred_region
        _
      $region40: #{_lambda_.19} parent=35 // pred_fallthru
        _
    $region36: #{_lambda_.19} parent=5 // pred_fallthru
      _
    %p1098 = scmp.le.s32.totalorder 2, %s10
    // Predicated region
    $region41: #{_lambda_.19} parent=5 // pred_check
      %p1099 = pneg %p1098
    $region42: #{_lambda_.19} parent=5 // pred_check_branch
      %1101 = sbr.rel (%p1099) target = $region44
    $region43: #{_lambda_.19} parent=5 // pred_region
      %s1102 = ssub.s32 %s10, 2
      // Predicated region
      $region45: #{_lambda_.19} parent=43 // pred_check
        %p1103 = pneg %p128
      $region46: #{_lambda_.19} parent=43 // pred_check_branch
        %1105 = sbr.rel (%p1103) target = $region48
      $region47: #{_lambda_.19} parent=43 // pred_region
        %p1106 = scmp.lt.s32.totalorder %s16, 1
        %s1107 = scalar_select %p1106, %s16, 1
        %s1108 = smul.addr %s1107, 4
        %s1109 = scalar_lea.vmem %s4, %s1108
      $region48: #{_lambda_.19} parent=43 // pred_fallthru
        _
    $region44: #{_lambda_.19} parent=5 // pred_fallthru
      _
  $region6: #{_lambda_.19} parent=0 // loop_footer
    %s14 = sadd.s32 1, %s10
  $region7: #{_lambda_.19} parent=0 // loop_footer_branch
    %9 = sbr.rel target = $region3
  $region8: #{_lambda_.19} parent=0 // loop_exit
    _

</llo_original>
